<compile_context>
chip_gen: v7x
topology: tpu7x:2x2x1
jax: 0.10.0
libtpu: 0.0.40
codegen_flags: <defaults>
</compile_context>

<pallas_src>
import jax
import jax.numpy as jnp
from jax.experimental import pallas as pl
from jax.experimental.pallas import tpu as pltpu


# Logical layer sizes from MyModel.__init__ (in_features, out_features).
_LAYER_DIMS = [
    (11 * 40, 1024),
    (1024, 1024),
    (1024, 1024),
    (1024, 512),
    (512, 256),
    (256, 128),
    (128, 64),
    (64, 48),
]
# Padded (K, N) as seen by the kernel: layer-1 K padded 440->512, last two
# layers padded to lane-dense 128-wide shapes (all padding is exact zeros).
_PADDED_DIMS = [
    (512, 1024),
    (1024, 1024),
    (1024, 1024),
    (1024, 512),
    (512, 256),
    (256, 128),
    (128, 128),
    (128, 128),
]
_K0 = 11 * 40           # 440
_K0_PAD = 512           # layer-1 contraction dim padded to a multiple of 128
_N_OUT = 48             # logical output width
_N_OUT_PAD = 128        # lane-dense padded output width


def _mlp_kernel(*refs):
    """refs = (x_ref, w1, b1, ..., w8, b8, o_ref). Everything lives in VMEM."""
    x_ref = refs[0]
    o_ref = refs[-1]
    wb = refs[1:-1]
    n_layers = len(wb) // 2

    h = x_ref[...]                              # bf16 (tm, 512)
    for i in range(n_layers):
        w = wb[2 * i][...]                      # bf16 (K, N)
        b = wb[2 * i + 1][...]                  # f32  (1, N)
        # MXU matmul with f32 accumulation; bias (+ReLU) on the f32 value (VPU).
        y = jnp.dot(h, w, preferred_element_type=jnp.float32) + b
        if i != n_layers - 1:
            h = jnp.maximum(y, 0.0).astype(jnp.bfloat16)   # bf16 inter-layer act
        else:
            h = y
    # Single lane-dense HBM store per tile: the final (tm, 128) f32 result.
    o_ref[...] = h.astype(o_ref.dtype)


def _resident_spec(shape):
    """Grid-invariant (weight/bias) block: DMA'd once, kept resident in VMEM.
    Single-buffered when the installed JAX supports pipeline_mode."""
    idx = lambda i: (0,) * len(shape)
    if hasattr(pl, "Buffered"):
        try:
            return pl.BlockSpec(shape, idx, pipeline_mode=pl.Buffered(1))
        except TypeError:
            pass
    return pl.BlockSpec(shape, idx)


def _pick_batch_tiling(batch):
    """Returns (B_pad, tm). Guarantees >= 2 tiles whenever batch > 256 so the
    'parallel' grid axis can be sharded across v7x's two TensorCores."""
    if batch <= 256:
        b_pad = max(8, ((batch + 7) // 8) * 8)
        return b_pad, b_pad                       # single tile
    tm = 512 if batch >= 1024 else 256
    b_pad = ((batch + tm - 1) // tm) * tm         # >= 2 tiles by construction
    return b_pad, tm


def fused_mlp(x_padded, params, tm):
    """x_padded: (B_pad, 512) bf16, B_pad a multiple of tm.
    params: list of (w_bf16 (K, N), b_f32 (1, N)) padded per _PADDED_DIMS.
    Returns (B_pad, 128) f32 (columns >= 48 are exact zeros)."""
    B, K = x_padded.shape
    assert K == _K0_PAD and B % tm == 0

    flat_args = []
    in_specs = [pl.BlockSpec((tm, K), lambda i: (i, 0))]
    for w, b in params:
        flat_args.append(w)
        flat_args.append(b)
        in_specs.append(_resident_spec(w.shape))
        in_specs.append(_resident_spec(b.shape))

    weight_bytes = sum(w.size * w.dtype.itemsize + b.size * b.dtype.itemsize
                       for w, b in params)
    flops = 2 * B * sum(k * n for k, n in _PADDED_DIMS)
    bytes_accessed = (weight_bytes
                      + B * K * x_padded.dtype.itemsize   # bf16 input stream
                      + B * _N_OUT_PAD * 4)               # f32 output stream

    return pl.pallas_call(
        _mlp_kernel,
        out_shape=jax.ShapeDtypeStruct((B, _N_OUT_PAD), jnp.float32),
        grid=(B // tm,),
        in_specs=in_specs,
        out_specs=pl.BlockSpec((tm, _N_OUT_PAD), lambda i: (i, 0)),
        compiler_params=pltpu.CompilerParams(
            # Batch tiles are independent -> megacore-splittable on v7x.
            dimension_semantics=("parallel",),
            # ~6.4 MiB resident bf16 weights + pipelined input/output tiles +
            # f32 activation temporaries; within v7x's 64 MiB physical VMEM.
            vmem_limit_bytes=48 << 20,
        ),
        cost_estimate=pl.CostEstimate(
            flops=flops, transcendentals=0, bytes_accessed=bytes_accessed),
    )(x_padded, *flat_args)


def init_params(key):
    """nn.Linear-style init U(-1/sqrt(in), 1/sqrt(in)).
    Returns (kernel_params, ref_params):
      kernel_params: (w bf16 (K_pad, N_pad), b f32 (1, N_pad)) with exact zero
                     padding (440->512 K rows; last two layers lane-padded).
      ref_params:    unpadded f32 (w (K, N), b (N,)) for a reference forward."""
    kernel_params, ref_params = [], []
    for li, (fan_in, fan_out) in enumerate(_LAYER_DIMS):
        key, kw, kb = jax.random.split(key, 3)
        bound = fan_in ** -0.5
        w = jax.random.uniform(kw, (fan_in, fan_out), jnp.float32, -bound, bound)
        b = jax.random.uniform(kb, (fan_out,), jnp.float32, -bound, bound)
        ref_params.append((w, b))
        k_pad, n_pad = _PADDED_DIMS[li]
        w_p = jnp.pad(w, ((0, k_pad - fan_in), (0, n_pad - fan_out)))
        b_p = jnp.pad(b, (0, n_pad - fan_out)).reshape(1, n_pad)
        kernel_params.append((w_p.astype(jnp.bfloat16), b_p))
    return kernel_params, ref_params


@jax.jit
def my_model_forward(x, params):
    # torch.reshape(x, (-1, 11*40)) + bf16 cast + zero padding in plain JAX.
    h = x.reshape(-1, _K0)
    B = h.shape[0]
    b_pad, tm = _pick_batch_tiling(B)
    h = jnp.pad(h.astype(jnp.bfloat16), ((0, b_pad - B), (0, _K0_PAD - _K0)))
    out = fused_mlp(h, params, tm)
    return out[:B, :_N_OUT]


if __name__ == "__main__":
    key = jax.random.PRNGKey(0)
    key, k_x, k_p = jax.random.split(key, 3)

    B = 8
    x = jax.random.normal(k_x, (B, 11, 40), dtype=jnp.float32)
    kernel_params, ref_params = init_params(k_p)

    out = jax.block_until_ready(my_model_forward(x, kernel_params))

    assert out.shape == (B, _N_OUT), out.shape
    assert out.dtype == jnp.float32, out.dtype

    # Reference 1: identical mixed precision (bf16 weights + activations,
    # f32 accumulation) using the exact padded kernel parameters.
    h = jnp.pad(x.reshape(-1, _K0).astype(jnp.bfloat16),
                ((0, 0), (0, _K0_PAD - _K0)))
    for idx, (w, b) in enumerate(kernel_params):
        y = jnp.dot(h, w, preferred_element_type=jnp.float32) + b
        h = jnp.maximum(y, 0.0).astype(jnp.bfloat16) if idx != len(kernel_params) - 1 else y
    err_mixed = float(jnp.max(jnp.abs(out - h[:, :_N_OUT])))
    assert err_mixed < 2e-2, f"mixed-precision max abs err {err_mixed}"

    # Reference 2: full-f32 forward (the actual PyTorch eval-mode semantics),
    # loose tolerance to cover the bf16 weight/activation storage.
    hf = x.reshape(-1, _K0)
    for idx, (w, b) in enumerate(ref_params):
        hf = hf @ w + b
        if idx != len(ref_params) - 1:
            hf = jnp.maximum(hf, 0.0)
    err_f32 = float(jnp.max(jnp.abs(out - hf)))
    assert err_f32 < 1.5e-1, f"f32-reference max abs err {err_f32}"

    print("KERNEL_OK")
</pallas_src>

<mosaic_0001>
module attributes {stable_mosaic.version = 11 : i64} {
  func.func @_mlp_kernel(%arg0: i32, %arg1: memref<8x512xbf16, #tpu.memory_space<vmem>>, %arg2: memref<512x1024xbf16, #tpu.memory_space<vmem>>, %arg3: memref<1x1024xf32, #tpu.memory_space<vmem>>, %arg4: memref<1024x1024xbf16, #tpu.memory_space<vmem>>, %arg5: memref<1x1024xf32, #tpu.memory_space<vmem>>, %arg6: memref<1024x1024xbf16, #tpu.memory_space<vmem>>, %arg7: memref<1x1024xf32, #tpu.memory_space<vmem>>, %arg8: memref<1024x512xbf16, #tpu.memory_space<vmem>>, %arg9: memref<1x512xf32, #tpu.memory_space<vmem>>, %arg10: memref<512x256xbf16, #tpu.memory_space<vmem>>, %arg11: memref<1x256xf32, #tpu.memory_space<vmem>>, %arg12: memref<256x128xbf16, #tpu.memory_space<vmem>>, %arg13: memref<1x128xf32, #tpu.memory_space<vmem>>, %arg14: memref<128x128xbf16, #tpu.memory_space<vmem>>, %arg15: memref<1x128xf32, #tpu.memory_space<vmem>>, %arg16: memref<128x128xbf16, #tpu.memory_space<vmem>>, %arg17: memref<1x128xf32, #tpu.memory_space<vmem>>, %arg18: memref<8x128xf32, #tpu.memory_space<vmem>>) attributes {dimension_semantics = [#tpu.dimension_semantics<parallel>], iteration_bounds = array<i64: 1>, scalar_prefetch = 0 : i64, scratch_operands = 0 : i64, tpu.core_type = #tpu.core_type<tc>, window_params = [{transform_indices = @transform_0, window_bounds = array<i64: 8, 512>}, {pipeline_mode = #tpu.pipeline_mode<synchronous>, transform_indices = @transform_1, window_bounds = array<i64: 512, 1024>}, {pipeline_mode = #tpu.pipeline_mode<synchronous>, transform_indices = @transform_2, window_bounds = array<i64: 1, 1024>}, {pipeline_mode = #tpu.pipeline_mode<synchronous>, transform_indices = @transform_3, window_bounds = array<i64: 1024, 1024>}, {pipeline_mode = #tpu.pipeline_mode<synchronous>, transform_indices = @transform_4, window_bounds = array<i64: 1, 1024>}, {pipeline_mode = #tpu.pipeline_mode<synchronous>, transform_indices = @transform_5, window_bounds = array<i64: 1024, 1024>}, {pipeline_mode = #tpu.pipeline_mode<synchronous>, transform_indices = @transform_6, window_bounds = array<i64: 1, 1024>}, {pipeline_mode = #tpu.pipeline_mode<synchronous>, transform_indices = @transform_7, window_bounds = array<i64: 1024, 512>}, {pipeline_mode = #tpu.pipeline_mode<synchronous>, transform_indices = @transform_8, window_bounds = array<i64: 1, 512>}, {pipeline_mode = #tpu.pipeline_mode<synchronous>, transform_indices = @transform_9, window_bounds = array<i64: 512, 256>}, {pipeline_mode = #tpu.pipeline_mode<synchronous>, transform_indices = @transform_10, window_bounds = array<i64: 1, 256>}, {pipeline_mode = #tpu.pipeline_mode<synchronous>, transform_indices = @transform_11, window_bounds = array<i64: 256, 128>}, {pipeline_mode = #tpu.pipeline_mode<synchronous>, transform_indices = @transform_12, window_bounds = array<i64: 1, 128>}, {pipeline_mode = #tpu.pipeline_mode<synchronous>, transform_indices = @transform_13, window_bounds = array<i64: 128, 128>}, {pipeline_mode = #tpu.pipeline_mode<synchronous>, transform_indices = @transform_14, window_bounds = array<i64: 1, 128>}, {pipeline_mode = #tpu.pipeline_mode<synchronous>, transform_indices = @transform_15, window_bounds = array<i64: 128, 128>}, {pipeline_mode = #tpu.pipeline_mode<synchronous>, transform_indices = @transform_16, window_bounds = array<i64: 1, 128>}, {transform_indices = @transform_17, window_bounds = array<i64: 8, 128>}]} {
    %c0 = arith.constant 0 : index
    %c0_0 = arith.constant 0 : index
    %0 = vector.load %arg1[%c0, %c0_0] : memref<8x512xbf16, #tpu.memory_space<vmem>>, vector<8x512xbf16>
    %c0_1 = arith.constant 0 : index
    %c0_2 = arith.constant 0 : index
    %1 = vector.load %arg2[%c0_1, %c0_2] : memref<512x1024xbf16, #tpu.memory_space<vmem>>, vector<512x1024xbf16>
    %c0_3 = arith.constant 0 : index
    %c0_4 = arith.constant 0 : index
    %2 = vector.load %arg3[%c0_3, %c0_4] : memref<1x1024xf32, #tpu.memory_space<vmem>>, vector<1x1024xf32>
    %cst = arith.constant dense<0.000000e+00> : vector<8x1024xf32>
    %3 = tpu.matmul %0, %1, %cst {dimension_numbers = #tpu.dot_dimension_numbers<[1], [0], [0], [1], [0, 0, 1, 1], [], []>} : vector<8x512xbf16>, vector<512x1024xbf16>, vector<8x1024xf32> -> vector<8x1024xf32>
    %4 = vector.broadcast %2 : vector<1x1024xf32> to vector<8x1024xf32>
    %5 = arith.addf %3, %4 : vector<8x1024xf32>
    %cst_5 = arith.constant 0.000000e+00 : f32
    %6 = vector.broadcast %cst_5 : f32 to vector<8x1024xf32>
    %7 = arith.maximumf %5, %6 : vector<8x1024xf32>
    %8 = arith.truncf %7 : vector<8x1024xf32> to vector<8x1024xbf16>
    %c0_6 = arith.constant 0 : index
    %c0_7 = arith.constant 0 : index
    %9 = vector.load %arg4[%c0_6, %c0_7] : memref<1024x1024xbf16, #tpu.memory_space<vmem>>, vector<1024x1024xbf16>
    %c0_8 = arith.constant 0 : index
    %c0_9 = arith.constant 0 : index
    %10 = vector.load %arg5[%c0_8, %c0_9] : memref<1x1024xf32, #tpu.memory_space<vmem>>, vector<1x1024xf32>
    %cst_10 = arith.constant dense<0.000000e+00> : vector<8x1024xf32>
    %11 = tpu.matmul %8, %9, %cst_10 {dimension_numbers = #tpu.dot_dimension_numbers<[1], [0], [0], [1], [0, 0, 1, 1], [], []>} : vector<8x1024xbf16>, vector<1024x1024xbf16>, vector<8x1024xf32> -> vector<8x1024xf32>
    %12 = vector.broadcast %10 : vector<1x1024xf32> to vector<8x1024xf32>
    %13 = arith.addf %11, %12 : vector<8x1024xf32>
    %cst_11 = arith.constant 0.000000e+00 : f32
    %14 = vector.broadcast %cst_11 : f32 to vector<8x1024xf32>
    %15 = arith.maximumf %13, %14 : vector<8x1024xf32>
    %16 = arith.truncf %15 : vector<8x1024xf32> to vector<8x1024xbf16>
    %c0_12 = arith.constant 0 : index
    %c0_13 = arith.constant 0 : index
    %17 = vector.load %arg6[%c0_12, %c0_13] : memref<1024x1024xbf16, #tpu.memory_space<vmem>>, vector<1024x1024xbf16>
    %c0_14 = arith.constant 0 : index
    %c0_15 = arith.constant 0 : index
    %18 = vector.load %arg7[%c0_14, %c0_15] : memref<1x1024xf32, #tpu.memory_space<vmem>>, vector<1x1024xf32>
    %cst_16 = arith.constant dense<0.000000e+00> : vector<8x1024xf32>
    %19 = tpu.matmul %16, %17, %cst_16 {dimension_numbers = #tpu.dot_dimension_numbers<[1], [0], [0], [1], [0, 0, 1, 1], [], []>} : vector<8x1024xbf16>, vector<1024x1024xbf16>, vector<8x1024xf32> -> vector<8x1024xf32>
    %20 = vector.broadcast %18 : vector<1x1024xf32> to vector<8x1024xf32>
    %21 = arith.addf %19, %20 : vector<8x1024xf32>
    %cst_17 = arith.constant 0.000000e+00 : f32
    %22 = vector.broadcast %cst_17 : f32 to vector<8x1024xf32>
    %23 = arith.maximumf %21, %22 : vector<8x1024xf32>
    %24 = arith.truncf %23 : vector<8x1024xf32> to vector<8x1024xbf16>
    %c0_18 = arith.constant 0 : index
    %c0_19 = arith.constant 0 : index
    %25 = vector.load %arg8[%c0_18, %c0_19] : memref<1024x512xbf16, #tpu.memory_space<vmem>>, vector<1024x512xbf16>
    %c0_20 = arith.constant 0 : index
    %c0_21 = arith.constant 0 : index
    %26 = vector.load %arg9[%c0_20, %c0_21] : memref<1x512xf32, #tpu.memory_space<vmem>>, vector<1x512xf32>
    %cst_22 = arith.constant dense<0.000000e+00> : vector<8x512xf32>
    %27 = tpu.matmul %24, %25, %cst_22 {dimension_numbers = #tpu.dot_dimension_numbers<[1], [0], [0], [1], [0, 0, 1, 1], [], []>} : vector<8x1024xbf16>, vector<1024x512xbf16>, vector<8x512xf32> -> vector<8x512xf32>
    %28 = vector.broadcast %26 : vector<1x512xf32> to vector<8x512xf32>
    %29 = arith.addf %27, %28 : vector<8x512xf32>
    %cst_23 = arith.constant 0.000000e+00 : f32
    %30 = vector.broadcast %cst_23 : f32 to vector<8x512xf32>
    %31 = arith.maximumf %29, %30 : vector<8x512xf32>
    %32 = arith.truncf %31 : vector<8x512xf32> to vector<8x512xbf16>
    %c0_24 = arith.constant 0 : index
    %c0_25 = arith.constant 0 : index
    %33 = vector.load %arg10[%c0_24, %c0_25] : memref<512x256xbf16, #tpu.memory_space<vmem>>, vector<512x256xbf16>
    %c0_26 = arith.constant 0 : index
    %c0_27 = arith.constant 0 : index
    %34 = vector.load %arg11[%c0_26, %c0_27] : memref<1x256xf32, #tpu.memory_space<vmem>>, vector<1x256xf32>
    %cst_28 = arith.constant dense<0.000000e+00> : vector<8x256xf32>
    %35 = tpu.matmul %32, %33, %cst_28 {dimension_numbers = #tpu.dot_dimension_numbers<[1], [0], [0], [1], [0, 0, 1, 1], [], []>} : vector<8x512xbf16>, vector<512x256xbf16>, vector<8x256xf32> -> vector<8x256xf32>
    %36 = vector.broadcast %34 : vector<1x256xf32> to vector<8x256xf32>
    %37 = arith.addf %35, %36 : vector<8x256xf32>
    %cst_29 = arith.constant 0.000000e+00 : f32
    %38 = vector.broadcast %cst_29 : f32 to vector<8x256xf32>
    %39 = arith.maximumf %37, %38 : vector<8x256xf32>
    %40 = arith.truncf %39 : vector<8x256xf32> to vector<8x256xbf16>
    %c0_30 = arith.constant 0 : index
    %c0_31 = arith.constant 0 : index
    %41 = vector.load %arg12[%c0_30, %c0_31] : memref<256x128xbf16, #tpu.memory_space<vmem>>, vector<256x128xbf16>
    %c0_32 = arith.constant 0 : index
    %c0_33 = arith.constant 0 : index
    %42 = vector.load %arg13[%c0_32, %c0_33] : memref<1x128xf32, #tpu.memory_space<vmem>>, vector<1x128xf32>
    %cst_34 = arith.constant dense<0.000000e+00> : vector<8x128xf32>
    %43 = tpu.matmul %40, %41, %cst_34 {dimension_numbers = #tpu.dot_dimension_numbers<[1], [0], [0], [1], [0, 0, 1, 1], [], []>} : vector<8x256xbf16>, vector<256x128xbf16>, vector<8x128xf32> -> vector<8x128xf32>
    %44 = vector.broadcast %42 : vector<1x128xf32> to vector<8x128xf32>
    %45 = arith.addf %43, %44 : vector<8x128xf32>
    %cst_35 = arith.constant 0.000000e+00 : f32
    %46 = vector.broadcast %cst_35 : f32 to vector<8x128xf32>
    %47 = arith.maximumf %45, %46 : vector<8x128xf32>
    %48 = arith.truncf %47 : vector<8x128xf32> to vector<8x128xbf16>
    %c0_36 = arith.constant 0 : index
    %c0_37 = arith.constant 0 : index
    %49 = vector.load %arg14[%c0_36, %c0_37] : memref<128x128xbf16, #tpu.memory_space<vmem>>, vector<128x128xbf16>
    %c0_38 = arith.constant 0 : index
    %c0_39 = arith.constant 0 : index
    %50 = vector.load %arg15[%c0_38, %c0_39] : memref<1x128xf32, #tpu.memory_space<vmem>>, vector<1x128xf32>
    %cst_40 = arith.constant dense<0.000000e+00> : vector<8x128xf32>
    %51 = tpu.matmul %48, %49, %cst_40 {dimension_numbers = #tpu.dot_dimension_numbers<[1], [0], [0], [1], [0, 0, 1, 1], [], []>} : vector<8x128xbf16>, vector<128x128xbf16>, vector<8x128xf32> -> vector<8x128xf32>
    %52 = vector.broadcast %50 : vector<1x128xf32> to vector<8x128xf32>
    %53 = arith.addf %51, %52 : vector<8x128xf32>
    %cst_41 = arith.constant 0.000000e+00 : f32
    %54 = vector.broadcast %cst_41 : f32 to vector<8x128xf32>
    %55 = arith.maximumf %53, %54 : vector<8x128xf32>
    %56 = arith.truncf %55 : vector<8x128xf32> to vector<8x128xbf16>
    %c0_42 = arith.constant 0 : index
    %c0_43 = arith.constant 0 : index
    %57 = vector.load %arg16[%c0_42, %c0_43] : memref<128x128xbf16, #tpu.memory_space<vmem>>, vector<128x128xbf16>
    %c0_44 = arith.constant 0 : index
    %c0_45 = arith.constant 0 : index
    %58 = vector.load %arg17[%c0_44, %c0_45] : memref<1x128xf32, #tpu.memory_space<vmem>>, vector<1x128xf32>
    %cst_46 = arith.constant dense<0.000000e+00> : vector<8x128xf32>
    %59 = tpu.matmul %56, %57, %cst_46 {dimension_numbers = #tpu.dot_dimension_numbers<[1], [0], [0], [1], [0, 0, 1, 1], [], []>} : vector<8x128xbf16>, vector<128x128xbf16>, vector<8x128xf32> -> vector<8x128xf32>
    %60 = vector.broadcast %58 : vector<1x128xf32> to vector<8x128xf32>
    %61 = arith.addf %59, %60 : vector<8x128xf32>
    %c0_47 = arith.constant 0 : index
    %c0_48 = arith.constant 0 : index
    %62 = vector.load %arg18[%c0_47, %c0_48] : memref<8x128xf32, #tpu.memory_space<vmem>>, vector<8x128xf32>
    tpu.vector_store %arg18[%c0_47, %c0_48], %61 {strides = array<i32>} : memref<8x128xf32, #tpu.memory_space<vmem>>, vector<8x128xf32>,
    return
  }
  func.func @transform_0(%arg0: i32) -> (i32, i32) {
    %c0_i32 = arith.constant 0 : i32
    %c0_i32_0 = arith.constant 0 : i32
    return %arg0, %c0_i32 : i32, i32
  }
  func.func @transform_1(%arg0: i32) -> (i32, i32) {
    %c0_i32 = arith.constant 0 : i32
    %c0_i32_0 = arith.constant 0 : i32
    %c0_i32_1 = arith.constant 0 : i32
    return %c0_i32, %c0_i32_0 : i32, i32
  }
  func.func @transform_2(%arg0: i32) -> (i32, i32) {
    %c0_i32 = arith.constant 0 : i32
    %c0_i32_0 = arith.constant 0 : i32
    %c0_i32_1 = arith.constant 0 : i32
    return %c0_i32, %c0_i32_0 : i32, i32
  }
  func.func @transform_3(%arg0: i32) -> (i32, i32) {
    %c0_i32 = arith.constant 0 : i32
    %c0_i32_0 = arith.constant 0 : i32
    %c0_i32_1 = arith.constant 0 : i32
    return %c0_i32, %c0_i32_0 : i32, i32
  }
  func.func @transform_4(%arg0: i32) -> (i32, i32) {
    %c0_i32 = arith.constant 0 : i32
    %c0_i32_0 = arith.constant 0 : i32
    %c0_i32_1 = arith.constant 0 : i32
    return %c0_i32, %c0_i32_0 : i32, i32
  }
  func.func @transform_5(%arg0: i32) -> (i32, i32) {
    %c0_i32 = arith.constant 0 : i32
    %c0_i32_0 = arith.constant 0 : i32
    %c0_i32_1 = arith.constant 0 : i32
    return %c0_i32, %c0_i32_0 : i32, i32
  }
  func.func @transform_6(%arg0: i32) -> (i32, i32) {
    %c0_i32 = arith.constant 0 : i32
    %c0_i32_0 = arith.constant 0 : i32
    %c0_i32_1 = arith.constant 0 : i32
    return %c0_i32, %c0_i32_0 : i32, i32
  }
  func.func @transform_7(%arg0: i32) -> (i32, i32) {
    %c0_i32 = arith.constant 0 : i32
    %c0_i32_0 = arith.constant 0 : i32
    %c0_i32_1 = arith.constant 0 : i32
    return %c0_i32, %c0_i32_0 : i32, i32
  }
  func.func @transform_8(%arg0: i32) -> (i32, i32) {
    %c0_i32 = arith.constant 0 : i32
    %c0_i32_0 = arith.constant 0 : i32
    %c0_i32_1 = arith.constant 0 : i32
    return %c0_i32, %c0_i32_0 : i32, i32
  }
  func.func @transform_9(%arg0: i32) -> (i32, i32) {
    %c0_i32 = arith.constant 0 : i32
    %c0_i32_0 = arith.constant 0 : i32
    %c0_i32_1 = arith.constant 0 : i32
    return %c0_i32, %c0_i32_0 : i32, i32
  }
  func.func @transform_10(%arg0: i32) -> (i32, i32) {
    %c0_i32 = arith.constant 0 : i32
    %c0_i32_0 = arith.constant 0 : i32
    %c0_i32_1 = arith.constant 0 : i32
    return %c0_i32, %c0_i32_0 : i32, i32
  }
  func.func @transform_11(%arg0: i32) -> (i32, i32) {
    %c0_i32 = arith.constant 0 : i32
    %c0_i32_0 = arith.constant 0 : i32
    %c0_i32_1 = arith.constant 0 : i32
    return %c0_i32, %c0_i32_0 : i32, i32
  }
  func.func @transform_12(%arg0: i32) -> (i32, i32) {
    %c0_i32 = arith.constant 0 : i32
    %c0_i32_0 = arith.constant 0 : i32
    %c0_i32_1 = arith.constant 0 : i32
    return %c0_i32, %c0_i32_0 : i32, i32
  }
  func.func @transform_13(%arg0: i32) -> (i32, i32) {
    %c0_i32 = arith.constant 0 : i32
    %c0_i32_0 = arith.constant 0 : i32
    %c0_i32_1 = arith.constant 0 : i32
    return %c0_i32, %c0_i32_0 : i32, i32
  }
  func.func @transform_14(%arg0: i32) -> (i32, i32) {
    %c0_i32 = arith.constant 0 : i32
    %c0_i32_0 = arith.constant 0 : i32
    %c0_i32_1 = arith.constant 0 : i32
    return %c0_i32, %c0_i32_0 : i32, i32
  }
  func.func @transform_15(%arg0: i32) -> (i32, i32) {
    %c0_i32 = arith.constant 0 : i32
    %c0_i32_0 = arith.constant 0 : i32
    %c0_i32_1 = arith.constant 0 : i32
    return %c0_i32, %c0_i32_0 : i32, i32
  }
  func.func @transform_16(%arg0: i32) -> (i32, i32) {
    %c0_i32 = arith.constant 0 : i32
    %c0_i32_0 = arith.constant 0 : i32
    %c0_i32_1 = arith.constant 0 : i32
    return %c0_i32, %c0_i32_0 : i32, i32
  }
  func.func @transform_17(%arg0: i32) -> (i32, i32) {
    %c0_i32 = arith.constant 0 : i32
    %c0_i32_0 = arith.constant 0 : i32
    return %arg0, %c0_i32 : i32, i32
  }
}

</mosaic_0001>

<llo_original>
// kernel: my_model_forward.1
$region0: #{my_model_forward.1}
  #allocation0 [shape = 'u32[]', space=smem, size = 0x4, offset = 0x4, fixed_abs, tag = 'smem constant byte address 0x4 - core index']
  #allocation1 [shape = 'u32[144,128]{1,0:T(1,128)}', space=vmem, size = 0x12000, scoped, tag = 'internal scratch']
  %s0 = inlined_call_operand.vmem [shape: bf16[8,512], index: 0, kind: input, shape index: {}]
  %s1 = inlined_call_operand.hbm [shape: bf16[512,1024], index: 1, kind: input, shape index: {}]
  %s2 = inlined_call_operand.hbm [shape: f32[1,1024], index: 2, kind: input, shape index: {}]
  %s3 = inlined_call_operand.hbm [shape: bf16[1024,1024], index: 3, kind: input, shape index: {}]
  %s4 = inlined_call_operand.hbm [shape: f32[1,1024], index: 4, kind: input, shape index: {}]
  %s5 = inlined_call_operand.hbm [shape: bf16[1024,1024], index: 5, kind: input, shape index: {}]
  %s6 = inlined_call_operand.hbm [shape: f32[1,1024], index: 6, kind: input, shape index: {}]
  %s7 = inlined_call_operand.hbm [shape: bf16[1024,512], index: 7, kind: input, shape index: {}]
  %s8 = inlined_call_operand.hbm [shape: f32[1,512], index: 8, kind: input, shape index: {}]
  %s9 = inlined_call_operand.hbm [shape: bf16[512,256], index: 9, kind: input, shape index: {}]
  %s10 = inlined_call_operand.hbm [shape: f32[1,256], index: 10, kind: input, shape index: {}]
  %s11 = inlined_call_operand.hbm [shape: bf16[256,128], index: 11, kind: input, shape index: {}]
  %s12 = inlined_call_operand.hbm [shape: f32[1,128], index: 12, kind: input, shape index: {}]
  %s13 = inlined_call_operand.hbm [shape: bf16[128,128], index: 13, kind: input, shape index: {}]
  %s14 = inlined_call_operand.hbm [shape: f32[1,128], index: 14, kind: input, shape index: {}]
  %s15 = inlined_call_operand.hbm [shape: bf16[128,128], index: 15, kind: input, shape index: {}]
  %s16 = inlined_call_operand.hbm [shape: f32[1,128], index: 16, kind: input, shape index: {}]
  %s17 = inlined_call_operand.hbm [shape: f32[8,128], index: 17, kind: output, shape index: {}]
  %s18 = sld [smem:[#allocation0]]
  $region142: #{my_model_forward.1} parent=0
    _
  %s20 = ssub.s32 1, %s18
  %s21 = scalar_select 0, %s20, %s18
  $region1: #{my_model_forward.1} parent=0
    #allocation2 [shape = 'u8[1048576]{0}', space=vmem, size = 0x100000, scoped, tag = 'input window, operand 1, single buffered']
    #allocation3 [shape = 's32[1]{0}', space=sflag, size = 0x4, scoped, tag = 'scoped memory for my_model_forward.1']
    #allocation4 [shape = 's32[1]{0}', space=sflag, size = 0x4, scoped, tag = 'scoped memory for my_model_forward.1']
    #allocation5 [shape = 'u8[4096]{0}', space=vmem, size = 0x1000, scoped, tag = 'input window, operand 2, single buffered']
    #allocation6 [shape = 's32[1]{0}', space=sflag, size = 0x4, scoped, tag = 'scoped memory for my_model_forward.1']
    #allocation7 [shape = 'u8[2097152]{0}', space=vmem, size = 0x200000, scoped, tag = 'input window, operand 3, single buffered']
    #allocation8 [shape = 'u8[4096]{0}', space=vmem, size = 0x1000, scoped, tag = 'input window, operand 4, single buffered']
    #allocation9 [shape = 's32[1]{0}', space=sflag, size = 0x4, scoped, tag = 'scoped memory for my_model_forward.1']
    #allocation10 [shape = 'u8[2097152]{0}', space=vmem, size = 0x200000, scoped, tag = 'input window, operand 5, single buffered']
    #allocation11 [shape = 'u8[4096]{0}', space=vmem, size = 0x1000, scoped, tag = 'input window, operand 6, single buffered']
    #allocation12 [shape = 's32[1]{0}', space=sflag, size = 0x4, scoped, tag = 'scoped memory for my_model_forward.1']
    #allocation13 [shape = 'u8[1048576]{0}', space=vmem, size = 0x100000, scoped, tag = 'input window, operand 7, single buffered']
    #allocation14 [shape = 'u8[2048]{0}', space=vmem, size = 0x800, scoped, tag = 'input window, operand 8, single buffered']
    #allocation15 [shape = 's32[1]{0}', space=sflag, size = 0x4, scoped, tag = 'scoped memory for my_model_forward.1']
    #allocation16 [shape = 'u8[262144]{0}', space=vmem, size = 0x40000, scoped, tag = 'input window, operand 9, single buffered']
    #allocation17 [shape = 'u8[1024]{0}', space=vmem, size = 0x400, scoped, tag = 'input window, operand 10, single buffered']
    #allocation18 [shape = 's32[1]{0}', space=sflag, size = 0x4, scoped, tag = 'scoped memory for my_model_forward.1']
    #allocation19 [shape = 'u8[65536]{0}', space=vmem, size = 0x10000, scoped, tag = 'input window, operand 11, single buffered']
    #allocation20 [shape = 'u8[512]{0}', space=vmem, size = 0x400, scoped, tag = 'input window, operand 12, single buffered']
    #allocation21 [shape = 's32[1]{0}', space=sflag, size = 0x4, scoped, tag = 'scoped memory for my_model_forward.1']
    #allocation22 [shape = 'u8[32768]{0}', space=vmem, size = 0x8000, scoped, tag = 'input window, operand 13, single buffered']
    #allocation23 [shape = 'u8[512]{0}', space=vmem, size = 0x400, scoped, tag = 'input window, operand 14, single buffered']
    #allocation24 [shape = 's32[1]{0}', space=sflag, size = 0x4, scoped, tag = 'scoped memory for my_model_forward.1']
    #allocation25 [shape = 'u8[32768]{0}', space=vmem, size = 0x8000, scoped, tag = 'input window, operand 15, single buffered']
    #allocation26 [shape = 'u8[512]{0}', space=vmem, size = 0x400, scoped, tag = 'input window, operand 16, single buffered']
    #allocation27 [shape = 's32[1]{0}', space=sflag, size = 0x4, scoped, tag = 'scoped memory for my_model_forward.1']
    #allocation28 [shape = 'u8[4096]{0}', space=vmem, size = 0x1000, scoped, tag = 'output window, operand 0, single buffered']
    %22 = vsyncpa [#allocation3], 0
    %23 = vsyncpa [#allocation6], 0
    %24 = vsyncpa [#allocation9], 0
    %25 = vsyncpa [#allocation12], 0
    %26 = vsyncpa [#allocation15], 0
    %27 = vsyncpa [#allocation18], 0
    %28 = vsyncpa [#allocation21], 0
    %29 = vsyncpa [#allocation24], 0
    %30 = vsyncpa [#allocation27], 0
    %31 = vsyncpa [#allocation4], 0
    // Predicated region
    $region2: #{my_model_forward.1} parent=1 // pred_check
      _
    $region3: #{my_model_forward.1} parent=1 // pred_check_branch
      %33 = sbr.rel (0) target = $region5
    $region4: #{my_model_forward.1} parent=1 // pred_region
      _
    $region5: #{my_model_forward.1} parent=1 // pred_fallthru
      _
    // Predicated region
    $region6: #{my_model_forward.1} parent=1 // pred_check
      _
    $region7: #{my_model_forward.1} parent=1 // pred_check_branch
      %35 = sbr.rel (0) target = $region9
    $region8: #{my_model_forward.1} parent=1 // pred_region
      %s37 = ssub.s32 32768, 32768
      %38 = vsyncadd [#allocation3], %s37
      %s39 = sshll.u32 [#allocation2], 4
      %s40 = int_to_ptr.vmem [resolvable:$true] %s39
      %45 = dma.hbm_to_vmem [thread:$0]  %s1, 32768, %s40, [#allocation3], 512, 512, 32
    $region9: #{my_model_forward.1} parent=1 // pred_fallthru
      _
    // Predicated region
    $region10: #{my_model_forward.1} parent=1 // pred_check
      _
    $region11: #{my_model_forward.1} parent=1 // pred_check_branch
      %47 = sbr.rel (0) target = $region13
    $region12: #{my_model_forward.1} parent=1 // pred_region
      %s49 = ssub.s32 128, 128
      %50 = vsyncadd [#allocation6], %s49
      %s52 = sshll.u32 [#allocation5], 4
      %s53 = int_to_ptr.vmem [resolvable:$true] %s52
      %55 = dma.hbm_to_vmem [thread:$0]  %s2, 128, %s53, [#allocation6]
    $region13: #{my_model_forward.1} parent=1 // pred_fallthru
      _
    // Predicated region
    $region14: #{my_model_forward.1} parent=1 // pred_check
      _
    $region15: #{my_model_forward.1} parent=1 // pred_check_branch
      %57 = sbr.rel (0) target = $region17
    $region16: #{my_model_forward.1} parent=1 // pred_region
      %s59 = ssub.s32 65536, 65536
      %60 = vsyncadd [#allocation6], %s59
      %s61 = sshll.u32 [#allocation7], 4
      %s62 = int_to_ptr.vmem [resolvable:$true] %s61
      %67 = dma.hbm_to_vmem [thread:$0]  %s3, 65536, %s62, [#allocation6], 512, 512, 32
    $region17: #{my_model_forward.1} parent=1 // pred_fallthru
      _
    // Predicated region
    $region18: #{my_model_forward.1} parent=1 // pred_check
      _
    $region19: #{my_model_forward.1} parent=1 // pred_check_branch
      %69 = sbr.rel (0) target = $region21
    $region20: #{my_model_forward.1} parent=1 // pred_region
      %s71 = ssub.s32 128, 128
      %72 = vsyncadd [#allocation9], %s71
      %s74 = sshll.u32 [#allocation8], 4
      %s75 = int_to_ptr.vmem [resolvable:$true] %s74
      %77 = dma.hbm_to_vmem [thread:$0]  %s4, 128, %s75, [#allocation9]
    $region21: #{my_model_forward.1} parent=1 // pred_fallthru
      _
    // Predicated region
    $region22: #{my_model_forward.1} parent=1 // pred_check
      _
    $region23: #{my_model_forward.1} parent=1 // pred_check_branch
      %79 = sbr.rel (0) target = $region25
    $region24: #{my_model_forward.1} parent=1 // pred_region
      %s81 = ssub.s32 65536, 65536
      %82 = vsyncadd [#allocation9], %s81
      %s83 = sshll.u32 [#allocation10], 4
      %s84 = int_to_ptr.vmem [resolvable:$true] %s83
      %89 = dma.hbm_to_vmem [thread:$0]  %s5, 65536, %s84, [#allocation9], 512, 512, 32
    $region25: #{my_model_forward.1} parent=1 // pred_fallthru
      _
    // Predicated region
    $region26: #{my_model_forward.1} parent=1 // pred_check
      _
    $region27: #{my_model_forward.1} parent=1 // pred_check_branch
      %91 = sbr.rel (0) target = $region29
    $region28: #{my_model_forward.1} parent=1 // pred_region
      %s93 = ssub.s32 128, 128
      %94 = vsyncadd [#allocation12], %s93
      %s96 = sshll.u32 [#allocation11], 4
      %s97 = int_to_ptr.vmem [resolvable:$true] %s96
      %99 = dma.hbm_to_vmem [thread:$0]  %s6, 128, %s97, [#allocation12]
    $region29: #{my_model_forward.1} parent=1 // pred_fallthru
      _
    // Predicated region
    $region30: #{my_model_forward.1} parent=1 // pred_check
      _
    $region31: #{my_model_forward.1} parent=1 // pred_check_branch
      %101 = sbr.rel (0) target = $region33
    $region32: #{my_model_forward.1} parent=1 // pred_region
      %s103 = ssub.s32 32768, 32768
      %104 = vsyncadd [#allocation12], %s103
      %s105 = sshll.u32 [#allocation13], 4
      %s106 = int_to_ptr.vmem [resolvable:$true] %s105
      %111 = dma.hbm_to_vmem [thread:$0]  %s7, 32768, %s106, [#allocation12], 256, 256, 16
    $region33: #{my_model_forward.1} parent=1 // pred_fallthru
      _
    // Predicated region
    $region34: #{my_model_forward.1} parent=1 // pred_check
      _
    $region35: #{my_model_forward.1} parent=1 // pred_check_branch
      %113 = sbr.rel (0) target = $region37
    $region36: #{my_model_forward.1} parent=1 // pred_region
      %s115 = ssub.s32 64, 64
      %116 = vsyncadd [#allocation15], %s115
      %s118 = sshll.u32 [#allocation14], 4
      %s119 = int_to_ptr.vmem [resolvable:$true] %s118
      %121 = dma.hbm_to_vmem [thread:$0]  %s8, 64, %s119, [#allocation15]
    $region37: #{my_model_forward.1} parent=1 // pred_fallthru
      _
    // Predicated region
    $region38: #{my_model_forward.1} parent=1 // pred_check
      _
    $region39: #{my_model_forward.1} parent=1 // pred_check_branch
      %123 = sbr.rel (0) target = $region41
    $region40: #{my_model_forward.1} parent=1 // pred_region
      %s125 = ssub.s32 8192, 8192
      %126 = vsyncadd [#allocation15], %s125
      %s127 = sshll.u32 [#allocation16], 4
      %s128 = int_to_ptr.vmem [resolvable:$true] %s127
      %133 = dma.hbm_to_vmem [thread:$0]  %s9, 8192, %s128, [#allocation15], 128, 128, 8
    $region41: #{my_model_forward.1} parent=1 // pred_fallthru
      _
    // Predicated region
    $region42: #{my_model_forward.1} parent=1 // pred_check
      _
    $region43: #{my_model_forward.1} parent=1 // pred_check_branch
      %135 = sbr.rel (0) target = $region45
    $region44: #{my_model_forward.1} parent=1 // pred_region
      %s137 = ssub.s32 32, 32
      %138 = vsyncadd [#allocation18], %s137
      %s140 = sshll.u32 [#allocation17], 4
      %s141 = int_to_ptr.vmem [resolvable:$true] %s140
      %143 = dma.hbm_to_vmem [thread:$0]  %s10, 32, %s141, [#allocation18]
    $region45: #{my_model_forward.1} parent=1 // pred_fallthru
      _
    // Predicated region
    $region46: #{my_model_forward.1} parent=1 // pred_check
      _
    $region47: #{my_model_forward.1} parent=1 // pred_check_branch
      %145 = sbr.rel (0) target = $region49
    $region48: #{my_model_forward.1} parent=1 // pred_region
      %s147 = ssub.s32 2048, 2048
      %148 = vsyncadd [#allocation18], %s147
      %s149 = sshll.u32 [#allocation19], 4
      %s150 = int_to_ptr.vmem [resolvable:$true] %s149
      %155 = dma.hbm_to_vmem [thread:$0]  %s11, 2048, %s150, [#allocation18], 64, 64, 4
    $region49: #{my_model_forward.1} parent=1 // pred_fallthru
      _
    // Predicated region
    $region50: #{my_model_forward.1} parent=1 // pred_check
      _
    $region51: #{my_model_forward.1} parent=1 // pred_check_branch
      %157 = sbr.rel (0) target = $region53
    $region52: #{my_model_forward.1} parent=1 // pred_region
      %s159 = ssub.s32 16, 16
      %160 = vsyncadd [#allocation21], %s159
      %s162 = sshll.u32 [#allocation20], 4
      %s163 = int_to_ptr.vmem [resolvable:$true] %s162
      %165 = dma.hbm_to_vmem [thread:$0]  %s12, 16, %s163, [#allocation21]
    $region53: #{my_model_forward.1} parent=1 // pred_fallthru
      _
    // Predicated region
    $region54: #{my_model_forward.1} parent=1 // pred_check
      _
    $region55: #{my_model_forward.1} parent=1 // pred_check_branch
      %167 = sbr.rel (0) target = $region57
    $region56: #{my_model_forward.1} parent=1 // pred_region
      %s169 = ssub.s32 1024, 1024
      %170 = vsyncadd [#allocation21], %s169
      %s171 = sshll.u32 [#allocation22], 4
      %s172 = int_to_ptr.vmem [resolvable:$true] %s171
      %177 = dma.hbm_to_vmem [thread:$0]  %s13, 1024, %s172, [#allocation21], 64, 64, 4
    $region57: #{my_model_forward.1} parent=1 // pred_fallthru
      _
    // Predicated region
    $region58: #{my_model_forward.1} parent=1 // pred_check
      _
    $region59: #{my_model_forward.1} parent=1 // pred_check_branch
      %179 = sbr.rel (0) target = $region61
    $region60: #{my_model_forward.1} parent=1 // pred_region
      %s181 = ssub.s32 16, 16
      %182 = vsyncadd [#allocation24], %s181
      %s184 = sshll.u32 [#allocation23], 4
      %s185 = int_to_ptr.vmem [resolvable:$true] %s184
      %187 = dma.hbm_to_vmem [thread:$0]  %s14, 16, %s185, [#allocation24]
    $region61: #{my_model_forward.1} parent=1 // pred_fallthru
      _
    // Predicated region
    $region62: #{my_model_forward.1} parent=1 // pred_check
      _
    $region63: #{my_model_forward.1} parent=1 // pred_check_branch
      %189 = sbr.rel (0) target = $region65
    $region64: #{my_model_forward.1} parent=1 // pred_region
      %s191 = ssub.s32 1024, 1024
      %192 = vsyncadd [#allocation24], %s191
      %s193 = sshll.u32 [#allocation25], 4
      %s194 = int_to_ptr.vmem [resolvable:$true] %s193
      %199 = dma.hbm_to_vmem [thread:$0]  %s15, 1024, %s194, [#allocation24], 64, 64, 4
    $region65: #{my_model_forward.1} parent=1 // pred_fallthru
      _
    // Predicated region
    $region66: #{my_model_forward.1} parent=1 // pred_check
      _
    $region67: #{my_model_forward.1} parent=1 // pred_check_branch
      %201 = sbr.rel (0) target = $region69
    $region68: #{my_model_forward.1} parent=1 // pred_region
      %s203 = ssub.s32 16, 16
      %204 = vsyncadd [#allocation27], %s203
      %s206 = sshll.u32 [#allocation26], 4
      %s207 = int_to_ptr.vmem [resolvable:$true] %s206
      %209 = dma.hbm_to_vmem [thread:$0]  %s16, 16, %s207, [#allocation27]
    $region69: #{my_model_forward.1} parent=1 // pred_fallthru
      _
    // Predicated region
    $region70: #{my_model_forward.1} parent=1 // pred_check
      _
    $region71: #{my_model_forward.1} parent=1 // pred_check_branch
      %211 = sbr.rel (0) target = $region73
    $region72: #{my_model_forward.1} parent=1 // pred_region
      %212 = dma.done [#allocation3], 32768
    $region73: #{my_model_forward.1} parent=1 // pred_fallthru
      _
    // Predicated region
    $region74: #{my_model_forward.1} parent=1 // pred_check
      _
    $region75: #{my_model_forward.1} parent=1 // pred_check_branch
      %214 = sbr.rel (0) target = $region77
    $region76: #{my_model_forward.1} parent=1 // pred_region
      %215 = dma.done [#allocation6], 128
    $region77: #{my_model_forward.1} parent=1 // pred_fallthru
      _
    // Predicated region
    $region78: #{my_model_forward.1} parent=1 // pred_check
      _
    $region79: #{my_model_forward.1} parent=1 // pred_check_branch
      %217 = sbr.rel (0) target = $region81
    $region80: #{my_model_forward.1} parent=1 // pred_region
      %218 = dma.done [#allocation6], 65536
    $region81: #{my_model_forward.1} parent=1 // pred_fallthru
      _
    // Predicated region
    $region82: #{my_model_forward.1} parent=1 // pred_check
      _
    $region83: #{my_model_forward.1} parent=1 // pred_check_branch
      %220 = sbr.rel (0) target = $region85
    $region84: #{my_model_forward.1} parent=1 // pred_region
      %221 = dma.done [#allocation9], 128
    $region85: #{my_model_forward.1} parent=1 // pred_fallthru
      _
    // Predicated region
    $region86: #{my_model_forward.1} parent=1 // pred_check
      _
    $region87: #{my_model_forward.1} parent=1 // pred_check_branch
      %223 = sbr.rel (0) target = $region89
    $region88: #{my_model_forward.1} parent=1 // pred_region
      %224 = dma.done [#allocation9], 65536
    $region89: #{my_model_forward.1} parent=1 // pred_fallthru
      _
    // Predicated region
    $region90: #{my_model_forward.1} parent=1 // pred_check
      _
    $region91: #{my_model_forward.1} parent=1 // pred_check_branch
      %226 = sbr.rel (0) target = $region93
    $region92: #{my_model_forward.1} parent=1 // pred_region
      %227 = dma.done [#allocation12], 128
    $region93: #{my_model_forward.1} parent=1 // pred_fallthru
      _
    // Predicated region
    $region94: #{my_model_forward.1} parent=1 // pred_check
      _
    $region95: #{my_model_forward.1} parent=1 // pred_check_branch
      %229 = sbr.rel (0) target = $region97
    $region96: #{my_model_forward.1} parent=1 // pred_region
      %230 = dma.done [#allocation12], 32768
    $region97: #{my_model_forward.1} parent=1 // pred_fallthru
      _
    // Predicated region
    $region98: #{my_model_forward.1} parent=1 // pred_check
      _
    $region99: #{my_model_forward.1} parent=1 // pred_check_branch
      %232 = sbr.rel (0) target = $region101
    $region100: #{my_model_forward.1} parent=1 // pred_region
      %233 = dma.done [#allocation15], 64
    $region101: #{my_model_forward.1} parent=1 // pred_fallthru
      _
    // Predicated region
    $region102: #{my_model_forward.1} parent=1 // pred_check
      _
    $region103: #{my_model_forward.1} parent=1 // pred_check_branch
      %235 = sbr.rel (0) target = $region105
    $region104: #{my_model_forward.1} parent=1 // pred_region
      %236 = dma.done [#allocation15], 8192
    $region105: #{my_model_forward.1} parent=1 // pred_fallthru
      _
    // Predicated region
    $region106: #{my_model_forward.1} parent=1 // pred_check
      _
    $region107: #{my_model_forward.1} parent=1 // pred_check_branch
      %238 = sbr.rel (0) target = $region109
    $region108: #{my_model_forward.1} parent=1 // pred_region
      %239 = dma.done [#allocation18], 32
    $region109: #{my_model_forward.1} parent=1 // pred_fallthru
      _
    // Predicated region
    $region110: #{my_model_forward.1} parent=1 // pred_check
      _
    $region111: #{my_model_forward.1} parent=1 // pred_check_branch
      %241 = sbr.rel (0) target = $region113
    $region112: #{my_model_forward.1} parent=1 // pred_region
      %242 = dma.done [#allocation18], 2048
    $region113: #{my_model_forward.1} parent=1 // pred_fallthru
      _
    // Predicated region
    $region114: #{my_model_forward.1} parent=1 // pred_check
      _
    $region115: #{my_model_forward.1} parent=1 // pred_check_branch
      %244 = sbr.rel (0) target = $region117
    $region116: #{my_model_forward.1} parent=1 // pred_region
      %245 = dma.done [#allocation21], 16
    $region117: #{my_model_forward.1} parent=1 // pred_fallthru
      _
    // Predicated region
    $region118: #{my_model_forward.1} parent=1 // pred_check
      _
    $region119: #{my_model_forward.1} parent=1 // pred_check_branch
      %247 = sbr.rel (0) target = $region121
    $region120: #{my_model_forward.1} parent=1 // pred_region
      %248 = dma.done [#allocation21], 1024
    $region121: #{my_model_forward.1} parent=1 // pred_fallthru
      _
    // Predicated region
    $region122: #{my_model_forward.1} parent=1 // pred_check
      _
    $region123: #{my_model_forward.1} parent=1 // pred_check_branch
      %250 = sbr.rel (0) target = $region125
    $region124: #{my_model_forward.1} parent=1 // pred_region
      %251 = dma.done [#allocation24], 16
    $region125: #{my_model_forward.1} parent=1 // pred_fallthru
      _
    // Predicated region
    $region126: #{my_model_forward.1} parent=1 // pred_check
      _
    $region127: #{my_model_forward.1} parent=1 // pred_check_branch
      %253 = sbr.rel (0) target = $region129
    $region128: #{my_model_forward.1} parent=1 // pred_region
      %254 = dma.done [#allocation24], 1024
    $region129: #{my_model_forward.1} parent=1 // pred_fallthru
      _
    // Predicated region
    $region130: #{my_model_forward.1} parent=1 // pred_check
      _
    $region131: #{my_model_forward.1} parent=1 // pred_check_branch
      %256 = sbr.rel (0) target = $region133
    $region132: #{my_model_forward.1} parent=1 // pred_region
      %257 = dma.done [#allocation27], 16
    $region133: #{my_model_forward.1} parent=1 // pred_fallthru
      _
    %v259 = vld [vmem:[%s0] sm:$0xff]
    %v260 = vld [vmem:[%s0 + $0x8] sm:$0xff]
    %v261 = vld [vmem:[#allocation2] sm:$0xff]
    %v262 = vld [vmem:[#allocation2 + $0x8] sm:$0xff]
    %v263 = vld [vmem:[#allocation2 + $0x10] sm:$0xff]
    %v264 = vld [vmem:[#allocation2 + $0x18] sm:$0xff]
    %v265 = vld [vmem:[#allocation2 + $0x20] sm:$0xff]
    %v266 = vld [vmem:[#allocation2 + $0x28] sm:$0xff]
    %v267 = vld [vmem:[#allocation2 + $0x30] sm:$0xff]
    %v268 = vld [vmem:[#allocation2 + $0x38] sm:$0xff]
    %v269 = vld [vmem:[#allocation2 + $0x40] sm:$0xff]
    %v270 = vld [vmem:[#allocation2 + $0x48] sm:$0xff]
    %v271 = vld [vmem:[#allocation2 + $0x50] sm:$0xff]
    %v272 = vld [vmem:[#allocation2 + $0x58] sm:$0xff]
    %v273 = vld [vmem:[#allocation2 + $0x60] sm:$0xff]
    %v274 = vld [vmem:[#allocation2 + $0x68] sm:$0xff]
    %v275 = vld [vmem:[#allocation2 + $0x70] sm:$0xff]
    %v276 = vld [vmem:[#allocation2 + $0x78] sm:$0xff]
    %v277 = vld [vmem:[#allocation2 + $0x80] sm:$0xff]
    %v278 = vld [vmem:[#allocation2 + $0x88] sm:$0xff]
    %v279 = vld [vmem:[#allocation2 + $0x90] sm:$0xff]
    %v280 = vld [vmem:[#allocation2 + $0x98] sm:$0xff]
    %v281 = vld [vmem:[#allocation2 + $0xa0] sm:$0xff]
    %v282 = vld [vmem:[#allocation2 + $0xa8] sm:$0xff]
    %v283 = vld [vmem:[#allocation2 + $0xb0] sm:$0xff]
    %v284 = vld [vmem:[#allocation2 + $0xb8] sm:$0xff]
    %v285 = vld [vmem:[#allocation2 + $0xc0] sm:$0xff]
    %v286 = vld [vmem:[#allocation2 + $0xc8] sm:$0xff]
    %v287 = vld [vmem:[#allocation2 + $0xd0] sm:$0xff]
    %v288 = vld [vmem:[#allocation2 + $0xd8] sm:$0xff]
    %v289 = vld [vmem:[#allocation2 + $0xe0] sm:$0xff]
    %v290 = vld [vmem:[#allocation2 + $0xe8] sm:$0xff]
    %v291 = vld [vmem:[#allocation2 + $0xf0] sm:$0xff]
    %v292 = vld [vmem:[#allocation2 + $0xf8] sm:$0xff]
    %v293 = vld [vmem:[#allocation2 + $0x100] sm:$0xff]
    %v294 = vld [vmem:[#allocation2 + $0x108] sm:$0xff]
    %v295 = vld [vmem:[#allocation2 + $0x110] sm:$0xff]
    %v296 = vld [vmem:[#allocation2 + $0x118] sm:$0xff]
    %v297 = vld [vmem:[#allocation2 + $0x120] sm:$0xff]
    %v298 = vld [vmem:[#allocation2 + $0x128] sm:$0xff]
    %v299 = vld [vmem:[#allocation2 + $0x130] sm:$0xff]
    %v300 = vld [vmem:[#allocation2 + $0x138] sm:$0xff]
    %v301 = vld [vmem:[#allocation2 + $0x140] sm:$0xff]
    %v302 = vld [vmem:[#allocation2 + $0x148] sm:$0xff]
    %v303 = vld [vmem:[#allocation2 + $0x150] sm:$0xff]
    %v304 = vld [vmem:[#allocation2 + $0x158] sm:$0xff]
    %v305 = vld [vmem:[#allocation2 + $0x160] sm:$0xff]
    %v306 = vld [vmem:[#allocation2 + $0x168] sm:$0xff]
    %v307 = vld [vmem:[#allocation2 + $0x170] sm:$0xff]
    %v308 = vld [vmem:[#allocation2 + $0x178] sm:$0xff]
    %v309 = vld [vmem:[#allocation2 + $0x180] sm:$0xff]
    %v310 = vld [vmem:[#allocation2 + $0x188] sm:$0xff]
    %v311 = vld [vmem:[#allocation2 + $0x190] sm:$0xff]
    %v312 = vld [vmem:[#allocation2 + $0x198] sm:$0xff]
    %v313 = vld [vmem:[#allocation2 + $0x1a0] sm:$0xff]
    %v314 = vld [vmem:[#allocation2 + $0x1a8] sm:$0xff]
    %v315 = vld [vmem:[#allocation2 + $0x1b0] sm:$0xff]
    %v316 = vld [vmem:[#allocation2 + $0x1b8] sm:$0xff]
    %v317 = vld [vmem:[#allocation2 + $0x1c0] sm:$0xff]
    %v318 = vld [vmem:[#allocation2 + $0x1c8] sm:$0xff]
    %v319 = vld [vmem:[#allocation2 + $0x1d0] sm:$0xff]
    %v320 = vld [vmem:[#allocation2 + $0x1d8] sm:$0xff]
    %v321 = vld [vmem:[#allocation2 + $0x1e0] sm:$0xff]
    %v322 = vld [vmem:[#allocation2 + $0x1e8] sm:$0xff]
    %v323 = vld [vmem:[#allocation2 + $0x1f0] sm:$0xff]
    %v324 = vld [vmem:[#allocation2 + $0x1f8] sm:$0xff]
    %v325 = vld [vmem:[#allocation2 + $0x200] sm:$0xff]
    %v326 = vld [vmem:[#allocation2 + $0x208] sm:$0xff]
    %v327 = vld [vmem:[#allocation2 + $0x210] sm:$0xff]
    %v328 = vld [vmem:[#allocation2 + $0x218] sm:$0xff]
    %v329 = vld [vmem:[#allocation2 + $0x220] sm:$0xff]
    %v330 = vld [vmem:[#allocation2 + $0x228] sm:$0xff]
    %v331 = vld [vmem:[#allocation2 + $0x230] sm:$0xff]
    %v332 = vld [vmem:[#allocation2 + $0x238] sm:$0xff]
    %v333 = vld [vmem:[#allocation2 + $0x240] sm:$0xff]
    %v334 = vld [vmem:[#allocation2 + $0x248] sm:$0xff]
    %v335 = vld [vmem:[#allocation2 + $0x250] sm:$0xff]
    %v336 = vld [vmem:[#allocation2 + $0x258] sm:$0xff]
    %v337 = vld [vmem:[#allocation2 + $0x260] sm:$0xff]
    %v338 = vld [vmem:[#allocation2 + $0x268] sm:$0xff]
    %v339 = vld [vmem:[#allocation2 + $0x270] sm:$0xff]
    %v340 = vld [vmem:[#allocation2 + $0x278] sm:$0xff]
    %v341 = vld [vmem:[#allocation2 + $0x280] sm:$0xff]
    %v342 = vld [vmem:[#allocation2 + $0x288] sm:$0xff]
    %v343 = vld [vmem:[#allocation2 + $0x290] sm:$0xff]
    %v344 = vld [vmem:[#allocation2 + $0x298] sm:$0xff]
    %v345 = vld [vmem:[#allocation2 + $0x2a0] sm:$0xff]
    %v346 = vld [vmem:[#allocation2 + $0x2a8] sm:$0xff]
    %v347 = vld [vmem:[#allocation2 + $0x2b0] sm:$0xff]
    %v348 = vld [vmem:[#allocation2 + $0x2b8] sm:$0xff]
    %v349 = vld [vmem:[#allocation2 + $0x2c0] sm:$0xff]
    %v350 = vld [vmem:[#allocation2 + $0x2c8] sm:$0xff]
    %v351 = vld [vmem:[#allocation2 + $0x2d0] sm:$0xff]
    %v352 = vld [vmem:[#allocation2 + $0x2d8] sm:$0xff]
    %v353 = vld [vmem:[#allocation2 + $0x2e0] sm:$0xff]
    %v354 = vld [vmem:[#allocation2 + $0x2e8] sm:$0xff]
    %v355 = vld [vmem:[#allocation2 + $0x2f0] sm:$0xff]
    %v356 = vld [vmem:[#allocation2 + $0x2f8] sm:$0xff]
    %v357 = vld [vmem:[#allocation2 + $0x300] sm:$0xff]
    %v358 = vld [vmem:[#allocation2 + $0x308] sm:$0xff]
    %v359 = vld [vmem:[#allocation2 + $0x310] sm:$0xff]
    %v360 = vld [vmem:[#allocation2 + $0x318] sm:$0xff]
    %v361 = vld [vmem:[#allocation2 + $0x320] sm:$0xff]
    %v362 = vld [vmem:[#allocation2 + $0x328] sm:$0xff]
    %v363 = vld [vmem:[#allocation2 + $0x330] sm:$0xff]
    %v364 = vld [vmem:[#allocation2 + $0x338] sm:$0xff]
    %v365 = vld [vmem:[#allocation2 + $0x340] sm:$0xff]
    %v366 = vld [vmem:[#allocation2 + $0x348] sm:$0xff]
    %v367 = vld [vmem:[#allocation2 + $0x350] sm:$0xff]
    %v368 = vld [vmem:[#allocation2 + $0x358] sm:$0xff]
    %v369 = vld [vmem:[#allocation2 + $0x360] sm:$0xff]
    %v370 = vld [vmem:[#allocation2 + $0x368] sm:$0xff]
    %v371 = vld [vmem:[#allocation2 + $0x370] sm:$0xff]
    %v372 = vld [vmem:[#allocation2 + $0x378] sm:$0xff]
    %v373 = vld [vmem:[#allocation2 + $0x380] sm:$0xff]
    %v374 = vld [vmem:[#allocation2 + $0x388] sm:$0xff]
    %v375 = vld [vmem:[#allocation2 + $0x390] sm:$0xff]
    %v376 = vld [vmem:[#allocation2 + $0x398] sm:$0xff]
    %v377 = vld [vmem:[#allocation2 + $0x3a0] sm:$0xff]
    %v378 = vld [vmem:[#allocation2 + $0x3a8] sm:$0xff]
    %v379 = vld [vmem:[#allocation2 + $0x3b0] sm:$0xff]
    %v380 = vld [vmem:[#allocation2 + $0x3b8] sm:$0xff]
    %v381 = vld [vmem:[#allocation2 + $0x3c0] sm:$0xff]
    %v382 = vld [vmem:[#allocation2 + $0x3c8] sm:$0xff]
    %v383 = vld [vmem:[#allocation2 + $0x3d0] sm:$0xff]
    %v384 = vld [vmem:[#allocation2 + $0x3d8] sm:$0xff]
    %v385 = vld [vmem:[#allocation2 + $0x3e0] sm:$0xff]
    %v386 = vld [vmem:[#allocation2 + $0x3e8] sm:$0xff]
    %v387 = vld [vmem:[#allocation2 + $0x3f0] sm:$0xff]
    %v388 = vld [vmem:[#allocation2 + $0x3f8] sm:$0xff]
    %v389 = vld [vmem:[#allocation2 + $0x400] sm:$0xff]
    %v390 = vld [vmem:[#allocation2 + $0x408] sm:$0xff]
    %v391 = vld [vmem:[#allocation2 + $0x410] sm:$0xff]
    %v392 = vld [vmem:[#allocation2 + $0x418] sm:$0xff]
    %v393 = vld [vmem:[#allocation2 + $0x420] sm:$0xff]
    %v394 = vld [vmem:[#allocation2 + $0x428] sm:$0xff]
    %v395 = vld [vmem:[#allocation2 + $0x430] sm:$0xff]
    %v396 = vld [vmem:[#allocation2 + $0x438] sm:$0xff]
    %v397 = vld [vmem:[#allocation2 + $0x440] sm:$0xff]
    %v398 = vld [vmem:[#allocation2 + $0x448] sm:$0xff]
    %v399 = vld [vmem:[#allocation2 + $0x450] sm:$0xff]
    %v400 = vld [vmem:[#allocation2 + $0x458] sm:$0xff]
    %v401 = vld [vmem:[#allocation2 + $0x460] sm:$0xff]
    %v402 = vld [vmem:[#allocation2 + $0x468] sm:$0xff]
    %v403 = vld [vmem:[#allocation2 + $0x470] sm:$0xff]
    %v404 = vld [vmem:[#allocation2 + $0x478] sm:$0xff]
    %v405 = vld [vmem:[#allocation2 + $0x480] sm:$0xff]
    %v406 = vld [vmem:[#allocation2 + $0x488] sm:$0xff]
    %v407 = vld [vmem:[#allocation2 + $0x490] sm:$0xff]
    %v408 = vld [vmem:[#allocation2 + $0x498] sm:$0xff]
    %v409 = vld [vmem:[#allocation2 + $0x4a0] sm:$0xff]
    %v410 = vld [vmem:[#allocation2 + $0x4a8] sm:$0xff]
    %v411 = vld [vmem:[#allocation2 + $0x4b0] sm:$0xff]
    %v412 = vld [vmem:[#allocation2 + $0x4b8] sm:$0xff]
    %v413 = vld [vmem:[#allocation2 + $0x4c0] sm:$0xff]
    %v414 = vld [vmem:[#allocation2 + $0x4c8] sm:$0xff]
    %v415 = vld [vmem:[#allocation2 + $0x4d0] sm:$0xff]
    %v416 = vld [vmem:[#allocation2 + $0x4d8] sm:$0xff]
    %v417 = vld [vmem:[#allocation2 + $0x4e0] sm:$0xff]
    %v418 = vld [vmem:[#allocation2 + $0x4e8] sm:$0xff]
    %v419 = vld [vmem:[#allocation2 + $0x4f0] sm:$0xff]
    %v420 = vld [vmem:[#allocation2 + $0x4f8] sm:$0xff]
    %v421 = vld [vmem:[#allocation2 + $0x500] sm:$0xff]
    %v422 = vld [vmem:[#allocation2 + $0x508] sm:$0xff]
    %v423 = vld [vmem:[#allocation2 + $0x510] sm:$0xff]
    %v424 = vld [vmem:[#allocation2 + $0x518] sm:$0xff]
    %v425 = vld [vmem:[#allocation2 + $0x520] sm:$0xff]
    %v426 = vld [vmem:[#allocation2 + $0x528] sm:$0xff]
    %v427 = vld [vmem:[#allocation2 + $0x530] sm:$0xff]
    %v428 = vld [vmem:[#allocation2 + $0x538] sm:$0xff]
    %v429 = vld [vmem:[#allocation2 + $0x540] sm:$0xff]
    %v430 = vld [vmem:[#allocation2 + $0x548] sm:$0xff]
    %v431 = vld [vmem:[#allocation2 + $0x550] sm:$0xff]
    %v432 = vld [vmem:[#allocation2 + $0x558] sm:$0xff]
    %v433 = vld [vmem:[#allocation2 + $0x560] sm:$0xff]
    %v434 = vld [vmem:[#allocation2 + $0x568] sm:$0xff]
    %v435 = vld [vmem:[#allocation2 + $0x570] sm:$0xff]
    %v436 = vld [vmem:[#allocation2 + $0x578] sm:$0xff]
    %v437 = vld [vmem:[#allocation2 + $0x580] sm:$0xff]
    %v438 = vld [vmem:[#allocation2 + $0x588] sm:$0xff]
    %v439 = vld [vmem:[#allocation2 + $0x590] sm:$0xff]
    %v440 = vld [vmem:[#allocation2 + $0x598] sm:$0xff]
    %v441 = vld [vmem:[#allocation2 + $0x5a0] sm:$0xff]
    %v442 = vld [vmem:[#allocation2 + $0x5a8] sm:$0xff]
    %v443 = vld [vmem:[#allocation2 + $0x5b0] sm:$0xff]
    %v444 = vld [vmem:[#allocation2 + $0x5b8] sm:$0xff]
    %v445 = vld [vmem:[#allocation2 + $0x5c0] sm:$0xff]
    %v446 = vld [vmem:[#allocation2 + $0x5c8] sm:$0xff]
    %v447 = vld [vmem:[#allocation2 + $0x5d0] sm:$0xff]
    %v448 = vld [vmem:[#allocation2 + $0x5d8] sm:$0xff]
    %v449 = vld [vmem:[#allocation2 + $0x5e0] sm:$0xff]
    %v450 = vld [vmem:[#allocation2 + $0x5e8] sm:$0xff]
    %v451 = vld [vmem:[#allocation2 + $0x5f0] sm:$0xff]
    %v452 = vld [vmem:[#allocation2 + $0x5f8] sm:$0xff]
    %v453 = vld [vmem:[#allocation2 + $0x600] sm:$0xff]
    %v454 = vld [vmem:[#allocation2 + $0x608] sm:$0xff]
    %v455 = vld [vmem:[#allocation2 + $0x610] sm:$0xff]
    %v456 = vld [vmem:[#allocation2 + $0x618] sm:$0xff]
    %v457 = vld [vmem:[#allocation2 + $0x620] sm:$0xff]
    %v458 = vld [vmem:[#allocation2 + $0x628] sm:$0xff]
    %v459 = vld [vmem:[#allocation2 + $0x630] sm:$0xff]
    %v460 = vld [vmem:[#allocation2 + $0x638] sm:$0xff]
    %v461 = vld [vmem:[#allocation2 + $0x640] sm:$0xff]
    %v462 = vld [vmem:[#allocation2 + $0x648] sm:$0xff]
    %v463 = vld [vmem:[#allocation2 + $0x650] sm:$0xff]
    %v464 = vld [vmem:[#allocation2 + $0x658] sm:$0xff]
    %v465 = vld [vmem:[#allocation2 + $0x660] sm:$0xff]
    %v466 = vld [vmem:[#allocation2 + $0x668] sm:$0xff]
    %v467 = vld [vmem:[#allocation2 + $0x670] sm:$0xff]
    %v468 = vld [vmem:[#allocation2 + $0x678] sm:$0xff]
    %v469 = vld [vmem:[#allocation2 + $0x680] sm:$0xff]
    %v470 = vld [vmem:[#allocation2 + $0x688] sm:$0xff]
    %v471 = vld [vmem:[#allocation2 + $0x690] sm:$0xff]
    %v472 = vld [vmem:[#allocation2 + $0x698] sm:$0xff]
    %v473 = vld [vmem:[#allocation2 + $0x6a0] sm:$0xff]
    %v474 = vld [vmem:[#allocation2 + $0x6a8] sm:$0xff]
    %v475 = vld [vmem:[#allocation2 + $0x6b0] sm:$0xff]
    %v476 = vld [vmem:[#allocation2 + $0x6b8] sm:$0xff]
    %v477 = vld [vmem:[#allocation2 + $0x6c0] sm:$0xff]
    %v478 = vld [vmem:[#allocation2 + $0x6c8] sm:$0xff]
    %v479 = vld [vmem:[#allocation2 + $0x6d0] sm:$0xff]
    %v480 = vld [vmem:[#allocation2 + $0x6d8] sm:$0xff]
    %v481 = vld [vmem:[#allocation2 + $0x6e0] sm:$0xff]
    %v482 = vld [vmem:[#allocation2 + $0x6e8] sm:$0xff]
    %v483 = vld [vmem:[#allocation2 + $0x6f0] sm:$0xff]
    %v484 = vld [vmem:[#allocation2 + $0x6f8] sm:$0xff]
    %v485 = vld [vmem:[#allocation2 + $0x700] sm:$0xff]
    %v486 = vld [vmem:[#allocation2 + $0x708] sm:$0xff]
    %v487 = vld [vmem:[#allocation2 + $0x710] sm:$0xff]
    %v488 = vld [vmem:[#allocation2 + $0x718] sm:$0xff]
    %v489 = vld [vmem:[#allocation2 + $0x720] sm:$0xff]
    %v490 = vld [vmem:[#allocation2 + $0x728] sm:$0xff]
    %v491 = vld [vmem:[#allocation2 + $0x730] sm:$0xff]
    %v492 = vld [vmem:[#allocation2 + $0x738] sm:$0xff]
    %v493 = vld [vmem:[#allocation2 + $0x740] sm:$0xff]
    %v494 = vld [vmem:[#allocation2 + $0x748] sm:$0xff]
    %v495 = vld [vmem:[#allocation2 + $0x750] sm:$0xff]
    %v496 = vld [vmem:[#allocation2 + $0x758] sm:$0xff]
    %v497 = vld [vmem:[#allocation2 + $0x760] sm:$0xff]
    %v498 = vld [vmem:[#allocation2 + $0x768] sm:$0xff]
    %v499 = vld [vmem:[#allocation2 + $0x770] sm:$0xff]
    %v500 = vld [vmem:[#allocation2 + $0x778] sm:$0xff]
    %v501 = vld [vmem:[#allocation2 + $0x780] sm:$0xff]
    %v502 = vld [vmem:[#allocation2 + $0x788] sm:$0xff]
    %v503 = vld [vmem:[#allocation2 + $0x790] sm:$0xff]
    %v504 = vld [vmem:[#allocation2 + $0x798] sm:$0xff]
    %v505 = vld [vmem:[#allocation2 + $0x7a0] sm:$0xff]
    %v506 = vld [vmem:[#allocation2 + $0x7a8] sm:$0xff]
    %v507 = vld [vmem:[#allocation2 + $0x7b0] sm:$0xff]
    %v508 = vld [vmem:[#allocation2 + $0x7b8] sm:$0xff]
    %v509 = vld [vmem:[#allocation2 + $0x7c0] sm:$0xff]
    %v510 = vld [vmem:[#allocation2 + $0x7c8] sm:$0xff]
    %v511 = vld [vmem:[#allocation2 + $0x7d0] sm:$0xff]
    %v512 = vld [vmem:[#allocation2 + $0x7d8] sm:$0xff]
    %v513 = vld [vmem:[#allocation2 + $0x7e0] sm:$0xff]
    %v514 = vld [vmem:[#allocation2 + $0x7e8] sm:$0xff]
    %v515 = vld [vmem:[#allocation2 + $0x7f0] sm:$0xff]
    %v516 = vld [vmem:[#allocation2 + $0x7f8] sm:$0xff]
    %v517 = vld [vmem:[#allocation5] sm:$0xff]
    %v519 = vlaneseq
    %v520 = vshrl.u32 %v519, 7
    %v521 = vsub.s32 0, %v520
    %v522 = vrot.slane %v517, %v521
    %v523 = vlaneseq
    %v524 = vshrl.u32 %v523, 7
    %v525 = vsub.s32 1, %v524
    %v526 = vrot.slane %v517, %v525
    %v527 = vlaneseq
    %v528 = vshrl.u32 %v527, 7
    %v529 = vsub.s32 2, %v528
    %v530 = vrot.slane %v517, %v529
    %v531 = vlaneseq
    %v532 = vshrl.u32 %v531, 7
    %v533 = vsub.s32 3, %v532
    %v534 = vrot.slane %v517, %v533
    %v535 = vlaneseq
    %v536 = vshrl.u32 %v535, 7
    %v537 = vsub.s32 4, %v536
    %v538 = vrot.slane %v517, %v537
    %v539 = vlaneseq
    %v540 = vshrl.u32 %v539, 7
    %v541 = vsub.s32 5, %v540
    %v542 = vrot.slane %v517, %v541
    %v543 = vlaneseq
    %v544 = vshrl.u32 %v543, 7
    %v545 = vsub.s32 6, %v544
    %v546 = vrot.slane %v517, %v545
    %v547 = vlaneseq
    %v548 = vshrl.u32 %v547, 7
    %v549 = vsub.s32 7, %v548
    %v550 = vrot.slane %v517, %v549
    %v561 = vunpack.c.l.b16 %v259
    %v562 = vunpack.c.h.b16 %v259
    %v563 = vunpack.c.l.b16 %v260
    %v564 = vunpack.c.h.b16 %v260
    %v565 = vpack.c.b16 %v561, %v561
    %v566 = vpack.c.b16 %v562, %v562
    %v567 = vpack.c.b16 %v563, %v563
    %v568 = vpack.c.b16 %v564, %v564
    %v829 = vunpack.c.l.b16 %v261
    %v830 = vunpack.c.h.b16 %v261
    %v831 = vunpack.c.l.b16 %v262
    %v832 = vunpack.c.h.b16 %v262
    %v833 = vunpack.c.l.b16 %v263
    %v834 = vunpack.c.h.b16 %v263
    %v835 = vunpack.c.l.b16 %v264
    %v836 = vunpack.c.h.b16 %v264
    %v837 = vunpack.c.l.b16 %v265
    %v838 = vunpack.c.h.b16 %v265
    %v839 = vunpack.c.l.b16 %v266
    %v840 = vunpack.c.h.b16 %v266
    %v841 = vunpack.c.l.b16 %v267
    %v842 = vunpack.c.h.b16 %v267
    %v843 = vunpack.c.l.b16 %v268
    %v844 = vunpack.c.h.b16 %v268
    %v845 = vunpack.c.l.b16 %v269
    %v846 = vunpack.c.h.b16 %v269
    %v847 = vunpack.c.l.b16 %v270
    %v848 = vunpack.c.h.b16 %v270
    %v849 = vunpack.c.l.b16 %v271
    %v850 = vunpack.c.h.b16 %v271
    %v851 = vunpack.c.l.b16 %v272
    %v852 = vunpack.c.h.b16 %v272
    %v853 = vunpack.c.l.b16 %v273
    %v854 = vunpack.c.h.b16 %v273
    %v855 = vunpack.c.l.b16 %v274
    %v856 = vunpack.c.h.b16 %v274
    %v857 = vunpack.c.l.b16 %v275
    %v858 = vunpack.c.h.b16 %v275
    %v859 = vunpack.c.l.b16 %v276
    %v860 = vunpack.c.h.b16 %v276
    %v861 = vunpack.c.l.b16 %v277
    %v862 = vunpack.c.h.b16 %v277
    %v863 = vunpack.c.l.b16 %v278
    %v864 = vunpack.c.h.b16 %v278
    %v865 = vunpack.c.l.b16 %v279
    %v866 = vunpack.c.h.b16 %v279
    %v867 = vunpack.c.l.b16 %v280
    %v868 = vunpack.c.h.b16 %v280
    %v869 = vunpack.c.l.b16 %v281
    %v870 = vunpack.c.h.b16 %v281
    %v871 = vunpack.c.l.b16 %v282
    %v872 = vunpack.c.h.b16 %v282
    %v873 = vunpack.c.l.b16 %v283
    %v874 = vunpack.c.h.b16 %v283
    %v875 = vunpack.c.l.b16 %v284
    %v876 = vunpack.c.h.b16 %v284
    %v877 = vunpack.c.l.b16 %v285
    %v878 = vunpack.c.h.b16 %v285
    %v879 = vunpack.c.l.b16 %v286
    %v880 = vunpack.c.h.b16 %v286
    %v881 = vunpack.c.l.b16 %v287
    %v882 = vunpack.c.h.b16 %v287
    %v883 = vunpack.c.l.b16 %v288
    %v884 = vunpack.c.h.b16 %v288
    %v885 = vunpack.c.l.b16 %v289
    %v886 = vunpack.c.h.b16 %v289
    %v887 = vunpack.c.l.b16 %v290
    %v888 = vunpack.c.h.b16 %v290
    %v889 = vunpack.c.l.b16 %v291
    %v890 = vunpack.c.h.b16 %v291
    %v891 = vunpack.c.l.b16 %v292
    %v892 = vunpack.c.h.b16 %v292
    %v893 = vunpack.c.l.b16 %v293
    %v894 = vunpack.c.h.b16 %v293
    %v895 = vunpack.c.l.b16 %v294
    %v896 = vunpack.c.h.b16 %v294
    %v897 = vunpack.c.l.b16 %v295
    %v898 = vunpack.c.h.b16 %v295
    %v899 = vunpack.c.l.b16 %v296
    %v900 = vunpack.c.h.b16 %v296
    %v901 = vunpack.c.l.b16 %v297
    %v902 = vunpack.c.h.b16 %v297
    %v903 = vunpack.c.l.b16 %v298
    %v904 = vunpack.c.h.b16 %v298
    %v905 = vunpack.c.l.b16 %v299
    %v906 = vunpack.c.h.b16 %v299
    %v907 = vunpack.c.l.b16 %v300
    %v908 = vunpack.c.h.b16 %v300
    %v909 = vunpack.c.l.b16 %v301
    %v910 = vunpack.c.h.b16 %v301
    %v911 = vunpack.c.l.b16 %v302
    %v912 = vunpack.c.h.b16 %v302
    %v913 = vunpack.c.l.b16 %v303
    %v914 = vunpack.c.h.b16 %v303
    %v915 = vunpack.c.l.b16 %v304
    %v916 = vunpack.c.h.b16 %v304
    %v917 = vunpack.c.l.b16 %v305
    %v918 = vunpack.c.h.b16 %v305
    %v919 = vunpack.c.l.b16 %v306
    %v920 = vunpack.c.h.b16 %v306
    %v921 = vunpack.c.l.b16 %v307
    %v922 = vunpack.c.h.b16 %v307
    %v923 = vunpack.c.l.b16 %v308
    %v924 = vunpack.c.h.b16 %v308
    %v925 = vunpack.c.l.b16 %v309
    %v926 = vunpack.c.h.b16 %v309
    %v927 = vunpack.c.l.b16 %v310
    %v928 = vunpack.c.h.b16 %v310
    %v929 = vunpack.c.l.b16 %v311
    %v930 = vunpack.c.h.b16 %v311
    %v931 = vunpack.c.l.b16 %v312
    %v932 = vunpack.c.h.b16 %v312
    %v933 = vunpack.c.l.b16 %v313
    %v934 = vunpack.c.h.b16 %v313
    %v935 = vunpack.c.l.b16 %v314
    %v936 = vunpack.c.h.b16 %v314
    %v937 = vunpack.c.l.b16 %v315
    %v938 = vunpack.c.h.b16 %v315
    %v939 = vunpack.c.l.b16 %v316
    %v940 = vunpack.c.h.b16 %v316
    %v941 = vunpack.c.l.b16 %v317
    %v942 = vunpack.c.h.b16 %v317
    %v943 = vunpack.c.l.b16 %v318
    %v944 = vunpack.c.h.b16 %v318
    %v945 = vunpack.c.l.b16 %v319
    %v946 = vunpack.c.h.b16 %v319
    %v947 = vunpack.c.l.b16 %v320
    %v948 = vunpack.c.h.b16 %v320
    %v949 = vunpack.c.l.b16 %v321
    %v950 = vunpack.c.h.b16 %v321
    %v951 = vunpack.c.l.b16 %v322
    %v952 = vunpack.c.h.b16 %v322
    %v953 = vunpack.c.l.b16 %v323
    %v954 = vunpack.c.h.b16 %v323
    %v955 = vunpack.c.l.b16 %v324
    %v956 = vunpack.c.h.b16 %v324
    %v957 = vunpack.c.l.b16 %v325
    %v958 = vunpack.c.h.b16 %v325
    %v959 = vunpack.c.l.b16 %v326
    %v960 = vunpack.c.h.b16 %v326
    %v961 = vunpack.c.l.b16 %v327
    %v962 = vunpack.c.h.b16 %v327
    %v963 = vunpack.c.l.b16 %v328
    %v964 = vunpack.c.h.b16 %v328
    %v965 = vunpack.c.l.b16 %v329
    %v966 = vunpack.c.h.b16 %v329
    %v967 = vunpack.c.l.b16 %v330
    %v968 = vunpack.c.h.b16 %v330
    %v969 = vunpack.c.l.b16 %v331
    %v970 = vunpack.c.h.b16 %v331
    %v971 = vunpack.c.l.b16 %v332
    %v972 = vunpack.c.h.b16 %v332
    %v973 = vunpack.c.l.b16 %v333
    %v974 = vunpack.c.h.b16 %v333
    %v975 = vunpack.c.l.b16 %v334
    %v976 = vunpack.c.h.b16 %v334
    %v977 = vunpack.c.l.b16 %v335
    %v978 = vunpack.c.h.b16 %v335
    %v979 = vunpack.c.l.b16 %v336
    %v980 = vunpack.c.h.b16 %v336
    %v981 = vunpack.c.l.b16 %v337
    %v982 = vunpack.c.h.b16 %v337
    %v983 = vunpack.c.l.b16 %v338
    %v984 = vunpack.c.h.b16 %v338
    %v985 = vunpack.c.l.b16 %v339
    %v986 = vunpack.c.h.b16 %v339
    %v987 = vunpack.c.l.b16 %v340
    %v988 = vunpack.c.h.b16 %v340
    %v989 = vunpack.c.l.b16 %v341
    %v990 = vunpack.c.h.b16 %v341
    %v991 = vunpack.c.l.b16 %v342
    %v992 = vunpack.c.h.b16 %v342
    %v993 = vunpack.c.l.b16 %v343
    %v994 = vunpack.c.h.b16 %v343
    %v995 = vunpack.c.l.b16 %v344
    %v996 = vunpack.c.h.b16 %v344
    %v997 = vunpack.c.l.b16 %v345
    %v998 = vunpack.c.h.b16 %v345
    %v999 = vunpack.c.l.b16 %v346
    %v1000 = vunpack.c.h.b16 %v346
    %v1001 = vunpack.c.l.b16 %v347
    %v1002 = vunpack.c.h.b16 %v347
    %v1003 = vunpack.c.l.b16 %v348
    %v1004 = vunpack.c.h.b16 %v348
    %v1005 = vunpack.c.l.b16 %v349
    %v1006 = vunpack.c.h.b16 %v349
    %v1007 = vunpack.c.l.b16 %v350
    %v1008 = vunpack.c.h.b16 %v350
    %v1009 = vunpack.c.l.b16 %v351
    %v1010 = vunpack.c.h.b16 %v351
    %v1011 = vunpack.c.l.b16 %v352
    %v1012 = vunpack.c.h.b16 %v352
    %v1013 = vunpack.c.l.b16 %v353
    %v1014 = vunpack.c.h.b16 %v353
    %v1015 = vunpack.c.l.b16 %v354
    %v1016 = vunpack.c.h.b16 %v354
    %v1017 = vunpack.c.l.b16 %v355
    %v1018 = vunpack.c.h.b16 %v355
    %v1019 = vunpack.c.l.b16 %v356
    %v1020 = vunpack.c.h.b16 %v356
    %v1021 = vunpack.c.l.b16 %v357
    %v1022 = vunpack.c.h.b16 %v357
    %v1023 = vunpack.c.l.b16 %v358
    %v1024 = vunpack.c.h.b16 %v358
    %v1025 = vunpack.c.l.b16 %v359
    %v1026 = vunpack.c.h.b16 %v359
    %v1027 = vunpack.c.l.b16 %v360
    %v1028 = vunpack.c.h.b16 %v360
    %v1029 = vunpack.c.l.b16 %v361
    %v1030 = vunpack.c.h.b16 %v361
    %v1031 = vunpack.c.l.b16 %v362
    %v1032 = vunpack.c.h.b16 %v362
    %v1033 = vunpack.c.l.b16 %v363
    %v1034 = vunpack.c.h.b16 %v363
    %v1035 = vunpack.c.l.b16 %v364
    %v1036 = vunpack.c.h.b16 %v364
    %v1037 = vunpack.c.l.b16 %v365
    %v1038 = vunpack.c.h.b16 %v365
    %v1039 = vunpack.c.l.b16 %v366
    %v1040 = vunpack.c.h.b16 %v366
    %v1041 = vunpack.c.l.b16 %v367
    %v1042 = vunpack.c.h.b16 %v367
    %v1043 = vunpack.c.l.b16 %v368
    %v1044 = vunpack.c.h.b16 %v368
    %v1045 = vunpack.c.l.b16 %v369
    %v1046 = vunpack.c.h.b16 %v369
    %v1047 = vunpack.c.l.b16 %v370
    %v1048 = vunpack.c.h.b16 %v370
    %v1049 = vunpack.c.l.b16 %v371
    %v1050 = vunpack.c.h.b16 %v371
    %v1051 = vunpack.c.l.b16 %v372
    %v1052 = vunpack.c.h.b16 %v372
    %v1053 = vunpack.c.l.b16 %v373
    %v1054 = vunpack.c.h.b16 %v373
    %v1055 = vunpack.c.l.b16 %v374
    %v1056 = vunpack.c.h.b16 %v374
    %v1057 = vunpack.c.l.b16 %v375
    %v1058 = vunpack.c.h.b16 %v375
    %v1059 = vunpack.c.l.b16 %v376
    %v1060 = vunpack.c.h.b16 %v376
    %v1061 = vunpack.c.l.b16 %v377
    %v1062 = vunpack.c.h.b16 %v377
    %v1063 = vunpack.c.l.b16 %v378
    %v1064 = vunpack.c.h.b16 %v378
    %v1065 = vunpack.c.l.b16 %v379
    %v1066 = vunpack.c.h.b16 %v379
    %v1067 = vunpack.c.l.b16 %v380
    %v1068 = vunpack.c.h.b16 %v380
    %v1069 = vunpack.c.l.b16 %v381
    %v1070 = vunpack.c.h.b16 %v381
    %v1071 = vunpack.c.l.b16 %v382
    %v1072 = vunpack.c.h.b16 %v382
    %v1073 = vunpack.c.l.b16 %v383
    %v1074 = vunpack.c.h.b16 %v383
    %v1075 = vunpack.c.l.b16 %v384
    %v1076 = vunpack.c.h.b16 %v384
    %v1077 = vunpack.c.l.b16 %v385
    %v1078 = vunpack.c.h.b16 %v385
    %v1079 = vunpack.c.l.b16 %v386
    %v1080 = vunpack.c.h.b16 %v386
    %v1081 = vunpack.c.l.b16 %v387
    %v1082 = vunpack.c.h.b16 %v387
    %v1083 = vunpack.c.l.b16 %v388
    %v1084 = vunpack.c.h.b16 %v388
    %v1085 = vunpack.c.l.b16 %v389
    %v1086 = vunpack.c.h.b16 %v389
    %v1087 = vunpack.c.l.b16 %v390
    %v1088 = vunpack.c.h.b16 %v390
    %v1089 = vunpack.c.l.b16 %v391
    %v1090 = vunpack.c.h.b16 %v391
    %v1091 = vunpack.c.l.b16 %v392
    %v1092 = vunpack.c.h.b16 %v392
    %v1093 = vunpack.c.l.b16 %v393
    %v1094 = vunpack.c.h.b16 %v393
    %v1095 = vunpack.c.l.b16 %v394
    %v1096 = vunpack.c.h.b16 %v394
    %v1097 = vunpack.c.l.b16 %v395
    %v1098 = vunpack.c.h.b16 %v395
    %v1099 = vunpack.c.l.b16 %v396
    %v1100 = vunpack.c.h.b16 %v396
    %v1101 = vunpack.c.l.b16 %v397
    %v1102 = vunpack.c.h.b16 %v397
    %v1103 = vunpack.c.l.b16 %v398
    %v1104 = vunpack.c.h.b16 %v398
    %v1105 = vunpack.c.l.b16 %v399
    %v1106 = vunpack.c.h.b16 %v399
    %v1107 = vunpack.c.l.b16 %v400
    %v1108 = vunpack.c.h.b16 %v400
    %v1109 = vunpack.c.l.b16 %v401
    %v1110 = vunpack.c.h.b16 %v401
    %v1111 = vunpack.c.l.b16 %v402
    %v1112 = vunpack.c.h.b16 %v402
    %v1113 = vunpack.c.l.b16 %v403
    %v1114 = vunpack.c.h.b16 %v403
    %v1115 = vunpack.c.l.b16 %v404
    %v1116 = vunpack.c.h.b16 %v404
    %v1117 = vunpack.c.l.b16 %v405
    %v1118 = vunpack.c.h.b16 %v405
    %v1119 = vunpack.c.l.b16 %v406
    %v1120 = vunpack.c.h.b16 %v406
    %v1121 = vunpack.c.l.b16 %v407
    %v1122 = vunpack.c.h.b16 %v407
    %v1123 = vunpack.c.l.b16 %v408
    %v1124 = vunpack.c.h.b16 %v408
    %v1125 = vunpack.c.l.b16 %v409
    %v1126 = vunpack.c.h.b16 %v409
    %v1127 = vunpack.c.l.b16 %v410
    %v1128 = vunpack.c.h.b16 %v410
    %v1129 = vunpack.c.l.b16 %v411
    %v1130 = vunpack.c.h.b16 %v411
    %v1131 = vunpack.c.l.b16 %v412
    %v1132 = vunpack.c.h.b16 %v412
    %v1133 = vunpack.c.l.b16 %v413
    %v1134 = vunpack.c.h.b16 %v413
    %v1135 = vunpack.c.l.b16 %v414
    %v1136 = vunpack.c.h.b16 %v414
    %v1137 = vunpack.c.l.b16 %v415
    %v1138 = vunpack.c.h.b16 %v415
    %v1139 = vunpack.c.l.b16 %v416
    %v1140 = vunpack.c.h.b16 %v416
    %v1141 = vunpack.c.l.b16 %v417
    %v1142 = vunpack.c.h.b16 %v417
    %v1143 = vunpack.c.l.b16 %v418
    %v1144 = vunpack.c.h.b16 %v418
    %v1145 = vunpack.c.l.b16 %v419
    %v1146 = vunpack.c.h.b16 %v419
    %v1147 = vunpack.c.l.b16 %v420
    %v1148 = vunpack.c.h.b16 %v420
    %v1149 = vunpack.c.l.b16 %v421
    %v1150 = vunpack.c.h.b16 %v421
    %v1151 = vunpack.c.l.b16 %v422
    %v1152 = vunpack.c.h.b16 %v422
    %v1153 = vunpack.c.l.b16 %v423
    %v1154 = vunpack.c.h.b16 %v423
    %v1155 = vunpack.c.l.b16 %v424
    %v1156 = vunpack.c.h.b16 %v424
    %v1157 = vunpack.c.l.b16 %v425
    %v1158 = vunpack.c.h.b16 %v425
    %v1159 = vunpack.c.l.b16 %v426
    %v1160 = vunpack.c.h.b16 %v426
    %v1161 = vunpack.c.l.b16 %v427
    %v1162 = vunpack.c.h.b16 %v427
    %v1163 = vunpack.c.l.b16 %v428
    %v1164 = vunpack.c.h.b16 %v428
    %v1165 = vunpack.c.l.b16 %v429
    %v1166 = vunpack.c.h.b16 %v429
    %v1167 = vunpack.c.l.b16 %v430
    %v1168 = vunpack.c.h.b16 %v430
    %v1169 = vunpack.c.l.b16 %v431
    %v1170 = vunpack.c.h.b16 %v431
    %v1171 = vunpack.c.l.b16 %v432
    %v1172 = vunpack.c.h.b16 %v432
    %v1173 = vunpack.c.l.b16 %v433
    %v1174 = vunpack.c.h.b16 %v433
    %v1175 = vunpack.c.l.b16 %v434
    %v1176 = vunpack.c.h.b16 %v434
    %v1177 = vunpack.c.l.b16 %v435
    %v1178 = vunpack.c.h.b16 %v435
    %v1179 = vunpack.c.l.b16 %v436
    %v1180 = vunpack.c.h.b16 %v436
    %v1181 = vunpack.c.l.b16 %v437
    %v1182 = vunpack.c.h.b16 %v437
    %v1183 = vunpack.c.l.b16 %v438
    %v1184 = vunpack.c.h.b16 %v438
    %v1185 = vunpack.c.l.b16 %v439
    %v1186 = vunpack.c.h.b16 %v439
    %v1187 = vunpack.c.l.b16 %v440
    %v1188 = vunpack.c.h.b16 %v440
    %v1189 = vunpack.c.l.b16 %v441
    %v1190 = vunpack.c.h.b16 %v441
    %v1191 = vunpack.c.l.b16 %v442
    %v1192 = vunpack.c.h.b16 %v442
    %v1193 = vunpack.c.l.b16 %v443
    %v1194 = vunpack.c.h.b16 %v443
    %v1195 = vunpack.c.l.b16 %v444
    %v1196 = vunpack.c.h.b16 %v444
    %v1197 = vunpack.c.l.b16 %v445
    %v1198 = vunpack.c.h.b16 %v445
    %v1199 = vunpack.c.l.b16 %v446
    %v1200 = vunpack.c.h.b16 %v446
    %v1201 = vunpack.c.l.b16 %v447
    %v1202 = vunpack.c.h.b16 %v447
    %v1203 = vunpack.c.l.b16 %v448
    %v1204 = vunpack.c.h.b16 %v448
    %v1205 = vunpack.c.l.b16 %v449
    %v1206 = vunpack.c.h.b16 %v449
    %v1207 = vunpack.c.l.b16 %v450
    %v1208 = vunpack.c.h.b16 %v450
    %v1209 = vunpack.c.l.b16 %v451
    %v1210 = vunpack.c.h.b16 %v451
    %v1211 = vunpack.c.l.b16 %v452
    %v1212 = vunpack.c.h.b16 %v452
    %v1213 = vunpack.c.l.b16 %v453
    %v1214 = vunpack.c.h.b16 %v453
    %v1215 = vunpack.c.l.b16 %v454
    %v1216 = vunpack.c.h.b16 %v454
    %v1217 = vunpack.c.l.b16 %v455
    %v1218 = vunpack.c.h.b16 %v455
    %v1219 = vunpack.c.l.b16 %v456
    %v1220 = vunpack.c.h.b16 %v456
    %v1221 = vunpack.c.l.b16 %v457
    %v1222 = vunpack.c.h.b16 %v457
    %v1223 = vunpack.c.l.b16 %v458
    %v1224 = vunpack.c.h.b16 %v458
    %v1225 = vunpack.c.l.b16 %v459
    %v1226 = vunpack.c.h.b16 %v459
    %v1227 = vunpack.c.l.b16 %v460
    %v1228 = vunpack.c.h.b16 %v460
    %v1229 = vunpack.c.l.b16 %v461
    %v1230 = vunpack.c.h.b16 %v461
    %v1231 = vunpack.c.l.b16 %v462
    %v1232 = vunpack.c.h.b16 %v462
    %v1233 = vunpack.c.l.b16 %v463
    %v1234 = vunpack.c.h.b16 %v463
    %v1235 = vunpack.c.l.b16 %v464
    %v1236 = vunpack.c.h.b16 %v464
    %v1237 = vunpack.c.l.b16 %v465
    %v1238 = vunpack.c.h.b16 %v465
    %v1239 = vunpack.c.l.b16 %v466
    %v1240 = vunpack.c.h.b16 %v466
    %v1241 = vunpack.c.l.b16 %v467
    %v1242 = vunpack.c.h.b16 %v467
    %v1243 = vunpack.c.l.b16 %v468
    %v1244 = vunpack.c.h.b16 %v468
    %v1245 = vunpack.c.l.b16 %v469
    %v1246 = vunpack.c.h.b16 %v469
    %v1247 = vunpack.c.l.b16 %v470
    %v1248 = vunpack.c.h.b16 %v470
    %v1249 = vunpack.c.l.b16 %v471
    %v1250 = vunpack.c.h.b16 %v471
    %v1251 = vunpack.c.l.b16 %v472
    %v1252 = vunpack.c.h.b16 %v472
    %v1253 = vunpack.c.l.b16 %v473
    %v1254 = vunpack.c.h.b16 %v473
    %v1255 = vunpack.c.l.b16 %v474
    %v1256 = vunpack.c.h.b16 %v474
    %v1257 = vunpack.c.l.b16 %v475
    %v1258 = vunpack.c.h.b16 %v475
    %v1259 = vunpack.c.l.b16 %v476
    %v1260 = vunpack.c.h.b16 %v476
    %v1261 = vunpack.c.l.b16 %v477
    %v1262 = vunpack.c.h.b16 %v477
    %v1263 = vunpack.c.l.b16 %v478
    %v1264 = vunpack.c.h.b16 %v478
    %v1265 = vunpack.c.l.b16 %v479
    %v1266 = vunpack.c.h.b16 %v479
    %v1267 = vunpack.c.l.b16 %v480
    %v1268 = vunpack.c.h.b16 %v480
    %v1269 = vunpack.c.l.b16 %v481
    %v1270 = vunpack.c.h.b16 %v481
    %v1271 = vunpack.c.l.b16 %v482
    %v1272 = vunpack.c.h.b16 %v482
    %v1273 = vunpack.c.l.b16 %v483
    %v1274 = vunpack.c.h.b16 %v483
    %v1275 = vunpack.c.l.b16 %v484
    %v1276 = vunpack.c.h.b16 %v484
    %v1277 = vunpack.c.l.b16 %v485
    %v1278 = vunpack.c.h.b16 %v485
    %v1279 = vunpack.c.l.b16 %v486
    %v1280 = vunpack.c.h.b16 %v486
    %v1281 = vunpack.c.l.b16 %v487
    %v1282 = vunpack.c.h.b16 %v487
    %v1283 = vunpack.c.l.b16 %v488
    %v1284 = vunpack.c.h.b16 %v488
    %v1285 = vunpack.c.l.b16 %v489
    %v1286 = vunpack.c.h.b16 %v489
    %v1287 = vunpack.c.l.b16 %v490
    %v1288 = vunpack.c.h.b16 %v490
    %v1289 = vunpack.c.l.b16 %v491
    %v1290 = vunpack.c.h.b16 %v491
    %v1291 = vunpack.c.l.b16 %v492
    %v1292 = vunpack.c.h.b16 %v492
    %v1293 = vunpack.c.l.b16 %v493
    %v1294 = vunpack.c.h.b16 %v493
    %v1295 = vunpack.c.l.b16 %v494
    %v1296 = vunpack.c.h.b16 %v494
    %v1297 = vunpack.c.l.b16 %v495
    %v1298 = vunpack.c.h.b16 %v495
    %v1299 = vunpack.c.l.b16 %v496
    %v1300 = vunpack.c.h.b16 %v496
    %v1301 = vunpack.c.l.b16 %v497
    %v1302 = vunpack.c.h.b16 %v497
    %v1303 = vunpack.c.l.b16 %v498
    %v1304 = vunpack.c.h.b16 %v498
    %v1305 = vunpack.c.l.b16 %v499
    %v1306 = vunpack.c.h.b16 %v499
    %v1307 = vunpack.c.l.b16 %v500
    %v1308 = vunpack.c.h.b16 %v500
    %v1309 = vunpack.c.l.b16 %v501
    %v1310 = vunpack.c.h.b16 %v501
    %v1311 = vunpack.c.l.b16 %v502
    %v1312 = vunpack.c.h.b16 %v502
    %v1313 = vunpack.c.l.b16 %v503
    %v1314 = vunpack.c.h.b16 %v503
    %v1315 = vunpack.c.l.b16 %v504
    %v1316 = vunpack.c.h.b16 %v504
    %v1317 = vunpack.c.l.b16 %v505
    %v1318 = vunpack.c.h.b16 %v505
    %v1319 = vunpack.c.l.b16 %v506
    %v1320 = vunpack.c.h.b16 %v506
    %v1321 = vunpack.c.l.b16 %v507
    %v1322 = vunpack.c.h.b16 %v507
    %v1323 = vunpack.c.l.b16 %v508
    %v1324 = vunpack.c.h.b16 %v508
    %v1325 = vunpack.c.l.b16 %v509
    %v1326 = vunpack.c.h.b16 %v509
    %v1327 = vunpack.c.l.b16 %v510
    %v1328 = vunpack.c.h.b16 %v510
    %v1329 = vunpack.c.l.b16 %v511
    %v1330 = vunpack.c.h.b16 %v511
    %v1331 = vunpack.c.l.b16 %v512
    %v1332 = vunpack.c.h.b16 %v512
    %v1333 = vunpack.c.l.b16 %v513
    %v1334 = vunpack.c.h.b16 %v513
    %v1335 = vunpack.c.l.b16 %v514
    %v1336 = vunpack.c.h.b16 %v514
    %v1337 = vunpack.c.l.b16 %v515
    %v1338 = vunpack.c.h.b16 %v515
    %v1339 = vunpack.c.l.b16 %v516
    %v1340 = vunpack.c.h.b16 %v516
    %v1341 = vpack.c.b16 %v837, %v829
    %v1342 = vpack.c.b16 %v838, %v830
    %v1343 = vpack.c.b16 %v839, %v831
    %v1344 = vpack.c.b16 %v840, %v832
    %v1345 = vpack.c.b16 %v841, %v833
    %v1346 = vpack.c.b16 %v842, %v834
    %v1347 = vpack.c.b16 %v843, %v835
    %v1348 = vpack.c.b16 %v844, %v836
    %v1349 = vpack.c.b16 %v853, %v845
    %v1350 = vpack.c.b16 %v854, %v846
    %v1351 = vpack.c.b16 %v855, %v847
    %v1352 = vpack.c.b16 %v856, %v848
    %v1353 = vpack.c.b16 %v857, %v849
    %v1354 = vpack.c.b16 %v858, %v850
    %v1355 = vpack.c.b16 %v859, %v851
    %v1356 = vpack.c.b16 %v860, %v852
    %v1357 = vpack.c.b16 %v869, %v861
    %v1358 = vpack.c.b16 %v870, %v862
    %v1359 = vpack.c.b16 %v871, %v863
    %v1360 = vpack.c.b16 %v872, %v864
    %v1361 = vpack.c.b16 %v873, %v865
    %v1362 = vpack.c.b16 %v874, %v866
    %v1363 = vpack.c.b16 %v875, %v867
    %v1364 = vpack.c.b16 %v876, %v868
    %v1365 = vpack.c.b16 %v885, %v877
    %v1366 = vpack.c.b16 %v886, %v878
    %v1367 = vpack.c.b16 %v887, %v879
    %v1368 = vpack.c.b16 %v888, %v880
    %v1369 = vpack.c.b16 %v889, %v881
    %v1370 = vpack.c.b16 %v890, %v882
    %v1371 = vpack.c.b16 %v891, %v883
    %v1372 = vpack.c.b16 %v892, %v884
    %v1373 = vpack.c.b16 %v901, %v893
    %v1374 = vpack.c.b16 %v902, %v894
    %v1375 = vpack.c.b16 %v903, %v895
    %v1376 = vpack.c.b16 %v904, %v896
    %v1377 = vpack.c.b16 %v905, %v897
    %v1378 = vpack.c.b16 %v906, %v898
    %v1379 = vpack.c.b16 %v907, %v899
    %v1380 = vpack.c.b16 %v908, %v900
    %v1381 = vpack.c.b16 %v917, %v909
    %v1382 = vpack.c.b16 %v918, %v910
    %v1383 = vpack.c.b16 %v919, %v911
    %v1384 = vpack.c.b16 %v920, %v912
    %v1385 = vpack.c.b16 %v921, %v913
    %v1386 = vpack.c.b16 %v922, %v914
    %v1387 = vpack.c.b16 %v923, %v915
    %v1388 = vpack.c.b16 %v924, %v916
    %v1389 = vpack.c.b16 %v933, %v925
    %v1390 = vpack.c.b16 %v934, %v926
    %v1391 = vpack.c.b16 %v935, %v927
    %v1392 = vpack.c.b16 %v936, %v928
    %v1393 = vpack.c.b16 %v937, %v929
    %v1394 = vpack.c.b16 %v938, %v930
    %v1395 = vpack.c.b16 %v939, %v931
    %v1396 = vpack.c.b16 %v940, %v932
    %v1397 = vpack.c.b16 %v949, %v941
    %v1398 = vpack.c.b16 %v950, %v942
    %v1399 = vpack.c.b16 %v951, %v943
    %v1400 = vpack.c.b16 %v952, %v944
    %v1401 = vpack.c.b16 %v953, %v945
    %v1402 = vpack.c.b16 %v954, %v946
    %v1403 = vpack.c.b16 %v955, %v947
    %v1404 = vpack.c.b16 %v956, %v948
    %v1405 = vpack.c.b16 %v965, %v957
    %v1406 = vpack.c.b16 %v966, %v958
    %v1407 = vpack.c.b16 %v967, %v959
    %v1408 = vpack.c.b16 %v968, %v960
    %v1409 = vpack.c.b16 %v969, %v961
    %v1410 = vpack.c.b16 %v970, %v962
    %v1411 = vpack.c.b16 %v971, %v963
    %v1412 = vpack.c.b16 %v972, %v964
    %v1413 = vpack.c.b16 %v981, %v973
    %v1414 = vpack.c.b16 %v982, %v974
    %v1415 = vpack.c.b16 %v983, %v975
    %v1416 = vpack.c.b16 %v984, %v976
    %v1417 = vpack.c.b16 %v985, %v977
    %v1418 = vpack.c.b16 %v986, %v978
    %v1419 = vpack.c.b16 %v987, %v979
    %v1420 = vpack.c.b16 %v988, %v980
    %v1421 = vpack.c.b16 %v997, %v989
    %v1422 = vpack.c.b16 %v998, %v990
    %v1423 = vpack.c.b16 %v999, %v991
    %v1424 = vpack.c.b16 %v1000, %v992
    %v1425 = vpack.c.b16 %v1001, %v993
    %v1426 = vpack.c.b16 %v1002, %v994
    %v1427 = vpack.c.b16 %v1003, %v995
    %v1428 = vpack.c.b16 %v1004, %v996
    %v1429 = vpack.c.b16 %v1013, %v1005
    %v1430 = vpack.c.b16 %v1014, %v1006
    %v1431 = vpack.c.b16 %v1015, %v1007
    %v1432 = vpack.c.b16 %v1016, %v1008
    %v1433 = vpack.c.b16 %v1017, %v1009
    %v1434 = vpack.c.b16 %v1018, %v1010
    %v1435 = vpack.c.b16 %v1019, %v1011
    %v1436 = vpack.c.b16 %v1020, %v1012
    %v1437 = vpack.c.b16 %v1029, %v1021
    %v1438 = vpack.c.b16 %v1030, %v1022
    %v1439 = vpack.c.b16 %v1031, %v1023
    %v1440 = vpack.c.b16 %v1032, %v1024
    %v1441 = vpack.c.b16 %v1033, %v1025
    %v1442 = vpack.c.b16 %v1034, %v1026
    %v1443 = vpack.c.b16 %v1035, %v1027
    %v1444 = vpack.c.b16 %v1036, %v1028
    %v1445 = vpack.c.b16 %v1045, %v1037
    %v1446 = vpack.c.b16 %v1046, %v1038
    %v1447 = vpack.c.b16 %v1047, %v1039
    %v1448 = vpack.c.b16 %v1048, %v1040
    %v1449 = vpack.c.b16 %v1049, %v1041
    %v1450 = vpack.c.b16 %v1050, %v1042
    %v1451 = vpack.c.b16 %v1051, %v1043
    %v1452 = vpack.c.b16 %v1052, %v1044
    %v1453 = vpack.c.b16 %v1061, %v1053
    %v1454 = vpack.c.b16 %v1062, %v1054
    %v1455 = vpack.c.b16 %v1063, %v1055
    %v1456 = vpack.c.b16 %v1064, %v1056
    %v1457 = vpack.c.b16 %v1065, %v1057
    %v1458 = vpack.c.b16 %v1066, %v1058
    %v1459 = vpack.c.b16 %v1067, %v1059
    %v1460 = vpack.c.b16 %v1068, %v1060
    %v1461 = vpack.c.b16 %v1077, %v1069
    %v1462 = vpack.c.b16 %v1078, %v1070
    %v1463 = vpack.c.b16 %v1079, %v1071
    %v1464 = vpack.c.b16 %v1080, %v1072
    %v1465 = vpack.c.b16 %v1081, %v1073
    %v1466 = vpack.c.b16 %v1082, %v1074
    %v1467 = vpack.c.b16 %v1083, %v1075
    %v1468 = vpack.c.b16 %v1084, %v1076
    %v1469 = vpack.c.b16 %v1093, %v1085
    %v1470 = vpack.c.b16 %v1094, %v1086
    %v1471 = vpack.c.b16 %v1095, %v1087
    %v1472 = vpack.c.b16 %v1096, %v1088
    %v1473 = vpack.c.b16 %v1097, %v1089
    %v1474 = vpack.c.b16 %v1098, %v1090
    %v1475 = vpack.c.b16 %v1099, %v1091
    %v1476 = vpack.c.b16 %v1100, %v1092
    %v1477 = vpack.c.b16 %v1109, %v1101
    %v1478 = vpack.c.b16 %v1110, %v1102
    %v1479 = vpack.c.b16 %v1111, %v1103
    %v1480 = vpack.c.b16 %v1112, %v1104
    %v1481 = vpack.c.b16 %v1113, %v1105
    %v1482 = vpack.c.b16 %v1114, %v1106
    %v1483 = vpack.c.b16 %v1115, %v1107
    %v1484 = vpack.c.b16 %v1116, %v1108
    %v1485 = vpack.c.b16 %v1125, %v1117
    %v1486 = vpack.c.b16 %v1126, %v1118
    %v1487 = vpack.c.b16 %v1127, %v1119
    %v1488 = vpack.c.b16 %v1128, %v1120
    %v1489 = vpack.c.b16 %v1129, %v1121
    %v1490 = vpack.c.b16 %v1130, %v1122
    %v1491 = vpack.c.b16 %v1131, %v1123
    %v1492 = vpack.c.b16 %v1132, %v1124
    %v1493 = vpack.c.b16 %v1141, %v1133
    %v1494 = vpack.c.b16 %v1142, %v1134
    %v1495 = vpack.c.b16 %v1143, %v1135
    %v1496 = vpack.c.b16 %v1144, %v1136
    %v1497 = vpack.c.b16 %v1145, %v1137
    %v1498 = vpack.c.b16 %v1146, %v1138
    %v1499 = vpack.c.b16 %v1147, %v1139
    %v1500 = vpack.c.b16 %v1148, %v1140
    %v1501 = vpack.c.b16 %v1157, %v1149
    %v1502 = vpack.c.b16 %v1158, %v1150
    %v1503 = vpack.c.b16 %v1159, %v1151
    %v1504 = vpack.c.b16 %v1160, %v1152
    %v1505 = vpack.c.b16 %v1161, %v1153
    %v1506 = vpack.c.b16 %v1162, %v1154
    %v1507 = vpack.c.b16 %v1163, %v1155
    %v1508 = vpack.c.b16 %v1164, %v1156
    %v1509 = vpack.c.b16 %v1173, %v1165
    %v1510 = vpack.c.b16 %v1174, %v1166
    %v1511 = vpack.c.b16 %v1175, %v1167
    %v1512 = vpack.c.b16 %v1176, %v1168
    %v1513 = vpack.c.b16 %v1177, %v1169
    %v1514 = vpack.c.b16 %v1178, %v1170
    %v1515 = vpack.c.b16 %v1179, %v1171
    %v1516 = vpack.c.b16 %v1180, %v1172
    %v1517 = vpack.c.b16 %v1189, %v1181
    %v1518 = vpack.c.b16 %v1190, %v1182
    %v1519 = vpack.c.b16 %v1191, %v1183
    %v1520 = vpack.c.b16 %v1192, %v1184
    %v1521 = vpack.c.b16 %v1193, %v1185
    %v1522 = vpack.c.b16 %v1194, %v1186
    %v1523 = vpack.c.b16 %v1195, %v1187
    %v1524 = vpack.c.b16 %v1196, %v1188
    %v1525 = vpack.c.b16 %v1205, %v1197
    %v1526 = vpack.c.b16 %v1206, %v1198
    %v1527 = vpack.c.b16 %v1207, %v1199
    %v1528 = vpack.c.b16 %v1208, %v1200
    %v1529 = vpack.c.b16 %v1209, %v1201
    %v1530 = vpack.c.b16 %v1210, %v1202
    %v1531 = vpack.c.b16 %v1211, %v1203
    %v1532 = vpack.c.b16 %v1212, %v1204
    %v1533 = vpack.c.b16 %v1221, %v1213
    %v1534 = vpack.c.b16 %v1222, %v1214
    %v1535 = vpack.c.b16 %v1223, %v1215
    %v1536 = vpack.c.b16 %v1224, %v1216
    %v1537 = vpack.c.b16 %v1225, %v1217
    %v1538 = vpack.c.b16 %v1226, %v1218
    %v1539 = vpack.c.b16 %v1227, %v1219
    %v1540 = vpack.c.b16 %v1228, %v1220
    %v1541 = vpack.c.b16 %v1237, %v1229
    %v1542 = vpack.c.b16 %v1238, %v1230
    %v1543 = vpack.c.b16 %v1239, %v1231
    %v1544 = vpack.c.b16 %v1240, %v1232
    %v1545 = vpack.c.b16 %v1241, %v1233
    %v1546 = vpack.c.b16 %v1242, %v1234
    %v1547 = vpack.c.b16 %v1243, %v1235
    %v1548 = vpack.c.b16 %v1244, %v1236
    %v1549 = vpack.c.b16 %v1253, %v1245
    %v1550 = vpack.c.b16 %v1254, %v1246
    %v1551 = vpack.c.b16 %v1255, %v1247
    %v1552 = vpack.c.b16 %v1256, %v1248
    %v1553 = vpack.c.b16 %v1257, %v1249
    %v1554 = vpack.c.b16 %v1258, %v1250
    %v1555 = vpack.c.b16 %v1259, %v1251
    %v1556 = vpack.c.b16 %v1260, %v1252
    %v1557 = vpack.c.b16 %v1269, %v1261
    %v1558 = vpack.c.b16 %v1270, %v1262
    %v1559 = vpack.c.b16 %v1271, %v1263
    %v1560 = vpack.c.b16 %v1272, %v1264
    %v1561 = vpack.c.b16 %v1273, %v1265
    %v1562 = vpack.c.b16 %v1274, %v1266
    %v1563 = vpack.c.b16 %v1275, %v1267
    %v1564 = vpack.c.b16 %v1276, %v1268
    %v1565 = vpack.c.b16 %v1285, %v1277
    %v1566 = vpack.c.b16 %v1286, %v1278
    %v1567 = vpack.c.b16 %v1287, %v1279
    %v1568 = vpack.c.b16 %v1288, %v1280
    %v1569 = vpack.c.b16 %v1289, %v1281
    %v1570 = vpack.c.b16 %v1290, %v1282
    %v1571 = vpack.c.b16 %v1291, %v1283
    %v1572 = vpack.c.b16 %v1292, %v1284
    %v1573 = vpack.c.b16 %v1301, %v1293
    %v1574 = vpack.c.b16 %v1302, %v1294
    %v1575 = vpack.c.b16 %v1303, %v1295
    %v1576 = vpack.c.b16 %v1304, %v1296
    %v1577 = vpack.c.b16 %v1305, %v1297
    %v1578 = vpack.c.b16 %v1306, %v1298
    %v1579 = vpack.c.b16 %v1307, %v1299
    %v1580 = vpack.c.b16 %v1308, %v1300
    %v1581 = vpack.c.b16 %v1317, %v1309
    %v1582 = vpack.c.b16 %v1318, %v1310
    %v1583 = vpack.c.b16 %v1319, %v1311
    %v1584 = vpack.c.b16 %v1320, %v1312
    %v1585 = vpack.c.b16 %v1321, %v1313
    %v1586 = vpack.c.b16 %v1322, %v1314
    %v1587 = vpack.c.b16 %v1323, %v1315
    %v1588 = vpack.c.b16 %v1324, %v1316
    %v1589 = vpack.c.b16 %v1333, %v1325
    %v1590 = vpack.c.b16 %v1334, %v1326
    %v1591 = vpack.c.b16 %v1335, %v1327
    %v1592 = vpack.c.b16 %v1336, %v1328
    %v1593 = vpack.c.b16 %v1337, %v1329
    %v1594 = vpack.c.b16 %v1338, %v1330
    %v1595 = vpack.c.b16 %v1339, %v1331
    %v1596 = vpack.c.b16 %v1340, %v1332
    %1853 = vmatprep.subr.bf16.mxu0 %v1342
    %1854 = vmatpush1.bf16.msra.mxu0 %v1341
    %1855 = vmatprep.subr.bf16.mxu0 %v1350
    %1856 = vmatpush1.bf16.msra.mxu0 %v1349
    %1857 = vmatprep.subr.bf16.mxu0 %v1358
    %1858 = vmatpush1.bf16.msra.mxu0 %v1357
    %1859 = vmatprep.subr.bf16.mxu0 %v1366
    %1860 = vmatpush1.bf16.msra.mxu0 %v1365
    %1861 = vmatprep.subr.bf16.mxu0 %v1374
    %1862 = vmatpush1.bf16.msra.mxu0 %v1373
    %1863 = vmatprep.subr.bf16.mxu0 %v1382
    %1864 = vmatpush1.bf16.msra.mxu0 %v1381
    %1865 = vmatprep.subr.bf16.mxu0 %v1390
    %1866 = vmatpush1.bf16.msra.mxu0 %v1389
    %1867 = vmatprep.subr.bf16.mxu0 %v1398
    %1868 = vmatpush1.bf16.msra.mxu0 %v1397
    %1869 = vmatprep.subr.bf16.mxu0 %v1406
    %1870 = vmatpush1.bf16.msra.mxu0 %v1405
    %1871 = vmatprep.subr.bf16.mxu0 %v1414
    %1872 = vmatpush1.bf16.msra.mxu0 %v1413
    %1873 = vmatprep.subr.bf16.mxu0 %v1422
    %1874 = vmatpush1.bf16.msra.mxu0 %v1421
    %1875 = vmatprep.subr.bf16.mxu0 %v1430
    %1876 = vmatpush1.bf16.msra.mxu0 %v1429
    %1877 = vmatprep.subr.bf16.mxu0 %v1438
    %1878 = vmatpush1.bf16.msra.mxu0 %v1437
    %1879 = vmatprep.subr.bf16.mxu0 %v1446
    %1880 = vmatpush1.bf16.msra.mxu0 %v1445
    %1881 = vmatprep.subr.bf16.mxu0 %v1454
    %1882 = vmatpush1.bf16.msra.mxu0 %v1453
    %1883 = vmatprep.subr.bf16.mxu0 %v1462
    %1884 = vmatpush1.bf16.msra.mxu0 %v1461
    %1885 = vmatprep.mubr.bf16.mxu0 %v566
    %1886 = vmatmul.mubr.bf16.gmra.mrb[0].mxu0 %v565
    %v1887 = vpop.f32.mrb[0].mxu0
    %v1888 = vadd.f32 %v522, %v1887
    %v1889 = vpop.f32.mrb[0].mxu0
    %v1890 = vadd.f32 %v526, %v1889
    %v1891 = vpop.f32.mrb[0].mxu0
    %v1892 = vpop.f32.mrb[0].mxu0
    %1893 = vdwg.mxu0
    %1894 = vmatprep.subr.bf16.mxu0 %v1470
    %1895 = vmatpush1.bf16.msra.mxu0 %v1469
    %1896 = vmatprep.subr.bf16.mxu0 %v1478
    %1897 = vmatpush1.bf16.msra.mxu0 %v1477
    %1898 = vmatprep.subr.bf16.mxu0 %v1486
    %1899 = vmatpush1.bf16.msra.mxu0 %v1485
    %1900 = vmatprep.subr.bf16.mxu0 %v1494
    %1901 = vmatpush1.bf16.msra.mxu0 %v1493
    %1902 = vmatprep.subr.bf16.mxu0 %v1502
    %1903 = vmatpush1.bf16.msra.mxu0 %v1501
    %1904 = vmatprep.subr.bf16.mxu0 %v1510
    %1905 = vmatpush1.bf16.msra.mxu0 %v1509
    %1906 = vmatprep.subr.bf16.mxu0 %v1518
    %1907 = vmatpush1.bf16.msra.mxu0 %v1517
    %1908 = vmatprep.subr.bf16.mxu0 %v1526
    %1909 = vmatpush1.bf16.msra.mxu0 %v1525
    %1910 = vmatprep.subr.bf16.mxu0 %v1534
    %1911 = vmatpush1.bf16.msra.mxu0 %v1533
    %1912 = vmatprep.subr.bf16.mxu0 %v1542
    %1913 = vmatpush1.bf16.msra.mxu0 %v1541
    %1914 = vmatprep.subr.bf16.mxu0 %v1550
    %1915 = vmatpush1.bf16.msra.mxu0 %v1549
    %1916 = vmatprep.subr.bf16.mxu0 %v1558
    %1917 = vmatpush1.bf16.msra.mxu0 %v1557
    %1918 = vmatprep.subr.bf16.mxu0 %v1566
    %1919 = vmatpush1.bf16.msra.mxu0 %v1565
    %1920 = vmatprep.subr.bf16.mxu0 %v1574
    %1921 = vmatpush1.bf16.msra.mxu0 %v1573
    %1922 = vmatprep.subr.bf16.mxu0 %v1582
    %1923 = vmatpush1.bf16.msra.mxu0 %v1581
    %1924 = vmatprep.subr.bf16.mxu0 %v1590
    %1925 = vmatpush1.bf16.msra.mxu0 %v1589
    %1926 = vmatprep.mubr.bf16.mxu0 %v568
    %1927 = vmatmul.mubr.bf16.gmra.mrb[0].mxu0 %v567
    %v1928 = vpop.f32.mrb[0].mxu0
    %v1929 = vadd.f32 %v1888, %v1928
    %v1930 = vpop.f32.mrb[0].mxu0
    %v1931 = vadd.f32 %v1890, %v1930
    %v1932 = vpop.f32.mrb[0].mxu0
    %v1933 = vpop.f32.mrb[0].mxu0
    %1934 = vdwg.mxu0
    %1935 = vmatprep.subr.bf16.mxu0 %v1344
    %1936 = vmatpush1.bf16.msra.mxu0 %v1343
    %1937 = vmatprep.subr.bf16.mxu0 %v1352
    %1938 = vmatpush1.bf16.msra.mxu0 %v1351
    %1939 = vmatprep.subr.bf16.mxu0 %v1360
    %1940 = vmatpush1.bf16.msra.mxu0 %v1359
    %1941 = vmatprep.subr.bf16.mxu0 %v1368
    %1942 = vmatpush1.bf16.msra.mxu0 %v1367
    %1943 = vmatprep.subr.bf16.mxu0 %v1376
    %1944 = vmatpush1.bf16.msra.mxu0 %v1375
    %1945 = vmatprep.subr.bf16.mxu0 %v1384
    %1946 = vmatpush1.bf16.msra.mxu0 %v1383
    %1947 = vmatprep.subr.bf16.mxu0 %v1392
    %1948 = vmatpush1.bf16.msra.mxu0 %v1391
    %1949 = vmatprep.subr.bf16.mxu0 %v1400
    %1950 = vmatpush1.bf16.msra.mxu0 %v1399
    %1951 = vmatprep.subr.bf16.mxu0 %v1408
    %1952 = vmatpush1.bf16.msra.mxu0 %v1407
    %1953 = vmatprep.subr.bf16.mxu0 %v1416
    %1954 = vmatpush1.bf16.msra.mxu0 %v1415
    %1955 = vmatprep.subr.bf16.mxu0 %v1424
    %1956 = vmatpush1.bf16.msra.mxu0 %v1423
    %1957 = vmatprep.subr.bf16.mxu0 %v1432
    %1958 = vmatpush1.bf16.msra.mxu0 %v1431
    %1959 = vmatprep.subr.bf16.mxu0 %v1440
    %1960 = vmatpush1.bf16.msra.mxu0 %v1439
    %1961 = vmatprep.subr.bf16.mxu0 %v1448
    %1962 = vmatpush1.bf16.msra.mxu0 %v1447
    %1963 = vmatprep.subr.bf16.mxu0 %v1456
    %1964 = vmatpush1.bf16.msra.mxu0 %v1455
    %1965 = vmatprep.subr.bf16.mxu0 %v1464
    %1966 = vmatpush1.bf16.msra.mxu0 %v1463
    %1967 = vmatprep.mubr.bf16.mxu0 %v566
    %1968 = vmatmul.mubr.bf16.gmra.mrb[0].mxu0 %v565
    %v1969 = vpop.f32.mrb[0].mxu0
    %v1970 = vadd.f32 %v530, %v1969
    %v1971 = vpop.f32.mrb[0].mxu0
    %v1972 = vadd.f32 %v534, %v1971
    %v1973 = vpop.f32.mrb[0].mxu0
    %v1974 = vpop.f32.mrb[0].mxu0
    %1975 = vdwg.mxu0
    %1976 = vmatprep.subr.bf16.mxu0 %v1472
    %1977 = vmatpush1.bf16.msra.mxu0 %v1471
    %1978 = vmatprep.subr.bf16.mxu0 %v1480
    %1979 = vmatpush1.bf16.msra.mxu0 %v1479
    %1980 = vmatprep.subr.bf16.mxu0 %v1488
    %1981 = vmatpush1.bf16.msra.mxu0 %v1487
    %1982 = vmatprep.subr.bf16.mxu0 %v1496
    %1983 = vmatpush1.bf16.msra.mxu0 %v1495
    %1984 = vmatprep.subr.bf16.mxu0 %v1504
    %1985 = vmatpush1.bf16.msra.mxu0 %v1503
    %1986 = vmatprep.subr.bf16.mxu0 %v1512
    %1987 = vmatpush1.bf16.msra.mxu0 %v1511
    %1988 = vmatprep.subr.bf16.mxu0 %v1520
    %1989 = vmatpush1.bf16.msra.mxu0 %v1519
    %1990 = vmatprep.subr.bf16.mxu0 %v1528
    %1991 = vmatpush1.bf16.msra.mxu0 %v1527
    %1992 = vmatprep.subr.bf16.mxu0 %v1536
    %1993 = vmatpush1.bf16.msra.mxu0 %v1535
    %1994 = vmatprep.subr.bf16.mxu0 %v1544
    %1995 = vmatpush1.bf16.msra.mxu0 %v1543
    %1996 = vmatprep.subr.bf16.mxu0 %v1552
    %1997 = vmatpush1.bf16.msra.mxu0 %v1551
    %1998 = vmatprep.subr.bf16.mxu0 %v1560
    %1999 = vmatpush1.bf16.msra.mxu0 %v1559
    %2000 = vmatprep.subr.bf16.mxu0 %v1568
    %2001 = vmatpush1.bf16.msra.mxu0 %v1567
    %2002 = vmatprep.subr.bf16.mxu0 %v1576
    %2003 = vmatpush1.bf16.msra.mxu0 %v1575
    %2004 = vmatprep.subr.bf16.mxu0 %v1584
    %2005 = vmatpush1.bf16.msra.mxu0 %v1583
    %2006 = vmatprep.subr.bf16.mxu0 %v1592
    %2007 = vmatpush1.bf16.msra.mxu0 %v1591
    %2008 = vmatprep.mubr.bf16.mxu0 %v568
    %2009 = vmatmul.mubr.bf16.gmra.mrb[0].mxu0 %v567
    %v2010 = vpop.f32.mrb[0].mxu0
    %v2011 = vadd.f32 %v1970, %v2010
    %v2012 = vpop.f32.mrb[0].mxu0
    %v2013 = vadd.f32 %v1972, %v2012
    %v2014 = vpop.f32.mrb[0].mxu0
    %v2015 = vpop.f32.mrb[0].mxu0
    %2016 = vdwg.mxu0
    %2017 = vmatprep.subr.bf16.mxu0 %v1346
    %2018 = vmatpush1.bf16.msra.mxu0 %v1345
    %2019 = vmatprep.subr.bf16.mxu0 %v1354
    %2020 = vmatpush1.bf16.msra.mxu0 %v1353
    %2021 = vmatprep.subr.bf16.mxu0 %v1362
    %2022 = vmatpush1.bf16.msra.mxu0 %v1361
    %2023 = vmatprep.subr.bf16.mxu0 %v1370
    %2024 = vmatpush1.bf16.msra.mxu0 %v1369
    %2025 = vmatprep.subr.bf16.mxu0 %v1378
    %2026 = vmatpush1.bf16.msra.mxu0 %v1377
    %2027 = vmatprep.subr.bf16.mxu0 %v1386
    %2028 = vmatpush1.bf16.msra.mxu0 %v1385
    %2029 = vmatprep.subr.bf16.mxu0 %v1394
    %2030 = vmatpush1.bf16.msra.mxu0 %v1393
    %2031 = vmatprep.subr.bf16.mxu0 %v1402
    %2032 = vmatpush1.bf16.msra.mxu0 %v1401
    %2033 = vmatprep.subr.bf16.mxu0 %v1410
    %2034 = vmatpush1.bf16.msra.mxu0 %v1409
    %2035 = vmatprep.subr.bf16.mxu0 %v1418
    %2036 = vmatpush1.bf16.msra.mxu0 %v1417
    %2037 = vmatprep.subr.bf16.mxu0 %v1426
    %2038 = vmatpush1.bf16.msra.mxu0 %v1425
    %2039 = vmatprep.subr.bf16.mxu0 %v1434
    %2040 = vmatpush1.bf16.msra.mxu0 %v1433
    %2041 = vmatprep.subr.bf16.mxu0 %v1442
    %2042 = vmatpush1.bf16.msra.mxu0 %v1441
    %2043 = vmatprep.subr.bf16.mxu0 %v1450
    %2044 = vmatpush1.bf16.msra.mxu0 %v1449
    %2045 = vmatprep.subr.bf16.mxu0 %v1458
    %2046 = vmatpush1.bf16.msra.mxu0 %v1457
    %2047 = vmatprep.subr.bf16.mxu0 %v1466
    %2048 = vmatpush1.bf16.msra.mxu0 %v1465
    %2049 = vmatprep.mubr.bf16.mxu0 %v566
    %2050 = vmatmul.mubr.bf16.gmra.mrb[0].mxu0 %v565
    %v2051 = vpop.f32.mrb[0].mxu0
    %v2052 = vadd.f32 %v538, %v2051
    %v2053 = vpop.f32.mrb[0].mxu0
    %v2054 = vadd.f32 %v542, %v2053
    %v2055 = vpop.f32.mrb[0].mxu0
    %v2056 = vpop.f32.mrb[0].mxu0
    %2057 = vdwg.mxu0
    %2058 = vmatprep.subr.bf16.mxu0 %v1474
    %2059 = vmatpush1.bf16.msra.mxu0 %v1473
    %2060 = vmatprep.subr.bf16.mxu0 %v1482
    %2061 = vmatpush1.bf16.msra.mxu0 %v1481
    %2062 = vmatprep.subr.bf16.mxu0 %v1490
    %2063 = vmatpush1.bf16.msra.mxu0 %v1489
    %2064 = vmatprep.subr.bf16.mxu0 %v1498
    %2065 = vmatpush1.bf16.msra.mxu0 %v1497
    %2066 = vmatprep.subr.bf16.mxu0 %v1506
    %2067 = vmatpush1.bf16.msra.mxu0 %v1505
    %2068 = vmatprep.subr.bf16.mxu0 %v1514
    %2069 = vmatpush1.bf16.msra.mxu0 %v1513
    %2070 = vmatprep.subr.bf16.mxu0 %v1522
    %2071 = vmatpush1.bf16.msra.mxu0 %v1521
    %2072 = vmatprep.subr.bf16.mxu0 %v1530
    %2073 = vmatpush1.bf16.msra.mxu0 %v1529
    %2074 = vmatprep.subr.bf16.mxu0 %v1538
    %2075 = vmatpush1.bf16.msra.mxu0 %v1537
    %2076 = vmatprep.subr.bf16.mxu0 %v1546
    %2077 = vmatpush1.bf16.msra.mxu0 %v1545
    %2078 = vmatprep.subr.bf16.mxu0 %v1554
    %2079 = vmatpush1.bf16.msra.mxu0 %v1553
    %2080 = vmatprep.subr.bf16.mxu0 %v1562
    %2081 = vmatpush1.bf16.msra.mxu0 %v1561
    %2082 = vmatprep.subr.bf16.mxu0 %v1570
    %2083 = vmatpush1.bf16.msra.mxu0 %v1569
    %2084 = vmatprep.subr.bf16.mxu0 %v1578
    %2085 = vmatpush1.bf16.msra.mxu0 %v1577
    %2086 = vmatprep.subr.bf16.mxu0 %v1586
    %2087 = vmatpush1.bf16.msra.mxu0 %v1585
    %2088 = vmatprep.subr.bf16.mxu0 %v1594
    %2089 = vmatpush1.bf16.msra.mxu0 %v1593
    %2090 = vmatprep.mubr.bf16.mxu0 %v568
    %2091 = vmatmul.mubr.bf16.gmra.mrb[0].mxu0 %v567
    %v2092 = vpop.f32.mrb[0].mxu0
    %v2093 = vadd.f32 %v2052, %v2092
    %v2094 = vpop.f32.mrb[0].mxu0
    %v2095 = vadd.f32 %v2054, %v2094
    %v2096 = vpop.f32.mrb[0].mxu0
    %v2097 = vpop.f32.mrb[0].mxu0
    %2098 = vdwg.mxu0
    %2099 = vmatprep.subr.bf16.mxu0 %v1348
    %2100 = vmatpush1.bf16.msra.mxu0 %v1347
    %2101 = vmatprep.subr.bf16.mxu0 %v1356
    %2102 = vmatpush1.bf16.msra.mxu0 %v1355
    %2103 = vmatprep.subr.bf16.mxu0 %v1364
    %2104 = vmatpush1.bf16.msra.mxu0 %v1363
    %2105 = vmatprep.subr.bf16.mxu0 %v1372
    %2106 = vmatpush1.bf16.msra.mxu0 %v1371
    %2107 = vmatprep.subr.bf16.mxu0 %v1380
    %2108 = vmatpush1.bf16.msra.mxu0 %v1379
    %2109 = vmatprep.subr.bf16.mxu0 %v1388
    %2110 = vmatpush1.bf16.msra.mxu0 %v1387
    %2111 = vmatprep.subr.bf16.mxu0 %v1396
    %2112 = vmatpush1.bf16.msra.mxu0 %v1395
    %2113 = vmatprep.subr.bf16.mxu0 %v1404
    %2114 = vmatpush1.bf16.msra.mxu0 %v1403
    %2115 = vmatprep.subr.bf16.mxu0 %v1412
    %2116 = vmatpush1.bf16.msra.mxu0 %v1411
    %2117 = vmatprep.subr.bf16.mxu0 %v1420
    %2118 = vmatpush1.bf16.msra.mxu0 %v1419
    %2119 = vmatprep.subr.bf16.mxu0 %v1428
    %2120 = vmatpush1.bf16.msra.mxu0 %v1427
    %2121 = vmatprep.subr.bf16.mxu0 %v1436
    %2122 = vmatpush1.bf16.msra.mxu0 %v1435
    %2123 = vmatprep.subr.bf16.mxu0 %v1444
    %2124 = vmatpush1.bf16.msra.mxu0 %v1443
    %2125 = vmatprep.subr.bf16.mxu0 %v1452
    %2126 = vmatpush1.bf16.msra.mxu0 %v1451
    %2127 = vmatprep.subr.bf16.mxu0 %v1460
    %2128 = vmatpush1.bf16.msra.mxu0 %v1459
    %2129 = vmatprep.subr.bf16.mxu0 %v1468
    %2130 = vmatpush1.bf16.msra.mxu0 %v1467
    %2131 = vmatprep.mubr.bf16.mxu0 %v566
    %2132 = vmatmul.mubr.bf16.gmra.mrb[0].mxu0 %v565
    %v2133 = vpop.f32.mrb[0].mxu0
    %v2134 = vadd.f32 %v546, %v2133
    %v2135 = vpop.f32.mrb[0].mxu0
    %v2136 = vadd.f32 %v550, %v2135
    %v2137 = vpop.f32.mrb[0].mxu0
    %v2138 = vpop.f32.mrb[0].mxu0
    %2139 = vdwg.mxu0
    %2140 = vmatprep.subr.bf16.mxu0 %v1476
    %2141 = vmatpush1.bf16.msra.mxu0 %v1475
    %2142 = vmatprep.subr.bf16.mxu0 %v1484
    %2143 = vmatpush1.bf16.msra.mxu0 %v1483
    %2144 = vmatprep.subr.bf16.mxu0 %v1492
    %2145 = vmatpush1.bf16.msra.mxu0 %v1491
    %2146 = vmatprep.subr.bf16.mxu0 %v1500
    %2147 = vmatpush1.bf16.msra.mxu0 %v1499
    %2148 = vmatprep.subr.bf16.mxu0 %v1508
    %2149 = vmatpush1.bf16.msra.mxu0 %v1507
    %2150 = vmatprep.subr.bf16.mxu0 %v1516
    %2151 = vmatpush1.bf16.msra.mxu0 %v1515
    %2152 = vmatprep.subr.bf16.mxu0 %v1524
    %2153 = vmatpush1.bf16.msra.mxu0 %v1523
    %2154 = vmatprep.subr.bf16.mxu0 %v1532
    %2155 = vmatpush1.bf16.msra.mxu0 %v1531
    %2156 = vmatprep.subr.bf16.mxu0 %v1540
    %2157 = vmatpush1.bf16.msra.mxu0 %v1539
    %2158 = vmatprep.subr.bf16.mxu0 %v1548
    %2159 = vmatpush1.bf16.msra.mxu0 %v1547
    %2160 = vmatprep.subr.bf16.mxu0 %v1556
    %2161 = vmatpush1.bf16.msra.mxu0 %v1555
    %2162 = vmatprep.subr.bf16.mxu0 %v1564
    %2163 = vmatpush1.bf16.msra.mxu0 %v1563
    %2164 = vmatprep.subr.bf16.mxu0 %v1572
    %2165 = vmatpush1.bf16.msra.mxu0 %v1571
    %2166 = vmatprep.subr.bf16.mxu0 %v1580
    %2167 = vmatpush1.bf16.msra.mxu0 %v1579
    %2168 = vmatprep.subr.bf16.mxu0 %v1588
    %2169 = vmatpush1.bf16.msra.mxu0 %v1587
    %2170 = vmatprep.subr.bf16.mxu0 %v1596
    %2171 = vmatpush1.bf16.msra.mxu0 %v1595
    %2172 = vmatprep.mubr.bf16.mxu0 %v568
    %2173 = vmatmul.mubr.bf16.gmra.mrb[0].mxu0 %v567
    %v2174 = vpop.f32.mrb[0].mxu0
    %v2175 = vadd.f32 %v2134, %v2174
    %v2176 = vpop.f32.mrb[0].mxu0
    %v2177 = vadd.f32 %v2136, %v2176
    %v2178 = vpop.f32.mrb[0].mxu0
    %v2179 = vpop.f32.mrb[0].mxu0
    %2180 = vdwg.mxu0
    %v2181 = vmax.f32 %v1929, 0.0
    %v2182 = vmax.f32 %v1931, 0.0
    %v2183 = vmax.f32 %v2011, 0.0
    %v2184 = vmax.f32 %v2013, 0.0
    %v2185 = vmax.f32 %v2093, 0.0
    %v2186 = vmax.f32 %v2095, 0.0
    %v2187 = vmax.f32 %v2175, 0.0
    %v2188 = vmax.f32 %v2177, 0.0
    %v2189 = vpack.c.bf16 %v2181, %v2181
    %v2190 = vpack.c.bf16 %v2182, %v2182
    %v2191 = vpack.c.bf16 %v2183, %v2183
    %v2192 = vpack.c.bf16 %v2184, %v2184
    %v2193 = vpack.c.bf16 %v2185, %v2185
    %v2194 = vpack.c.bf16 %v2186, %v2186
    %v2195 = vpack.c.bf16 %v2187, %v2187
    %v2196 = vpack.c.bf16 %v2188, %v2188
    %v2197 = vld [vmem:[#allocation7] sm:$0xff]
    %v2198 = vld [vmem:[#allocation7 + $0x8] sm:$0xff]
    %v2199 = vld [vmem:[#allocation7 + $0x10] sm:$0xff]
    %v2200 = vld [vmem:[#allocation7 + $0x18] sm:$0xff]
    %v2201 = vld [vmem:[#allocation7 + $0x20] sm:$0xff]
    %v2202 = vld [vmem:[#allocation7 + $0x28] sm:$0xff]
    %v2203 = vld [vmem:[#allocation7 + $0x30] sm:$0xff]
    %v2204 = vld [vmem:[#allocation7 + $0x38] sm:$0xff]
    %v2205 = vld [vmem:[#allocation7 + $0x40] sm:$0xff]
    %v2206 = vld [vmem:[#allocation7 + $0x48] sm:$0xff]
    %v2207 = vld [vmem:[#allocation7 + $0x50] sm:$0xff]
    %v2208 = vld [vmem:[#allocation7 + $0x58] sm:$0xff]
    %v2209 = vld [vmem:[#allocation7 + $0x60] sm:$0xff]
    %v2210 = vld [vmem:[#allocation7 + $0x68] sm:$0xff]
    %v2211 = vld [vmem:[#allocation7 + $0x70] sm:$0xff]
    %v2212 = vld [vmem:[#allocation7 + $0x78] sm:$0xff]
    %v2213 = vld [vmem:[#allocation7 + $0x80] sm:$0xff]
    %v2214 = vld [vmem:[#allocation7 + $0x88] sm:$0xff]
    %v2215 = vld [vmem:[#allocation7 + $0x90] sm:$0xff]
    %v2216 = vld [vmem:[#allocation7 + $0x98] sm:$0xff]
    %v2217 = vld [vmem:[#allocation7 + $0xa0] sm:$0xff]
    %v2218 = vld [vmem:[#allocation7 + $0xa8] sm:$0xff]
    %v2219 = vld [vmem:[#allocation7 + $0xb0] sm:$0xff]
    %v2220 = vld [vmem:[#allocation7 + $0xb8] sm:$0xff]
    %v2221 = vld [vmem:[#allocation7 + $0xc0] sm:$0xff]
    %v2222 = vld [vmem:[#allocation7 + $0xc8] sm:$0xff]
    %v2223 = vld [vmem:[#allocation7 + $0xd0] sm:$0xff]
    %v2224 = vld [vmem:[#allocation7 + $0xd8] sm:$0xff]
    %v2225 = vld [vmem:[#allocation7 + $0xe0] sm:$0xff]
    %v2226 = vld [vmem:[#allocation7 + $0xe8] sm:$0xff]
    %v2227 = vld [vmem:[#allocation7 + $0xf0] sm:$0xff]
    %v2228 = vld [vmem:[#allocation7 + $0xf8] sm:$0xff]
    %v2229 = vld [vmem:[#allocation7 + $0x100] sm:$0xff]
    %v2230 = vld [vmem:[#allocation7 + $0x108] sm:$0xff]
    %v2231 = vld [vmem:[#allocation7 + $0x110] sm:$0xff]
    %v2232 = vld [vmem:[#allocation7 + $0x118] sm:$0xff]
    %v2233 = vld [vmem:[#allocation7 + $0x120] sm:$0xff]
    %v2234 = vld [vmem:[#allocation7 + $0x128] sm:$0xff]
    %v2235 = vld [vmem:[#allocation7 + $0x130] sm:$0xff]
    %v2236 = vld [vmem:[#allocation7 + $0x138] sm:$0xff]
    %v2237 = vld [vmem:[#allocation7 + $0x140] sm:$0xff]
    %v2238 = vld [vmem:[#allocation7 + $0x148] sm:$0xff]
    %v2239 = vld [vmem:[#allocation7 + $0x150] sm:$0xff]
    %v2240 = vld [vmem:[#allocation7 + $0x158] sm:$0xff]
    %v2241 = vld [vmem:[#allocation7 + $0x160] sm:$0xff]
    %v2242 = vld [vmem:[#allocation7 + $0x168] sm:$0xff]
    %v2243 = vld [vmem:[#allocation7 + $0x170] sm:$0xff]
    %v2244 = vld [vmem:[#allocation7 + $0x178] sm:$0xff]
    %v2245 = vld [vmem:[#allocation7 + $0x180] sm:$0xff]
    %v2246 = vld [vmem:[#allocation7 + $0x188] sm:$0xff]
    %v2247 = vld [vmem:[#allocation7 + $0x190] sm:$0xff]
    %v2248 = vld [vmem:[#allocation7 + $0x198] sm:$0xff]
    %v2249 = vld [vmem:[#allocation7 + $0x1a0] sm:$0xff]
    %v2250 = vld [vmem:[#allocation7 + $0x1a8] sm:$0xff]
    %v2251 = vld [vmem:[#allocation7 + $0x1b0] sm:$0xff]
    %v2252 = vld [vmem:[#allocation7 + $0x1b8] sm:$0xff]
    %v2253 = vld [vmem:[#allocation7 + $0x1c0] sm:$0xff]
    %v2254 = vld [vmem:[#allocation7 + $0x1c8] sm:$0xff]
    %v2255 = vld [vmem:[#allocation7 + $0x1d0] sm:$0xff]
    %v2256 = vld [vmem:[#allocation7 + $0x1d8] sm:$0xff]
    %v2257 = vld [vmem:[#allocation7 + $0x1e0] sm:$0xff]
    %v2258 = vld [vmem:[#allocation7 + $0x1e8] sm:$0xff]
    %v2259 = vld [vmem:[#allocation7 + $0x1f0] sm:$0xff]
    %v2260 = vld [vmem:[#allocation7 + $0x1f8] sm:$0xff]
    %v2261 = vld [vmem:[#allocation7 + $0x200] sm:$0xff]
    %v2262 = vld [vmem:[#allocation7 + $0x208] sm:$0xff]
    %v2263 = vld [vmem:[#allocation7 + $0x210] sm:$0xff]
    %v2264 = vld [vmem:[#allocation7 + $0x218] sm:$0xff]
    %v2265 = vld [vmem:[#allocation7 + $0x220] sm:$0xff]
    %v2266 = vld [vmem:[#allocation7 + $0x228] sm:$0xff]
    %v2267 = vld [vmem:[#allocation7 + $0x230] sm:$0xff]
    %v2268 = vld [vmem:[#allocation7 + $0x238] sm:$0xff]
    %v2269 = vld [vmem:[#allocation7 + $0x240] sm:$0xff]
    %v2270 = vld [vmem:[#allocation7 + $0x248] sm:$0xff]
    %v2271 = vld [vmem:[#allocation7 + $0x250] sm:$0xff]
    %v2272 = vld [vmem:[#allocation7 + $0x258] sm:$0xff]
    %v2273 = vld [vmem:[#allocation7 + $0x260] sm:$0xff]
    %v2274 = vld [vmem:[#allocation7 + $0x268] sm:$0xff]
    %v2275 = vld [vmem:[#allocation7 + $0x270] sm:$0xff]
    %v2276 = vld [vmem:[#allocation7 + $0x278] sm:$0xff]
    %v2277 = vld [vmem:[#allocation7 + $0x280] sm:$0xff]
    %v2278 = vld [vmem:[#allocation7 + $0x288] sm:$0xff]
    %v2279 = vld [vmem:[#allocation7 + $0x290] sm:$0xff]
    %v2280 = vld [vmem:[#allocation7 + $0x298] sm:$0xff]
    %v2281 = vld [vmem:[#allocation7 + $0x2a0] sm:$0xff]
    %v2282 = vld [vmem:[#allocation7 + $0x2a8] sm:$0xff]
    %v2283 = vld [vmem:[#allocation7 + $0x2b0] sm:$0xff]
    %v2284 = vld [vmem:[#allocation7 + $0x2b8] sm:$0xff]
    %v2285 = vld [vmem:[#allocation7 + $0x2c0] sm:$0xff]
    %v2286 = vld [vmem:[#allocation7 + $0x2c8] sm:$0xff]
    %v2287 = vld [vmem:[#allocation7 + $0x2d0] sm:$0xff]
    %v2288 = vld [vmem:[#allocation7 + $0x2d8] sm:$0xff]
    %v2289 = vld [vmem:[#allocation7 + $0x2e0] sm:$0xff]
    %v2290 = vld [vmem:[#allocation7 + $0x2e8] sm:$0xff]
    %v2291 = vld [vmem:[#allocation7 + $0x2f0] sm:$0xff]
    %v2292 = vld [vmem:[#allocation7 + $0x2f8] sm:$0xff]
    %v2293 = vld [vmem:[#allocation7 + $0x300] sm:$0xff]
    %v2294 = vld [vmem:[#allocation7 + $0x308] sm:$0xff]
    %v2295 = vld [vmem:[#allocation7 + $0x310] sm:$0xff]
    %v2296 = vld [vmem:[#allocation7 + $0x318] sm:$0xff]
    %v2297 = vld [vmem:[#allocation7 + $0x320] sm:$0xff]
    %v2298 = vld [vmem:[#allocation7 + $0x328] sm:$0xff]
    %v2299 = vld [vmem:[#allocation7 + $0x330] sm:$0xff]
    %v2300 = vld [vmem:[#allocation7 + $0x338] sm:$0xff]
    %v2301 = vld [vmem:[#allocation7 + $0x340] sm:$0xff]
    %v2302 = vld [vmem:[#allocation7 + $0x348] sm:$0xff]
    %v2303 = vld [vmem:[#allocation7 + $0x350] sm:$0xff]
    %v2304 = vld [vmem:[#allocation7 + $0x358] sm:$0xff]
    %v2305 = vld [vmem:[#allocation7 + $0x360] sm:$0xff]
    %v2306 = vld [vmem:[#allocation7 + $0x368] sm:$0xff]
    %v2307 = vld [vmem:[#allocation7 + $0x370] sm:$0xff]
    %v2308 = vld [vmem:[#allocation7 + $0x378] sm:$0xff]
    %v2309 = vld [vmem:[#allocation7 + $0x380] sm:$0xff]
    %v2310 = vld [vmem:[#allocation7 + $0x388] sm:$0xff]
    %v2311 = vld [vmem:[#allocation7 + $0x390] sm:$0xff]
    %v2312 = vld [vmem:[#allocation7 + $0x398] sm:$0xff]
    %v2313 = vld [vmem:[#allocation7 + $0x3a0] sm:$0xff]
    %v2314 = vld [vmem:[#allocation7 + $0x3a8] sm:$0xff]
    %v2315 = vld [vmem:[#allocation7 + $0x3b0] sm:$0xff]
    %v2316 = vld [vmem:[#allocation7 + $0x3b8] sm:$0xff]
    %v2317 = vld [vmem:[#allocation7 + $0x3c0] sm:$0xff]
    %v2318 = vld [vmem:[#allocation7 + $0x3c8] sm:$0xff]
    %v2319 = vld [vmem:[#allocation7 + $0x3d0] sm:$0xff]
    %v2320 = vld [vmem:[#allocation7 + $0x3d8] sm:$0xff]
    %v2321 = vld [vmem:[#allocation7 + $0x3e0] sm:$0xff]
    %v2322 = vld [vmem:[#allocation7 + $0x3e8] sm:$0xff]
    %v2323 = vld [vmem:[#allocation7 + $0x3f0] sm:$0xff]
    %v2324 = vld [vmem:[#allocation7 + $0x3f8] sm:$0xff]
    %v2325 = vld [vmem:[#allocation7 + $0x400] sm:$0xff]
    %v2326 = vld [vmem:[#allocation7 + $0x408] sm:$0xff]
    %v2327 = vld [vmem:[#allocation7 + $0x410] sm:$0xff]
    %v2328 = vld [vmem:[#allocation7 + $0x418] sm:$0xff]
    %v2329 = vld [vmem:[#allocation7 + $0x420] sm:$0xff]
    %v2330 = vld [vmem:[#allocation7 + $0x428] sm:$0xff]
    %v2331 = vld [vmem:[#allocation7 + $0x430] sm:$0xff]
    %v2332 = vld [vmem:[#allocation7 + $0x438] sm:$0xff]
    %v2333 = vld [vmem:[#allocation7 + $0x440] sm:$0xff]
    %v2334 = vld [vmem:[#allocation7 + $0x448] sm:$0xff]
    %v2335 = vld [vmem:[#allocation7 + $0x450] sm:$0xff]
    %v2336 = vld [vmem:[#allocation7 + $0x458] sm:$0xff]
    %v2337 = vld [vmem:[#allocation7 + $0x460] sm:$0xff]
    %v2338 = vld [vmem:[#allocation7 + $0x468] sm:$0xff]
    %v2339 = vld [vmem:[#allocation7 + $0x470] sm:$0xff]
    %v2340 = vld [vmem:[#allocation7 + $0x478] sm:$0xff]
    %v2341 = vld [vmem:[#allocation7 + $0x480] sm:$0xff]
    %v2342 = vld [vmem:[#allocation7 + $0x488] sm:$0xff]
    %v2343 = vld [vmem:[#allocation7 + $0x490] sm:$0xff]
    %v2344 = vld [vmem:[#allocation7 + $0x498] sm:$0xff]
    %v2345 = vld [vmem:[#allocation7 + $0x4a0] sm:$0xff]
    %v2346 = vld [vmem:[#allocation7 + $0x4a8] sm:$0xff]
    %v2347 = vld [vmem:[#allocation7 + $0x4b0] sm:$0xff]
    %v2348 = vld [vmem:[#allocation7 + $0x4b8] sm:$0xff]
    %v2349 = vld [vmem:[#allocation7 + $0x4c0] sm:$0xff]
    %v2350 = vld [vmem:[#allocation7 + $0x4c8] sm:$0xff]
    %v2351 = vld [vmem:[#allocation7 + $0x4d0] sm:$0xff]
    %v2352 = vld [vmem:[#allocation7 + $0x4d8] sm:$0xff]
    %v2353 = vld [vmem:[#allocation7 + $0x4e0] sm:$0xff]
    %v2354 = vld [vmem:[#allocation7 + $0x4e8] sm:$0xff]
    %v2355 = vld [vmem:[#allocation7 + $0x4f0] sm:$0xff]
    %v2356 = vld [vmem:[#allocation7 + $0x4f8] sm:$0xff]
    %v2357 = vld [vmem:[#allocation7 + $0x500] sm:$0xff]
    %v2358 = vld [vmem:[#allocation7 + $0x508] sm:$0xff]
    %v2359 = vld [vmem:[#allocation7 + $0x510] sm:$0xff]
    %v2360 = vld [vmem:[#allocation7 + $0x518] sm:$0xff]
    %v2361 = vld [vmem:[#allocation7 + $0x520] sm:$0xff]
    %v2362 = vld [vmem:[#allocation7 + $0x528] sm:$0xff]
    %v2363 = vld [vmem:[#allocation7 + $0x530] sm:$0xff]
    %v2364 = vld [vmem:[#allocation7 + $0x538] sm:$0xff]
    %v2365 = vld [vmem:[#allocation7 + $0x540] sm:$0xff]
    %v2366 = vld [vmem:[#allocation7 + $0x548] sm:$0xff]
    %v2367 = vld [vmem:[#allocation7 + $0x550] sm:$0xff]
    %v2368 = vld [vmem:[#allocation7 + $0x558] sm:$0xff]
    %v2369 = vld [vmem:[#allocation7 + $0x560] sm:$0xff]
    %v2370 = vld [vmem:[#allocation7 + $0x568] sm:$0xff]
    %v2371 = vld [vmem:[#allocation7 + $0x570] sm:$0xff]
    %v2372 = vld [vmem:[#allocation7 + $0x578] sm:$0xff]
    %v2373 = vld [vmem:[#allocation7 + $0x580] sm:$0xff]
    %v2374 = vld [vmem:[#allocation7 + $0x588] sm:$0xff]
    %v2375 = vld [vmem:[#allocation7 + $0x590] sm:$0xff]
    %v2376 = vld [vmem:[#allocation7 + $0x598] sm:$0xff]
    %v2377 = vld [vmem:[#allocation7 + $0x5a0] sm:$0xff]
    %v2378 = vld [vmem:[#allocation7 + $0x5a8] sm:$0xff]
    %v2379 = vld [vmem:[#allocation7 + $0x5b0] sm:$0xff]
    %v2380 = vld [vmem:[#allocation7 + $0x5b8] sm:$0xff]
    %v2381 = vld [vmem:[#allocation7 + $0x5c0] sm:$0xff]
    %v2382 = vld [vmem:[#allocation7 + $0x5c8] sm:$0xff]
    %v2383 = vld [vmem:[#allocation7 + $0x5d0] sm:$0xff]
    %v2384 = vld [vmem:[#allocation7 + $0x5d8] sm:$0xff]
    %v2385 = vld [vmem:[#allocation7 + $0x5e0] sm:$0xff]
    %v2386 = vld [vmem:[#allocation7 + $0x5e8] sm:$0xff]
    %v2387 = vld [vmem:[#allocation7 + $0x5f0] sm:$0xff]
    %v2388 = vld [vmem:[#allocation7 + $0x5f8] sm:$0xff]
    %v2389 = vld [vmem:[#allocation7 + $0x600] sm:$0xff]
    %v2390 = vld [vmem:[#allocation7 + $0x608] sm:$0xff]
    %v2391 = vld [vmem:[#allocation7 + $0x610] sm:$0xff]
    %v2392 = vld [vmem:[#allocation7 + $0x618] sm:$0xff]
    %v2393 = vld [vmem:[#allocation7 + $0x620] sm:$0xff]
    %v2394 = vld [vmem:[#allocation7 + $0x628] sm:$0xff]
    %v2395 = vld [vmem:[#allocation7 + $0x630] sm:$0xff]
    %v2396 = vld [vmem:[#allocation7 + $0x638] sm:$0xff]
    %v2397 = vld [vmem:[#allocation7 + $0x640] sm:$0xff]
    %v2398 = vld [vmem:[#allocation7 + $0x648] sm:$0xff]
    %v2399 = vld [vmem:[#allocation7 + $0x650] sm:$0xff]
    %v2400 = vld [vmem:[#allocation7 + $0x658] sm:$0xff]
    %v2401 = vld [vmem:[#allocation7 + $0x660] sm:$0xff]
    %v2402 = vld [vmem:[#allocation7 + $0x668] sm:$0xff]
    %v2403 = vld [vmem:[#allocation7 + $0x670] sm:$0xff]
    %v2404 = vld [vmem:[#allocation7 + $0x678] sm:$0xff]
    %v2405 = vld [vmem:[#allocation7 + $0x680] sm:$0xff]
    %v2406 = vld [vmem:[#allocation7 + $0x688] sm:$0xff]
    %v2407 = vld [vmem:[#allocation7 + $0x690] sm:$0xff]
    %v2408 = vld [vmem:[#allocation7 + $0x698] sm:$0xff]
    %v2409 = vld [vmem:[#allocation7 + $0x6a0] sm:$0xff]
    %v2410 = vld [vmem:[#allocation7 + $0x6a8] sm:$0xff]
    %v2411 = vld [vmem:[#allocation7 + $0x6b0] sm:$0xff]
    %v2412 = vld [vmem:[#allocation7 + $0x6b8] sm:$0xff]
    %v2413 = vld [vmem:[#allocation7 + $0x6c0] sm:$0xff]
    %v2414 = vld [vmem:[#allocation7 + $0x6c8] sm:$0xff]
    %v2415 = vld [vmem:[#allocation7 + $0x6d0] sm:$0xff]
    %v2416 = vld [vmem:[#allocation7 + $0x6d8] sm:$0xff]
    %v2417 = vld [vmem:[#allocation7 + $0x6e0] sm:$0xff]
    %v2418 = vld [vmem:[#allocation7 + $0x6e8] sm:$0xff]
    %v2419 = vld [vmem:[#allocation7 + $0x6f0] sm:$0xff]
    %v2420 = vld [vmem:[#allocation7 + $0x6f8] sm:$0xff]
    %v2421 = vld [vmem:[#allocation7 + $0x700] sm:$0xff]
    %v2422 = vld [vmem:[#allocation7 + $0x708] sm:$0xff]
    %v2423 = vld [vmem:[#allocation7 + $0x710] sm:$0xff]
    %v2424 = vld [vmem:[#allocation7 + $0x718] sm:$0xff]
    %v2425 = vld [vmem:[#allocation7 + $0x720] sm:$0xff]
    %v2426 = vld [vmem:[#allocation7 + $0x728] sm:$0xff]
    %v2427 = vld [vmem:[#allocation7 + $0x730] sm:$0xff]
    %v2428 = vld [vmem:[#allocation7 + $0x738] sm:$0xff]
    %v2429 = vld [vmem:[#allocation7 + $0x740] sm:$0xff]
    %v2430 = vld [vmem:[#allocation7 + $0x748] sm:$0xff]
    %v2431 = vld [vmem:[#allocation7 + $0x750] sm:$0xff]
    %v2432 = vld [vmem:[#allocation7 + $0x758] sm:$0xff]
    %v2433 = vld [vmem:[#allocation7 + $0x760] sm:$0xff]
    %v2434 = vld [vmem:[#allocation7 + $0x768] sm:$0xff]
    %v2435 = vld [vmem:[#allocation7 + $0x770] sm:$0xff]
    %v2436 = vld [vmem:[#allocation7 + $0x778] sm:$0xff]
    %v2437 = vld [vmem:[#allocation7 + $0x780] sm:$0xff]
    %v2438 = vld [vmem:[#allocation7 + $0x788] sm:$0xff]
    %v2439 = vld [vmem:[#allocation7 + $0x790] sm:$0xff]
    %v2440 = vld [vmem:[#allocation7 + $0x798] sm:$0xff]
    %v2441 = vld [vmem:[#allocation7 + $0x7a0] sm:$0xff]
    %v2442 = vld [vmem:[#allocation7 + $0x7a8] sm:$0xff]
    %v2443 = vld [vmem:[#allocation7 + $0x7b0] sm:$0xff]
    %v2444 = vld [vmem:[#allocation7 + $0x7b8] sm:$0xff]
    %v2445 = vld [vmem:[#allocation7 + $0x7c0] sm:$0xff]
    %v2446 = vld [vmem:[#allocation7 + $0x7c8] sm:$0xff]
    %v2447 = vld [vmem:[#allocation7 + $0x7d0] sm:$0xff]
    %v2448 = vld [vmem:[#allocation7 + $0x7d8] sm:$0xff]
    %v2449 = vld [vmem:[#allocation7 + $0x7e0] sm:$0xff]
    %v2450 = vld [vmem:[#allocation7 + $0x7e8] sm:$0xff]
    %v2451 = vld [vmem:[#allocation7 + $0x7f0] sm:$0xff]
    %v2452 = vld [vmem:[#allocation7 + $0x7f8] sm:$0xff]
    %v2453 = vld [vmem:[#allocation7 + $0x800] sm:$0xff]
    %v2454 = vld [vmem:[#allocation7 + $0x808] sm:$0xff]
    %v2455 = vld [vmem:[#allocation7 + $0x810] sm:$0xff]
    %v2456 = vld [vmem:[#allocation7 + $0x818] sm:$0xff]
    %v2457 = vld [vmem:[#allocation7 + $0x820] sm:$0xff]
    %v2458 = vld [vmem:[#allocation7 + $0x828] sm:$0xff]
    %v2459 = vld [vmem:[#allocation7 + $0x830] sm:$0xff]
    %v2460 = vld [vmem:[#allocation7 + $0x838] sm:$0xff]
    %v2461 = vld [vmem:[#allocation7 + $0x840] sm:$0xff]
    %v2462 = vld [vmem:[#allocation7 + $0x848] sm:$0xff]
    %v2463 = vld [vmem:[#allocation7 + $0x850] sm:$0xff]
    %v2464 = vld [vmem:[#allocation7 + $0x858] sm:$0xff]
    %v2465 = vld [vmem:[#allocation7 + $0x860] sm:$0xff]
    %v2466 = vld [vmem:[#allocation7 + $0x868] sm:$0xff]
    %v2467 = vld [vmem:[#allocation7 + $0x870] sm:$0xff]
    %v2468 = vld [vmem:[#allocation7 + $0x878] sm:$0xff]
    %v2469 = vld [vmem:[#allocation7 + $0x880] sm:$0xff]
    %v2470 = vld [vmem:[#allocation7 + $0x888] sm:$0xff]
    %v2471 = vld [vmem:[#allocation7 + $0x890] sm:$0xff]
    %v2472 = vld [vmem:[#allocation7 + $0x898] sm:$0xff]
    %v2473 = vld [vmem:[#allocation7 + $0x8a0] sm:$0xff]
    %v2474 = vld [vmem:[#allocation7 + $0x8a8] sm:$0xff]
    %v2475 = vld [vmem:[#allocation7 + $0x8b0] sm:$0xff]
    %v2476 = vld [vmem:[#allocation7 + $0x8b8] sm:$0xff]
    %v2477 = vld [vmem:[#allocation7 + $0x8c0] sm:$0xff]
    %v2478 = vld [vmem:[#allocation7 + $0x8c8] sm:$0xff]
    %v2479 = vld [vmem:[#allocation7 + $0x8d0] sm:$0xff]
    %v2480 = vld [vmem:[#allocation7 + $0x8d8] sm:$0xff]
    %v2481 = vld [vmem:[#allocation7 + $0x8e0] sm:$0xff]
    %v2482 = vld [vmem:[#allocation7 + $0x8e8] sm:$0xff]
    %v2483 = vld [vmem:[#allocation7 + $0x8f0] sm:$0xff]
    %v2484 = vld [vmem:[#allocation7 + $0x8f8] sm:$0xff]
    %v2485 = vld [vmem:[#allocation7 + $0x900] sm:$0xff]
    %v2486 = vld [vmem:[#allocation7 + $0x908] sm:$0xff]
    %v2487 = vld [vmem:[#allocation7 + $0x910] sm:$0xff]
    %v2488 = vld [vmem:[#allocation7 + $0x918] sm:$0xff]
    %v2489 = vld [vmem:[#allocation7 + $0x920] sm:$0xff]
    %v2490 = vld [vmem:[#allocation7 + $0x928] sm:$0xff]
    %v2491 = vld [vmem:[#allocation7 + $0x930] sm:$0xff]
    %v2492 = vld [vmem:[#allocation7 + $0x938] sm:$0xff]
    %v2493 = vld [vmem:[#allocation7 + $0x940] sm:$0xff]
    %v2494 = vld [vmem:[#allocation7 + $0x948] sm:$0xff]
    %v2495 = vld [vmem:[#allocation7 + $0x950] sm:$0xff]
    %v2496 = vld [vmem:[#allocation7 + $0x958] sm:$0xff]
    %v2497 = vld [vmem:[#allocation7 + $0x960] sm:$0xff]
    %v2498 = vld [vmem:[#allocation7 + $0x968] sm:$0xff]
    %v2499 = vld [vmem:[#allocation7 + $0x970] sm:$0xff]
    %v2500 = vld [vmem:[#allocation7 + $0x978] sm:$0xff]
    %v2501 = vld [vmem:[#allocation7 + $0x980] sm:$0xff]
    %v2502 = vld [vmem:[#allocation7 + $0x988] sm:$0xff]
    %v2503 = vld [vmem:[#allocation7 + $0x990] sm:$0xff]
    %v2504 = vld [vmem:[#allocation7 + $0x998] sm:$0xff]
    %v2505 = vld [vmem:[#allocation7 + $0x9a0] sm:$0xff]
    %v2506 = vld [vmem:[#allocation7 + $0x9a8] sm:$0xff]
    %v2507 = vld [vmem:[#allocation7 + $0x9b0] sm:$0xff]
    %v2508 = vld [vmem:[#allocation7 + $0x9b8] sm:$0xff]
    %v2509 = vld [vmem:[#allocation7 + $0x9c0] sm:$0xff]
    %v2510 = vld [vmem:[#allocation7 + $0x9c8] sm:$0xff]
    %v2511 = vld [vmem:[#allocation7 + $0x9d0] sm:$0xff]
    %v2512 = vld [vmem:[#allocation7 + $0x9d8] sm:$0xff]
    %v2513 = vld [vmem:[#allocation7 + $0x9e0] sm:$0xff]
    %v2514 = vld [vmem:[#allocation7 + $0x9e8] sm:$0xff]
    %v2515 = vld [vmem:[#allocation7 + $0x9f0] sm:$0xff]
    %v2516 = vld [vmem:[#allocation7 + $0x9f8] sm:$0xff]
    %v2517 = vld [vmem:[#allocation7 + $0xa00] sm:$0xff]
    %v2518 = vld [vmem:[#allocation7 + $0xa08] sm:$0xff]
    %v2519 = vld [vmem:[#allocation7 + $0xa10] sm:$0xff]
    %v2520 = vld [vmem:[#allocation7 + $0xa18] sm:$0xff]
    %v2521 = vld [vmem:[#allocation7 + $0xa20] sm:$0xff]
    %v2522 = vld [vmem:[#allocation7 + $0xa28] sm:$0xff]
    %v2523 = vld [vmem:[#allocation7 + $0xa30] sm:$0xff]
    %v2524 = vld [vmem:[#allocation7 + $0xa38] sm:$0xff]
    %v2525 = vld [vmem:[#allocation7 + $0xa40] sm:$0xff]
    %v2526 = vld [vmem:[#allocation7 + $0xa48] sm:$0xff]
    %v2527 = vld [vmem:[#allocation7 + $0xa50] sm:$0xff]
    %v2528 = vld [vmem:[#allocation7 + $0xa58] sm:$0xff]
    %v2529 = vld [vmem:[#allocation7 + $0xa60] sm:$0xff]
    %v2530 = vld [vmem:[#allocation7 + $0xa68] sm:$0xff]
    %v2531 = vld [vmem:[#allocation7 + $0xa70] sm:$0xff]
    %v2532 = vld [vmem:[#allocation7 + $0xa78] sm:$0xff]
    %v2533 = vld [vmem:[#allocation7 + $0xa80] sm:$0xff]
    %v2534 = vld [vmem:[#allocation7 + $0xa88] sm:$0xff]
    %v2535 = vld [vmem:[#allocation7 + $0xa90] sm:$0xff]
    %v2536 = vld [vmem:[#allocation7 + $0xa98] sm:$0xff]
    %v2537 = vld [vmem:[#allocation7 + $0xaa0] sm:$0xff]
    %v2538 = vld [vmem:[#allocation7 + $0xaa8] sm:$0xff]
    %v2539 = vld [vmem:[#allocation7 + $0xab0] sm:$0xff]
    %v2540 = vld [vmem:[#allocation7 + $0xab8] sm:$0xff]
    %v2541 = vld [vmem:[#allocation7 + $0xac0] sm:$0xff]
    %v2542 = vld [vmem:[#allocation7 + $0xac8] sm:$0xff]
    %v2543 = vld [vmem:[#allocation7 + $0xad0] sm:$0xff]
    %v2544 = vld [vmem:[#allocation7 + $0xad8] sm:$0xff]
    %v2545 = vld [vmem:[#allocation7 + $0xae0] sm:$0xff]
    %v2546 = vld [vmem:[#allocation7 + $0xae8] sm:$0xff]
    %v2547 = vld [vmem:[#allocation7 + $0xaf0] sm:$0xff]
    %v2548 = vld [vmem:[#allocation7 + $0xaf8] sm:$0xff]
    %v2549 = vld [vmem:[#allocation7 + $0xb00] sm:$0xff]
    %v2550 = vld [vmem:[#allocation7 + $0xb08] sm:$0xff]
    %v2551 = vld [vmem:[#allocation7 + $0xb10] sm:$0xff]
    %v2552 = vld [vmem:[#allocation7 + $0xb18] sm:$0xff]
    %v2553 = vld [vmem:[#allocation7 + $0xb20] sm:$0xff]
    %v2554 = vld [vmem:[#allocation7 + $0xb28] sm:$0xff]
    %v2555 = vld [vmem:[#allocation7 + $0xb30] sm:$0xff]
    %v2556 = vld [vmem:[#allocation7 + $0xb38] sm:$0xff]
    %v2557 = vld [vmem:[#allocation7 + $0xb40] sm:$0xff]
    %v2558 = vld [vmem:[#allocation7 + $0xb48] sm:$0xff]
    %v2559 = vld [vmem:[#allocation7 + $0xb50] sm:$0xff]
    %v2560 = vld [vmem:[#allocation7 + $0xb58] sm:$0xff]
    %v2561 = vld [vmem:[#allocation7 + $0xb60] sm:$0xff]
    %v2562 = vld [vmem:[#allocation7 + $0xb68] sm:$0xff]
    %v2563 = vld [vmem:[#allocation7 + $0xb70] sm:$0xff]
    %v2564 = vld [vmem:[#allocation7 + $0xb78] sm:$0xff]
    %v2565 = vld [vmem:[#allocation7 + $0xb80] sm:$0xff]
    %v2566 = vld [vmem:[#allocation7 + $0xb88] sm:$0xff]
    %v2567 = vld [vmem:[#allocation7 + $0xb90] sm:$0xff]
    %v2568 = vld [vmem:[#allocation7 + $0xb98] sm:$0xff]
    %v2569 = vld [vmem:[#allocation7 + $0xba0] sm:$0xff]
    %v2570 = vld [vmem:[#allocation7 + $0xba8] sm:$0xff]
    %v2571 = vld [vmem:[#allocation7 + $0xbb0] sm:$0xff]
    %v2572 = vld [vmem:[#allocation7 + $0xbb8] sm:$0xff]
    %v2573 = vld [vmem:[#allocation7 + $0xbc0] sm:$0xff]
    %v2574 = vld [vmem:[#allocation7 + $0xbc8] sm:$0xff]
    %v2575 = vld [vmem:[#allocation7 + $0xbd0] sm:$0xff]
    %v2576 = vld [vmem:[#allocation7 + $0xbd8] sm:$0xff]
    %v2577 = vld [vmem:[#allocation7 + $0xbe0] sm:$0xff]
    %v2578 = vld [vmem:[#allocation7 + $0xbe8] sm:$0xff]
    %v2579 = vld [vmem:[#allocation7 + $0xbf0] sm:$0xff]
    %v2580 = vld [vmem:[#allocation7 + $0xbf8] sm:$0xff]
    %v2581 = vld [vmem:[#allocation7 + $0xc00] sm:$0xff]
    %v2582 = vld [vmem:[#allocation7 + $0xc08] sm:$0xff]
    %v2583 = vld [vmem:[#allocation7 + $0xc10] sm:$0xff]
    %v2584 = vld [vmem:[#allocation7 + $0xc18] sm:$0xff]
    %v2585 = vld [vmem:[#allocation7 + $0xc20] sm:$0xff]
    %v2586 = vld [vmem:[#allocation7 + $0xc28] sm:$0xff]
    %v2587 = vld [vmem:[#allocation7 + $0xc30] sm:$0xff]
    %v2588 = vld [vmem:[#allocation7 + $0xc38] sm:$0xff]
    %v2589 = vld [vmem:[#allocation7 + $0xc40] sm:$0xff]
    %v2590 = vld [vmem:[#allocation7 + $0xc48] sm:$0xff]
    %v2591 = vld [vmem:[#allocation7 + $0xc50] sm:$0xff]
    %v2592 = vld [vmem:[#allocation7 + $0xc58] sm:$0xff]
    %v2593 = vld [vmem:[#allocation7 + $0xc60] sm:$0xff]
    %v2594 = vld [vmem:[#allocation7 + $0xc68] sm:$0xff]
    %v2595 = vld [vmem:[#allocation7 + $0xc70] sm:$0xff]
    %v2596 = vld [vmem:[#allocation7 + $0xc78] sm:$0xff]
    %v2597 = vld [vmem:[#allocation7 + $0xc80] sm:$0xff]
    %v2598 = vld [vmem:[#allocation7 + $0xc88] sm:$0xff]
    %v2599 = vld [vmem:[#allocation7 + $0xc90] sm:$0xff]
    %v2600 = vld [vmem:[#allocation7 + $0xc98] sm:$0xff]
    %v2601 = vld [vmem:[#allocation7 + $0xca0] sm:$0xff]
    %v2602 = vld [vmem:[#allocation7 + $0xca8] sm:$0xff]
    %v2603 = vld [vmem:[#allocation7 + $0xcb0] sm:$0xff]
    %v2604 = vld [vmem:[#allocation7 + $0xcb8] sm:$0xff]
    %v2605 = vld [vmem:[#allocation7 + $0xcc0] sm:$0xff]
    %v2606 = vld [vmem:[#allocation7 + $0xcc8] sm:$0xff]
    %v2607 = vld [vmem:[#allocation7 + $0xcd0] sm:$0xff]
    %v2608 = vld [vmem:[#allocation7 + $0xcd8] sm:$0xff]
    %v2609 = vld [vmem:[#allocation7 + $0xce0] sm:$0xff]
    %v2610 = vld [vmem:[#allocation7 + $0xce8] sm:$0xff]
    %v2611 = vld [vmem:[#allocation7 + $0xcf0] sm:$0xff]
    %v2612 = vld [vmem:[#allocation7 + $0xcf8] sm:$0xff]
    %v2613 = vld [vmem:[#allocation7 + $0xd00] sm:$0xff]
    %v2614 = vld [vmem:[#allocation7 + $0xd08] sm:$0xff]
    %v2615 = vld [vmem:[#allocation7 + $0xd10] sm:$0xff]
    %v2616 = vld [vmem:[#allocation7 + $0xd18] sm:$0xff]
    %v2617 = vld [vmem:[#allocation7 + $0xd20] sm:$0xff]
    %v2618 = vld [vmem:[#allocation7 + $0xd28] sm:$0xff]
    %v2619 = vld [vmem:[#allocation7 + $0xd30] sm:$0xff]
    %v2620 = vld [vmem:[#allocation7 + $0xd38] sm:$0xff]
    %v2621 = vld [vmem:[#allocation7 + $0xd40] sm:$0xff]
    %v2622 = vld [vmem:[#allocation7 + $0xd48] sm:$0xff]
    %v2623 = vld [vmem:[#allocation7 + $0xd50] sm:$0xff]
    %v2624 = vld [vmem:[#allocation7 + $0xd58] sm:$0xff]
    %v2625 = vld [vmem:[#allocation7 + $0xd60] sm:$0xff]
    %v2626 = vld [vmem:[#allocation7 + $0xd68] sm:$0xff]
    %v2627 = vld [vmem:[#allocation7 + $0xd70] sm:$0xff]
    %v2628 = vld [vmem:[#allocation7 + $0xd78] sm:$0xff]
    %v2629 = vld [vmem:[#allocation7 + $0xd80] sm:$0xff]
    %v2630 = vld [vmem:[#allocation7 + $0xd88] sm:$0xff]
    %v2631 = vld [vmem:[#allocation7 + $0xd90] sm:$0xff]
    %v2632 = vld [vmem:[#allocation7 + $0xd98] sm:$0xff]
    %v2633 = vld [vmem:[#allocation7 + $0xda0] sm:$0xff]
    %v2634 = vld [vmem:[#allocation7 + $0xda8] sm:$0xff]
    %v2635 = vld [vmem:[#allocation7 + $0xdb0] sm:$0xff]
    %v2636 = vld [vmem:[#allocation7 + $0xdb8] sm:$0xff]
    %v2637 = vld [vmem:[#allocation7 + $0xdc0] sm:$0xff]
    %v2638 = vld [vmem:[#allocation7 + $0xdc8] sm:$0xff]
    %v2639 = vld [vmem:[#allocation7 + $0xdd0] sm:$0xff]
    %v2640 = vld [vmem:[#allocation7 + $0xdd8] sm:$0xff]
    %v2641 = vld [vmem:[#allocation7 + $0xde0] sm:$0xff]
    %v2642 = vld [vmem:[#allocation7 + $0xde8] sm:$0xff]
    %v2643 = vld [vmem:[#allocation7 + $0xdf0] sm:$0xff]
    %v2644 = vld [vmem:[#allocation7 + $0xdf8] sm:$0xff]
    %v2645 = vld [vmem:[#allocation7 + $0xe00] sm:$0xff]
    %v2646 = vld [vmem:[#allocation7 + $0xe08] sm:$0xff]
    %v2647 = vld [vmem:[#allocation7 + $0xe10] sm:$0xff]
    %v2648 = vld [vmem:[#allocation7 + $0xe18] sm:$0xff]
    %v2649 = vld [vmem:[#allocation7 + $0xe20] sm:$0xff]
    %v2650 = vld [vmem:[#allocation7 + $0xe28] sm:$0xff]
    %v2651 = vld [vmem:[#allocation7 + $0xe30] sm:$0xff]
    %v2652 = vld [vmem:[#allocation7 + $0xe38] sm:$0xff]
    %v2653 = vld [vmem:[#allocation7 + $0xe40] sm:$0xff]
    %v2654 = vld [vmem:[#allocation7 + $0xe48] sm:$0xff]
    %v2655 = vld [vmem:[#allocation7 + $0xe50] sm:$0xff]
    %v2656 = vld [vmem:[#allocation7 + $0xe58] sm:$0xff]
    %v2657 = vld [vmem:[#allocation7 + $0xe60] sm:$0xff]
    %v2658 = vld [vmem:[#allocation7 + $0xe68] sm:$0xff]
    %v2659 = vld [vmem:[#allocation7 + $0xe70] sm:$0xff]
    %v2660 = vld [vmem:[#allocation7 + $0xe78] sm:$0xff]
    %v2661 = vld [vmem:[#allocation7 + $0xe80] sm:$0xff]
    %v2662 = vld [vmem:[#allocation7 + $0xe88] sm:$0xff]
    %v2663 = vld [vmem:[#allocation7 + $0xe90] sm:$0xff]
    %v2664 = vld [vmem:[#allocation7 + $0xe98] sm:$0xff]
    %v2665 = vld [vmem:[#allocation7 + $0xea0] sm:$0xff]
    %v2666 = vld [vmem:[#allocation7 + $0xea8] sm:$0xff]
    %v2667 = vld [vmem:[#allocation7 + $0xeb0] sm:$0xff]
    %v2668 = vld [vmem:[#allocation7 + $0xeb8] sm:$0xff]
    %v2669 = vld [vmem:[#allocation7 + $0xec0] sm:$0xff]
    %v2670 = vld [vmem:[#allocation7 + $0xec8] sm:$0xff]
    %v2671 = vld [vmem:[#allocation7 + $0xed0] sm:$0xff]
    %v2672 = vld [vmem:[#allocation7 + $0xed8] sm:$0xff]
    %v2673 = vld [vmem:[#allocation7 + $0xee0] sm:$0xff]
    %v2674 = vld [vmem:[#allocation7 + $0xee8] sm:$0xff]
    %v2675 = vld [vmem:[#allocation7 + $0xef0] sm:$0xff]
    %v2676 = vld [vmem:[#allocation7 + $0xef8] sm:$0xff]
    %v2677 = vld [vmem:[#allocation7 + $0xf00] sm:$0xff]
    %v2678 = vld [vmem:[#allocation7 + $0xf08] sm:$0xff]
    %v2679 = vld [vmem:[#allocation7 + $0xf10] sm:$0xff]
    %v2680 = vld [vmem:[#allocation7 + $0xf18] sm:$0xff]
    %v2681 = vld [vmem:[#allocation7 + $0xf20] sm:$0xff]
    %v2682 = vld [vmem:[#allocation7 + $0xf28] sm:$0xff]
    %v2683 = vld [vmem:[#allocation7 + $0xf30] sm:$0xff]
    %v2684 = vld [vmem:[#allocation7 + $0xf38] sm:$0xff]
    %v2685 = vld [vmem:[#allocation7 + $0xf40] sm:$0xff]
    %v2686 = vld [vmem:[#allocation7 + $0xf48] sm:$0xff]
    %v2687 = vld [vmem:[#allocation7 + $0xf50] sm:$0xff]
    %v2688 = vld [vmem:[#allocation7 + $0xf58] sm:$0xff]
    %v2689 = vld [vmem:[#allocation7 + $0xf60] sm:$0xff]
    %v2690 = vld [vmem:[#allocation7 + $0xf68] sm:$0xff]
    %v2691 = vld [vmem:[#allocation7 + $0xf70] sm:$0xff]
    %v2692 = vld [vmem:[#allocation7 + $0xf78] sm:$0xff]
    %v2693 = vld [vmem:[#allocation7 + $0xf80] sm:$0xff]
    %v2694 = vld [vmem:[#allocation7 + $0xf88] sm:$0xff]
    %v2695 = vld [vmem:[#allocation7 + $0xf90] sm:$0xff]
    %v2696 = vld [vmem:[#allocation7 + $0xf98] sm:$0xff]
    %v2697 = vld [vmem:[#allocation7 + $0xfa0] sm:$0xff]
    %v2698 = vld [vmem:[#allocation7 + $0xfa8] sm:$0xff]
    %v2699 = vld [vmem:[#allocation7 + $0xfb0] sm:$0xff]
    %v2700 = vld [vmem:[#allocation7 + $0xfb8] sm:$0xff]
    %v2701 = vld [vmem:[#allocation7 + $0xfc0] sm:$0xff]
    %v2702 = vld [vmem:[#allocation7 + $0xfc8] sm:$0xff]
    %v2703 = vld [vmem:[#allocation7 + $0xfd0] sm:$0xff]
    %v2704 = vld [vmem:[#allocation7 + $0xfd8] sm:$0xff]
    %v2705 = vld [vmem:[#allocation7 + $0xfe0] sm:$0xff]
    %v2706 = vld [vmem:[#allocation7 + $0xfe8] sm:$0xff]
    %v2707 = vld [vmem:[#allocation7 + $0xff0] sm:$0xff]
    %v2708 = vld [vmem:[#allocation7 + $0xff8] sm:$0xff]
    %v2709 = vld [vmem:[#allocation8] sm:$0xff]
    %v2711 = vlaneseq
    %v2712 = vshrl.u32 %v2711, 7
    %v2713 = vsub.s32 0, %v2712
    %v2714 = vrot.slane %v2709, %v2713
    %v2715 = vlaneseq
    %v2716 = vshrl.u32 %v2715, 7
    %v2717 = vsub.s32 1, %v2716
    %v2718 = vrot.slane %v2709, %v2717
    %v2719 = vlaneseq
    %v2720 = vshrl.u32 %v2719, 7
    %v2721 = vsub.s32 2, %v2720
    %v2722 = vrot.slane %v2709, %v2721
    %v2723 = vlaneseq
    %v2724 = vshrl.u32 %v2723, 7
    %v2725 = vsub.s32 3, %v2724
    %v2726 = vrot.slane %v2709, %v2725
    %v2727 = vlaneseq
    %v2728 = vshrl.u32 %v2727, 7
    %v2729 = vsub.s32 4, %v2728
    %v2730 = vrot.slane %v2709, %v2729
    %v2731 = vlaneseq
    %v2732 = vshrl.u32 %v2731, 7
    %v2733 = vsub.s32 5, %v2732
    %v2734 = vrot.slane %v2709, %v2733
    %v2735 = vlaneseq
    %v2736 = vshrl.u32 %v2735, 7
    %v2737 = vsub.s32 6, %v2736
    %v2738 = vrot.slane %v2709, %v2737
    %v2739 = vlaneseq
    %v2740 = vshrl.u32 %v2739, 7
    %v2741 = vsub.s32 7, %v2740
    %v2742 = vrot.slane %v2709, %v2741
    %v3263 = vunpack.c.l.b16 %v2197
    %v3264 = vunpack.c.h.b16 %v2197
    %v3265 = vunpack.c.l.b16 %v2198
    %v3266 = vunpack.c.h.b16 %v2198
    %v3267 = vunpack.c.l.b16 %v2199
    %v3268 = vunpack.c.h.b16 %v2199
    %v3269 = vunpack.c.l.b16 %v2200
    %v3270 = vunpack.c.h.b16 %v2200
    %v3271 = vunpack.c.l.b16 %v2201
    %v3272 = vunpack.c.h.b16 %v2201
    %v3273 = vunpack.c.l.b16 %v2202
    %v3274 = vunpack.c.h.b16 %v2202
    %v3275 = vunpack.c.l.b16 %v2203
    %v3276 = vunpack.c.h.b16 %v2203
    %v3277 = vunpack.c.l.b16 %v2204
    %v3278 = vunpack.c.h.b16 %v2204
    %v3279 = vunpack.c.l.b16 %v2205
    %v3280 = vunpack.c.h.b16 %v2205
    %v3281 = vunpack.c.l.b16 %v2206
    %v3282 = vunpack.c.h.b16 %v2206
    %v3283 = vunpack.c.l.b16 %v2207
    %v3284 = vunpack.c.h.b16 %v2207
    %v3285 = vunpack.c.l.b16 %v2208
    %v3286 = vunpack.c.h.b16 %v2208
    %v3287 = vunpack.c.l.b16 %v2209
    %v3288 = vunpack.c.h.b16 %v2209
    %v3289 = vunpack.c.l.b16 %v2210
    %v3290 = vunpack.c.h.b16 %v2210
    %v3291 = vunpack.c.l.b16 %v2211
    %v3292 = vunpack.c.h.b16 %v2211
    %v3293 = vunpack.c.l.b16 %v2212
    %v3294 = vunpack.c.h.b16 %v2212
    %v3295 = vunpack.c.l.b16 %v2213
    %v3296 = vunpack.c.h.b16 %v2213
    %v3297 = vunpack.c.l.b16 %v2214
    %v3298 = vunpack.c.h.b16 %v2214
    %v3299 = vunpack.c.l.b16 %v2215
    %v3300 = vunpack.c.h.b16 %v2215
    %v3301 = vunpack.c.l.b16 %v2216
    %v3302 = vunpack.c.h.b16 %v2216
    %v3303 = vunpack.c.l.b16 %v2217
    %v3304 = vunpack.c.h.b16 %v2217
    %v3305 = vunpack.c.l.b16 %v2218
    %v3306 = vunpack.c.h.b16 %v2218
    %v3307 = vunpack.c.l.b16 %v2219
    %v3308 = vunpack.c.h.b16 %v2219
    %v3309 = vunpack.c.l.b16 %v2220
    %v3310 = vunpack.c.h.b16 %v2220
    %v3311 = vunpack.c.l.b16 %v2221
    %v3312 = vunpack.c.h.b16 %v2221
    %v3313 = vunpack.c.l.b16 %v2222
    %v3314 = vunpack.c.h.b16 %v2222
    %v3315 = vunpack.c.l.b16 %v2223
    %v3316 = vunpack.c.h.b16 %v2223
    %v3317 = vunpack.c.l.b16 %v2224
    %v3318 = vunpack.c.h.b16 %v2224
    %v3319 = vunpack.c.l.b16 %v2225
    %v3320 = vunpack.c.h.b16 %v2225
    %v3321 = vunpack.c.l.b16 %v2226
    %v3322 = vunpack.c.h.b16 %v2226
    %v3323 = vunpack.c.l.b16 %v2227
    %v3324 = vunpack.c.h.b16 %v2227
    %v3325 = vunpack.c.l.b16 %v2228
    %v3326 = vunpack.c.h.b16 %v2228
    %v3327 = vunpack.c.l.b16 %v2229
    %v3328 = vunpack.c.h.b16 %v2229
    %v3329 = vunpack.c.l.b16 %v2230
    %v3330 = vunpack.c.h.b16 %v2230
    %v3331 = vunpack.c.l.b16 %v2231
    %v3332 = vunpack.c.h.b16 %v2231
    %v3333 = vunpack.c.l.b16 %v2232
    %v3334 = vunpack.c.h.b16 %v2232
    %v3335 = vunpack.c.l.b16 %v2233
    %v3336 = vunpack.c.h.b16 %v2233
    %v3337 = vunpack.c.l.b16 %v2234
    %v3338 = vunpack.c.h.b16 %v2234
    %v3339 = vunpack.c.l.b16 %v2235
    %v3340 = vunpack.c.h.b16 %v2235
    %v3341 = vunpack.c.l.b16 %v2236
    %v3342 = vunpack.c.h.b16 %v2236
    %v3343 = vunpack.c.l.b16 %v2237
    %v3344 = vunpack.c.h.b16 %v2237
    %v3345 = vunpack.c.l.b16 %v2238
    %v3346 = vunpack.c.h.b16 %v2238
    %v3347 = vunpack.c.l.b16 %v2239
    %v3348 = vunpack.c.h.b16 %v2239
    %v3349 = vunpack.c.l.b16 %v2240
    %v3350 = vunpack.c.h.b16 %v2240
    %v3351 = vunpack.c.l.b16 %v2241
    %v3352 = vunpack.c.h.b16 %v2241
    %v3353 = vunpack.c.l.b16 %v2242
    %v3354 = vunpack.c.h.b16 %v2242
    %v3355 = vunpack.c.l.b16 %v2243
    %v3356 = vunpack.c.h.b16 %v2243
    %v3357 = vunpack.c.l.b16 %v2244
    %v3358 = vunpack.c.h.b16 %v2244
    %v3359 = vunpack.c.l.b16 %v2245
    %v3360 = vunpack.c.h.b16 %v2245
    %v3361 = vunpack.c.l.b16 %v2246
    %v3362 = vunpack.c.h.b16 %v2246
    %v3363 = vunpack.c.l.b16 %v2247
    %v3364 = vunpack.c.h.b16 %v2247
    %v3365 = vunpack.c.l.b16 %v2248
    %v3366 = vunpack.c.h.b16 %v2248
    %v3367 = vunpack.c.l.b16 %v2249
    %v3368 = vunpack.c.h.b16 %v2249
    %v3369 = vunpack.c.l.b16 %v2250
    %v3370 = vunpack.c.h.b16 %v2250
    %v3371 = vunpack.c.l.b16 %v2251
    %v3372 = vunpack.c.h.b16 %v2251
    %v3373 = vunpack.c.l.b16 %v2252
    %v3374 = vunpack.c.h.b16 %v2252
    %v3375 = vunpack.c.l.b16 %v2253
    %v3376 = vunpack.c.h.b16 %v2253
    %v3377 = vunpack.c.l.b16 %v2254
    %v3378 = vunpack.c.h.b16 %v2254
    %v3379 = vunpack.c.l.b16 %v2255
    %v3380 = vunpack.c.h.b16 %v2255
    %v3381 = vunpack.c.l.b16 %v2256
    %v3382 = vunpack.c.h.b16 %v2256
    %v3383 = vunpack.c.l.b16 %v2257
    %v3384 = vunpack.c.h.b16 %v2257
    %v3385 = vunpack.c.l.b16 %v2258
    %v3386 = vunpack.c.h.b16 %v2258
    %v3387 = vunpack.c.l.b16 %v2259
    %v3388 = vunpack.c.h.b16 %v2259
    %v3389 = vunpack.c.l.b16 %v2260
    %v3390 = vunpack.c.h.b16 %v2260
    %v3391 = vunpack.c.l.b16 %v2261
    %v3392 = vunpack.c.h.b16 %v2261
    %v3393 = vunpack.c.l.b16 %v2262
    %v3394 = vunpack.c.h.b16 %v2262
    %v3395 = vunpack.c.l.b16 %v2263
    %v3396 = vunpack.c.h.b16 %v2263
    %v3397 = vunpack.c.l.b16 %v2264
    %v3398 = vunpack.c.h.b16 %v2264
    %v3399 = vunpack.c.l.b16 %v2265
    %v3400 = vunpack.c.h.b16 %v2265
    %v3401 = vunpack.c.l.b16 %v2266
    %v3402 = vunpack.c.h.b16 %v2266
    %v3403 = vunpack.c.l.b16 %v2267
    %v3404 = vunpack.c.h.b16 %v2267
    %v3405 = vunpack.c.l.b16 %v2268
    %v3406 = vunpack.c.h.b16 %v2268
    %v3407 = vunpack.c.l.b16 %v2269
    %v3408 = vunpack.c.h.b16 %v2269
    %v3409 = vunpack.c.l.b16 %v2270
    %v3410 = vunpack.c.h.b16 %v2270
    %v3411 = vunpack.c.l.b16 %v2271
    %v3412 = vunpack.c.h.b16 %v2271
    %v3413 = vunpack.c.l.b16 %v2272
    %v3414 = vunpack.c.h.b16 %v2272
    %v3415 = vunpack.c.l.b16 %v2273
    %v3416 = vunpack.c.h.b16 %v2273
    %v3417 = vunpack.c.l.b16 %v2274
    %v3418 = vunpack.c.h.b16 %v2274
    %v3419 = vunpack.c.l.b16 %v2275
    %v3420 = vunpack.c.h.b16 %v2275
    %v3421 = vunpack.c.l.b16 %v2276
    %v3422 = vunpack.c.h.b16 %v2276
    %v3423 = vunpack.c.l.b16 %v2277
    %v3424 = vunpack.c.h.b16 %v2277
    %v3425 = vunpack.c.l.b16 %v2278
    %v3426 = vunpack.c.h.b16 %v2278
    %v3427 = vunpack.c.l.b16 %v2279
    %v3428 = vunpack.c.h.b16 %v2279
    %v3429 = vunpack.c.l.b16 %v2280
    %v3430 = vunpack.c.h.b16 %v2280
    %v3431 = vunpack.c.l.b16 %v2281
    %v3432 = vunpack.c.h.b16 %v2281
    %v3433 = vunpack.c.l.b16 %v2282
    %v3434 = vunpack.c.h.b16 %v2282
    %v3435 = vunpack.c.l.b16 %v2283
    %v3436 = vunpack.c.h.b16 %v2283
    %v3437 = vunpack.c.l.b16 %v2284
    %v3438 = vunpack.c.h.b16 %v2284
    %v3439 = vunpack.c.l.b16 %v2285
    %v3440 = vunpack.c.h.b16 %v2285
    %v3441 = vunpack.c.l.b16 %v2286
    %v3442 = vunpack.c.h.b16 %v2286
    %v3443 = vunpack.c.l.b16 %v2287
    %v3444 = vunpack.c.h.b16 %v2287
    %v3445 = vunpack.c.l.b16 %v2288
    %v3446 = vunpack.c.h.b16 %v2288
    %v3447 = vunpack.c.l.b16 %v2289
    %v3448 = vunpack.c.h.b16 %v2289
    %v3449 = vunpack.c.l.b16 %v2290
    %v3450 = vunpack.c.h.b16 %v2290
    %v3451 = vunpack.c.l.b16 %v2291
    %v3452 = vunpack.c.h.b16 %v2291
    %v3453 = vunpack.c.l.b16 %v2292
    %v3454 = vunpack.c.h.b16 %v2292
    %v3455 = vunpack.c.l.b16 %v2293
    %v3456 = vunpack.c.h.b16 %v2293
    %v3457 = vunpack.c.l.b16 %v2294
    %v3458 = vunpack.c.h.b16 %v2294
    %v3459 = vunpack.c.l.b16 %v2295
    %v3460 = vunpack.c.h.b16 %v2295
    %v3461 = vunpack.c.l.b16 %v2296
    %v3462 = vunpack.c.h.b16 %v2296
    %v3463 = vunpack.c.l.b16 %v2297
    %v3464 = vunpack.c.h.b16 %v2297
    %v3465 = vunpack.c.l.b16 %v2298
    %v3466 = vunpack.c.h.b16 %v2298
    %v3467 = vunpack.c.l.b16 %v2299
    %v3468 = vunpack.c.h.b16 %v2299
    %v3469 = vunpack.c.l.b16 %v2300
    %v3470 = vunpack.c.h.b16 %v2300
    %v3471 = vunpack.c.l.b16 %v2301
    %v3472 = vunpack.c.h.b16 %v2301
    %v3473 = vunpack.c.l.b16 %v2302
    %v3474 = vunpack.c.h.b16 %v2302
    %v3475 = vunpack.c.l.b16 %v2303
    %v3476 = vunpack.c.h.b16 %v2303
    %v3477 = vunpack.c.l.b16 %v2304
    %v3478 = vunpack.c.h.b16 %v2304
    %v3479 = vunpack.c.l.b16 %v2305
    %v3480 = vunpack.c.h.b16 %v2305
    %v3481 = vunpack.c.l.b16 %v2306
    %v3482 = vunpack.c.h.b16 %v2306
    %v3483 = vunpack.c.l.b16 %v2307
    %v3484 = vunpack.c.h.b16 %v2307
    %v3485 = vunpack.c.l.b16 %v2308
    %v3486 = vunpack.c.h.b16 %v2308
    %v3487 = vunpack.c.l.b16 %v2309
    %v3488 = vunpack.c.h.b16 %v2309
    %v3489 = vunpack.c.l.b16 %v2310
    %v3490 = vunpack.c.h.b16 %v2310
    %v3491 = vunpack.c.l.b16 %v2311
    %v3492 = vunpack.c.h.b16 %v2311
    %v3493 = vunpack.c.l.b16 %v2312
    %v3494 = vunpack.c.h.b16 %v2312
    %v3495 = vunpack.c.l.b16 %v2313
    %v3496 = vunpack.c.h.b16 %v2313
    %v3497 = vunpack.c.l.b16 %v2314
    %v3498 = vunpack.c.h.b16 %v2314
    %v3499 = vunpack.c.l.b16 %v2315
    %v3500 = vunpack.c.h.b16 %v2315
    %v3501 = vunpack.c.l.b16 %v2316
    %v3502 = vunpack.c.h.b16 %v2316
    %v3503 = vunpack.c.l.b16 %v2317
    %v3504 = vunpack.c.h.b16 %v2317
    %v3505 = vunpack.c.l.b16 %v2318
    %v3506 = vunpack.c.h.b16 %v2318
    %v3507 = vunpack.c.l.b16 %v2319
    %v3508 = vunpack.c.h.b16 %v2319
    %v3509 = vunpack.c.l.b16 %v2320
    %v3510 = vunpack.c.h.b16 %v2320
    %v3511 = vunpack.c.l.b16 %v2321
    %v3512 = vunpack.c.h.b16 %v2321
    %v3513 = vunpack.c.l.b16 %v2322
    %v3514 = vunpack.c.h.b16 %v2322
    %v3515 = vunpack.c.l.b16 %v2323
    %v3516 = vunpack.c.h.b16 %v2323
    %v3517 = vunpack.c.l.b16 %v2324
    %v3518 = vunpack.c.h.b16 %v2324
    %v3519 = vunpack.c.l.b16 %v2325
    %v3520 = vunpack.c.h.b16 %v2325
    %v3521 = vunpack.c.l.b16 %v2326
    %v3522 = vunpack.c.h.b16 %v2326
    %v3523 = vunpack.c.l.b16 %v2327
    %v3524 = vunpack.c.h.b16 %v2327
    %v3525 = vunpack.c.l.b16 %v2328
    %v3526 = vunpack.c.h.b16 %v2328
    %v3527 = vunpack.c.l.b16 %v2329
    %v3528 = vunpack.c.h.b16 %v2329
    %v3529 = vunpack.c.l.b16 %v2330
    %v3530 = vunpack.c.h.b16 %v2330
    %v3531 = vunpack.c.l.b16 %v2331
    %v3532 = vunpack.c.h.b16 %v2331
    %v3533 = vunpack.c.l.b16 %v2332
    %v3534 = vunpack.c.h.b16 %v2332
    %v3535 = vunpack.c.l.b16 %v2333
    %v3536 = vunpack.c.h.b16 %v2333
    %v3537 = vunpack.c.l.b16 %v2334
    %v3538 = vunpack.c.h.b16 %v2334
    %v3539 = vunpack.c.l.b16 %v2335
    %v3540 = vunpack.c.h.b16 %v2335
    %v3541 = vunpack.c.l.b16 %v2336
    %v3542 = vunpack.c.h.b16 %v2336
    %v3543 = vunpack.c.l.b16 %v2337
    %v3544 = vunpack.c.h.b16 %v2337
    %v3545 = vunpack.c.l.b16 %v2338
    %v3546 = vunpack.c.h.b16 %v2338
    %v3547 = vunpack.c.l.b16 %v2339
    %v3548 = vunpack.c.h.b16 %v2339
    %v3549 = vunpack.c.l.b16 %v2340
    %v3550 = vunpack.c.h.b16 %v2340
    %v3551 = vunpack.c.l.b16 %v2341
    %v3552 = vunpack.c.h.b16 %v2341
    %v3553 = vunpack.c.l.b16 %v2342
    %v3554 = vunpack.c.h.b16 %v2342
    %v3555 = vunpack.c.l.b16 %v2343
    %v3556 = vunpack.c.h.b16 %v2343
    %v3557 = vunpack.c.l.b16 %v2344
    %v3558 = vunpack.c.h.b16 %v2344
    %v3559 = vunpack.c.l.b16 %v2345
    %v3560 = vunpack.c.h.b16 %v2345
    %v3561 = vunpack.c.l.b16 %v2346
    %v3562 = vunpack.c.h.b16 %v2346
    %v3563 = vunpack.c.l.b16 %v2347
    %v3564 = vunpack.c.h.b16 %v2347
    %v3565 = vunpack.c.l.b16 %v2348
    %v3566 = vunpack.c.h.b16 %v2348
    %v3567 = vunpack.c.l.b16 %v2349
    %v3568 = vunpack.c.h.b16 %v2349
    %v3569 = vunpack.c.l.b16 %v2350
    %v3570 = vunpack.c.h.b16 %v2350
    %v3571 = vunpack.c.l.b16 %v2351
    %v3572 = vunpack.c.h.b16 %v2351
    %v3573 = vunpack.c.l.b16 %v2352
    %v3574 = vunpack.c.h.b16 %v2352
    %v3575 = vunpack.c.l.b16 %v2353
    %v3576 = vunpack.c.h.b16 %v2353
    %v3577 = vunpack.c.l.b16 %v2354
    %v3578 = vunpack.c.h.b16 %v2354
    %v3579 = vunpack.c.l.b16 %v2355
    %v3580 = vunpack.c.h.b16 %v2355
    %v3581 = vunpack.c.l.b16 %v2356
    %v3582 = vunpack.c.h.b16 %v2356
    %v3583 = vunpack.c.l.b16 %v2357
    %v3584 = vunpack.c.h.b16 %v2357
    %v3585 = vunpack.c.l.b16 %v2358
    %v3586 = vunpack.c.h.b16 %v2358
    %v3587 = vunpack.c.l.b16 %v2359
    %v3588 = vunpack.c.h.b16 %v2359
    %v3589 = vunpack.c.l.b16 %v2360
    %v3590 = vunpack.c.h.b16 %v2360
    %v3591 = vunpack.c.l.b16 %v2361
    %v3592 = vunpack.c.h.b16 %v2361
    %v3593 = vunpack.c.l.b16 %v2362
    %v3594 = vunpack.c.h.b16 %v2362
    %v3595 = vunpack.c.l.b16 %v2363
    %v3596 = vunpack.c.h.b16 %v2363
    %v3597 = vunpack.c.l.b16 %v2364
    %v3598 = vunpack.c.h.b16 %v2364
    %v3599 = vunpack.c.l.b16 %v2365
    %v3600 = vunpack.c.h.b16 %v2365
    %v3601 = vunpack.c.l.b16 %v2366
    %v3602 = vunpack.c.h.b16 %v2366
    %v3603 = vunpack.c.l.b16 %v2367
    %v3604 = vunpack.c.h.b16 %v2367
    %v3605 = vunpack.c.l.b16 %v2368
    %v3606 = vunpack.c.h.b16 %v2368
    %v3607 = vunpack.c.l.b16 %v2369
    %v3608 = vunpack.c.h.b16 %v2369
    %v3609 = vunpack.c.l.b16 %v2370
    %v3610 = vunpack.c.h.b16 %v2370
    %v3611 = vunpack.c.l.b16 %v2371
    %v3612 = vunpack.c.h.b16 %v2371
    %v3613 = vunpack.c.l.b16 %v2372
    %v3614 = vunpack.c.h.b16 %v2372
    %v3615 = vunpack.c.l.b16 %v2373
    %v3616 = vunpack.c.h.b16 %v2373
    %v3617 = vunpack.c.l.b16 %v2374
    %v3618 = vunpack.c.h.b16 %v2374
    %v3619 = vunpack.c.l.b16 %v2375
    %v3620 = vunpack.c.h.b16 %v2375
    %v3621 = vunpack.c.l.b16 %v2376
    %v3622 = vunpack.c.h.b16 %v2376
    %v3623 = vunpack.c.l.b16 %v2377
    %v3624 = vunpack.c.h.b16 %v2377
    %v3625 = vunpack.c.l.b16 %v2378
    %v3626 = vunpack.c.h.b16 %v2378
    %v3627 = vunpack.c.l.b16 %v2379
    %v3628 = vunpack.c.h.b16 %v2379
    %v3629 = vunpack.c.l.b16 %v2380
    %v3630 = vunpack.c.h.b16 %v2380
    %v3631 = vunpack.c.l.b16 %v2381
    %v3632 = vunpack.c.h.b16 %v2381
    %v3633 = vunpack.c.l.b16 %v2382
    %v3634 = vunpack.c.h.b16 %v2382
    %v3635 = vunpack.c.l.b16 %v2383
    %v3636 = vunpack.c.h.b16 %v2383
    %v3637 = vunpack.c.l.b16 %v2384
    %v3638 = vunpack.c.h.b16 %v2384
    %v3639 = vunpack.c.l.b16 %v2385
    %v3640 = vunpack.c.h.b16 %v2385
    %v3641 = vunpack.c.l.b16 %v2386
    %v3642 = vunpack.c.h.b16 %v2386
    %v3643 = vunpack.c.l.b16 %v2387
    %v3644 = vunpack.c.h.b16 %v2387
    %v3645 = vunpack.c.l.b16 %v2388
    %v3646 = vunpack.c.h.b16 %v2388
    %v3647 = vunpack.c.l.b16 %v2389
    %v3648 = vunpack.c.h.b16 %v2389
    %v3649 = vunpack.c.l.b16 %v2390
    %v3650 = vunpack.c.h.b16 %v2390
    %v3651 = vunpack.c.l.b16 %v2391
    %v3652 = vunpack.c.h.b16 %v2391
    %v3653 = vunpack.c.l.b16 %v2392
    %v3654 = vunpack.c.h.b16 %v2392
    %v3655 = vunpack.c.l.b16 %v2393
    %v3656 = vunpack.c.h.b16 %v2393
    %v3657 = vunpack.c.l.b16 %v2394
    %v3658 = vunpack.c.h.b16 %v2394
    %v3659 = vunpack.c.l.b16 %v2395
    %v3660 = vunpack.c.h.b16 %v2395
    %v3661 = vunpack.c.l.b16 %v2396
    %v3662 = vunpack.c.h.b16 %v2396
    %v3663 = vunpack.c.l.b16 %v2397
    %v3664 = vunpack.c.h.b16 %v2397
    %v3665 = vunpack.c.l.b16 %v2398
    %v3666 = vunpack.c.h.b16 %v2398
    %v3667 = vunpack.c.l.b16 %v2399
    %v3668 = vunpack.c.h.b16 %v2399
    %v3669 = vunpack.c.l.b16 %v2400
    %v3670 = vunpack.c.h.b16 %v2400
    %v3671 = vunpack.c.l.b16 %v2401
    %v3672 = vunpack.c.h.b16 %v2401
    %v3673 = vunpack.c.l.b16 %v2402
    %v3674 = vunpack.c.h.b16 %v2402
    %v3675 = vunpack.c.l.b16 %v2403
    %v3676 = vunpack.c.h.b16 %v2403
    %v3677 = vunpack.c.l.b16 %v2404
    %v3678 = vunpack.c.h.b16 %v2404
    %v3679 = vunpack.c.l.b16 %v2405
    %v3680 = vunpack.c.h.b16 %v2405
    %v3681 = vunpack.c.l.b16 %v2406
    %v3682 = vunpack.c.h.b16 %v2406
    %v3683 = vunpack.c.l.b16 %v2407
    %v3684 = vunpack.c.h.b16 %v2407
    %v3685 = vunpack.c.l.b16 %v2408
    %v3686 = vunpack.c.h.b16 %v2408
    %v3687 = vunpack.c.l.b16 %v2409
    %v3688 = vunpack.c.h.b16 %v2409
    %v3689 = vunpack.c.l.b16 %v2410
    %v3690 = vunpack.c.h.b16 %v2410
    %v3691 = vunpack.c.l.b16 %v2411
    %v3692 = vunpack.c.h.b16 %v2411
    %v3693 = vunpack.c.l.b16 %v2412
    %v3694 = vunpack.c.h.b16 %v2412
    %v3695 = vunpack.c.l.b16 %v2413
    %v3696 = vunpack.c.h.b16 %v2413
    %v3697 = vunpack.c.l.b16 %v2414
    %v3698 = vunpack.c.h.b16 %v2414
    %v3699 = vunpack.c.l.b16 %v2415
    %v3700 = vunpack.c.h.b16 %v2415
    %v3701 = vunpack.c.l.b16 %v2416
    %v3702 = vunpack.c.h.b16 %v2416
    %v3703 = vunpack.c.l.b16 %v2417
    %v3704 = vunpack.c.h.b16 %v2417
    %v3705 = vunpack.c.l.b16 %v2418
    %v3706 = vunpack.c.h.b16 %v2418
    %v3707 = vunpack.c.l.b16 %v2419
    %v3708 = vunpack.c.h.b16 %v2419
    %v3709 = vunpack.c.l.b16 %v2420
    %v3710 = vunpack.c.h.b16 %v2420
    %v3711 = vunpack.c.l.b16 %v2421
    %v3712 = vunpack.c.h.b16 %v2421
    %v3713 = vunpack.c.l.b16 %v2422
    %v3714 = vunpack.c.h.b16 %v2422
    %v3715 = vunpack.c.l.b16 %v2423
    %v3716 = vunpack.c.h.b16 %v2423
    %v3717 = vunpack.c.l.b16 %v2424
    %v3718 = vunpack.c.h.b16 %v2424
    %v3719 = vunpack.c.l.b16 %v2425
    %v3720 = vunpack.c.h.b16 %v2425
    %v3721 = vunpack.c.l.b16 %v2426
    %v3722 = vunpack.c.h.b16 %v2426
    %v3723 = vunpack.c.l.b16 %v2427
    %v3724 = vunpack.c.h.b16 %v2427
    %v3725 = vunpack.c.l.b16 %v2428
    %v3726 = vunpack.c.h.b16 %v2428
    %v3727 = vunpack.c.l.b16 %v2429
    %v3728 = vunpack.c.h.b16 %v2429
    %v3729 = vunpack.c.l.b16 %v2430
    %v3730 = vunpack.c.h.b16 %v2430
    %v3731 = vunpack.c.l.b16 %v2431
    %v3732 = vunpack.c.h.b16 %v2431
    %v3733 = vunpack.c.l.b16 %v2432
    %v3734 = vunpack.c.h.b16 %v2432
    %v3735 = vunpack.c.l.b16 %v2433
    %v3736 = vunpack.c.h.b16 %v2433
    %v3737 = vunpack.c.l.b16 %v2434
    %v3738 = vunpack.c.h.b16 %v2434
    %v3739 = vunpack.c.l.b16 %v2435
    %v3740 = vunpack.c.h.b16 %v2435
    %v3741 = vunpack.c.l.b16 %v2436
    %v3742 = vunpack.c.h.b16 %v2436
    %v3743 = vunpack.c.l.b16 %v2437
    %v3744 = vunpack.c.h.b16 %v2437
    %v3745 = vunpack.c.l.b16 %v2438
    %v3746 = vunpack.c.h.b16 %v2438
    %v3747 = vunpack.c.l.b16 %v2439
    %v3748 = vunpack.c.h.b16 %v2439
    %v3749 = vunpack.c.l.b16 %v2440
    %v3750 = vunpack.c.h.b16 %v2440
    %v3751 = vunpack.c.l.b16 %v2441
    %v3752 = vunpack.c.h.b16 %v2441
    %v3753 = vunpack.c.l.b16 %v2442
    %v3754 = vunpack.c.h.b16 %v2442
    %v3755 = vunpack.c.l.b16 %v2443
    %v3756 = vunpack.c.h.b16 %v2443
    %v3757 = vunpack.c.l.b16 %v2444
    %v3758 = vunpack.c.h.b16 %v2444
    %v3759 = vunpack.c.l.b16 %v2445
    %v3760 = vunpack.c.h.b16 %v2445
    %v3761 = vunpack.c.l.b16 %v2446
    %v3762 = vunpack.c.h.b16 %v2446
    %v3763 = vunpack.c.l.b16 %v2447
    %v3764 = vunpack.c.h.b16 %v2447
    %v3765 = vunpack.c.l.b16 %v2448
    %v3766 = vunpack.c.h.b16 %v2448
    %v3767 = vunpack.c.l.b16 %v2449
    %v3768 = vunpack.c.h.b16 %v2449
    %v3769 = vunpack.c.l.b16 %v2450
    %v3770 = vunpack.c.h.b16 %v2450
    %v3771 = vunpack.c.l.b16 %v2451
    %v3772 = vunpack.c.h.b16 %v2451
    %v3773 = vunpack.c.l.b16 %v2452
    %v3774 = vunpack.c.h.b16 %v2452
    %v3775 = vunpack.c.l.b16 %v2453
    %v3776 = vunpack.c.h.b16 %v2453
    %v3777 = vunpack.c.l.b16 %v2454
    %v3778 = vunpack.c.h.b16 %v2454
    %v3779 = vunpack.c.l.b16 %v2455
    %v3780 = vunpack.c.h.b16 %v2455
    %v3781 = vunpack.c.l.b16 %v2456
    %v3782 = vunpack.c.h.b16 %v2456
    %v3783 = vunpack.c.l.b16 %v2457
    %v3784 = vunpack.c.h.b16 %v2457
    %v3785 = vunpack.c.l.b16 %v2458
    %v3786 = vunpack.c.h.b16 %v2458
    %v3787 = vunpack.c.l.b16 %v2459
    %v3788 = vunpack.c.h.b16 %v2459
    %v3789 = vunpack.c.l.b16 %v2460
    %v3790 = vunpack.c.h.b16 %v2460
    %v3791 = vunpack.c.l.b16 %v2461
    %v3792 = vunpack.c.h.b16 %v2461
    %v3793 = vunpack.c.l.b16 %v2462
    %v3794 = vunpack.c.h.b16 %v2462
    %v3795 = vunpack.c.l.b16 %v2463
    %v3796 = vunpack.c.h.b16 %v2463
    %v3797 = vunpack.c.l.b16 %v2464
    %v3798 = vunpack.c.h.b16 %v2464
    %v3799 = vunpack.c.l.b16 %v2465
    %v3800 = vunpack.c.h.b16 %v2465
    %v3801 = vunpack.c.l.b16 %v2466
    %v3802 = vunpack.c.h.b16 %v2466
    %v3803 = vunpack.c.l.b16 %v2467
    %v3804 = vunpack.c.h.b16 %v2467
    %v3805 = vunpack.c.l.b16 %v2468
    %v3806 = vunpack.c.h.b16 %v2468
    %v3807 = vunpack.c.l.b16 %v2469
    %v3808 = vunpack.c.h.b16 %v2469
    %v3809 = vunpack.c.l.b16 %v2470
    %v3810 = vunpack.c.h.b16 %v2470
    %v3811 = vunpack.c.l.b16 %v2471
    %v3812 = vunpack.c.h.b16 %v2471
    %v3813 = vunpack.c.l.b16 %v2472
    %v3814 = vunpack.c.h.b16 %v2472
    %v3815 = vunpack.c.l.b16 %v2473
    %v3816 = vunpack.c.h.b16 %v2473
    %v3817 = vunpack.c.l.b16 %v2474
    %v3818 = vunpack.c.h.b16 %v2474
    %v3819 = vunpack.c.l.b16 %v2475
    %v3820 = vunpack.c.h.b16 %v2475
    %v3821 = vunpack.c.l.b16 %v2476
    %v3822 = vunpack.c.h.b16 %v2476
    %v3823 = vunpack.c.l.b16 %v2477
    %v3824 = vunpack.c.h.b16 %v2477
    %v3825 = vunpack.c.l.b16 %v2478
    %v3826 = vunpack.c.h.b16 %v2478
    %v3827 = vunpack.c.l.b16 %v2479
    %v3828 = vunpack.c.h.b16 %v2479
    %v3829 = vunpack.c.l.b16 %v2480
    %v3830 = vunpack.c.h.b16 %v2480
    %v3831 = vunpack.c.l.b16 %v2481
    %v3832 = vunpack.c.h.b16 %v2481
    %v3833 = vunpack.c.l.b16 %v2482
    %v3834 = vunpack.c.h.b16 %v2482
    %v3835 = vunpack.c.l.b16 %v2483
    %v3836 = vunpack.c.h.b16 %v2483
    %v3837 = vunpack.c.l.b16 %v2484
    %v3838 = vunpack.c.h.b16 %v2484
    %v3839 = vunpack.c.l.b16 %v2485
    %v3840 = vunpack.c.h.b16 %v2485
    %v3841 = vunpack.c.l.b16 %v2486
    %v3842 = vunpack.c.h.b16 %v2486
    %v3843 = vunpack.c.l.b16 %v2487
    %v3844 = vunpack.c.h.b16 %v2487
    %v3845 = vunpack.c.l.b16 %v2488
    %v3846 = vunpack.c.h.b16 %v2488
    %v3847 = vunpack.c.l.b16 %v2489
    %v3848 = vunpack.c.h.b16 %v2489
    %v3849 = vunpack.c.l.b16 %v2490
    %v3850 = vunpack.c.h.b16 %v2490
    %v3851 = vunpack.c.l.b16 %v2491
    %v3852 = vunpack.c.h.b16 %v2491
    %v3853 = vunpack.c.l.b16 %v2492
    %v3854 = vunpack.c.h.b16 %v2492
    %v3855 = vunpack.c.l.b16 %v2493
    %v3856 = vunpack.c.h.b16 %v2493
    %v3857 = vunpack.c.l.b16 %v2494
    %v3858 = vunpack.c.h.b16 %v2494
    %v3859 = vunpack.c.l.b16 %v2495
    %v3860 = vunpack.c.h.b16 %v2495
    %v3861 = vunpack.c.l.b16 %v2496
    %v3862 = vunpack.c.h.b16 %v2496
    %v3863 = vunpack.c.l.b16 %v2497
    %v3864 = vunpack.c.h.b16 %v2497
    %v3865 = vunpack.c.l.b16 %v2498
    %v3866 = vunpack.c.h.b16 %v2498
    %v3867 = vunpack.c.l.b16 %v2499
    %v3868 = vunpack.c.h.b16 %v2499
    %v3869 = vunpack.c.l.b16 %v2500
    %v3870 = vunpack.c.h.b16 %v2500
    %v3871 = vunpack.c.l.b16 %v2501
    %v3872 = vunpack.c.h.b16 %v2501
    %v3873 = vunpack.c.l.b16 %v2502
    %v3874 = vunpack.c.h.b16 %v2502
    %v3875 = vunpack.c.l.b16 %v2503
    %v3876 = vunpack.c.h.b16 %v2503
    %v3877 = vunpack.c.l.b16 %v2504
    %v3878 = vunpack.c.h.b16 %v2504
    %v3879 = vunpack.c.l.b16 %v2505
    %v3880 = vunpack.c.h.b16 %v2505
    %v3881 = vunpack.c.l.b16 %v2506
    %v3882 = vunpack.c.h.b16 %v2506
    %v3883 = vunpack.c.l.b16 %v2507
    %v3884 = vunpack.c.h.b16 %v2507
    %v3885 = vunpack.c.l.b16 %v2508
    %v3886 = vunpack.c.h.b16 %v2508
    %v3887 = vunpack.c.l.b16 %v2509
    %v3888 = vunpack.c.h.b16 %v2509
    %v3889 = vunpack.c.l.b16 %v2510
    %v3890 = vunpack.c.h.b16 %v2510
    %v3891 = vunpack.c.l.b16 %v2511
    %v3892 = vunpack.c.h.b16 %v2511
    %v3893 = vunpack.c.l.b16 %v2512
    %v3894 = vunpack.c.h.b16 %v2512
    %v3895 = vunpack.c.l.b16 %v2513
    %v3896 = vunpack.c.h.b16 %v2513
    %v3897 = vunpack.c.l.b16 %v2514
    %v3898 = vunpack.c.h.b16 %v2514
    %v3899 = vunpack.c.l.b16 %v2515
    %v3900 = vunpack.c.h.b16 %v2515
    %v3901 = vunpack.c.l.b16 %v2516
    %v3902 = vunpack.c.h.b16 %v2516
    %v3903 = vunpack.c.l.b16 %v2517
    %v3904 = vunpack.c.h.b16 %v2517
    %v3905 = vunpack.c.l.b16 %v2518
    %v3906 = vunpack.c.h.b16 %v2518
    %v3907 = vunpack.c.l.b16 %v2519
    %v3908 = vunpack.c.h.b16 %v2519
    %v3909 = vunpack.c.l.b16 %v2520
    %v3910 = vunpack.c.h.b16 %v2520
    %v3911 = vunpack.c.l.b16 %v2521
    %v3912 = vunpack.c.h.b16 %v2521
    %v3913 = vunpack.c.l.b16 %v2522
    %v3914 = vunpack.c.h.b16 %v2522
    %v3915 = vunpack.c.l.b16 %v2523
    %v3916 = vunpack.c.h.b16 %v2523
    %v3917 = vunpack.c.l.b16 %v2524
    %v3918 = vunpack.c.h.b16 %v2524
    %v3919 = vunpack.c.l.b16 %v2525
    %v3920 = vunpack.c.h.b16 %v2525
    %v3921 = vunpack.c.l.b16 %v2526
    %v3922 = vunpack.c.h.b16 %v2526
    %v3923 = vunpack.c.l.b16 %v2527
    %v3924 = vunpack.c.h.b16 %v2527
    %v3925 = vunpack.c.l.b16 %v2528
    %v3926 = vunpack.c.h.b16 %v2528
    %v3927 = vunpack.c.l.b16 %v2529
    %v3928 = vunpack.c.h.b16 %v2529
    %v3929 = vunpack.c.l.b16 %v2530
    %v3930 = vunpack.c.h.b16 %v2530
    %v3931 = vunpack.c.l.b16 %v2531
    %v3932 = vunpack.c.h.b16 %v2531
    %v3933 = vunpack.c.l.b16 %v2532
    %v3934 = vunpack.c.h.b16 %v2532
    %v3935 = vunpack.c.l.b16 %v2533
    %v3936 = vunpack.c.h.b16 %v2533
    %v3937 = vunpack.c.l.b16 %v2534
    %v3938 = vunpack.c.h.b16 %v2534
    %v3939 = vunpack.c.l.b16 %v2535
    %v3940 = vunpack.c.h.b16 %v2535
    %v3941 = vunpack.c.l.b16 %v2536
    %v3942 = vunpack.c.h.b16 %v2536
    %v3943 = vunpack.c.l.b16 %v2537
    %v3944 = vunpack.c.h.b16 %v2537
    %v3945 = vunpack.c.l.b16 %v2538
    %v3946 = vunpack.c.h.b16 %v2538
    %v3947 = vunpack.c.l.b16 %v2539
    %v3948 = vunpack.c.h.b16 %v2539
    %v3949 = vunpack.c.l.b16 %v2540
    %v3950 = vunpack.c.h.b16 %v2540
    %v3951 = vunpack.c.l.b16 %v2541
    %v3952 = vunpack.c.h.b16 %v2541
    %v3953 = vunpack.c.l.b16 %v2542
    %v3954 = vunpack.c.h.b16 %v2542
    %v3955 = vunpack.c.l.b16 %v2543
    %v3956 = vunpack.c.h.b16 %v2543
    %v3957 = vunpack.c.l.b16 %v2544
    %v3958 = vunpack.c.h.b16 %v2544
    %v3959 = vunpack.c.l.b16 %v2545
    %v3960 = vunpack.c.h.b16 %v2545
    %v3961 = vunpack.c.l.b16 %v2546
    %v3962 = vunpack.c.h.b16 %v2546
    %v3963 = vunpack.c.l.b16 %v2547
    %v3964 = vunpack.c.h.b16 %v2547
    %v3965 = vunpack.c.l.b16 %v2548
    %v3966 = vunpack.c.h.b16 %v2548
    %v3967 = vunpack.c.l.b16 %v2549
    %v3968 = vunpack.c.h.b16 %v2549
    %v3969 = vunpack.c.l.b16 %v2550
    %v3970 = vunpack.c.h.b16 %v2550
    %v3971 = vunpack.c.l.b16 %v2551
    %v3972 = vunpack.c.h.b16 %v2551
    %v3973 = vunpack.c.l.b16 %v2552
    %v3974 = vunpack.c.h.b16 %v2552
    %v3975 = vunpack.c.l.b16 %v2553
    %v3976 = vunpack.c.h.b16 %v2553
    %v3977 = vunpack.c.l.b16 %v2554
    %v3978 = vunpack.c.h.b16 %v2554
    %v3979 = vunpack.c.l.b16 %v2555
    %v3980 = vunpack.c.h.b16 %v2555
    %v3981 = vunpack.c.l.b16 %v2556
    %v3982 = vunpack.c.h.b16 %v2556
    %v3983 = vunpack.c.l.b16 %v2557
    %v3984 = vunpack.c.h.b16 %v2557
    %v3985 = vunpack.c.l.b16 %v2558
    %v3986 = vunpack.c.h.b16 %v2558
    %v3987 = vunpack.c.l.b16 %v2559
    %v3988 = vunpack.c.h.b16 %v2559
    %v3989 = vunpack.c.l.b16 %v2560
    %v3990 = vunpack.c.h.b16 %v2560
    %v3991 = vunpack.c.l.b16 %v2561
    %v3992 = vunpack.c.h.b16 %v2561
    %v3993 = vunpack.c.l.b16 %v2562
    %v3994 = vunpack.c.h.b16 %v2562
    %v3995 = vunpack.c.l.b16 %v2563
    %v3996 = vunpack.c.h.b16 %v2563
    %v3997 = vunpack.c.l.b16 %v2564
    %v3998 = vunpack.c.h.b16 %v2564
    %v3999 = vunpack.c.l.b16 %v2565
    %v4000 = vunpack.c.h.b16 %v2565
    %v4001 = vunpack.c.l.b16 %v2566
    %v4002 = vunpack.c.h.b16 %v2566
    %v4003 = vunpack.c.l.b16 %v2567
    %v4004 = vunpack.c.h.b16 %v2567
    %v4005 = vunpack.c.l.b16 %v2568
    %v4006 = vunpack.c.h.b16 %v2568
    %v4007 = vunpack.c.l.b16 %v2569
    %v4008 = vunpack.c.h.b16 %v2569
    %v4009 = vunpack.c.l.b16 %v2570
    %v4010 = vunpack.c.h.b16 %v2570
    %v4011 = vunpack.c.l.b16 %v2571
    %v4012 = vunpack.c.h.b16 %v2571
    %v4013 = vunpack.c.l.b16 %v2572
    %v4014 = vunpack.c.h.b16 %v2572
    %v4015 = vunpack.c.l.b16 %v2573
    %v4016 = vunpack.c.h.b16 %v2573
    %v4017 = vunpack.c.l.b16 %v2574
    %v4018 = vunpack.c.h.b16 %v2574
    %v4019 = vunpack.c.l.b16 %v2575
    %v4020 = vunpack.c.h.b16 %v2575
    %v4021 = vunpack.c.l.b16 %v2576
    %v4022 = vunpack.c.h.b16 %v2576
    %v4023 = vunpack.c.l.b16 %v2577
    %v4024 = vunpack.c.h.b16 %v2577
    %v4025 = vunpack.c.l.b16 %v2578
    %v4026 = vunpack.c.h.b16 %v2578
    %v4027 = vunpack.c.l.b16 %v2579
    %v4028 = vunpack.c.h.b16 %v2579
    %v4029 = vunpack.c.l.b16 %v2580
    %v4030 = vunpack.c.h.b16 %v2580
    %v4031 = vunpack.c.l.b16 %v2581
    %v4032 = vunpack.c.h.b16 %v2581
    %v4033 = vunpack.c.l.b16 %v2582
    %v4034 = vunpack.c.h.b16 %v2582
    %v4035 = vunpack.c.l.b16 %v2583
    %v4036 = vunpack.c.h.b16 %v2583
    %v4037 = vunpack.c.l.b16 %v2584
    %v4038 = vunpack.c.h.b16 %v2584
    %v4039 = vunpack.c.l.b16 %v2585
    %v4040 = vunpack.c.h.b16 %v2585
    %v4041 = vunpack.c.l.b16 %v2586
    %v4042 = vunpack.c.h.b16 %v2586
    %v4043 = vunpack.c.l.b16 %v2587
    %v4044 = vunpack.c.h.b16 %v2587
    %v4045 = vunpack.c.l.b16 %v2588
    %v4046 = vunpack.c.h.b16 %v2588
    %v4047 = vunpack.c.l.b16 %v2589
    %v4048 = vunpack.c.h.b16 %v2589
    %v4049 = vunpack.c.l.b16 %v2590
    %v4050 = vunpack.c.h.b16 %v2590
    %v4051 = vunpack.c.l.b16 %v2591
    %v4052 = vunpack.c.h.b16 %v2591
    %v4053 = vunpack.c.l.b16 %v2592
    %v4054 = vunpack.c.h.b16 %v2592
    %v4055 = vunpack.c.l.b16 %v2593
    %v4056 = vunpack.c.h.b16 %v2593
    %v4057 = vunpack.c.l.b16 %v2594
    %v4058 = vunpack.c.h.b16 %v2594
    %v4059 = vunpack.c.l.b16 %v2595
    %v4060 = vunpack.c.h.b16 %v2595
    %v4061 = vunpack.c.l.b16 %v2596
    %v4062 = vunpack.c.h.b16 %v2596
    %v4063 = vunpack.c.l.b16 %v2597
    %v4064 = vunpack.c.h.b16 %v2597
    %v4065 = vunpack.c.l.b16 %v2598
    %v4066 = vunpack.c.h.b16 %v2598
    %v4067 = vunpack.c.l.b16 %v2599
    %v4068 = vunpack.c.h.b16 %v2599
    %v4069 = vunpack.c.l.b16 %v2600
    %v4070 = vunpack.c.h.b16 %v2600
    %v4071 = vunpack.c.l.b16 %v2601
    %v4072 = vunpack.c.h.b16 %v2601
    %v4073 = vunpack.c.l.b16 %v2602
    %v4074 = vunpack.c.h.b16 %v2602
    %v4075 = vunpack.c.l.b16 %v2603
    %v4076 = vunpack.c.h.b16 %v2603
    %v4077 = vunpack.c.l.b16 %v2604
    %v4078 = vunpack.c.h.b16 %v2604
    %v4079 = vunpack.c.l.b16 %v2605
    %v4080 = vunpack.c.h.b16 %v2605
    %v4081 = vunpack.c.l.b16 %v2606
    %v4082 = vunpack.c.h.b16 %v2606
    %v4083 = vunpack.c.l.b16 %v2607
    %v4084 = vunpack.c.h.b16 %v2607
    %v4085 = vunpack.c.l.b16 %v2608
    %v4086 = vunpack.c.h.b16 %v2608
    %v4087 = vunpack.c.l.b16 %v2609
    %v4088 = vunpack.c.h.b16 %v2609
    %v4089 = vunpack.c.l.b16 %v2610
    %v4090 = vunpack.c.h.b16 %v2610
    %v4091 = vunpack.c.l.b16 %v2611
    %v4092 = vunpack.c.h.b16 %v2611
    %v4093 = vunpack.c.l.b16 %v2612
    %v4094 = vunpack.c.h.b16 %v2612
    %v4095 = vunpack.c.l.b16 %v2613
    %v4096 = vunpack.c.h.b16 %v2613
    %v4097 = vunpack.c.l.b16 %v2614
    %v4098 = vunpack.c.h.b16 %v2614
    %v4099 = vunpack.c.l.b16 %v2615
    %v4100 = vunpack.c.h.b16 %v2615
    %v4101 = vunpack.c.l.b16 %v2616
    %v4102 = vunpack.c.h.b16 %v2616
    %v4103 = vunpack.c.l.b16 %v2617
    %v4104 = vunpack.c.h.b16 %v2617
    %v4105 = vunpack.c.l.b16 %v2618
    %v4106 = vunpack.c.h.b16 %v2618
    %v4107 = vunpack.c.l.b16 %v2619
    %v4108 = vunpack.c.h.b16 %v2619
    %v4109 = vunpack.c.l.b16 %v2620
    %v4110 = vunpack.c.h.b16 %v2620
    %v4111 = vunpack.c.l.b16 %v2621
    %v4112 = vunpack.c.h.b16 %v2621
    %v4113 = vunpack.c.l.b16 %v2622
    %v4114 = vunpack.c.h.b16 %v2622
    %v4115 = vunpack.c.l.b16 %v2623
    %v4116 = vunpack.c.h.b16 %v2623
    %v4117 = vunpack.c.l.b16 %v2624
    %v4118 = vunpack.c.h.b16 %v2624
    %v4119 = vunpack.c.l.b16 %v2625
    %v4120 = vunpack.c.h.b16 %v2625
    %v4121 = vunpack.c.l.b16 %v2626
    %v4122 = vunpack.c.h.b16 %v2626
    %v4123 = vunpack.c.l.b16 %v2627
    %v4124 = vunpack.c.h.b16 %v2627
    %v4125 = vunpack.c.l.b16 %v2628
    %v4126 = vunpack.c.h.b16 %v2628
    %v4127 = vunpack.c.l.b16 %v2629
    %v4128 = vunpack.c.h.b16 %v2629
    %v4129 = vunpack.c.l.b16 %v2630
    %v4130 = vunpack.c.h.b16 %v2630
    %v4131 = vunpack.c.l.b16 %v2631
    %v4132 = vunpack.c.h.b16 %v2631
    %v4133 = vunpack.c.l.b16 %v2632
    %v4134 = vunpack.c.h.b16 %v2632
    %v4135 = vunpack.c.l.b16 %v2633
    %v4136 = vunpack.c.h.b16 %v2633
    %v4137 = vunpack.c.l.b16 %v2634
    %v4138 = vunpack.c.h.b16 %v2634
    %v4139 = vunpack.c.l.b16 %v2635
    %v4140 = vunpack.c.h.b16 %v2635
    %v4141 = vunpack.c.l.b16 %v2636
    %v4142 = vunpack.c.h.b16 %v2636
    %v4143 = vunpack.c.l.b16 %v2637
    %v4144 = vunpack.c.h.b16 %v2637
    %v4145 = vunpack.c.l.b16 %v2638
    %v4146 = vunpack.c.h.b16 %v2638
    %v4147 = vunpack.c.l.b16 %v2639
    %v4148 = vunpack.c.h.b16 %v2639
    %v4149 = vunpack.c.l.b16 %v2640
    %v4150 = vunpack.c.h.b16 %v2640
    %v4151 = vunpack.c.l.b16 %v2641
    %v4152 = vunpack.c.h.b16 %v2641
    %v4153 = vunpack.c.l.b16 %v2642
    %v4154 = vunpack.c.h.b16 %v2642
    %v4155 = vunpack.c.l.b16 %v2643
    %v4156 = vunpack.c.h.b16 %v2643
    %v4157 = vunpack.c.l.b16 %v2644
    %v4158 = vunpack.c.h.b16 %v2644
    %v4159 = vunpack.c.l.b16 %v2645
    %v4160 = vunpack.c.h.b16 %v2645
    %v4161 = vunpack.c.l.b16 %v2646
    %v4162 = vunpack.c.h.b16 %v2646
    %v4163 = vunpack.c.l.b16 %v2647
    %v4164 = vunpack.c.h.b16 %v2647
    %v4165 = vunpack.c.l.b16 %v2648
    %v4166 = vunpack.c.h.b16 %v2648
    %v4167 = vunpack.c.l.b16 %v2649
    %v4168 = vunpack.c.h.b16 %v2649
    %v4169 = vunpack.c.l.b16 %v2650
    %v4170 = vunpack.c.h.b16 %v2650
    %v4171 = vunpack.c.l.b16 %v2651
    %v4172 = vunpack.c.h.b16 %v2651
    %v4173 = vunpack.c.l.b16 %v2652
    %v4174 = vunpack.c.h.b16 %v2652
    %v4175 = vunpack.c.l.b16 %v2653
    %v4176 = vunpack.c.h.b16 %v2653
    %v4177 = vunpack.c.l.b16 %v2654
    %v4178 = vunpack.c.h.b16 %v2654
    %v4179 = vunpack.c.l.b16 %v2655
    %v4180 = vunpack.c.h.b16 %v2655
    %v4181 = vunpack.c.l.b16 %v2656
    %v4182 = vunpack.c.h.b16 %v2656
    %v4183 = vunpack.c.l.b16 %v2657
    %v4184 = vunpack.c.h.b16 %v2657
    %v4185 = vunpack.c.l.b16 %v2658
    %v4186 = vunpack.c.h.b16 %v2658
    %v4187 = vunpack.c.l.b16 %v2659
    %v4188 = vunpack.c.h.b16 %v2659
    %v4189 = vunpack.c.l.b16 %v2660
    %v4190 = vunpack.c.h.b16 %v2660
    %v4191 = vunpack.c.l.b16 %v2661
    %v4192 = vunpack.c.h.b16 %v2661
    %v4193 = vunpack.c.l.b16 %v2662
    %v4194 = vunpack.c.h.b16 %v2662
    %v4195 = vunpack.c.l.b16 %v2663
    %v4196 = vunpack.c.h.b16 %v2663
    %v4197 = vunpack.c.l.b16 %v2664
    %v4198 = vunpack.c.h.b16 %v2664
    %v4199 = vunpack.c.l.b16 %v2665
    %v4200 = vunpack.c.h.b16 %v2665
    %v4201 = vunpack.c.l.b16 %v2666
    %v4202 = vunpack.c.h.b16 %v2666
    %v4203 = vunpack.c.l.b16 %v2667
    %v4204 = vunpack.c.h.b16 %v2667
    %v4205 = vunpack.c.l.b16 %v2668
    %v4206 = vunpack.c.h.b16 %v2668
    %v4207 = vunpack.c.l.b16 %v2669
    %v4208 = vunpack.c.h.b16 %v2669
    %v4209 = vunpack.c.l.b16 %v2670
    %v4210 = vunpack.c.h.b16 %v2670
    %v4211 = vunpack.c.l.b16 %v2671
    %v4212 = vunpack.c.h.b16 %v2671
    %v4213 = vunpack.c.l.b16 %v2672
    %v4214 = vunpack.c.h.b16 %v2672
    %v4215 = vunpack.c.l.b16 %v2673
    %v4216 = vunpack.c.h.b16 %v2673
    %v4217 = vunpack.c.l.b16 %v2674
    %v4218 = vunpack.c.h.b16 %v2674
    %v4219 = vunpack.c.l.b16 %v2675
    %v4220 = vunpack.c.h.b16 %v2675
    %v4221 = vunpack.c.l.b16 %v2676
    %v4222 = vunpack.c.h.b16 %v2676
    %v4223 = vunpack.c.l.b16 %v2677
    %v4224 = vunpack.c.h.b16 %v2677
    %v4225 = vunpack.c.l.b16 %v2678
    %v4226 = vunpack.c.h.b16 %v2678
    %v4227 = vunpack.c.l.b16 %v2679
    %v4228 = vunpack.c.h.b16 %v2679
    %v4229 = vunpack.c.l.b16 %v2680
    %v4230 = vunpack.c.h.b16 %v2680
    %v4231 = vunpack.c.l.b16 %v2681
    %v4232 = vunpack.c.h.b16 %v2681
    %v4233 = vunpack.c.l.b16 %v2682
    %v4234 = vunpack.c.h.b16 %v2682
    %v4235 = vunpack.c.l.b16 %v2683
    %v4236 = vunpack.c.h.b16 %v2683
    %v4237 = vunpack.c.l.b16 %v2684
    %v4238 = vunpack.c.h.b16 %v2684
    %v4239 = vunpack.c.l.b16 %v2685
    %v4240 = vunpack.c.h.b16 %v2685
    %v4241 = vunpack.c.l.b16 %v2686
    %v4242 = vunpack.c.h.b16 %v2686
    %v4243 = vunpack.c.l.b16 %v2687
    %v4244 = vunpack.c.h.b16 %v2687
    %v4245 = vunpack.c.l.b16 %v2688
    %v4246 = vunpack.c.h.b16 %v2688
    %v4247 = vunpack.c.l.b16 %v2689
    %v4248 = vunpack.c.h.b16 %v2689
    %v4249 = vunpack.c.l.b16 %v2690
    %v4250 = vunpack.c.h.b16 %v2690
    %v4251 = vunpack.c.l.b16 %v2691
    %v4252 = vunpack.c.h.b16 %v2691
    %v4253 = vunpack.c.l.b16 %v2692
    %v4254 = vunpack.c.h.b16 %v2692
    %v4255 = vunpack.c.l.b16 %v2693
    %v4256 = vunpack.c.h.b16 %v2693
    %v4257 = vunpack.c.l.b16 %v2694
    %v4258 = vunpack.c.h.b16 %v2694
    %v4259 = vunpack.c.l.b16 %v2695
    %v4260 = vunpack.c.h.b16 %v2695
    %v4261 = vunpack.c.l.b16 %v2696
    %v4262 = vunpack.c.h.b16 %v2696
    %v4263 = vunpack.c.l.b16 %v2697
    %v4264 = vunpack.c.h.b16 %v2697
    %v4265 = vunpack.c.l.b16 %v2698
    %v4266 = vunpack.c.h.b16 %v2698
    %v4267 = vunpack.c.l.b16 %v2699
    %v4268 = vunpack.c.h.b16 %v2699
    %v4269 = vunpack.c.l.b16 %v2700
    %v4270 = vunpack.c.h.b16 %v2700
    %v4271 = vunpack.c.l.b16 %v2701
    %v4272 = vunpack.c.h.b16 %v2701
    %v4273 = vunpack.c.l.b16 %v2702
    %v4274 = vunpack.c.h.b16 %v2702
    %v4275 = vunpack.c.l.b16 %v2703
    %v4276 = vunpack.c.h.b16 %v2703
    %v4277 = vunpack.c.l.b16 %v2704
    %v4278 = vunpack.c.h.b16 %v2704
    %v4279 = vunpack.c.l.b16 %v2705
    %v4280 = vunpack.c.h.b16 %v2705
    %v4281 = vunpack.c.l.b16 %v2706
    %v4282 = vunpack.c.h.b16 %v2706
    %v4283 = vunpack.c.l.b16 %v2707
    %v4284 = vunpack.c.h.b16 %v2707
    %v4285 = vunpack.c.l.b16 %v2708
    %v4286 = vunpack.c.h.b16 %v2708
    %v4287 = vpack.c.b16 %v3271, %v3263
    %v4288 = vpack.c.b16 %v3272, %v3264
    %v4289 = vpack.c.b16 %v3273, %v3265
    %v4290 = vpack.c.b16 %v3274, %v3266
    %v4291 = vpack.c.b16 %v3275, %v3267
    %v4292 = vpack.c.b16 %v3276, %v3268
    %v4293 = vpack.c.b16 %v3277, %v3269
    %v4294 = vpack.c.b16 %v3278, %v3270
    %v4295 = vpack.c.b16 %v3287, %v3279
    %v4296 = vpack.c.b16 %v3288, %v3280
    %v4297 = vpack.c.b16 %v3289, %v3281
    %v4298 = vpack.c.b16 %v3290, %v3282
    %v4299 = vpack.c.b16 %v3291, %v3283
    %v4300 = vpack.c.b16 %v3292, %v3284
    %v4301 = vpack.c.b16 %v3293, %v3285
    %v4302 = vpack.c.b16 %v3294, %v3286
    %v4303 = vpack.c.b16 %v3303, %v3295
    %v4304 = vpack.c.b16 %v3304, %v3296
    %v4305 = vpack.c.b16 %v3305, %v3297
    %v4306 = vpack.c.b16 %v3306, %v3298
    %v4307 = vpack.c.b16 %v3307, %v3299
    %v4308 = vpack.c.b16 %v3308, %v3300
    %v4309 = vpack.c.b16 %v3309, %v3301
    %v4310 = vpack.c.b16 %v3310, %v3302
    %v4311 = vpack.c.b16 %v3319, %v3311
    %v4312 = vpack.c.b16 %v3320, %v3312
    %v4313 = vpack.c.b16 %v3321, %v3313
    %v4314 = vpack.c.b16 %v3322, %v3314
    %v4315 = vpack.c.b16 %v3323, %v3315
    %v4316 = vpack.c.b16 %v3324, %v3316
    %v4317 = vpack.c.b16 %v3325, %v3317
    %v4318 = vpack.c.b16 %v3326, %v3318
    %v4319 = vpack.c.b16 %v3335, %v3327
    %v4320 = vpack.c.b16 %v3336, %v3328
    %v4321 = vpack.c.b16 %v3337, %v3329
    %v4322 = vpack.c.b16 %v3338, %v3330
    %v4323 = vpack.c.b16 %v3339, %v3331
    %v4324 = vpack.c.b16 %v3340, %v3332
    %v4325 = vpack.c.b16 %v3341, %v3333
    %v4326 = vpack.c.b16 %v3342, %v3334
    %v4327 = vpack.c.b16 %v3351, %v3343
    %v4328 = vpack.c.b16 %v3352, %v3344
    %v4329 = vpack.c.b16 %v3353, %v3345
    %v4330 = vpack.c.b16 %v3354, %v3346
    %v4331 = vpack.c.b16 %v3355, %v3347
    %v4332 = vpack.c.b16 %v3356, %v3348
    %v4333 = vpack.c.b16 %v3357, %v3349
    %v4334 = vpack.c.b16 %v3358, %v3350
    %v4335 = vpack.c.b16 %v3367, %v3359
    %v4336 = vpack.c.b16 %v3368, %v3360
    %v4337 = vpack.c.b16 %v3369, %v3361
    %v4338 = vpack.c.b16 %v3370, %v3362
    %v4339 = vpack.c.b16 %v3371, %v3363
    %v4340 = vpack.c.b16 %v3372, %v3364
    %v4341 = vpack.c.b16 %v3373, %v3365
    %v4342 = vpack.c.b16 %v3374, %v3366
    %v4343 = vpack.c.b16 %v3383, %v3375
    %v4344 = vpack.c.b16 %v3384, %v3376
    %v4345 = vpack.c.b16 %v3385, %v3377
    %v4346 = vpack.c.b16 %v3386, %v3378
    %v4347 = vpack.c.b16 %v3387, %v3379
    %v4348 = vpack.c.b16 %v3388, %v3380
    %v4349 = vpack.c.b16 %v3389, %v3381
    %v4350 = vpack.c.b16 %v3390, %v3382
    %v4351 = vpack.c.b16 %v3399, %v3391
    %v4352 = vpack.c.b16 %v3400, %v3392
    %v4353 = vpack.c.b16 %v3401, %v3393
    %v4354 = vpack.c.b16 %v3402, %v3394
    %v4355 = vpack.c.b16 %v3403, %v3395
    %v4356 = vpack.c.b16 %v3404, %v3396
    %v4357 = vpack.c.b16 %v3405, %v3397
    %v4358 = vpack.c.b16 %v3406, %v3398
    %v4359 = vpack.c.b16 %v3415, %v3407
    %v4360 = vpack.c.b16 %v3416, %v3408
    %v4361 = vpack.c.b16 %v3417, %v3409
    %v4362 = vpack.c.b16 %v3418, %v3410
    %v4363 = vpack.c.b16 %v3419, %v3411
    %v4364 = vpack.c.b16 %v3420, %v3412
    %v4365 = vpack.c.b16 %v3421, %v3413
    %v4366 = vpack.c.b16 %v3422, %v3414
    %v4367 = vpack.c.b16 %v3431, %v3423
    %v4368 = vpack.c.b16 %v3432, %v3424
    %v4369 = vpack.c.b16 %v3433, %v3425
    %v4370 = vpack.c.b16 %v3434, %v3426
    %v4371 = vpack.c.b16 %v3435, %v3427
    %v4372 = vpack.c.b16 %v3436, %v3428
    %v4373 = vpack.c.b16 %v3437, %v3429
    %v4374 = vpack.c.b16 %v3438, %v3430
    %v4375 = vpack.c.b16 %v3447, %v3439
    %v4376 = vpack.c.b16 %v3448, %v3440
    %v4377 = vpack.c.b16 %v3449, %v3441
    %v4378 = vpack.c.b16 %v3450, %v3442
    %v4379 = vpack.c.b16 %v3451, %v3443
    %v4380 = vpack.c.b16 %v3452, %v3444
    %v4381 = vpack.c.b16 %v3453, %v3445
    %v4382 = vpack.c.b16 %v3454, %v3446
    %v4383 = vpack.c.b16 %v3463, %v3455
    %v4384 = vpack.c.b16 %v3464, %v3456
    %v4385 = vpack.c.b16 %v3465, %v3457
    %v4386 = vpack.c.b16 %v3466, %v3458
    %v4387 = vpack.c.b16 %v3467, %v3459
    %v4388 = vpack.c.b16 %v3468, %v3460
    %v4389 = vpack.c.b16 %v3469, %v3461
    %v4390 = vpack.c.b16 %v3470, %v3462
    %v4391 = vpack.c.b16 %v3479, %v3471
    %v4392 = vpack.c.b16 %v3480, %v3472
    %v4393 = vpack.c.b16 %v3481, %v3473
    %v4394 = vpack.c.b16 %v3482, %v3474
    %v4395 = vpack.c.b16 %v3483, %v3475
    %v4396 = vpack.c.b16 %v3484, %v3476
    %v4397 = vpack.c.b16 %v3485, %v3477
    %v4398 = vpack.c.b16 %v3486, %v3478
    %v4399 = vpack.c.b16 %v3495, %v3487
    %v4400 = vpack.c.b16 %v3496, %v3488
    %v4401 = vpack.c.b16 %v3497, %v3489
    %v4402 = vpack.c.b16 %v3498, %v3490
    %v4403 = vpack.c.b16 %v3499, %v3491
    %v4404 = vpack.c.b16 %v3500, %v3492
    %v4405 = vpack.c.b16 %v3501, %v3493
    %v4406 = vpack.c.b16 %v3502, %v3494
    %v4407 = vpack.c.b16 %v3511, %v3503
    %v4408 = vpack.c.b16 %v3512, %v3504
    %v4409 = vpack.c.b16 %v3513, %v3505
    %v4410 = vpack.c.b16 %v3514, %v3506
    %v4411 = vpack.c.b16 %v3515, %v3507
    %v4412 = vpack.c.b16 %v3516, %v3508
    %v4413 = vpack.c.b16 %v3517, %v3509
    %v4414 = vpack.c.b16 %v3518, %v3510
    %v4415 = vpack.c.b16 %v3527, %v3519
    %v4416 = vpack.c.b16 %v3528, %v3520
    %v4417 = vpack.c.b16 %v3529, %v3521
    %v4418 = vpack.c.b16 %v3530, %v3522
    %v4419 = vpack.c.b16 %v3531, %v3523
    %v4420 = vpack.c.b16 %v3532, %v3524
    %v4421 = vpack.c.b16 %v3533, %v3525
    %v4422 = vpack.c.b16 %v3534, %v3526
    %v4423 = vpack.c.b16 %v3543, %v3535
    %v4424 = vpack.c.b16 %v3544, %v3536
    %v4425 = vpack.c.b16 %v3545, %v3537
    %v4426 = vpack.c.b16 %v3546, %v3538
    %v4427 = vpack.c.b16 %v3547, %v3539
    %v4428 = vpack.c.b16 %v3548, %v3540
    %v4429 = vpack.c.b16 %v3549, %v3541
    %v4430 = vpack.c.b16 %v3550, %v3542
    %v4431 = vpack.c.b16 %v3559, %v3551
    %v4432 = vpack.c.b16 %v3560, %v3552
    %v4433 = vpack.c.b16 %v3561, %v3553
    %v4434 = vpack.c.b16 %v3562, %v3554
    %v4435 = vpack.c.b16 %v3563, %v3555
    %v4436 = vpack.c.b16 %v3564, %v3556
    %v4437 = vpack.c.b16 %v3565, %v3557
    %v4438 = vpack.c.b16 %v3566, %v3558
    %v4439 = vpack.c.b16 %v3575, %v3567
    %v4440 = vpack.c.b16 %v3576, %v3568
    %v4441 = vpack.c.b16 %v3577, %v3569
    %v4442 = vpack.c.b16 %v3578, %v3570
    %v4443 = vpack.c.b16 %v3579, %v3571
    %v4444 = vpack.c.b16 %v3580, %v3572
    %v4445 = vpack.c.b16 %v3581, %v3573
    %v4446 = vpack.c.b16 %v3582, %v3574
    %v4447 = vpack.c.b16 %v3591, %v3583
    %v4448 = vpack.c.b16 %v3592, %v3584
    %v4449 = vpack.c.b16 %v3593, %v3585
    %v4450 = vpack.c.b16 %v3594, %v3586
    %v4451 = vpack.c.b16 %v3595, %v3587
    %v4452 = vpack.c.b16 %v3596, %v3588
    %v4453 = vpack.c.b16 %v3597, %v3589
    %v4454 = vpack.c.b16 %v3598, %v3590
    %v4455 = vpack.c.b16 %v3607, %v3599
    %v4456 = vpack.c.b16 %v3608, %v3600
    %v4457 = vpack.c.b16 %v3609, %v3601
    %v4458 = vpack.c.b16 %v3610, %v3602
    %v4459 = vpack.c.b16 %v3611, %v3603
    %v4460 = vpack.c.b16 %v3612, %v3604
    %v4461 = vpack.c.b16 %v3613, %v3605
    %v4462 = vpack.c.b16 %v3614, %v3606
    %v4463 = vpack.c.b16 %v3623, %v3615
    %v4464 = vpack.c.b16 %v3624, %v3616
    %v4465 = vpack.c.b16 %v3625, %v3617
    %v4466 = vpack.c.b16 %v3626, %v3618
    %v4467 = vpack.c.b16 %v3627, %v3619
    %v4468 = vpack.c.b16 %v3628, %v3620
    %v4469 = vpack.c.b16 %v3629, %v3621
    %v4470 = vpack.c.b16 %v3630, %v3622
    %v4471 = vpack.c.b16 %v3639, %v3631
    %v4472 = vpack.c.b16 %v3640, %v3632
    %v4473 = vpack.c.b16 %v3641, %v3633
    %v4474 = vpack.c.b16 %v3642, %v3634
    %v4475 = vpack.c.b16 %v3643, %v3635
    %v4476 = vpack.c.b16 %v3644, %v3636
    %v4477 = vpack.c.b16 %v3645, %v3637
    %v4478 = vpack.c.b16 %v3646, %v3638
    %v4479 = vpack.c.b16 %v3655, %v3647
    %v4480 = vpack.c.b16 %v3656, %v3648
    %v4481 = vpack.c.b16 %v3657, %v3649
    %v4482 = vpack.c.b16 %v3658, %v3650
    %v4483 = vpack.c.b16 %v3659, %v3651
    %v4484 = vpack.c.b16 %v3660, %v3652
    %v4485 = vpack.c.b16 %v3661, %v3653
    %v4486 = vpack.c.b16 %v3662, %v3654
    %v4487 = vpack.c.b16 %v3671, %v3663
    %v4488 = vpack.c.b16 %v3672, %v3664
    %v4489 = vpack.c.b16 %v3673, %v3665
    %v4490 = vpack.c.b16 %v3674, %v3666
    %v4491 = vpack.c.b16 %v3675, %v3667
    %v4492 = vpack.c.b16 %v3676, %v3668
    %v4493 = vpack.c.b16 %v3677, %v3669
    %v4494 = vpack.c.b16 %v3678, %v3670
    %v4495 = vpack.c.b16 %v3687, %v3679
    %v4496 = vpack.c.b16 %v3688, %v3680
    %v4497 = vpack.c.b16 %v3689, %v3681
    %v4498 = vpack.c.b16 %v3690, %v3682
    %v4499 = vpack.c.b16 %v3691, %v3683
    %v4500 = vpack.c.b16 %v3692, %v3684
    %v4501 = vpack.c.b16 %v3693, %v3685
    %v4502 = vpack.c.b16 %v3694, %v3686
    %v4503 = vpack.c.b16 %v3703, %v3695
    %v4504 = vpack.c.b16 %v3704, %v3696
    %v4505 = vpack.c.b16 %v3705, %v3697
    %v4506 = vpack.c.b16 %v3706, %v3698
    %v4507 = vpack.c.b16 %v3707, %v3699
    %v4508 = vpack.c.b16 %v3708, %v3700
    %v4509 = vpack.c.b16 %v3709, %v3701
    %v4510 = vpack.c.b16 %v3710, %v3702
    %v4511 = vpack.c.b16 %v3719, %v3711
    %v4512 = vpack.c.b16 %v3720, %v3712
    %v4513 = vpack.c.b16 %v3721, %v3713
    %v4514 = vpack.c.b16 %v3722, %v3714
    %v4515 = vpack.c.b16 %v3723, %v3715
    %v4516 = vpack.c.b16 %v3724, %v3716
    %v4517 = vpack.c.b16 %v3725, %v3717
    %v4518 = vpack.c.b16 %v3726, %v3718
    %v4519 = vpack.c.b16 %v3735, %v3727
    %v4520 = vpack.c.b16 %v3736, %v3728
    %v4521 = vpack.c.b16 %v3737, %v3729
    %v4522 = vpack.c.b16 %v3738, %v3730
    %v4523 = vpack.c.b16 %v3739, %v3731
    %v4524 = vpack.c.b16 %v3740, %v3732
    %v4525 = vpack.c.b16 %v3741, %v3733
    %v4526 = vpack.c.b16 %v3742, %v3734
    %v4527 = vpack.c.b16 %v3751, %v3743
    %v4528 = vpack.c.b16 %v3752, %v3744
    %v4529 = vpack.c.b16 %v3753, %v3745
    %v4530 = vpack.c.b16 %v3754, %v3746
    %v4531 = vpack.c.b16 %v3755, %v3747
    %v4532 = vpack.c.b16 %v3756, %v3748
    %v4533 = vpack.c.b16 %v3757, %v3749
    %v4534 = vpack.c.b16 %v3758, %v3750
    %v4535 = vpack.c.b16 %v3767, %v3759
    %v4536 = vpack.c.b16 %v3768, %v3760
    %v4537 = vpack.c.b16 %v3769, %v3761
    %v4538 = vpack.c.b16 %v3770, %v3762
    %v4539 = vpack.c.b16 %v3771, %v3763
    %v4540 = vpack.c.b16 %v3772, %v3764
    %v4541 = vpack.c.b16 %v3773, %v3765
    %v4542 = vpack.c.b16 %v3774, %v3766
    %v4543 = vpack.c.b16 %v3783, %v3775
    %v4544 = vpack.c.b16 %v3784, %v3776
    %v4545 = vpack.c.b16 %v3785, %v3777
    %v4546 = vpack.c.b16 %v3786, %v3778
    %v4547 = vpack.c.b16 %v3787, %v3779
    %v4548 = vpack.c.b16 %v3788, %v3780
    %v4549 = vpack.c.b16 %v3789, %v3781
    %v4550 = vpack.c.b16 %v3790, %v3782
    %v4551 = vpack.c.b16 %v3799, %v3791
    %v4552 = vpack.c.b16 %v3800, %v3792
    %v4553 = vpack.c.b16 %v3801, %v3793
    %v4554 = vpack.c.b16 %v3802, %v3794
    %v4555 = vpack.c.b16 %v3803, %v3795
    %v4556 = vpack.c.b16 %v3804, %v3796
    %v4557 = vpack.c.b16 %v3805, %v3797
    %v4558 = vpack.c.b16 %v3806, %v3798
    %v4559 = vpack.c.b16 %v3815, %v3807
    %v4560 = vpack.c.b16 %v3816, %v3808
    %v4561 = vpack.c.b16 %v3817, %v3809
    %v4562 = vpack.c.b16 %v3818, %v3810
    %v4563 = vpack.c.b16 %v3819, %v3811
    %v4564 = vpack.c.b16 %v3820, %v3812
    %v4565 = vpack.c.b16 %v3821, %v3813
    %v4566 = vpack.c.b16 %v3822, %v3814
    %v4567 = vpack.c.b16 %v3831, %v3823
    %v4568 = vpack.c.b16 %v3832, %v3824
    %v4569 = vpack.c.b16 %v3833, %v3825
    %v4570 = vpack.c.b16 %v3834, %v3826
    %v4571 = vpack.c.b16 %v3835, %v3827
    %v4572 = vpack.c.b16 %v3836, %v3828
    %v4573 = vpack.c.b16 %v3837, %v3829
    %v4574 = vpack.c.b16 %v3838, %v3830
    %v4575 = vpack.c.b16 %v3847, %v3839
    %v4576 = vpack.c.b16 %v3848, %v3840
    %v4577 = vpack.c.b16 %v3849, %v3841
    %v4578 = vpack.c.b16 %v3850, %v3842
    %v4579 = vpack.c.b16 %v3851, %v3843
    %v4580 = vpack.c.b16 %v3852, %v3844
    %v4581 = vpack.c.b16 %v3853, %v3845
    %v4582 = vpack.c.b16 %v3854, %v3846
    %v4583 = vpack.c.b16 %v3863, %v3855
    %v4584 = vpack.c.b16 %v3864, %v3856
    %v4585 = vpack.c.b16 %v3865, %v3857
    %v4586 = vpack.c.b16 %v3866, %v3858
    %v4587 = vpack.c.b16 %v3867, %v3859
    %v4588 = vpack.c.b16 %v3868, %v3860
    %v4589 = vpack.c.b16 %v3869, %v3861
    %v4590 = vpack.c.b16 %v3870, %v3862
    %v4591 = vpack.c.b16 %v3879, %v3871
    %v4592 = vpack.c.b16 %v3880, %v3872
    %v4593 = vpack.c.b16 %v3881, %v3873
    %v4594 = vpack.c.b16 %v3882, %v3874
    %v4595 = vpack.c.b16 %v3883, %v3875
    %v4596 = vpack.c.b16 %v3884, %v3876
    %v4597 = vpack.c.b16 %v3885, %v3877
    %v4598 = vpack.c.b16 %v3886, %v3878
    %v4599 = vpack.c.b16 %v3895, %v3887
    %v4600 = vpack.c.b16 %v3896, %v3888
    %v4601 = vpack.c.b16 %v3897, %v3889
    %v4602 = vpack.c.b16 %v3898, %v3890
    %v4603 = vpack.c.b16 %v3899, %v3891
    %v4604 = vpack.c.b16 %v3900, %v3892
    %v4605 = vpack.c.b16 %v3901, %v3893
    %v4606 = vpack.c.b16 %v3902, %v3894
    %v4607 = vpack.c.b16 %v3911, %v3903
    %v4608 = vpack.c.b16 %v3912, %v3904
    %v4609 = vpack.c.b16 %v3913, %v3905
    %v4610 = vpack.c.b16 %v3914, %v3906
    %v4611 = vpack.c.b16 %v3915, %v3907
    %v4612 = vpack.c.b16 %v3916, %v3908
    %v4613 = vpack.c.b16 %v3917, %v3909
    %v4614 = vpack.c.b16 %v3918, %v3910
    %v4615 = vpack.c.b16 %v3927, %v3919
    %v4616 = vpack.c.b16 %v3928, %v3920
    %v4617 = vpack.c.b16 %v3929, %v3921
    %v4618 = vpack.c.b16 %v3930, %v3922
    %v4619 = vpack.c.b16 %v3931, %v3923
    %v4620 = vpack.c.b16 %v3932, %v3924
    %v4621 = vpack.c.b16 %v3933, %v3925
    %v4622 = vpack.c.b16 %v3934, %v3926
    %v4623 = vpack.c.b16 %v3943, %v3935
    %v4624 = vpack.c.b16 %v3944, %v3936
    %v4625 = vpack.c.b16 %v3945, %v3937
    %v4626 = vpack.c.b16 %v3946, %v3938
    %v4627 = vpack.c.b16 %v3947, %v3939
    %v4628 = vpack.c.b16 %v3948, %v3940
    %v4629 = vpack.c.b16 %v3949, %v3941
    %v4630 = vpack.c.b16 %v3950, %v3942
    %v4631 = vpack.c.b16 %v3959, %v3951
    %v4632 = vpack.c.b16 %v3960, %v3952
    %v4633 = vpack.c.b16 %v3961, %v3953
    %v4634 = vpack.c.b16 %v3962, %v3954
    %v4635 = vpack.c.b16 %v3963, %v3955
    %v4636 = vpack.c.b16 %v3964, %v3956
    %v4637 = vpack.c.b16 %v3965, %v3957
    %v4638 = vpack.c.b16 %v3966, %v3958
    %v4639 = vpack.c.b16 %v3975, %v3967
    %v4640 = vpack.c.b16 %v3976, %v3968
    %v4641 = vpack.c.b16 %v3977, %v3969
    %v4642 = vpack.c.b16 %v3978, %v3970
    %v4643 = vpack.c.b16 %v3979, %v3971
    %v4644 = vpack.c.b16 %v3980, %v3972
    %v4645 = vpack.c.b16 %v3981, %v3973
    %v4646 = vpack.c.b16 %v3982, %v3974
    %v4647 = vpack.c.b16 %v3991, %v3983
    %v4648 = vpack.c.b16 %v3992, %v3984
    %v4649 = vpack.c.b16 %v3993, %v3985
    %v4650 = vpack.c.b16 %v3994, %v3986
    %v4651 = vpack.c.b16 %v3995, %v3987
    %v4652 = vpack.c.b16 %v3996, %v3988
    %v4653 = vpack.c.b16 %v3997, %v3989
    %v4654 = vpack.c.b16 %v3998, %v3990
    %v4655 = vpack.c.b16 %v4007, %v3999
    %v4656 = vpack.c.b16 %v4008, %v4000
    %v4657 = vpack.c.b16 %v4009, %v4001
    %v4658 = vpack.c.b16 %v4010, %v4002
    %v4659 = vpack.c.b16 %v4011, %v4003
    %v4660 = vpack.c.b16 %v4012, %v4004
    %v4661 = vpack.c.b16 %v4013, %v4005
    %v4662 = vpack.c.b16 %v4014, %v4006
    %v4663 = vpack.c.b16 %v4023, %v4015
    %v4664 = vpack.c.b16 %v4024, %v4016
    %v4665 = vpack.c.b16 %v4025, %v4017
    %v4666 = vpack.c.b16 %v4026, %v4018
    %v4667 = vpack.c.b16 %v4027, %v4019
    %v4668 = vpack.c.b16 %v4028, %v4020
    %v4669 = vpack.c.b16 %v4029, %v4021
    %v4670 = vpack.c.b16 %v4030, %v4022
    %v4671 = vpack.c.b16 %v4039, %v4031
    %v4672 = vpack.c.b16 %v4040, %v4032
    %v4673 = vpack.c.b16 %v4041, %v4033
    %v4674 = vpack.c.b16 %v4042, %v4034
    %v4675 = vpack.c.b16 %v4043, %v4035
    %v4676 = vpack.c.b16 %v4044, %v4036
    %v4677 = vpack.c.b16 %v4045, %v4037
    %v4678 = vpack.c.b16 %v4046, %v4038
    %v4679 = vpack.c.b16 %v4055, %v4047
    %v4680 = vpack.c.b16 %v4056, %v4048
    %v4681 = vpack.c.b16 %v4057, %v4049
    %v4682 = vpack.c.b16 %v4058, %v4050
    %v4683 = vpack.c.b16 %v4059, %v4051
    %v4684 = vpack.c.b16 %v4060, %v4052
    %v4685 = vpack.c.b16 %v4061, %v4053
    %v4686 = vpack.c.b16 %v4062, %v4054
    %v4687 = vpack.c.b16 %v4071, %v4063
    %v4688 = vpack.c.b16 %v4072, %v4064
    %v4689 = vpack.c.b16 %v4073, %v4065
    %v4690 = vpack.c.b16 %v4074, %v4066
    %v4691 = vpack.c.b16 %v4075, %v4067
    %v4692 = vpack.c.b16 %v4076, %v4068
    %v4693 = vpack.c.b16 %v4077, %v4069
    %v4694 = vpack.c.b16 %v4078, %v4070
    %v4695 = vpack.c.b16 %v4087, %v4079
    %v4696 = vpack.c.b16 %v4088, %v4080
    %v4697 = vpack.c.b16 %v4089, %v4081
    %v4698 = vpack.c.b16 %v4090, %v4082
    %v4699 = vpack.c.b16 %v4091, %v4083
    %v4700 = vpack.c.b16 %v4092, %v4084
    %v4701 = vpack.c.b16 %v4093, %v4085
    %v4702 = vpack.c.b16 %v4094, %v4086
    %v4703 = vpack.c.b16 %v4103, %v4095
    %v4704 = vpack.c.b16 %v4104, %v4096
    %v4705 = vpack.c.b16 %v4105, %v4097
    %v4706 = vpack.c.b16 %v4106, %v4098
    %v4707 = vpack.c.b16 %v4107, %v4099
    %v4708 = vpack.c.b16 %v4108, %v4100
    %v4709 = vpack.c.b16 %v4109, %v4101
    %v4710 = vpack.c.b16 %v4110, %v4102
    %v4711 = vpack.c.b16 %v4119, %v4111
    %v4712 = vpack.c.b16 %v4120, %v4112
    %v4713 = vpack.c.b16 %v4121, %v4113
    %v4714 = vpack.c.b16 %v4122, %v4114
    %v4715 = vpack.c.b16 %v4123, %v4115
    %v4716 = vpack.c.b16 %v4124, %v4116
    %v4717 = vpack.c.b16 %v4125, %v4117
    %v4718 = vpack.c.b16 %v4126, %v4118
    %v4719 = vpack.c.b16 %v4135, %v4127
    %v4720 = vpack.c.b16 %v4136, %v4128
    %v4721 = vpack.c.b16 %v4137, %v4129
    %v4722 = vpack.c.b16 %v4138, %v4130
    %v4723 = vpack.c.b16 %v4139, %v4131
    %v4724 = vpack.c.b16 %v4140, %v4132
    %v4725 = vpack.c.b16 %v4141, %v4133
    %v4726 = vpack.c.b16 %v4142, %v4134
    %v4727 = vpack.c.b16 %v4151, %v4143
    %v4728 = vpack.c.b16 %v4152, %v4144
    %v4729 = vpack.c.b16 %v4153, %v4145
    %v4730 = vpack.c.b16 %v4154, %v4146
    %v4731 = vpack.c.b16 %v4155, %v4147
    %v4732 = vpack.c.b16 %v4156, %v4148
    %v4733 = vpack.c.b16 %v4157, %v4149
    %v4734 = vpack.c.b16 %v4158, %v4150
    %v4735 = vpack.c.b16 %v4167, %v4159
    %v4736 = vpack.c.b16 %v4168, %v4160
    %v4737 = vpack.c.b16 %v4169, %v4161
    %v4738 = vpack.c.b16 %v4170, %v4162
    %v4739 = vpack.c.b16 %v4171, %v4163
    %v4740 = vpack.c.b16 %v4172, %v4164
    %v4741 = vpack.c.b16 %v4173, %v4165
    %v4742 = vpack.c.b16 %v4174, %v4166
    %v4743 = vpack.c.b16 %v4183, %v4175
    %v4744 = vpack.c.b16 %v4184, %v4176
    %v4745 = vpack.c.b16 %v4185, %v4177
    %v4746 = vpack.c.b16 %v4186, %v4178
    %v4747 = vpack.c.b16 %v4187, %v4179
    %v4748 = vpack.c.b16 %v4188, %v4180
    %v4749 = vpack.c.b16 %v4189, %v4181
    %v4750 = vpack.c.b16 %v4190, %v4182
    %v4751 = vpack.c.b16 %v4199, %v4191
    %v4752 = vpack.c.b16 %v4200, %v4192
    %v4753 = vpack.c.b16 %v4201, %v4193
    %v4754 = vpack.c.b16 %v4202, %v4194
    %v4755 = vpack.c.b16 %v4203, %v4195
    %v4756 = vpack.c.b16 %v4204, %v4196
    %v4757 = vpack.c.b16 %v4205, %v4197
    %v4758 = vpack.c.b16 %v4206, %v4198
    %v4759 = vpack.c.b16 %v4215, %v4207
    %v4760 = vpack.c.b16 %v4216, %v4208
    %v4761 = vpack.c.b16 %v4217, %v4209
    %v4762 = vpack.c.b16 %v4218, %v4210
    %v4763 = vpack.c.b16 %v4219, %v4211
    %v4764 = vpack.c.b16 %v4220, %v4212
    %v4765 = vpack.c.b16 %v4221, %v4213
    %v4766 = vpack.c.b16 %v4222, %v4214
    %v4767 = vpack.c.b16 %v4231, %v4223
    %v4768 = vpack.c.b16 %v4232, %v4224
    %v4769 = vpack.c.b16 %v4233, %v4225
    %v4770 = vpack.c.b16 %v4234, %v4226
    %v4771 = vpack.c.b16 %v4235, %v4227
    %v4772 = vpack.c.b16 %v4236, %v4228
    %v4773 = vpack.c.b16 %v4237, %v4229
    %v4774 = vpack.c.b16 %v4238, %v4230
    %v4775 = vpack.c.b16 %v4247, %v4239
    %v4776 = vpack.c.b16 %v4248, %v4240
    %v4777 = vpack.c.b16 %v4249, %v4241
    %v4778 = vpack.c.b16 %v4250, %v4242
    %v4779 = vpack.c.b16 %v4251, %v4243
    %v4780 = vpack.c.b16 %v4252, %v4244
    %v4781 = vpack.c.b16 %v4253, %v4245
    %v4782 = vpack.c.b16 %v4254, %v4246
    %v4783 = vpack.c.b16 %v4263, %v4255
    %v4784 = vpack.c.b16 %v4264, %v4256
    %v4785 = vpack.c.b16 %v4265, %v4257
    %v4786 = vpack.c.b16 %v4266, %v4258
    %v4787 = vpack.c.b16 %v4267, %v4259
    %v4788 = vpack.c.b16 %v4268, %v4260
    %v4789 = vpack.c.b16 %v4269, %v4261
    %v4790 = vpack.c.b16 %v4270, %v4262
    %v4791 = vpack.c.b16 %v4279, %v4271
    %v4792 = vpack.c.b16 %v4280, %v4272
    %v4793 = vpack.c.b16 %v4281, %v4273
    %v4794 = vpack.c.b16 %v4282, %v4274
    %v4795 = vpack.c.b16 %v4283, %v4275
    %v4796 = vpack.c.b16 %v4284, %v4276
    %v4797 = vpack.c.b16 %v4285, %v4277
    %v4798 = vpack.c.b16 %v4286, %v4278
    %5311 = vmatprep.subr.bf16.mxu0 %v4288
    %5312 = vmatpush1.bf16.msra.mxu0 %v4287
    %5313 = vmatprep.subr.bf16.mxu0 %v4296
    %5314 = vmatpush1.bf16.msra.mxu0 %v4295
    %5315 = vmatprep.subr.bf16.mxu0 %v4304
    %5316 = vmatpush1.bf16.msra.mxu0 %v4303
    %5317 = vmatprep.subr.bf16.mxu0 %v4312
    %5318 = vmatpush1.bf16.msra.mxu0 %v4311
    %5319 = vmatprep.subr.bf16.mxu0 %v4320
    %5320 = vmatpush1.bf16.msra.mxu0 %v4319
    %5321 = vmatprep.subr.bf16.mxu0 %v4328
    %5322 = vmatpush1.bf16.msra.mxu0 %v4327
    %5323 = vmatprep.subr.bf16.mxu0 %v4336
    %5324 = vmatpush1.bf16.msra.mxu0 %v4335
    %5325 = vmatprep.subr.bf16.mxu0 %v4344
    %5326 = vmatpush1.bf16.msra.mxu0 %v4343
    %5327 = vmatprep.subr.bf16.mxu0 %v4352
    %5328 = vmatpush1.bf16.msra.mxu0 %v4351
    %5329 = vmatprep.subr.bf16.mxu0 %v4360
    %5330 = vmatpush1.bf16.msra.mxu0 %v4359
    %5331 = vmatprep.subr.bf16.mxu0 %v4368
    %5332 = vmatpush1.bf16.msra.mxu0 %v4367
    %5333 = vmatprep.subr.bf16.mxu0 %v4376
    %5334 = vmatpush1.bf16.msra.mxu0 %v4375
    %5335 = vmatprep.subr.bf16.mxu0 %v4384
    %5336 = vmatpush1.bf16.msra.mxu0 %v4383
    %5337 = vmatprep.subr.bf16.mxu0 %v4392
    %5338 = vmatpush1.bf16.msra.mxu0 %v4391
    %5339 = vmatprep.subr.bf16.mxu0 %v4400
    %5340 = vmatpush1.bf16.msra.mxu0 %v4399
    %5341 = vmatprep.subr.bf16.mxu0 %v4408
    %5342 = vmatpush1.bf16.msra.mxu0 %v4407
    %5343 = vmatprep.mubr.bf16.mxu0 %v2190
    %5344 = vmatmul.mubr.bf16.gmra.mrb[0].mxu0 %v2189
    %v5345 = vpop.f32.mrb[0].mxu0
    %v5346 = vadd.f32 %v2714, %v5345
    %v5347 = vpop.f32.mrb[0].mxu0
    %v5348 = vadd.f32 %v2718, %v5347
    %v5349 = vpop.f32.mrb[0].mxu0
    %v5350 = vpop.f32.mrb[0].mxu0
    %5351 = vdwg.mxu0
    %5352 = vmatprep.subr.bf16.mxu0 %v4416
    %5353 = vmatpush1.bf16.msra.mxu0 %v4415
    %5354 = vmatprep.subr.bf16.mxu0 %v4424
    %5355 = vmatpush1.bf16.msra.mxu0 %v4423
    %5356 = vmatprep.subr.bf16.mxu0 %v4432
    %5357 = vmatpush1.bf16.msra.mxu0 %v4431
    %5358 = vmatprep.subr.bf16.mxu0 %v4440
    %5359 = vmatpush1.bf16.msra.mxu0 %v4439
    %5360 = vmatprep.subr.bf16.mxu0 %v4448
    %5361 = vmatpush1.bf16.msra.mxu0 %v4447
    %5362 = vmatprep.subr.bf16.mxu0 %v4456
    %5363 = vmatpush1.bf16.msra.mxu0 %v4455
    %5364 = vmatprep.subr.bf16.mxu0 %v4464
    %5365 = vmatpush1.bf16.msra.mxu0 %v4463
    %5366 = vmatprep.subr.bf16.mxu0 %v4472
    %5367 = vmatpush1.bf16.msra.mxu0 %v4471
    %5368 = vmatprep.subr.bf16.mxu0 %v4480
    %5369 = vmatpush1.bf16.msra.mxu0 %v4479
    %5370 = vmatprep.subr.bf16.mxu0 %v4488
    %5371 = vmatpush1.bf16.msra.mxu0 %v4487
    %5372 = vmatprep.subr.bf16.mxu0 %v4496
    %5373 = vmatpush1.bf16.msra.mxu0 %v4495
    %5374 = vmatprep.subr.bf16.mxu0 %v4504
    %5375 = vmatpush1.bf16.msra.mxu0 %v4503
    %5376 = vmatprep.subr.bf16.mxu0 %v4512
    %5377 = vmatpush1.bf16.msra.mxu0 %v4511
    %5378 = vmatprep.subr.bf16.mxu0 %v4520
    %5379 = vmatpush1.bf16.msra.mxu0 %v4519
    %5380 = vmatprep.subr.bf16.mxu0 %v4528
    %5381 = vmatpush1.bf16.msra.mxu0 %v4527
    %5382 = vmatprep.subr.bf16.mxu0 %v4536
    %5383 = vmatpush1.bf16.msra.mxu0 %v4535
    %5384 = vmatprep.mubr.bf16.mxu0 %v2192
    %5385 = vmatmul.mubr.bf16.gmra.mrb[0].mxu0 %v2191
    %v5386 = vpop.f32.mrb[0].mxu0
    %v5387 = vadd.f32 %v5346, %v5386
    %v5388 = vpop.f32.mrb[0].mxu0
    %v5389 = vadd.f32 %v5348, %v5388
    %v5390 = vpop.f32.mrb[0].mxu0
    %v5391 = vpop.f32.mrb[0].mxu0
    %5392 = vdwg.mxu0
    %5393 = vmatprep.subr.bf16.mxu0 %v4544
    %5394 = vmatpush1.bf16.msra.mxu0 %v4543
    %5395 = vmatprep.subr.bf16.mxu0 %v4552
    %5396 = vmatpush1.bf16.msra.mxu0 %v4551
    %5397 = vmatprep.subr.bf16.mxu0 %v4560
    %5398 = vmatpush1.bf16.msra.mxu0 %v4559
    %5399 = vmatprep.subr.bf16.mxu0 %v4568
    %5400 = vmatpush1.bf16.msra.mxu0 %v4567
    %5401 = vmatprep.subr.bf16.mxu0 %v4576
    %5402 = vmatpush1.bf16.msra.mxu0 %v4575
    %5403 = vmatprep.subr.bf16.mxu0 %v4584
    %5404 = vmatpush1.bf16.msra.mxu0 %v4583
    %5405 = vmatprep.subr.bf16.mxu0 %v4592
    %5406 = vmatpush1.bf16.msra.mxu0 %v4591
    %5407 = vmatprep.subr.bf16.mxu0 %v4600
    %5408 = vmatpush1.bf16.msra.mxu0 %v4599
    %5409 = vmatprep.subr.bf16.mxu0 %v4608
    %5410 = vmatpush1.bf16.msra.mxu0 %v4607
    %5411 = vmatprep.subr.bf16.mxu0 %v4616
    %5412 = vmatpush1.bf16.msra.mxu0 %v4615
    %5413 = vmatprep.subr.bf16.mxu0 %v4624
    %5414 = vmatpush1.bf16.msra.mxu0 %v4623
    %5415 = vmatprep.subr.bf16.mxu0 %v4632
    %5416 = vmatpush1.bf16.msra.mxu0 %v4631
    %5417 = vmatprep.subr.bf16.mxu0 %v4640
    %5418 = vmatpush1.bf16.msra.mxu0 %v4639
    %5419 = vmatprep.subr.bf16.mxu0 %v4648
    %5420 = vmatpush1.bf16.msra.mxu0 %v4647
    %5421 = vmatprep.subr.bf16.mxu0 %v4656
    %5422 = vmatpush1.bf16.msra.mxu0 %v4655
    %5423 = vmatprep.subr.bf16.mxu0 %v4664
    %5424 = vmatpush1.bf16.msra.mxu0 %v4663
    %5425 = vmatprep.mubr.bf16.mxu0 %v2194
    %5426 = vmatmul.mubr.bf16.gmra.mrb[0].mxu0 %v2193
    %v5427 = vpop.f32.mrb[0].mxu0
    %v5428 = vadd.f32 %v5387, %v5427
    %v5429 = vpop.f32.mrb[0].mxu0
    %v5430 = vadd.f32 %v5389, %v5429
    %v5431 = vpop.f32.mrb[0].mxu0
    %v5432 = vpop.f32.mrb[0].mxu0
    %5433 = vdwg.mxu0
    %5434 = vmatprep.subr.bf16.mxu0 %v4672
    %5435 = vmatpush1.bf16.msra.mxu0 %v4671
    %5436 = vmatprep.subr.bf16.mxu0 %v4680
    %5437 = vmatpush1.bf16.msra.mxu0 %v4679
    %5438 = vmatprep.subr.bf16.mxu0 %v4688
    %5439 = vmatpush1.bf16.msra.mxu0 %v4687
    %5440 = vmatprep.subr.bf16.mxu0 %v4696
    %5441 = vmatpush1.bf16.msra.mxu0 %v4695
    %5442 = vmatprep.subr.bf16.mxu0 %v4704
    %5443 = vmatpush1.bf16.msra.mxu0 %v4703
    %5444 = vmatprep.subr.bf16.mxu0 %v4712
    %5445 = vmatpush1.bf16.msra.mxu0 %v4711
    %5446 = vmatprep.subr.bf16.mxu0 %v4720
    %5447 = vmatpush1.bf16.msra.mxu0 %v4719
    %5448 = vmatprep.subr.bf16.mxu0 %v4728
    %5449 = vmatpush1.bf16.msra.mxu0 %v4727
    %5450 = vmatprep.subr.bf16.mxu0 %v4736
    %5451 = vmatpush1.bf16.msra.mxu0 %v4735
    %5452 = vmatprep.subr.bf16.mxu0 %v4744
    %5453 = vmatpush1.bf16.msra.mxu0 %v4743
    %5454 = vmatprep.subr.bf16.mxu0 %v4752
    %5455 = vmatpush1.bf16.msra.mxu0 %v4751
    %5456 = vmatprep.subr.bf16.mxu0 %v4760
    %5457 = vmatpush1.bf16.msra.mxu0 %v4759
    %5458 = vmatprep.subr.bf16.mxu0 %v4768
    %5459 = vmatpush1.bf16.msra.mxu0 %v4767
    %5460 = vmatprep.subr.bf16.mxu0 %v4776
    %5461 = vmatpush1.bf16.msra.mxu0 %v4775
    %5462 = vmatprep.subr.bf16.mxu0 %v4784
    %5463 = vmatpush1.bf16.msra.mxu0 %v4783
    %5464 = vmatprep.subr.bf16.mxu0 %v4792
    %5465 = vmatpush1.bf16.msra.mxu0 %v4791
    %5466 = vmatprep.mubr.bf16.mxu0 %v2196
    %5467 = vmatmul.mubr.bf16.gmra.mrb[0].mxu0 %v2195
    %v5468 = vpop.f32.mrb[0].mxu0
    %v5469 = vadd.f32 %v5428, %v5468
    %v5470 = vpop.f32.mrb[0].mxu0
    %v5471 = vadd.f32 %v5430, %v5470
    %v5472 = vpop.f32.mrb[0].mxu0
    %v5473 = vpop.f32.mrb[0].mxu0
    %5474 = vdwg.mxu0
    %5475 = vmatprep.subr.bf16.mxu0 %v4290
    %5476 = vmatpush1.bf16.msra.mxu0 %v4289
    %5477 = vmatprep.subr.bf16.mxu0 %v4298
    %5478 = vmatpush1.bf16.msra.mxu0 %v4297
    %5479 = vmatprep.subr.bf16.mxu0 %v4306
    %5480 = vmatpush1.bf16.msra.mxu0 %v4305
    %5481 = vmatprep.subr.bf16.mxu0 %v4314
    %5482 = vmatpush1.bf16.msra.mxu0 %v4313
    %5483 = vmatprep.subr.bf16.mxu0 %v4322
    %5484 = vmatpush1.bf16.msra.mxu0 %v4321
    %5485 = vmatprep.subr.bf16.mxu0 %v4330
    %5486 = vmatpush1.bf16.msra.mxu0 %v4329
    %5487 = vmatprep.subr.bf16.mxu0 %v4338
    %5488 = vmatpush1.bf16.msra.mxu0 %v4337
    %5489 = vmatprep.subr.bf16.mxu0 %v4346
    %5490 = vmatpush1.bf16.msra.mxu0 %v4345
    %5491 = vmatprep.subr.bf16.mxu0 %v4354
    %5492 = vmatpush1.bf16.msra.mxu0 %v4353
    %5493 = vmatprep.subr.bf16.mxu0 %v4362
    %5494 = vmatpush1.bf16.msra.mxu0 %v4361
    %5495 = vmatprep.subr.bf16.mxu0 %v4370
    %5496 = vmatpush1.bf16.msra.mxu0 %v4369
    %5497 = vmatprep.subr.bf16.mxu0 %v4378
    %5498 = vmatpush1.bf16.msra.mxu0 %v4377
    %5499 = vmatprep.subr.bf16.mxu0 %v4386
    %5500 = vmatpush1.bf16.msra.mxu0 %v4385
    %5501 = vmatprep.subr.bf16.mxu0 %v4394
    %5502 = vmatpush1.bf16.msra.mxu0 %v4393
    %5503 = vmatprep.subr.bf16.mxu0 %v4402
    %5504 = vmatpush1.bf16.msra.mxu0 %v4401
    %5505 = vmatprep.subr.bf16.mxu0 %v4410
    %5506 = vmatpush1.bf16.msra.mxu0 %v4409
    %5507 = vmatprep.mubr.bf16.mxu0 %v2190
    %5508 = vmatmul.mubr.bf16.gmra.mrb[0].mxu0 %v2189
    %v5509 = vpop.f32.mrb[0].mxu0
    %v5510 = vadd.f32 %v2722, %v5509
    %v5511 = vpop.f32.mrb[0].mxu0
    %v5512 = vadd.f32 %v2726, %v5511
    %v5513 = vpop.f32.mrb[0].mxu0
    %v5514 = vpop.f32.mrb[0].mxu0
    %5515 = vdwg.mxu0
    %5516 = vmatprep.subr.bf16.mxu0 %v4418
    %5517 = vmatpush1.bf16.msra.mxu0 %v4417
    %5518 = vmatprep.subr.bf16.mxu0 %v4426
    %5519 = vmatpush1.bf16.msra.mxu0 %v4425
    %5520 = vmatprep.subr.bf16.mxu0 %v4434
    %5521 = vmatpush1.bf16.msra.mxu0 %v4433
    %5522 = vmatprep.subr.bf16.mxu0 %v4442
    %5523 = vmatpush1.bf16.msra.mxu0 %v4441
    %5524 = vmatprep.subr.bf16.mxu0 %v4450
    %5525 = vmatpush1.bf16.msra.mxu0 %v4449
    %5526 = vmatprep.subr.bf16.mxu0 %v4458
    %5527 = vmatpush1.bf16.msra.mxu0 %v4457
    %5528 = vmatprep.subr.bf16.mxu0 %v4466
    %5529 = vmatpush1.bf16.msra.mxu0 %v4465
    %5530 = vmatprep.subr.bf16.mxu0 %v4474
    %5531 = vmatpush1.bf16.msra.mxu0 %v4473
    %5532 = vmatprep.subr.bf16.mxu0 %v4482
    %5533 = vmatpush1.bf16.msra.mxu0 %v4481
    %5534 = vmatprep.subr.bf16.mxu0 %v4490
    %5535 = vmatpush1.bf16.msra.mxu0 %v4489
    %5536 = vmatprep.subr.bf16.mxu0 %v4498
    %5537 = vmatpush1.bf16.msra.mxu0 %v4497
    %5538 = vmatprep.subr.bf16.mxu0 %v4506
    %5539 = vmatpush1.bf16.msra.mxu0 %v4505
    %5540 = vmatprep.subr.bf16.mxu0 %v4514
    %5541 = vmatpush1.bf16.msra.mxu0 %v4513
    %5542 = vmatprep.subr.bf16.mxu0 %v4522
    %5543 = vmatpush1.bf16.msra.mxu0 %v4521
    %5544 = vmatprep.subr.bf16.mxu0 %v4530
    %5545 = vmatpush1.bf16.msra.mxu0 %v4529
    %5546 = vmatprep.subr.bf16.mxu0 %v4538
    %5547 = vmatpush1.bf16.msra.mxu0 %v4537
    %5548 = vmatprep.mubr.bf16.mxu0 %v2192
    %5549 = vmatmul.mubr.bf16.gmra.mrb[0].mxu0 %v2191
    %v5550 = vpop.f32.mrb[0].mxu0
    %v5551 = vadd.f32 %v5510, %v5550
    %v5552 = vpop.f32.mrb[0].mxu0
    %v5553 = vadd.f32 %v5512, %v5552
    %v5554 = vpop.f32.mrb[0].mxu0
    %v5555 = vpop.f32.mrb[0].mxu0
    %5556 = vdwg.mxu0
    %5557 = vmatprep.subr.bf16.mxu0 %v4546
    %5558 = vmatpush1.bf16.msra.mxu0 %v4545
    %5559 = vmatprep.subr.bf16.mxu0 %v4554
    %5560 = vmatpush1.bf16.msra.mxu0 %v4553
    %5561 = vmatprep.subr.bf16.mxu0 %v4562
    %5562 = vmatpush1.bf16.msra.mxu0 %v4561
    %5563 = vmatprep.subr.bf16.mxu0 %v4570
    %5564 = vmatpush1.bf16.msra.mxu0 %v4569
    %5565 = vmatprep.subr.bf16.mxu0 %v4578
    %5566 = vmatpush1.bf16.msra.mxu0 %v4577
    %5567 = vmatprep.subr.bf16.mxu0 %v4586
    %5568 = vmatpush1.bf16.msra.mxu0 %v4585
    %5569 = vmatprep.subr.bf16.mxu0 %v4594
    %5570 = vmatpush1.bf16.msra.mxu0 %v4593
    %5571 = vmatprep.subr.bf16.mxu0 %v4602
    %5572 = vmatpush1.bf16.msra.mxu0 %v4601
    %5573 = vmatprep.subr.bf16.mxu0 %v4610
    %5574 = vmatpush1.bf16.msra.mxu0 %v4609
    %5575 = vmatprep.subr.bf16.mxu0 %v4618
    %5576 = vmatpush1.bf16.msra.mxu0 %v4617
    %5577 = vmatprep.subr.bf16.mxu0 %v4626
    %5578 = vmatpush1.bf16.msra.mxu0 %v4625
    %5579 = vmatprep.subr.bf16.mxu0 %v4634
    %5580 = vmatpush1.bf16.msra.mxu0 %v4633
    %5581 = vmatprep.subr.bf16.mxu0 %v4642
    %5582 = vmatpush1.bf16.msra.mxu0 %v4641
    %5583 = vmatprep.subr.bf16.mxu0 %v4650
    %5584 = vmatpush1.bf16.msra.mxu0 %v4649
    %5585 = vmatprep.subr.bf16.mxu0 %v4658
    %5586 = vmatpush1.bf16.msra.mxu0 %v4657
    %5587 = vmatprep.subr.bf16.mxu0 %v4666
    %5588 = vmatpush1.bf16.msra.mxu0 %v4665
    %5589 = vmatprep.mubr.bf16.mxu0 %v2194
    %5590 = vmatmul.mubr.bf16.gmra.mrb[0].mxu0 %v2193
    %v5591 = vpop.f32.mrb[0].mxu0
    %v5592 = vadd.f32 %v5551, %v5591
    %v5593 = vpop.f32.mrb[0].mxu0
    %v5594 = vadd.f32 %v5553, %v5593
    %v5595 = vpop.f32.mrb[0].mxu0
    %v5596 = vpop.f32.mrb[0].mxu0
    %5597 = vdwg.mxu0
    %5598 = vmatprep.subr.bf16.mxu0 %v4674
    %5599 = vmatpush1.bf16.msra.mxu0 %v4673
    %5600 = vmatprep.subr.bf16.mxu0 %v4682
    %5601 = vmatpush1.bf16.msra.mxu0 %v4681
    %5602 = vmatprep.subr.bf16.mxu0 %v4690
    %5603 = vmatpush1.bf16.msra.mxu0 %v4689
    %5604 = vmatprep.subr.bf16.mxu0 %v4698
    %5605 = vmatpush1.bf16.msra.mxu0 %v4697
    %5606 = vmatprep.subr.bf16.mxu0 %v4706
    %5607 = vmatpush1.bf16.msra.mxu0 %v4705
    %5608 = vmatprep.subr.bf16.mxu0 %v4714
    %5609 = vmatpush1.bf16.msra.mxu0 %v4713
    %5610 = vmatprep.subr.bf16.mxu0 %v4722
    %5611 = vmatpush1.bf16.msra.mxu0 %v4721
    %5612 = vmatprep.subr.bf16.mxu0 %v4730
    %5613 = vmatpush1.bf16.msra.mxu0 %v4729
    %5614 = vmatprep.subr.bf16.mxu0 %v4738
    %5615 = vmatpush1.bf16.msra.mxu0 %v4737
    %5616 = vmatprep.subr.bf16.mxu0 %v4746
    %5617 = vmatpush1.bf16.msra.mxu0 %v4745
    %5618 = vmatprep.subr.bf16.mxu0 %v4754
    %5619 = vmatpush1.bf16.msra.mxu0 %v4753
    %5620 = vmatprep.subr.bf16.mxu0 %v4762
    %5621 = vmatpush1.bf16.msra.mxu0 %v4761
    %5622 = vmatprep.subr.bf16.mxu0 %v4770
    %5623 = vmatpush1.bf16.msra.mxu0 %v4769
    %5624 = vmatprep.subr.bf16.mxu0 %v4778
    %5625 = vmatpush1.bf16.msra.mxu0 %v4777
    %5626 = vmatprep.subr.bf16.mxu0 %v4786
    %5627 = vmatpush1.bf16.msra.mxu0 %v4785
    %5628 = vmatprep.subr.bf16.mxu0 %v4794
    %5629 = vmatpush1.bf16.msra.mxu0 %v4793
    %5630 = vmatprep.mubr.bf16.mxu0 %v2196
    %5631 = vmatmul.mubr.bf16.gmra.mrb[0].mxu0 %v2195
    %v5632 = vpop.f32.mrb[0].mxu0
    %v5633 = vadd.f32 %v5592, %v5632
    %v5634 = vpop.f32.mrb[0].mxu0
    %v5635 = vadd.f32 %v5594, %v5634
    %v5636 = vpop.f32.mrb[0].mxu0
    %v5637 = vpop.f32.mrb[0].mxu0
    %5638 = vdwg.mxu0
    %5639 = vmatprep.subr.bf16.mxu0 %v4292
    %5640 = vmatpush1.bf16.msra.mxu0 %v4291
    %5641 = vmatprep.subr.bf16.mxu0 %v4300
    %5642 = vmatpush1.bf16.msra.mxu0 %v4299
    %5643 = vmatprep.subr.bf16.mxu0 %v4308
    %5644 = vmatpush1.bf16.msra.mxu0 %v4307
    %5645 = vmatprep.subr.bf16.mxu0 %v4316
    %5646 = vmatpush1.bf16.msra.mxu0 %v4315
    %5647 = vmatprep.subr.bf16.mxu0 %v4324
    %5648 = vmatpush1.bf16.msra.mxu0 %v4323
    %5649 = vmatprep.subr.bf16.mxu0 %v4332
    %5650 = vmatpush1.bf16.msra.mxu0 %v4331
    %5651 = vmatprep.subr.bf16.mxu0 %v4340
    %5652 = vmatpush1.bf16.msra.mxu0 %v4339
    %5653 = vmatprep.subr.bf16.mxu0 %v4348
    %5654 = vmatpush1.bf16.msra.mxu0 %v4347
    %5655 = vmatprep.subr.bf16.mxu0 %v4356
    %5656 = vmatpush1.bf16.msra.mxu0 %v4355
    %5657 = vmatprep.subr.bf16.mxu0 %v4364
    %5658 = vmatpush1.bf16.msra.mxu0 %v4363
    %5659 = vmatprep.subr.bf16.mxu0 %v4372
    %5660 = vmatpush1.bf16.msra.mxu0 %v4371
    %5661 = vmatprep.subr.bf16.mxu0 %v4380
    %5662 = vmatpush1.bf16.msra.mxu0 %v4379
    %5663 = vmatprep.subr.bf16.mxu0 %v4388
    %5664 = vmatpush1.bf16.msra.mxu0 %v4387
    %5665 = vmatprep.subr.bf16.mxu0 %v4396
    %5666 = vmatpush1.bf16.msra.mxu0 %v4395
    %5667 = vmatprep.subr.bf16.mxu0 %v4404
    %5668 = vmatpush1.bf16.msra.mxu0 %v4403
    %5669 = vmatprep.subr.bf16.mxu0 %v4412
    %5670 = vmatpush1.bf16.msra.mxu0 %v4411
    %5671 = vmatprep.mubr.bf16.mxu0 %v2190
    %5672 = vmatmul.mubr.bf16.gmra.mrb[0].mxu0 %v2189
    %v5673 = vpop.f32.mrb[0].mxu0
    %v5674 = vadd.f32 %v2730, %v5673
    %v5675 = vpop.f32.mrb[0].mxu0
    %v5676 = vadd.f32 %v2734, %v5675
    %v5677 = vpop.f32.mrb[0].mxu0
    %v5678 = vpop.f32.mrb[0].mxu0
    %5679 = vdwg.mxu0
    %5680 = vmatprep.subr.bf16.mxu0 %v4420
    %5681 = vmatpush1.bf16.msra.mxu0 %v4419
    %5682 = vmatprep.subr.bf16.mxu0 %v4428
    %5683 = vmatpush1.bf16.msra.mxu0 %v4427
    %5684 = vmatprep.subr.bf16.mxu0 %v4436
    %5685 = vmatpush1.bf16.msra.mxu0 %v4435
    %5686 = vmatprep.subr.bf16.mxu0 %v4444
    %5687 = vmatpush1.bf16.msra.mxu0 %v4443
    %5688 = vmatprep.subr.bf16.mxu0 %v4452
    %5689 = vmatpush1.bf16.msra.mxu0 %v4451
    %5690 = vmatprep.subr.bf16.mxu0 %v4460
    %5691 = vmatpush1.bf16.msra.mxu0 %v4459
    %5692 = vmatprep.subr.bf16.mxu0 %v4468
    %5693 = vmatpush1.bf16.msra.mxu0 %v4467
    %5694 = vmatprep.subr.bf16.mxu0 %v4476
    %5695 = vmatpush1.bf16.msra.mxu0 %v4475
    %5696 = vmatprep.subr.bf16.mxu0 %v4484
    %5697 = vmatpush1.bf16.msra.mxu0 %v4483
    %5698 = vmatprep.subr.bf16.mxu0 %v4492
    %5699 = vmatpush1.bf16.msra.mxu0 %v4491
    %5700 = vmatprep.subr.bf16.mxu0 %v4500
    %5701 = vmatpush1.bf16.msra.mxu0 %v4499
    %5702 = vmatprep.subr.bf16.mxu0 %v4508
    %5703 = vmatpush1.bf16.msra.mxu0 %v4507
    %5704 = vmatprep.subr.bf16.mxu0 %v4516
    %5705 = vmatpush1.bf16.msra.mxu0 %v4515
    %5706 = vmatprep.subr.bf16.mxu0 %v4524
    %5707 = vmatpush1.bf16.msra.mxu0 %v4523
    %5708 = vmatprep.subr.bf16.mxu0 %v4532
    %5709 = vmatpush1.bf16.msra.mxu0 %v4531
    %5710 = vmatprep.subr.bf16.mxu0 %v4540
    %5711 = vmatpush1.bf16.msra.mxu0 %v4539
    %5712 = vmatprep.mubr.bf16.mxu0 %v2192
    %5713 = vmatmul.mubr.bf16.gmra.mrb[0].mxu0 %v2191
    %v5714 = vpop.f32.mrb[0].mxu0
    %v5715 = vadd.f32 %v5674, %v5714
    %v5716 = vpop.f32.mrb[0].mxu0
    %v5717 = vadd.f32 %v5676, %v5716
    %v5718 = vpop.f32.mrb[0].mxu0
    %v5719 = vpop.f32.mrb[0].mxu0
    %5720 = vdwg.mxu0
    %5721 = vmatprep.subr.bf16.mxu0 %v4548
    %5722 = vmatpush1.bf16.msra.mxu0 %v4547
    %5723 = vmatprep.subr.bf16.mxu0 %v4556
    %5724 = vmatpush1.bf16.msra.mxu0 %v4555
    %5725 = vmatprep.subr.bf16.mxu0 %v4564
    %5726 = vmatpush1.bf16.msra.mxu0 %v4563
    %5727 = vmatprep.subr.bf16.mxu0 %v4572
    %5728 = vmatpush1.bf16.msra.mxu0 %v4571
    %5729 = vmatprep.subr.bf16.mxu0 %v4580
    %5730 = vmatpush1.bf16.msra.mxu0 %v4579
    %5731 = vmatprep.subr.bf16.mxu0 %v4588
    %5732 = vmatpush1.bf16.msra.mxu0 %v4587
    %5733 = vmatprep.subr.bf16.mxu0 %v4596
    %5734 = vmatpush1.bf16.msra.mxu0 %v4595
    %5735 = vmatprep.subr.bf16.mxu0 %v4604
    %5736 = vmatpush1.bf16.msra.mxu0 %v4603
    %5737 = vmatprep.subr.bf16.mxu0 %v4612
    %5738 = vmatpush1.bf16.msra.mxu0 %v4611
    %5739 = vmatprep.subr.bf16.mxu0 %v4620
    %5740 = vmatpush1.bf16.msra.mxu0 %v4619
    %5741 = vmatprep.subr.bf16.mxu0 %v4628
    %5742 = vmatpush1.bf16.msra.mxu0 %v4627
    %5743 = vmatprep.subr.bf16.mxu0 %v4636
    %5744 = vmatpush1.bf16.msra.mxu0 %v4635
    %5745 = vmatprep.subr.bf16.mxu0 %v4644
    %5746 = vmatpush1.bf16.msra.mxu0 %v4643
    %5747 = vmatprep.subr.bf16.mxu0 %v4652
    %5748 = vmatpush1.bf16.msra.mxu0 %v4651
    %5749 = vmatprep.subr.bf16.mxu0 %v4660
    %5750 = vmatpush1.bf16.msra.mxu0 %v4659
    %5751 = vmatprep.subr.bf16.mxu0 %v4668
    %5752 = vmatpush1.bf16.msra.mxu0 %v4667
    %5753 = vmatprep.mubr.bf16.mxu0 %v2194
    %5754 = vmatmul.mubr.bf16.gmra.mrb[0].mxu0 %v2193
    %v5755 = vpop.f32.mrb[0].mxu0
    %v5756 = vadd.f32 %v5715, %v5755
    %v5757 = vpop.f32.mrb[0].mxu0
    %v5758 = vadd.f32 %v5717, %v5757
    %v5759 = vpop.f32.mrb[0].mxu0
    %v5760 = vpop.f32.mrb[0].mxu0
    %5761 = vdwg.mxu0
    %5762 = vmatprep.subr.bf16.mxu0 %v4676
    %5763 = vmatpush1.bf16.msra.mxu0 %v4675
    %5764 = vmatprep.subr.bf16.mxu0 %v4684
    %5765 = vmatpush1.bf16.msra.mxu0 %v4683
    %5766 = vmatprep.subr.bf16.mxu0 %v4692
    %5767 = vmatpush1.bf16.msra.mxu0 %v4691
    %5768 = vmatprep.subr.bf16.mxu0 %v4700
    %5769 = vmatpush1.bf16.msra.mxu0 %v4699
    %5770 = vmatprep.subr.bf16.mxu0 %v4708
    %5771 = vmatpush1.bf16.msra.mxu0 %v4707
    %5772 = vmatprep.subr.bf16.mxu0 %v4716
    %5773 = vmatpush1.bf16.msra.mxu0 %v4715
    %5774 = vmatprep.subr.bf16.mxu0 %v4724
    %5775 = vmatpush1.bf16.msra.mxu0 %v4723
    %5776 = vmatprep.subr.bf16.mxu0 %v4732
    %5777 = vmatpush1.bf16.msra.mxu0 %v4731
    %5778 = vmatprep.subr.bf16.mxu0 %v4740
    %5779 = vmatpush1.bf16.msra.mxu0 %v4739
    %5780 = vmatprep.subr.bf16.mxu0 %v4748
    %5781 = vmatpush1.bf16.msra.mxu0 %v4747
    %5782 = vmatprep.subr.bf16.mxu0 %v4756
    %5783 = vmatpush1.bf16.msra.mxu0 %v4755
    %5784 = vmatprep.subr.bf16.mxu0 %v4764
    %5785 = vmatpush1.bf16.msra.mxu0 %v4763
    %5786 = vmatprep.subr.bf16.mxu0 %v4772
    %5787 = vmatpush1.bf16.msra.mxu0 %v4771
    %5788 = vmatprep.subr.bf16.mxu0 %v4780
    %5789 = vmatpush1.bf16.msra.mxu0 %v4779
    %5790 = vmatprep.subr.bf16.mxu0 %v4788
    %5791 = vmatpush1.bf16.msra.mxu0 %v4787
    %5792 = vmatprep.subr.bf16.mxu0 %v4796
    %5793 = vmatpush1.bf16.msra.mxu0 %v4795
    %5794 = vmatprep.mubr.bf16.mxu0 %v2196
    %5795 = vmatmul.mubr.bf16.gmra.mrb[0].mxu0 %v2195
    %v5796 = vpop.f32.mrb[0].mxu0
    %v5797 = vadd.f32 %v5756, %v5796
    %v5798 = vpop.f32.mrb[0].mxu0
    %v5799 = vadd.f32 %v5758, %v5798
    %v5800 = vpop.f32.mrb[0].mxu0
    %v5801 = vpop.f32.mrb[0].mxu0
    %5802 = vdwg.mxu0
    %5803 = vmatprep.subr.bf16.mxu0 %v4294
    %5804 = vmatpush1.bf16.msra.mxu0 %v4293
    %5805 = vmatprep.subr.bf16.mxu0 %v4302
    %5806 = vmatpush1.bf16.msra.mxu0 %v4301
    %5807 = vmatprep.subr.bf16.mxu0 %v4310
    %5808 = vmatpush1.bf16.msra.mxu0 %v4309
    %5809 = vmatprep.subr.bf16.mxu0 %v4318
    %5810 = vmatpush1.bf16.msra.mxu0 %v4317
    %5811 = vmatprep.subr.bf16.mxu0 %v4326
    %5812 = vmatpush1.bf16.msra.mxu0 %v4325
    %5813 = vmatprep.subr.bf16.mxu0 %v4334
    %5814 = vmatpush1.bf16.msra.mxu0 %v4333
    %5815 = vmatprep.subr.bf16.mxu0 %v4342
    %5816 = vmatpush1.bf16.msra.mxu0 %v4341
    %5817 = vmatprep.subr.bf16.mxu0 %v4350
    %5818 = vmatpush1.bf16.msra.mxu0 %v4349
    %5819 = vmatprep.subr.bf16.mxu0 %v4358
    %5820 = vmatpush1.bf16.msra.mxu0 %v4357
    %5821 = vmatprep.subr.bf16.mxu0 %v4366
    %5822 = vmatpush1.bf16.msra.mxu0 %v4365
    %5823 = vmatprep.subr.bf16.mxu0 %v4374
    %5824 = vmatpush1.bf16.msra.mxu0 %v4373
    %5825 = vmatprep.subr.bf16.mxu0 %v4382
    %5826 = vmatpush1.bf16.msra.mxu0 %v4381
    %5827 = vmatprep.subr.bf16.mxu0 %v4390
    %5828 = vmatpush1.bf16.msra.mxu0 %v4389
    %5829 = vmatprep.subr.bf16.mxu0 %v4398
    %5830 = vmatpush1.bf16.msra.mxu0 %v4397
    %5831 = vmatprep.subr.bf16.mxu0 %v4406
    %5832 = vmatpush1.bf16.msra.mxu0 %v4405
    %5833 = vmatprep.subr.bf16.mxu0 %v4414
    %5834 = vmatpush1.bf16.msra.mxu0 %v4413
    %5835 = vmatprep.mubr.bf16.mxu0 %v2190
    %5836 = vmatmul.mubr.bf16.gmra.mrb[0].mxu0 %v2189
    %v5837 = vpop.f32.mrb[0].mxu0
    %v5838 = vadd.f32 %v2738, %v5837
    %v5839 = vpop.f32.mrb[0].mxu0
    %v5840 = vadd.f32 %v2742, %v5839
    %v5841 = vpop.f32.mrb[0].mxu0
    %v5842 = vpop.f32.mrb[0].mxu0
    %5843 = vdwg.mxu0
    %5844 = vmatprep.subr.bf16.mxu0 %v4422
    %5845 = vmatpush1.bf16.msra.mxu0 %v4421
    %5846 = vmatprep.subr.bf16.mxu0 %v4430
    %5847 = vmatpush1.bf16.msra.mxu0 %v4429
    %5848 = vmatprep.subr.bf16.mxu0 %v4438
    %5849 = vmatpush1.bf16.msra.mxu0 %v4437
    %5850 = vmatprep.subr.bf16.mxu0 %v4446
    %5851 = vmatpush1.bf16.msra.mxu0 %v4445
    %5852 = vmatprep.subr.bf16.mxu0 %v4454
    %5853 = vmatpush1.bf16.msra.mxu0 %v4453
    %5854 = vmatprep.subr.bf16.mxu0 %v4462
    %5855 = vmatpush1.bf16.msra.mxu0 %v4461
    %5856 = vmatprep.subr.bf16.mxu0 %v4470
    %5857 = vmatpush1.bf16.msra.mxu0 %v4469
    %5858 = vmatprep.subr.bf16.mxu0 %v4478
    %5859 = vmatpush1.bf16.msra.mxu0 %v4477
    %5860 = vmatprep.subr.bf16.mxu0 %v4486
    %5861 = vmatpush1.bf16.msra.mxu0 %v4485
    %5862 = vmatprep.subr.bf16.mxu0 %v4494
    %5863 = vmatpush1.bf16.msra.mxu0 %v4493
    %5864 = vmatprep.subr.bf16.mxu0 %v4502
    %5865 = vmatpush1.bf16.msra.mxu0 %v4501
    %5866 = vmatprep.subr.bf16.mxu0 %v4510
    %5867 = vmatpush1.bf16.msra.mxu0 %v4509
    %5868 = vmatprep.subr.bf16.mxu0 %v4518
    %5869 = vmatpush1.bf16.msra.mxu0 %v4517
    %5870 = vmatprep.subr.bf16.mxu0 %v4526
    %5871 = vmatpush1.bf16.msra.mxu0 %v4525
    %5872 = vmatprep.subr.bf16.mxu0 %v4534
    %5873 = vmatpush1.bf16.msra.mxu0 %v4533
    %5874 = vmatprep.subr.bf16.mxu0 %v4542
    %5875 = vmatpush1.bf16.msra.mxu0 %v4541
    %5876 = vmatprep.mubr.bf16.mxu0 %v2192
    %5877 = vmatmul.mubr.bf16.gmra.mrb[0].mxu0 %v2191
    %v5878 = vpop.f32.mrb[0].mxu0
    %v5879 = vadd.f32 %v5838, %v5878
    %v5880 = vpop.f32.mrb[0].mxu0
    %v5881 = vadd.f32 %v5840, %v5880
    %v5882 = vpop.f32.mrb[0].mxu0
    %v5883 = vpop.f32.mrb[0].mxu0
    %5884 = vdwg.mxu0
    %5885 = vmatprep.subr.bf16.mxu0 %v4550
    %5886 = vmatpush1.bf16.msra.mxu0 %v4549
    %5887 = vmatprep.subr.bf16.mxu0 %v4558
    %5888 = vmatpush1.bf16.msra.mxu0 %v4557
    %5889 = vmatprep.subr.bf16.mxu0 %v4566
    %5890 = vmatpush1.bf16.msra.mxu0 %v4565
    %5891 = vmatprep.subr.bf16.mxu0 %v4574
    %5892 = vmatpush1.bf16.msra.mxu0 %v4573
    %5893 = vmatprep.subr.bf16.mxu0 %v4582
    %5894 = vmatpush1.bf16.msra.mxu0 %v4581
    %5895 = vmatprep.subr.bf16.mxu0 %v4590
    %5896 = vmatpush1.bf16.msra.mxu0 %v4589
    %5897 = vmatprep.subr.bf16.mxu0 %v4598
    %5898 = vmatpush1.bf16.msra.mxu0 %v4597
    %5899 = vmatprep.subr.bf16.mxu0 %v4606
    %5900 = vmatpush1.bf16.msra.mxu0 %v4605
    %5901 = vmatprep.subr.bf16.mxu0 %v4614
    %5902 = vmatpush1.bf16.msra.mxu0 %v4613
    %5903 = vmatprep.subr.bf16.mxu0 %v4622
    %5904 = vmatpush1.bf16.msra.mxu0 %v4621
    %5905 = vmatprep.subr.bf16.mxu0 %v4630
    %5906 = vmatpush1.bf16.msra.mxu0 %v4629
    %5907 = vmatprep.subr.bf16.mxu0 %v4638
    %5908 = vmatpush1.bf16.msra.mxu0 %v4637
    %5909 = vmatprep.subr.bf16.mxu0 %v4646
    %5910 = vmatpush1.bf16.msra.mxu0 %v4645
    %5911 = vmatprep.subr.bf16.mxu0 %v4654
    %5912 = vmatpush1.bf16.msra.mxu0 %v4653
    %5913 = vmatprep.subr.bf16.mxu0 %v4662
    %5914 = vmatpush1.bf16.msra.mxu0 %v4661
    %5915 = vmatprep.subr.bf16.mxu0 %v4670
    %5916 = vmatpush1.bf16.msra.mxu0 %v4669
    %5917 = vmatprep.mubr.bf16.mxu0 %v2194
    %5918 = vmatmul.mubr.bf16.gmra.mrb[0].mxu0 %v2193
    %v5919 = vpop.f32.mrb[0].mxu0
    %v5920 = vadd.f32 %v5879, %v5919
    %v5921 = vpop.f32.mrb[0].mxu0
    %v5922 = vadd.f32 %v5881, %v5921
    %v5923 = vpop.f32.mrb[0].mxu0
    %v5924 = vpop.f32.mrb[0].mxu0
    %5925 = vdwg.mxu0
    %5926 = vmatprep.subr.bf16.mxu0 %v4678
    %5927 = vmatpush1.bf16.msra.mxu0 %v4677
    %5928 = vmatprep.subr.bf16.mxu0 %v4686
    %5929 = vmatpush1.bf16.msra.mxu0 %v4685
    %5930 = vmatprep.subr.bf16.mxu0 %v4694
    %5931 = vmatpush1.bf16.msra.mxu0 %v4693
    %5932 = vmatprep.subr.bf16.mxu0 %v4702
    %5933 = vmatpush1.bf16.msra.mxu0 %v4701
    %5934 = vmatprep.subr.bf16.mxu0 %v4710
    %5935 = vmatpush1.bf16.msra.mxu0 %v4709
    %5936 = vmatprep.subr.bf16.mxu0 %v4718
    %5937 = vmatpush1.bf16.msra.mxu0 %v4717
    %5938 = vmatprep.subr.bf16.mxu0 %v4726
    %5939 = vmatpush1.bf16.msra.mxu0 %v4725
    %5940 = vmatprep.subr.bf16.mxu0 %v4734
    %5941 = vmatpush1.bf16.msra.mxu0 %v4733
    %5942 = vmatprep.subr.bf16.mxu0 %v4742
    %5943 = vmatpush1.bf16.msra.mxu0 %v4741
    %5944 = vmatprep.subr.bf16.mxu0 %v4750
    %5945 = vmatpush1.bf16.msra.mxu0 %v4749
    %5946 = vmatprep.subr.bf16.mxu0 %v4758
    %5947 = vmatpush1.bf16.msra.mxu0 %v4757
    %5948 = vmatprep.subr.bf16.mxu0 %v4766
    %5949 = vmatpush1.bf16.msra.mxu0 %v4765
    %5950 = vmatprep.subr.bf16.mxu0 %v4774
    %5951 = vmatpush1.bf16.msra.mxu0 %v4773
    %5952 = vmatprep.subr.bf16.mxu0 %v4782
    %5953 = vmatpush1.bf16.msra.mxu0 %v4781
    %5954 = vmatprep.subr.bf16.mxu0 %v4790
    %5955 = vmatpush1.bf16.msra.mxu0 %v4789
    %5956 = vmatprep.subr.bf16.mxu0 %v4798
    %5957 = vmatpush1.bf16.msra.mxu0 %v4797
    %5958 = vmatprep.mubr.bf16.mxu0 %v2196
    %5959 = vmatmul.mubr.bf16.gmra.mrb[0].mxu0 %v2195
    %v5960 = vpop.f32.mrb[0].mxu0
    %v5961 = vadd.f32 %v5920, %v5960
    %v5962 = vpop.f32.mrb[0].mxu0
    %v5963 = vadd.f32 %v5922, %v5962
    %v5964 = vpop.f32.mrb[0].mxu0
    %v5965 = vpop.f32.mrb[0].mxu0
    %5966 = vdwg.mxu0
    %v5967 = vmax.f32 %v5469, 0.0
    %v5968 = vmax.f32 %v5471, 0.0
    %v5969 = vmax.f32 %v5633, 0.0
    %v5970 = vmax.f32 %v5635, 0.0
    %v5971 = vmax.f32 %v5797, 0.0
    %v5972 = vmax.f32 %v5799, 0.0
    %v5973 = vmax.f32 %v5961, 0.0
    %v5974 = vmax.f32 %v5963, 0.0
    %v5975 = vpack.c.bf16 %v5967, %v5967
    %v5976 = vpack.c.bf16 %v5968, %v5968
    %v5977 = vpack.c.bf16 %v5969, %v5969
    %v5978 = vpack.c.bf16 %v5970, %v5970
    %v5979 = vpack.c.bf16 %v5971, %v5971
    %v5980 = vpack.c.bf16 %v5972, %v5972
    %v5981 = vpack.c.bf16 %v5973, %v5973
    %v5982 = vpack.c.bf16 %v5974, %v5974
    %v5983 = vld [vmem:[#allocation10] sm:$0xff]
    %v5984 = vld [vmem:[#allocation10 + $0x8] sm:$0xff]
    %v5985 = vld [vmem:[#allocation10 + $0x10] sm:$0xff]
    %v5986 = vld [vmem:[#allocation10 + $0x18] sm:$0xff]
    %v5987 = vld [vmem:[#allocation10 + $0x20] sm:$0xff]
    %v5988 = vld [vmem:[#allocation10 + $0x28] sm:$0xff]
    %v5989 = vld [vmem:[#allocation10 + $0x30] sm:$0xff]
    %v5990 = vld [vmem:[#allocation10 + $0x38] sm:$0xff]
    %v5991 = vld [vmem:[#allocation10 + $0x40] sm:$0xff]
    %v5992 = vld [vmem:[#allocation10 + $0x48] sm:$0xff]
    %v5993 = vld [vmem:[#allocation10 + $0x50] sm:$0xff]
    %v5994 = vld [vmem:[#allocation10 + $0x58] sm:$0xff]
    %v5995 = vld [vmem:[#allocation10 + $0x60] sm:$0xff]
    %v5996 = vld [vmem:[#allocation10 + $0x68] sm:$0xff]
    %v5997 = vld [vmem:[#allocation10 + $0x70] sm:$0xff]
    %v5998 = vld [vmem:[#allocation10 + $0x78] sm:$0xff]
    %v5999 = vld [vmem:[#allocation10 + $0x80] sm:$0xff]
    %v6000 = vld [vmem:[#allocation10 + $0x88] sm:$0xff]
    %v6001 = vld [vmem:[#allocation10 + $0x90] sm:$0xff]
    %v6002 = vld [vmem:[#allocation10 + $0x98] sm:$0xff]
    %v6003 = vld [vmem:[#allocation10 + $0xa0] sm:$0xff]
    %v6004 = vld [vmem:[#allocation10 + $0xa8] sm:$0xff]
    %v6005 = vld [vmem:[#allocation10 + $0xb0] sm:$0xff]
    %v6006 = vld [vmem:[#allocation10 + $0xb8] sm:$0xff]
    %v6007 = vld [vmem:[#allocation10 + $0xc0] sm:$0xff]
    %v6008 = vld [vmem:[#allocation10 + $0xc8] sm:$0xff]
    %v6009 = vld [vmem:[#allocation10 + $0xd0] sm:$0xff]
    %v6010 = vld [vmem:[#allocation10 + $0xd8] sm:$0xff]
    %v6011 = vld [vmem:[#allocation10 + $0xe0] sm:$0xff]
    %v6012 = vld [vmem:[#allocation10 + $0xe8] sm:$0xff]
    %v6013 = vld [vmem:[#allocation10 + $0xf0] sm:$0xff]
    %v6014 = vld [vmem:[#allocation10 + $0xf8] sm:$0xff]
    %v6015 = vld [vmem:[#allocation10 + $0x100] sm:$0xff]
    %v6016 = vld [vmem:[#allocation10 + $0x108] sm:$0xff]
    %v6017 = vld [vmem:[#allocation10 + $0x110] sm:$0xff]
    %v6018 = vld [vmem:[#allocation10 + $0x118] sm:$0xff]
    %v6019 = vld [vmem:[#allocation10 + $0x120] sm:$0xff]
    %v6020 = vld [vmem:[#allocation10 + $0x128] sm:$0xff]
    %v6021 = vld [vmem:[#allocation10 + $0x130] sm:$0xff]
    %v6022 = vld [vmem:[#allocation10 + $0x138] sm:$0xff]
    %v6023 = vld [vmem:[#allocation10 + $0x140] sm:$0xff]
    %v6024 = vld [vmem:[#allocation10 + $0x148] sm:$0xff]
    %v6025 = vld [vmem:[#allocation10 + $0x150] sm:$0xff]
    %v6026 = vld [vmem:[#allocation10 + $0x158] sm:$0xff]
    %v6027 = vld [vmem:[#allocation10 + $0x160] sm:$0xff]
    %v6028 = vld [vmem:[#allocation10 + $0x168] sm:$0xff]
    %v6029 = vld [vmem:[#allocation10 + $0x170] sm:$0xff]
    %v6030 = vld [vmem:[#allocation10 + $0x178] sm:$0xff]
    %v6031 = vld [vmem:[#allocation10 + $0x180] sm:$0xff]
    %v6032 = vld [vmem:[#allocation10 + $0x188] sm:$0xff]
    %v6033 = vld [vmem:[#allocation10 + $0x190] sm:$0xff]
    %v6034 = vld [vmem:[#allocation10 + $0x198] sm:$0xff]
    %v6035 = vld [vmem:[#allocation10 + $0x1a0] sm:$0xff]
    %v6036 = vld [vmem:[#allocation10 + $0x1a8] sm:$0xff]
    %v6037 = vld [vmem:[#allocation10 + $0x1b0] sm:$0xff]
    %v6038 = vld [vmem:[#allocation10 + $0x1b8] sm:$0xff]
    %v6039 = vld [vmem:[#allocation10 + $0x1c0] sm:$0xff]
    %v6040 = vld [vmem:[#allocation10 + $0x1c8] sm:$0xff]
    %v6041 = vld [vmem:[#allocation10 + $0x1d0] sm:$0xff]
    %v6042 = vld [vmem:[#allocation10 + $0x1d8] sm:$0xff]
    %v6043 = vld [vmem:[#allocation10 + $0x1e0] sm:$0xff]
    %v6044 = vld [vmem:[#allocation10 + $0x1e8] sm:$0xff]
    %v6045 = vld [vmem:[#allocation10 + $0x1f0] sm:$0xff]
    %v6046 = vld [vmem:[#allocation10 + $0x1f8] sm:$0xff]
    %v6047 = vld [vmem:[#allocation10 + $0x200] sm:$0xff]
    %v6048 = vld [vmem:[#allocation10 + $0x208] sm:$0xff]
    %v6049 = vld [vmem:[#allocation10 + $0x210] sm:$0xff]
    %v6050 = vld [vmem:[#allocation10 + $0x218] sm:$0xff]
    %v6051 = vld [vmem:[#allocation10 + $0x220] sm:$0xff]
    %v6052 = vld [vmem:[#allocation10 + $0x228] sm:$0xff]
    %v6053 = vld [vmem:[#allocation10 + $0x230] sm:$0xff]
    %v6054 = vld [vmem:[#allocation10 + $0x238] sm:$0xff]
    %v6055 = vld [vmem:[#allocation10 + $0x240] sm:$0xff]
    %v6056 = vld [vmem:[#allocation10 + $0x248] sm:$0xff]
    %v6057 = vld [vmem:[#allocation10 + $0x250] sm:$0xff]
    %v6058 = vld [vmem:[#allocation10 + $0x258] sm:$0xff]
    %v6059 = vld [vmem:[#allocation10 + $0x260] sm:$0xff]
    %v6060 = vld [vmem:[#allocation10 + $0x268] sm:$0xff]
    %v6061 = vld [vmem:[#allocation10 + $0x270] sm:$0xff]
    %v6062 = vld [vmem:[#allocation10 + $0x278] sm:$0xff]
    %v6063 = vld [vmem:[#allocation10 + $0x280] sm:$0xff]
    %v6064 = vld [vmem:[#allocation10 + $0x288] sm:$0xff]
    %v6065 = vld [vmem:[#allocation10 + $0x290] sm:$0xff]
    %v6066 = vld [vmem:[#allocation10 + $0x298] sm:$0xff]
    %v6067 = vld [vmem:[#allocation10 + $0x2a0] sm:$0xff]
    %v6068 = vld [vmem:[#allocation10 + $0x2a8] sm:$0xff]
    %v6069 = vld [vmem:[#allocation10 + $0x2b0] sm:$0xff]
    %v6070 = vld [vmem:[#allocation10 + $0x2b8] sm:$0xff]
    %v6071 = vld [vmem:[#allocation10 + $0x2c0] sm:$0xff]
    %v6072 = vld [vmem:[#allocation10 + $0x2c8] sm:$0xff]
    %v6073 = vld [vmem:[#allocation10 + $0x2d0] sm:$0xff]
    %v6074 = vld [vmem:[#allocation10 + $0x2d8] sm:$0xff]
    %v6075 = vld [vmem:[#allocation10 + $0x2e0] sm:$0xff]
    %v6076 = vld [vmem:[#allocation10 + $0x2e8] sm:$0xff]
    %v6077 = vld [vmem:[#allocation10 + $0x2f0] sm:$0xff]
    %v6078 = vld [vmem:[#allocation10 + $0x2f8] sm:$0xff]
    %v6079 = vld [vmem:[#allocation10 + $0x300] sm:$0xff]
    %v6080 = vld [vmem:[#allocation10 + $0x308] sm:$0xff]
    %v6081 = vld [vmem:[#allocation10 + $0x310] sm:$0xff]
    %v6082 = vld [vmem:[#allocation10 + $0x318] sm:$0xff]
    %v6083 = vld [vmem:[#allocation10 + $0x320] sm:$0xff]
    %v6084 = vld [vmem:[#allocation10 + $0x328] sm:$0xff]
    %v6085 = vld [vmem:[#allocation10 + $0x330] sm:$0xff]
    %v6086 = vld [vmem:[#allocation10 + $0x338] sm:$0xff]
    %v6087 = vld [vmem:[#allocation10 + $0x340] sm:$0xff]
    %v6088 = vld [vmem:[#allocation10 + $0x348] sm:$0xff]
    %v6089 = vld [vmem:[#allocation10 + $0x350] sm:$0xff]
    %v6090 = vld [vmem:[#allocation10 + $0x358] sm:$0xff]
    %v6091 = vld [vmem:[#allocation10 + $0x360] sm:$0xff]
    %v6092 = vld [vmem:[#allocation10 + $0x368] sm:$0xff]
    %v6093 = vld [vmem:[#allocation10 + $0x370] sm:$0xff]
    %v6094 = vld [vmem:[#allocation10 + $0x378] sm:$0xff]
    %v6095 = vld [vmem:[#allocation10 + $0x380] sm:$0xff]
    %v6096 = vld [vmem:[#allocation10 + $0x388] sm:$0xff]
    %v6097 = vld [vmem:[#allocation10 + $0x390] sm:$0xff]
    %v6098 = vld [vmem:[#allocation10 + $0x398] sm:$0xff]
    %v6099 = vld [vmem:[#allocation10 + $0x3a0] sm:$0xff]
    %v6100 = vld [vmem:[#allocation10 + $0x3a8] sm:$0xff]
    %v6101 = vld [vmem:[#allocation10 + $0x3b0] sm:$0xff]
    %v6102 = vld [vmem:[#allocation10 + $0x3b8] sm:$0xff]
    %v6103 = vld [vmem:[#allocation10 + $0x3c0] sm:$0xff]
    %v6104 = vld [vmem:[#allocation10 + $0x3c8] sm:$0xff]
    %v6105 = vld [vmem:[#allocation10 + $0x3d0] sm:$0xff]
    %v6106 = vld [vmem:[#allocation10 + $0x3d8] sm:$0xff]
    %v6107 = vld [vmem:[#allocation10 + $0x3e0] sm:$0xff]
    %v6108 = vld [vmem:[#allocation10 + $0x3e8] sm:$0xff]
    %v6109 = vld [vmem:[#allocation10 + $0x3f0] sm:$0xff]
    %v6110 = vld [vmem:[#allocation10 + $0x3f8] sm:$0xff]
    %v6111 = vld [vmem:[#allocation10 + $0x400] sm:$0xff]
    %v6112 = vld [vmem:[#allocation10 + $0x408] sm:$0xff]
    %v6113 = vld [vmem:[#allocation10 + $0x410] sm:$0xff]
    %v6114 = vld [vmem:[#allocation10 + $0x418] sm:$0xff]
    %v6115 = vld [vmem:[#allocation10 + $0x420] sm:$0xff]
    %v6116 = vld [vmem:[#allocation10 + $0x428] sm:$0xff]
    %v6117 = vld [vmem:[#allocation10 + $0x430] sm:$0xff]
    %v6118 = vld [vmem:[#allocation10 + $0x438] sm:$0xff]
    %v6119 = vld [vmem:[#allocation10 + $0x440] sm:$0xff]
    %v6120 = vld [vmem:[#allocation10 + $0x448] sm:$0xff]
    %v6121 = vld [vmem:[#allocation10 + $0x450] sm:$0xff]
    %v6122 = vld [vmem:[#allocation10 + $0x458] sm:$0xff]
    %v6123 = vld [vmem:[#allocation10 + $0x460] sm:$0xff]
    %v6124 = vld [vmem:[#allocation10 + $0x468] sm:$0xff]
    %v6125 = vld [vmem:[#allocation10 + $0x470] sm:$0xff]
    %v6126 = vld [vmem:[#allocation10 + $0x478] sm:$0xff]
    %v6127 = vld [vmem:[#allocation10 + $0x480] sm:$0xff]
    %v6128 = vld [vmem:[#allocation10 + $0x488] sm:$0xff]
    %v6129 = vld [vmem:[#allocation10 + $0x490] sm:$0xff]
    %v6130 = vld [vmem:[#allocation10 + $0x498] sm:$0xff]
    %v6131 = vld [vmem:[#allocation10 + $0x4a0] sm:$0xff]
    %v6132 = vld [vmem:[#allocation10 + $0x4a8] sm:$0xff]
    %v6133 = vld [vmem:[#allocation10 + $0x4b0] sm:$0xff]
    %v6134 = vld [vmem:[#allocation10 + $0x4b8] sm:$0xff]
    %v6135 = vld [vmem:[#allocation10 + $0x4c0] sm:$0xff]
    %v6136 = vld [vmem:[#allocation10 + $0x4c8] sm:$0xff]
    %v6137 = vld [vmem:[#allocation10 + $0x4d0] sm:$0xff]
    %v6138 = vld [vmem:[#allocation10 + $0x4d8] sm:$0xff]
    %v6139 = vld [vmem:[#allocation10 + $0x4e0] sm:$0xff]
    %v6140 = vld [vmem:[#allocation10 + $0x4e8] sm:$0xff]
    %v6141 = vld [vmem:[#allocation10 + $0x4f0] sm:$0xff]
    %v6142 = vld [vmem:[#allocation10 + $0x4f8] sm:$0xff]
    %v6143 = vld [vmem:[#allocation10 + $0x500] sm:$0xff]
    %v6144 = vld [vmem:[#allocation10 + $0x508] sm:$0xff]
    %v6145 = vld [vmem:[#allocation10 + $0x510] sm:$0xff]
    %v6146 = vld [vmem:[#allocation10 + $0x518] sm:$0xff]
    %v6147 = vld [vmem:[#allocation10 + $0x520] sm:$0xff]
    %v6148 = vld [vmem:[#allocation10 + $0x528] sm:$0xff]
    %v6149 = vld [vmem:[#allocation10 + $0x530] sm:$0xff]
    %v6150 = vld [vmem:[#allocation10 + $0x538] sm:$0xff]
    %v6151 = vld [vmem:[#allocation10 + $0x540] sm:$0xff]
    %v6152 = vld [vmem:[#allocation10 + $0x548] sm:$0xff]
    %v6153 = vld [vmem:[#allocation10 + $0x550] sm:$0xff]
    %v6154 = vld [vmem:[#allocation10 + $0x558] sm:$0xff]
    %v6155 = vld [vmem:[#allocation10 + $0x560] sm:$0xff]
    %v6156 = vld [vmem:[#allocation10 + $0x568] sm:$0xff]
    %v6157 = vld [vmem:[#allocation10 + $0x570] sm:$0xff]
    %v6158 = vld [vmem:[#allocation10 + $0x578] sm:$0xff]
    %v6159 = vld [vmem:[#allocation10 + $0x580] sm:$0xff]
    %v6160 = vld [vmem:[#allocation10 + $0x588] sm:$0xff]
    %v6161 = vld [vmem:[#allocation10 + $0x590] sm:$0xff]
    %v6162 = vld [vmem:[#allocation10 + $0x598] sm:$0xff]
    %v6163 = vld [vmem:[#allocation10 + $0x5a0] sm:$0xff]
    %v6164 = vld [vmem:[#allocation10 + $0x5a8] sm:$0xff]
    %v6165 = vld [vmem:[#allocation10 + $0x5b0] sm:$0xff]
    %v6166 = vld [vmem:[#allocation10 + $0x5b8] sm:$0xff]
    %v6167 = vld [vmem:[#allocation10 + $0x5c0] sm:$0xff]
    %v6168 = vld [vmem:[#allocation10 + $0x5c8] sm:$0xff]
    %v6169 = vld [vmem:[#allocation10 + $0x5d0] sm:$0xff]
    %v6170 = vld [vmem:[#allocation10 + $0x5d8] sm:$0xff]
    %v6171 = vld [vmem:[#allocation10 + $0x5e0] sm:$0xff]
    %v6172 = vld [vmem:[#allocation10 + $0x5e8] sm:$0xff]
    %v6173 = vld [vmem:[#allocation10 + $0x5f0] sm:$0xff]
    %v6174 = vld [vmem:[#allocation10 + $0x5f8] sm:$0xff]
    %v6175 = vld [vmem:[#allocation10 + $0x600] sm:$0xff]
    %v6176 = vld [vmem:[#allocation10 + $0x608] sm:$0xff]
    %v6177 = vld [vmem:[#allocation10 + $0x610] sm:$0xff]
    %v6178 = vld [vmem:[#allocation10 + $0x618] sm:$0xff]
    %v6179 = vld [vmem:[#allocation10 + $0x620] sm:$0xff]
    %v6180 = vld [vmem:[#allocation10 + $0x628] sm:$0xff]
    %v6181 = vld [vmem:[#allocation10 + $0x630] sm:$0xff]
    %v6182 = vld [vmem:[#allocation10 + $0x638] sm:$0xff]
    %v6183 = vld [vmem:[#allocation10 + $0x640] sm:$0xff]
    %v6184 = vld [vmem:[#allocation10 + $0x648] sm:$0xff]
    %v6185 = vld [vmem:[#allocation10 + $0x650] sm:$0xff]
    %v6186 = vld [vmem:[#allocation10 + $0x658] sm:$0xff]
    %v6187 = vld [vmem:[#allocation10 + $0x660] sm:$0xff]
    %v6188 = vld [vmem:[#allocation10 + $0x668] sm:$0xff]
    %v6189 = vld [vmem:[#allocation10 + $0x670] sm:$0xff]
    %v6190 = vld [vmem:[#allocation10 + $0x678] sm:$0xff]
    %v6191 = vld [vmem:[#allocation10 + $0x680] sm:$0xff]
    %v6192 = vld [vmem:[#allocation10 + $0x688] sm:$0xff]
    %v6193 = vld [vmem:[#allocation10 + $0x690] sm:$0xff]
    %v6194 = vld [vmem:[#allocation10 + $0x698] sm:$0xff]
    %v6195 = vld [vmem:[#allocation10 + $0x6a0] sm:$0xff]
    %v6196 = vld [vmem:[#allocation10 + $0x6a8] sm:$0xff]
    %v6197 = vld [vmem:[#allocation10 + $0x6b0] sm:$0xff]
    %v6198 = vld [vmem:[#allocation10 + $0x6b8] sm:$0xff]
    %v6199 = vld [vmem:[#allocation10 + $0x6c0] sm:$0xff]
    %v6200 = vld [vmem:[#allocation10 + $0x6c8] sm:$0xff]
    %v6201 = vld [vmem:[#allocation10 + $0x6d0] sm:$0xff]
    %v6202 = vld [vmem:[#allocation10 + $0x6d8] sm:$0xff]
    %v6203 = vld [vmem:[#allocation10 + $0x6e0] sm:$0xff]
    %v6204 = vld [vmem:[#allocation10 + $0x6e8] sm:$0xff]
    %v6205 = vld [vmem:[#allocation10 + $0x6f0] sm:$0xff]
    %v6206 = vld [vmem:[#allocation10 + $0x6f8] sm:$0xff]
    %v6207 = vld [vmem:[#allocation10 + $0x700] sm:$0xff]
    %v6208 = vld [vmem:[#allocation10 + $0x708] sm:$0xff]
    %v6209 = vld [vmem:[#allocation10 + $0x710] sm:$0xff]
    %v6210 = vld [vmem:[#allocation10 + $0x718] sm:$0xff]
    %v6211 = vld [vmem:[#allocation10 + $0x720] sm:$0xff]
    %v6212 = vld [vmem:[#allocation10 + $0x728] sm:$0xff]
    %v6213 = vld [vmem:[#allocation10 + $0x730] sm:$0xff]
    %v6214 = vld [vmem:[#allocation10 + $0x738] sm:$0xff]
    %v6215 = vld [vmem:[#allocation10 + $0x740] sm:$0xff]
    %v6216 = vld [vmem:[#allocation10 + $0x748] sm:$0xff]
    %v6217 = vld [vmem:[#allocation10 + $0x750] sm:$0xff]
    %v6218 = vld [vmem:[#allocation10 + $0x758] sm:$0xff]
    %v6219 = vld [vmem:[#allocation10 + $0x760] sm:$0xff]
    %v6220 = vld [vmem:[#allocation10 + $0x768] sm:$0xff]
    %v6221 = vld [vmem:[#allocation10 + $0x770] sm:$0xff]
    %v6222 = vld [vmem:[#allocation10 + $0x778] sm:$0xff]
    %v6223 = vld [vmem:[#allocation10 + $0x780] sm:$0xff]
    %v6224 = vld [vmem:[#allocation10 + $0x788] sm:$0xff]
    %v6225 = vld [vmem:[#allocation10 + $0x790] sm:$0xff]
    %v6226 = vld [vmem:[#allocation10 + $0x798] sm:$0xff]
    %v6227 = vld [vmem:[#allocation10 + $0x7a0] sm:$0xff]
    %v6228 = vld [vmem:[#allocation10 + $0x7a8] sm:$0xff]
    %v6229 = vld [vmem:[#allocation10 + $0x7b0] sm:$0xff]
    %v6230 = vld [vmem:[#allocation10 + $0x7b8] sm:$0xff]
    %v6231 = vld [vmem:[#allocation10 + $0x7c0] sm:$0xff]
    %v6232 = vld [vmem:[#allocation10 + $0x7c8] sm:$0xff]
    %v6233 = vld [vmem:[#allocation10 + $0x7d0] sm:$0xff]
    %v6234 = vld [vmem:[#allocation10 + $0x7d8] sm:$0xff]
    %v6235 = vld [vmem:[#allocation10 + $0x7e0] sm:$0xff]
    %v6236 = vld [vmem:[#allocation10 + $0x7e8] sm:$0xff]
    %v6237 = vld [vmem:[#allocation10 + $0x7f0] sm:$0xff]
    %v6238 = vld [vmem:[#allocation10 + $0x7f8] sm:$0xff]
    %v6239 = vld [vmem:[#allocation10 + $0x800] sm:$0xff]
    %v6240 = vld [vmem:[#allocation10 + $0x808] sm:$0xff]
    %v6241 = vld [vmem:[#allocation10 + $0x810] sm:$0xff]
    %v6242 = vld [vmem:[#allocation10 + $0x818] sm:$0xff]
    %v6243 = vld [vmem:[#allocation10 + $0x820] sm:$0xff]
    %v6244 = vld [vmem:[#allocation10 + $0x828] sm:$0xff]
    %v6245 = vld [vmem:[#allocation10 + $0x830] sm:$0xff]
    %v6246 = vld [vmem:[#allocation10 + $0x838] sm:$0xff]
    %v6247 = vld [vmem:[#allocation10 + $0x840] sm:$0xff]
    %v6248 = vld [vmem:[#allocation10 + $0x848] sm:$0xff]
    %v6249 = vld [vmem:[#allocation10 + $0x850] sm:$0xff]
    %v6250 = vld [vmem:[#allocation10 + $0x858] sm:$0xff]
    %v6251 = vld [vmem:[#allocation10 + $0x860] sm:$0xff]
    %v6252 = vld [vmem:[#allocation10 + $0x868] sm:$0xff]
    %v6253 = vld [vmem:[#allocation10 + $0x870] sm:$0xff]
    %v6254 = vld [vmem:[#allocation10 + $0x878] sm:$0xff]
    %v6255 = vld [vmem:[#allocation10 + $0x880] sm:$0xff]
    %v6256 = vld [vmem:[#allocation10 + $0x888] sm:$0xff]
    %v6257 = vld [vmem:[#allocation10 + $0x890] sm:$0xff]
    %v6258 = vld [vmem:[#allocation10 + $0x898] sm:$0xff]
    %v6259 = vld [vmem:[#allocation10 + $0x8a0] sm:$0xff]
    %v6260 = vld [vmem:[#allocation10 + $0x8a8] sm:$0xff]
    %v6261 = vld [vmem:[#allocation10 + $0x8b0] sm:$0xff]
    %v6262 = vld [vmem:[#allocation10 + $0x8b8] sm:$0xff]
    %v6263 = vld [vmem:[#allocation10 + $0x8c0] sm:$0xff]
    %v6264 = vld [vmem:[#allocation10 + $0x8c8] sm:$0xff]
    %v6265 = vld [vmem:[#allocation10 + $0x8d0] sm:$0xff]
    %v6266 = vld [vmem:[#allocation10 + $0x8d8] sm:$0xff]
    %v6267 = vld [vmem:[#allocation10 + $0x8e0] sm:$0xff]
    %v6268 = vld [vmem:[#allocation10 + $0x8e8] sm:$0xff]
    %v6269 = vld [vmem:[#allocation10 + $0x8f0] sm:$0xff]
    %v6270 = vld [vmem:[#allocation10 + $0x8f8] sm:$0xff]
    %v6271 = vld [vmem:[#allocation10 + $0x900] sm:$0xff]
    %v6272 = vld [vmem:[#allocation10 + $0x908] sm:$0xff]
    %v6273 = vld [vmem:[#allocation10 + $0x910] sm:$0xff]
    %v6274 = vld [vmem:[#allocation10 + $0x918] sm:$0xff]
    %v6275 = vld [vmem:[#allocation10 + $0x920] sm:$0xff]
    %v6276 = vld [vmem:[#allocation10 + $0x928] sm:$0xff]
    %v6277 = vld [vmem:[#allocation10 + $0x930] sm:$0xff]
    %v6278 = vld [vmem:[#allocation10 + $0x938] sm:$0xff]
    %v6279 = vld [vmem:[#allocation10 + $0x940] sm:$0xff]
    %v6280 = vld [vmem:[#allocation10 + $0x948] sm:$0xff]
    %v6281 = vld [vmem:[#allocation10 + $0x950] sm:$0xff]
    %v6282 = vld [vmem:[#allocation10 + $0x958] sm:$0xff]
    %v6283 = vld [vmem:[#allocation10 + $0x960] sm:$0xff]
    %v6284 = vld [vmem:[#allocation10 + $0x968] sm:$0xff]
    %v6285 = vld [vmem:[#allocation10 + $0x970] sm:$0xff]
    %v6286 = vld [vmem:[#allocation10 + $0x978] sm:$0xff]
    %v6287 = vld [vmem:[#allocation10 + $0x980] sm:$0xff]
    %v6288 = vld [vmem:[#allocation10 + $0x988] sm:$0xff]
    %v6289 = vld [vmem:[#allocation10 + $0x990] sm:$0xff]
    %v6290 = vld [vmem:[#allocation10 + $0x998] sm:$0xff]
    %v6291 = vld [vmem:[#allocation10 + $0x9a0] sm:$0xff]
    %v6292 = vld [vmem:[#allocation10 + $0x9a8] sm:$0xff]
    %v6293 = vld [vmem:[#allocation10 + $0x9b0] sm:$0xff]
    %v6294 = vld [vmem:[#allocation10 + $0x9b8] sm:$0xff]
    %v6295 = vld [vmem:[#allocation10 + $0x9c0] sm:$0xff]
    %v6296 = vld [vmem:[#allocation10 + $0x9c8] sm:$0xff]
    %v6297 = vld [vmem:[#allocation10 + $0x9d0] sm:$0xff]
    %v6298 = vld [vmem:[#allocation10 + $0x9d8] sm:$0xff]
    %v6299 = vld [vmem:[#allocation10 + $0x9e0] sm:$0xff]
    %v6300 = vld [vmem:[#allocation10 + $0x9e8] sm:$0xff]
    %v6301 = vld [vmem:[#allocation10 + $0x9f0] sm:$0xff]
    %v6302 = vld [vmem:[#allocation10 + $0x9f8] sm:$0xff]
    %v6303 = vld [vmem:[#allocation10 + $0xa00] sm:$0xff]
    %v6304 = vld [vmem:[#allocation10 + $0xa08] sm:$0xff]
    %v6305 = vld [vmem:[#allocation10 + $0xa10] sm:$0xff]
    %v6306 = vld [vmem:[#allocation10 + $0xa18] sm:$0xff]
    %v6307 = vld [vmem:[#allocation10 + $0xa20] sm:$0xff]
    %v6308 = vld [vmem:[#allocation10 + $0xa28] sm:$0xff]
    %v6309 = vld [vmem:[#allocation10 + $0xa30] sm:$0xff]
    %v6310 = vld [vmem:[#allocation10 + $0xa38] sm:$0xff]
    %v6311 = vld [vmem:[#allocation10 + $0xa40] sm:$0xff]
    %v6312 = vld [vmem:[#allocation10 + $0xa48] sm:$0xff]
    %v6313 = vld [vmem:[#allocation10 + $0xa50] sm:$0xff]
    %v6314 = vld [vmem:[#allocation10 + $0xa58] sm:$0xff]
    %v6315 = vld [vmem:[#allocation10 + $0xa60] sm:$0xff]
    %v6316 = vld [vmem:[#allocation10 + $0xa68] sm:$0xff]
    %v6317 = vld [vmem:[#allocation10 + $0xa70] sm:$0xff]
    %v6318 = vld [vmem:[#allocation10 + $0xa78] sm:$0xff]
    %v6319 = vld [vmem:[#allocation10 + $0xa80] sm:$0xff]
    %v6320 = vld [vmem:[#allocation10 + $0xa88] sm:$0xff]
    %v6321 = vld [vmem:[#allocation10 + $0xa90] sm:$0xff]
    %v6322 = vld [vmem:[#allocation10 + $0xa98] sm:$0xff]
    %v6323 = vld [vmem:[#allocation10 + $0xaa0] sm:$0xff]
    %v6324 = vld [vmem:[#allocation10 + $0xaa8] sm:$0xff]
    %v6325 = vld [vmem:[#allocation10 + $0xab0] sm:$0xff]
    %v6326 = vld [vmem:[#allocation10 + $0xab8] sm:$0xff]
    %v6327 = vld [vmem:[#allocation10 + $0xac0] sm:$0xff]
    %v6328 = vld [vmem:[#allocation10 + $0xac8] sm:$0xff]
    %v6329 = vld [vmem:[#allocation10 + $0xad0] sm:$0xff]
    %v6330 = vld [vmem:[#allocation10 + $0xad8] sm:$0xff]
    %v6331 = vld [vmem:[#allocation10 + $0xae0] sm:$0xff]
    %v6332 = vld [vmem:[#allocation10 + $0xae8] sm:$0xff]
    %v6333 = vld [vmem:[#allocation10 + $0xaf0] sm:$0xff]
    %v6334 = vld [vmem:[#allocation10 + $0xaf8] sm:$0xff]
    %v6335 = vld [vmem:[#allocation10 + $0xb00] sm:$0xff]
    %v6336 = vld [vmem:[#allocation10 + $0xb08] sm:$0xff]
    %v6337 = vld [vmem:[#allocation10 + $0xb10] sm:$0xff]
    %v6338 = vld [vmem:[#allocation10 + $0xb18] sm:$0xff]
    %v6339 = vld [vmem:[#allocation10 + $0xb20] sm:$0xff]
    %v6340 = vld [vmem:[#allocation10 + $0xb28] sm:$0xff]
    %v6341 = vld [vmem:[#allocation10 + $0xb30] sm:$0xff]
    %v6342 = vld [vmem:[#allocation10 + $0xb38] sm:$0xff]
    %v6343 = vld [vmem:[#allocation10 + $0xb40] sm:$0xff]
    %v6344 = vld [vmem:[#allocation10 + $0xb48] sm:$0xff]
    %v6345 = vld [vmem:[#allocation10 + $0xb50] sm:$0xff]
    %v6346 = vld [vmem:[#allocation10 + $0xb58] sm:$0xff]
    %v6347 = vld [vmem:[#allocation10 + $0xb60] sm:$0xff]
    %v6348 = vld [vmem:[#allocation10 + $0xb68] sm:$0xff]
    %v6349 = vld [vmem:[#allocation10 + $0xb70] sm:$0xff]
    %v6350 = vld [vmem:[#allocation10 + $0xb78] sm:$0xff]
    %v6351 = vld [vmem:[#allocation10 + $0xb80] sm:$0xff]
    %v6352 = vld [vmem:[#allocation10 + $0xb88] sm:$0xff]
    %v6353 = vld [vmem:[#allocation10 + $0xb90] sm:$0xff]
    %v6354 = vld [vmem:[#allocation10 + $0xb98] sm:$0xff]
    %v6355 = vld [vmem:[#allocation10 + $0xba0] sm:$0xff]
    %v6356 = vld [vmem:[#allocation10 + $0xba8] sm:$0xff]
    %v6357 = vld [vmem:[#allocation10 + $0xbb0] sm:$0xff]
    %v6358 = vld [vmem:[#allocation10 + $0xbb8] sm:$0xff]
    %v6359 = vld [vmem:[#allocation10 + $0xbc0] sm:$0xff]
    %v6360 = vld [vmem:[#allocation10 + $0xbc8] sm:$0xff]
    %v6361 = vld [vmem:[#allocation10 + $0xbd0] sm:$0xff]
    %v6362 = vld [vmem:[#allocation10 + $0xbd8] sm:$0xff]
    %v6363 = vld [vmem:[#allocation10 + $0xbe0] sm:$0xff]
    %v6364 = vld [vmem:[#allocation10 + $0xbe8] sm:$0xff]
    %v6365 = vld [vmem:[#allocation10 + $0xbf0] sm:$0xff]
    %v6366 = vld [vmem:[#allocation10 + $0xbf8] sm:$0xff]
    %v6367 = vld [vmem:[#allocation10 + $0xc00] sm:$0xff]
    %v6368 = vld [vmem:[#allocation10 + $0xc08] sm:$0xff]
    %v6369 = vld [vmem:[#allocation10 + $0xc10] sm:$0xff]
    %v6370 = vld [vmem:[#allocation10 + $0xc18] sm:$0xff]
    %v6371 = vld [vmem:[#allocation10 + $0xc20] sm:$0xff]
    %v6372 = vld [vmem:[#allocation10 + $0xc28] sm:$0xff]
    %v6373 = vld [vmem:[#allocation10 + $0xc30] sm:$0xff]
    %v6374 = vld [vmem:[#allocation10 + $0xc38] sm:$0xff]
    %v6375 = vld [vmem:[#allocation10 + $0xc40] sm:$0xff]
    %v6376 = vld [vmem:[#allocation10 + $0xc48] sm:$0xff]
    %v6377 = vld [vmem:[#allocation10 + $0xc50] sm:$0xff]
    %v6378 = vld [vmem:[#allocation10 + $0xc58] sm:$0xff]
    %v6379 = vld [vmem:[#allocation10 + $0xc60] sm:$0xff]
    %v6380 = vld [vmem:[#allocation10 + $0xc68] sm:$0xff]
    %v6381 = vld [vmem:[#allocation10 + $0xc70] sm:$0xff]
    %v6382 = vld [vmem:[#allocation10 + $0xc78] sm:$0xff]
    %v6383 = vld [vmem:[#allocation10 + $0xc80] sm:$0xff]
    %v6384 = vld [vmem:[#allocation10 + $0xc88] sm:$0xff]
    %v6385 = vld [vmem:[#allocation10 + $0xc90] sm:$0xff]
    %v6386 = vld [vmem:[#allocation10 + $0xc98] sm:$0xff]
    %v6387 = vld [vmem:[#allocation10 + $0xca0] sm:$0xff]
    %v6388 = vld [vmem:[#allocation10 + $0xca8] sm:$0xff]
    %v6389 = vld [vmem:[#allocation10 + $0xcb0] sm:$0xff]
    %v6390 = vld [vmem:[#allocation10 + $0xcb8] sm:$0xff]
    %v6391 = vld [vmem:[#allocation10 + $0xcc0] sm:$0xff]
    %v6392 = vld [vmem:[#allocation10 + $0xcc8] sm:$0xff]
    %v6393 = vld [vmem:[#allocation10 + $0xcd0] sm:$0xff]
    %v6394 = vld [vmem:[#allocation10 + $0xcd8] sm:$0xff]
    %v6395 = vld [vmem:[#allocation10 + $0xce0] sm:$0xff]
    %v6396 = vld [vmem:[#allocation10 + $0xce8] sm:$0xff]
    %v6397 = vld [vmem:[#allocation10 + $0xcf0] sm:$0xff]
    %v6398 = vld [vmem:[#allocation10 + $0xcf8] sm:$0xff]
    %v6399 = vld [vmem:[#allocation10 + $0xd00] sm:$0xff]
    %v6400 = vld [vmem:[#allocation10 + $0xd08] sm:$0xff]
    %v6401 = vld [vmem:[#allocation10 + $0xd10] sm:$0xff]
    %v6402 = vld [vmem:[#allocation10 + $0xd18] sm:$0xff]
    %v6403 = vld [vmem:[#allocation10 + $0xd20] sm:$0xff]
    %v6404 = vld [vmem:[#allocation10 + $0xd28] sm:$0xff]
    %v6405 = vld [vmem:[#allocation10 + $0xd30] sm:$0xff]
    %v6406 = vld [vmem:[#allocation10 + $0xd38] sm:$0xff]
    %v6407 = vld [vmem:[#allocation10 + $0xd40] sm:$0xff]
    %v6408 = vld [vmem:[#allocation10 + $0xd48] sm:$0xff]
    %v6409 = vld [vmem:[#allocation10 + $0xd50] sm:$0xff]
    %v6410 = vld [vmem:[#allocation10 + $0xd58] sm:$0xff]
    %v6411 = vld [vmem:[#allocation10 + $0xd60] sm:$0xff]
    %v6412 = vld [vmem:[#allocation10 + $0xd68] sm:$0xff]
    %v6413 = vld [vmem:[#allocation10 + $0xd70] sm:$0xff]
    %v6414 = vld [vmem:[#allocation10 + $0xd78] sm:$0xff]
    %v6415 = vld [vmem:[#allocation10 + $0xd80] sm:$0xff]
    %v6416 = vld [vmem:[#allocation10 + $0xd88] sm:$0xff]
    %v6417 = vld [vmem:[#allocation10 + $0xd90] sm:$0xff]
    %v6418 = vld [vmem:[#allocation10 + $0xd98] sm:$0xff]
    %v6419 = vld [vmem:[#allocation10 + $0xda0] sm:$0xff]
    %v6420 = vld [vmem:[#allocation10 + $0xda8] sm:$0xff]
    %v6421 = vld [vmem:[#allocation10 + $0xdb0] sm:$0xff]
    %v6422 = vld [vmem:[#allocation10 + $0xdb8] sm:$0xff]
    %v6423 = vld [vmem:[#allocation10 + $0xdc0] sm:$0xff]
    %v6424 = vld [vmem:[#allocation10 + $0xdc8] sm:$0xff]
    %v6425 = vld [vmem:[#allocation10 + $0xdd0] sm:$0xff]
    %v6426 = vld [vmem:[#allocation10 + $0xdd8] sm:$0xff]
    %v6427 = vld [vmem:[#allocation10 + $0xde0] sm:$0xff]
    %v6428 = vld [vmem:[#allocation10 + $0xde8] sm:$0xff]
    %v6429 = vld [vmem:[#allocation10 + $0xdf0] sm:$0xff]
    %v6430 = vld [vmem:[#allocation10 + $0xdf8] sm:$0xff]
    %v6431 = vld [vmem:[#allocation10 + $0xe00] sm:$0xff]
    %v6432 = vld [vmem:[#allocation10 + $0xe08] sm:$0xff]
    %v6433 = vld [vmem:[#allocation10 + $0xe10] sm:$0xff]
    %v6434 = vld [vmem:[#allocation10 + $0xe18] sm:$0xff]
    %v6435 = vld [vmem:[#allocation10 + $0xe20] sm:$0xff]
    %v6436 = vld [vmem:[#allocation10 + $0xe28] sm:$0xff]
    %v6437 = vld [vmem:[#allocation10 + $0xe30] sm:$0xff]
    %v6438 = vld [vmem:[#allocation10 + $0xe38] sm:$0xff]
    %v6439 = vld [vmem:[#allocation10 + $0xe40] sm:$0xff]
    %v6440 = vld [vmem:[#allocation10 + $0xe48] sm:$0xff]
    %v6441 = vld [vmem:[#allocation10 + $0xe50] sm:$0xff]
    %v6442 = vld [vmem:[#allocation10 + $0xe58] sm:$0xff]
    %v6443 = vld [vmem:[#allocation10 + $0xe60] sm:$0xff]
    %v6444 = vld [vmem:[#allocation10 + $0xe68] sm:$0xff]
    %v6445 = vld [vmem:[#allocation10 + $0xe70] sm:$0xff]
    %v6446 = vld [vmem:[#allocation10 + $0xe78] sm:$0xff]
    %v6447 = vld [vmem:[#allocation10 + $0xe80] sm:$0xff]
    %v6448 = vld [vmem:[#allocation10 + $0xe88] sm:$0xff]
    %v6449 = vld [vmem:[#allocation10 + $0xe90] sm:$0xff]
    %v6450 = vld [vmem:[#allocation10 + $0xe98] sm:$0xff]
    %v6451 = vld [vmem:[#allocation10 + $0xea0] sm:$0xff]
    %v6452 = vld [vmem:[#allocation10 + $0xea8] sm:$0xff]
    %v6453 = vld [vmem:[#allocation10 + $0xeb0] sm:$0xff]
    %v6454 = vld [vmem:[#allocation10 + $0xeb8] sm:$0xff]
    %v6455 = vld [vmem:[#allocation10 + $0xec0] sm:$0xff]
    %v6456 = vld [vmem:[#allocation10 + $0xec8] sm:$0xff]
    %v6457 = vld [vmem:[#allocation10 + $0xed0] sm:$0xff]
    %v6458 = vld [vmem:[#allocation10 + $0xed8] sm:$0xff]
    %v6459 = vld [vmem:[#allocation10 + $0xee0] sm:$0xff]
    %v6460 = vld [vmem:[#allocation10 + $0xee8] sm:$0xff]
    %v6461 = vld [vmem:[#allocation10 + $0xef0] sm:$0xff]
    %v6462 = vld [vmem:[#allocation10 + $0xef8] sm:$0xff]
    %v6463 = vld [vmem:[#allocation10 + $0xf00] sm:$0xff]
    %v6464 = vld [vmem:[#allocation10 + $0xf08] sm:$0xff]
    %v6465 = vld [vmem:[#allocation10 + $0xf10] sm:$0xff]
    %v6466 = vld [vmem:[#allocation10 + $0xf18] sm:$0xff]
    %v6467 = vld [vmem:[#allocation10 + $0xf20] sm:$0xff]
    %v6468 = vld [vmem:[#allocation10 + $0xf28] sm:$0xff]
    %v6469 = vld [vmem:[#allocation10 + $0xf30] sm:$0xff]
    %v6470 = vld [vmem:[#allocation10 + $0xf38] sm:$0xff]
    %v6471 = vld [vmem:[#allocation10 + $0xf40] sm:$0xff]
    %v6472 = vld [vmem:[#allocation10 + $0xf48] sm:$0xff]
    %v6473 = vld [vmem:[#allocation10 + $0xf50] sm:$0xff]
    %v6474 = vld [vmem:[#allocation10 + $0xf58] sm:$0xff]
    %v6475 = vld [vmem:[#allocation10 + $0xf60] sm:$0xff]
    %v6476 = vld [vmem:[#allocation10 + $0xf68] sm:$0xff]
    %v6477 = vld [vmem:[#allocation10 + $0xf70] sm:$0xff]
    %v6478 = vld [vmem:[#allocation10 + $0xf78] sm:$0xff]
    %v6479 = vld [vmem:[#allocation10 + $0xf80] sm:$0xff]
    %v6480 = vld [vmem:[#allocation10 + $0xf88] sm:$0xff]
    %v6481 = vld [vmem:[#allocation10 + $0xf90] sm:$0xff]
    %v6482 = vld [vmem:[#allocation10 + $0xf98] sm:$0xff]
    %v6483 = vld [vmem:[#allocation10 + $0xfa0] sm:$0xff]
    %v6484 = vld [vmem:[#allocation10 + $0xfa8] sm:$0xff]
    %v6485 = vld [vmem:[#allocation10 + $0xfb0] sm:$0xff]
    %v6486 = vld [vmem:[#allocation10 + $0xfb8] sm:$0xff]
    %v6487 = vld [vmem:[#allocation10 + $0xfc0] sm:$0xff]
    %v6488 = vld [vmem:[#allocation10 + $0xfc8] sm:$0xff]
    %v6489 = vld [vmem:[#allocation10 + $0xfd0] sm:$0xff]
    %v6490 = vld [vmem:[#allocation10 + $0xfd8] sm:$0xff]
    %v6491 = vld [vmem:[#allocation10 + $0xfe0] sm:$0xff]
    %v6492 = vld [vmem:[#allocation10 + $0xfe8] sm:$0xff]
    %v6493 = vld [vmem:[#allocation10 + $0xff0] sm:$0xff]
    %v6494 = vld [vmem:[#allocation10 + $0xff8] sm:$0xff]
    %v6495 = vld [vmem:[#allocation11] sm:$0xff]
    %v6497 = vlaneseq
    %v6498 = vshrl.u32 %v6497, 7
    %v6499 = vsub.s32 0, %v6498
    %v6500 = vrot.slane %v6495, %v6499
    %v6501 = vlaneseq
    %v6502 = vshrl.u32 %v6501, 7
    %v6503 = vsub.s32 1, %v6502
    %v6504 = vrot.slane %v6495, %v6503
    %v6505 = vlaneseq
    %v6506 = vshrl.u32 %v6505, 7
    %v6507 = vsub.s32 2, %v6506
    %v6508 = vrot.slane %v6495, %v6507
    %v6509 = vlaneseq
    %v6510 = vshrl.u32 %v6509, 7
    %v6511 = vsub.s32 3, %v6510
    %v6512 = vrot.slane %v6495, %v6511
    %v6513 = vlaneseq
    %v6514 = vshrl.u32 %v6513, 7
    %v6515 = vsub.s32 4, %v6514
    %v6516 = vrot.slane %v6495, %v6515
    %v6517 = vlaneseq
    %v6518 = vshrl.u32 %v6517, 7
    %v6519 = vsub.s32 5, %v6518
    %v6520 = vrot.slane %v6495, %v6519
    %v6521 = vlaneseq
    %v6522 = vshrl.u32 %v6521, 7
    %v6523 = vsub.s32 6, %v6522
    %v6524 = vrot.slane %v6495, %v6523
    %v6525 = vlaneseq
    %v6526 = vshrl.u32 %v6525, 7
    %v6527 = vsub.s32 7, %v6526
    %v6528 = vrot.slane %v6495, %v6527
    %v7049 = vunpack.c.l.b16 %v5983
    %v7050 = vunpack.c.h.b16 %v5983
    %v7051 = vunpack.c.l.b16 %v5984
    %v7052 = vunpack.c.h.b16 %v5984
    %v7053 = vunpack.c.l.b16 %v5985
    %v7054 = vunpack.c.h.b16 %v5985
    %v7055 = vunpack.c.l.b16 %v5986
    %v7056 = vunpack.c.h.b16 %v5986
    %v7057 = vunpack.c.l.b16 %v5987
    %v7058 = vunpack.c.h.b16 %v5987
    %v7059 = vunpack.c.l.b16 %v5988
    %v7060 = vunpack.c.h.b16 %v5988
    %v7061 = vunpack.c.l.b16 %v5989
    %v7062 = vunpack.c.h.b16 %v5989
    %v7063 = vunpack.c.l.b16 %v5990
    %v7064 = vunpack.c.h.b16 %v5990
    %v7065 = vunpack.c.l.b16 %v5991
    %v7066 = vunpack.c.h.b16 %v5991
    %v7067 = vunpack.c.l.b16 %v5992
    %v7068 = vunpack.c.h.b16 %v5992
    %v7069 = vunpack.c.l.b16 %v5993
    %v7070 = vunpack.c.h.b16 %v5993
    %v7071 = vunpack.c.l.b16 %v5994
    %v7072 = vunpack.c.h.b16 %v5994
    %v7073 = vunpack.c.l.b16 %v5995
    %v7074 = vunpack.c.h.b16 %v5995
    %v7075 = vunpack.c.l.b16 %v5996
    %v7076 = vunpack.c.h.b16 %v5996
    %v7077 = vunpack.c.l.b16 %v5997
    %v7078 = vunpack.c.h.b16 %v5997
    %v7079 = vunpack.c.l.b16 %v5998
    %v7080 = vunpack.c.h.b16 %v5998
    %v7081 = vunpack.c.l.b16 %v5999
    %v7082 = vunpack.c.h.b16 %v5999
    %v7083 = vunpack.c.l.b16 %v6000
    %v7084 = vunpack.c.h.b16 %v6000
    %v7085 = vunpack.c.l.b16 %v6001
    %v7086 = vunpack.c.h.b16 %v6001
    %v7087 = vunpack.c.l.b16 %v6002
    %v7088 = vunpack.c.h.b16 %v6002
    %v7089 = vunpack.c.l.b16 %v6003
    %v7090 = vunpack.c.h.b16 %v6003
    %v7091 = vunpack.c.l.b16 %v6004
    %v7092 = vunpack.c.h.b16 %v6004
    %v7093 = vunpack.c.l.b16 %v6005
    %v7094 = vunpack.c.h.b16 %v6005
    %v7095 = vunpack.c.l.b16 %v6006
    %v7096 = vunpack.c.h.b16 %v6006
    %v7097 = vunpack.c.l.b16 %v6007
    %v7098 = vunpack.c.h.b16 %v6007
    %v7099 = vunpack.c.l.b16 %v6008
    %v7100 = vunpack.c.h.b16 %v6008
    %v7101 = vunpack.c.l.b16 %v6009
    %v7102 = vunpack.c.h.b16 %v6009
    %v7103 = vunpack.c.l.b16 %v6010
    %v7104 = vunpack.c.h.b16 %v6010
    %v7105 = vunpack.c.l.b16 %v6011
    %v7106 = vunpack.c.h.b16 %v6011
    %v7107 = vunpack.c.l.b16 %v6012
    %v7108 = vunpack.c.h.b16 %v6012
    %v7109 = vunpack.c.l.b16 %v6013
    %v7110 = vunpack.c.h.b16 %v6013
    %v7111 = vunpack.c.l.b16 %v6014
    %v7112 = vunpack.c.h.b16 %v6014
    %v7113 = vunpack.c.l.b16 %v6015
    %v7114 = vunpack.c.h.b16 %v6015
    %v7115 = vunpack.c.l.b16 %v6016
    %v7116 = vunpack.c.h.b16 %v6016
    %v7117 = vunpack.c.l.b16 %v6017
    %v7118 = vunpack.c.h.b16 %v6017
    %v7119 = vunpack.c.l.b16 %v6018
    %v7120 = vunpack.c.h.b16 %v6018
    %v7121 = vunpack.c.l.b16 %v6019
    %v7122 = vunpack.c.h.b16 %v6019
    %v7123 = vunpack.c.l.b16 %v6020
    %v7124 = vunpack.c.h.b16 %v6020
    %v7125 = vunpack.c.l.b16 %v6021
    %v7126 = vunpack.c.h.b16 %v6021
    %v7127 = vunpack.c.l.b16 %v6022
    %v7128 = vunpack.c.h.b16 %v6022
    %v7129 = vunpack.c.l.b16 %v6023
    %v7130 = vunpack.c.h.b16 %v6023
    %v7131 = vunpack.c.l.b16 %v6024
    %v7132 = vunpack.c.h.b16 %v6024
    %v7133 = vunpack.c.l.b16 %v6025
    %v7134 = vunpack.c.h.b16 %v6025
    %v7135 = vunpack.c.l.b16 %v6026
    %v7136 = vunpack.c.h.b16 %v6026
    %v7137 = vunpack.c.l.b16 %v6027
    %v7138 = vunpack.c.h.b16 %v6027
    %v7139 = vunpack.c.l.b16 %v6028
    %v7140 = vunpack.c.h.b16 %v6028
    %v7141 = vunpack.c.l.b16 %v6029
    %v7142 = vunpack.c.h.b16 %v6029
    %v7143 = vunpack.c.l.b16 %v6030
    %v7144 = vunpack.c.h.b16 %v6030
    %v7145 = vunpack.c.l.b16 %v6031
    %v7146 = vunpack.c.h.b16 %v6031
    %v7147 = vunpack.c.l.b16 %v6032
    %v7148 = vunpack.c.h.b16 %v6032
    %v7149 = vunpack.c.l.b16 %v6033
    %v7150 = vunpack.c.h.b16 %v6033
    %v7151 = vunpack.c.l.b16 %v6034
    %v7152 = vunpack.c.h.b16 %v6034
    %v7153 = vunpack.c.l.b16 %v6035
    %v7154 = vunpack.c.h.b16 %v6035
    %v7155 = vunpack.c.l.b16 %v6036
    %v7156 = vunpack.c.h.b16 %v6036
    %v7157 = vunpack.c.l.b16 %v6037
    %v7158 = vunpack.c.h.b16 %v6037
    %v7159 = vunpack.c.l.b16 %v6038
    %v7160 = vunpack.c.h.b16 %v6038
    %v7161 = vunpack.c.l.b16 %v6039
    %v7162 = vunpack.c.h.b16 %v6039
    %v7163 = vunpack.c.l.b16 %v6040
    %v7164 = vunpack.c.h.b16 %v6040
    %v7165 = vunpack.c.l.b16 %v6041
    %v7166 = vunpack.c.h.b16 %v6041
    %v7167 = vunpack.c.l.b16 %v6042
    %v7168 = vunpack.c.h.b16 %v6042
    %v7169 = vunpack.c.l.b16 %v6043
    %v7170 = vunpack.c.h.b16 %v6043
    %v7171 = vunpack.c.l.b16 %v6044
    %v7172 = vunpack.c.h.b16 %v6044
    %v7173 = vunpack.c.l.b16 %v6045
    %v7174 = vunpack.c.h.b16 %v6045
    %v7175 = vunpack.c.l.b16 %v6046
    %v7176 = vunpack.c.h.b16 %v6046
    %v7177 = vunpack.c.l.b16 %v6047
    %v7178 = vunpack.c.h.b16 %v6047
    %v7179 = vunpack.c.l.b16 %v6048
    %v7180 = vunpack.c.h.b16 %v6048
    %v7181 = vunpack.c.l.b16 %v6049
    %v7182 = vunpack.c.h.b16 %v6049
    %v7183 = vunpack.c.l.b16 %v6050
    %v7184 = vunpack.c.h.b16 %v6050
    %v7185 = vunpack.c.l.b16 %v6051
    %v7186 = vunpack.c.h.b16 %v6051
    %v7187 = vunpack.c.l.b16 %v6052
    %v7188 = vunpack.c.h.b16 %v6052
    %v7189 = vunpack.c.l.b16 %v6053
    %v7190 = vunpack.c.h.b16 %v6053
    %v7191 = vunpack.c.l.b16 %v6054
    %v7192 = vunpack.c.h.b16 %v6054
    %v7193 = vunpack.c.l.b16 %v6055
    %v7194 = vunpack.c.h.b16 %v6055
    %v7195 = vunpack.c.l.b16 %v6056
    %v7196 = vunpack.c.h.b16 %v6056
    %v7197 = vunpack.c.l.b16 %v6057
    %v7198 = vunpack.c.h.b16 %v6057
    %v7199 = vunpack.c.l.b16 %v6058
    %v7200 = vunpack.c.h.b16 %v6058
    %v7201 = vunpack.c.l.b16 %v6059
    %v7202 = vunpack.c.h.b16 %v6059
    %v7203 = vunpack.c.l.b16 %v6060
    %v7204 = vunpack.c.h.b16 %v6060
    %v7205 = vunpack.c.l.b16 %v6061
    %v7206 = vunpack.c.h.b16 %v6061
    %v7207 = vunpack.c.l.b16 %v6062
    %v7208 = vunpack.c.h.b16 %v6062
    %v7209 = vunpack.c.l.b16 %v6063
    %v7210 = vunpack.c.h.b16 %v6063
    %v7211 = vunpack.c.l.b16 %v6064
    %v7212 = vunpack.c.h.b16 %v6064
    %v7213 = vunpack.c.l.b16 %v6065
    %v7214 = vunpack.c.h.b16 %v6065
    %v7215 = vunpack.c.l.b16 %v6066
    %v7216 = vunpack.c.h.b16 %v6066
    %v7217 = vunpack.c.l.b16 %v6067
    %v7218 = vunpack.c.h.b16 %v6067
    %v7219 = vunpack.c.l.b16 %v6068
    %v7220 = vunpack.c.h.b16 %v6068
    %v7221 = vunpack.c.l.b16 %v6069
    %v7222 = vunpack.c.h.b16 %v6069
    %v7223 = vunpack.c.l.b16 %v6070
    %v7224 = vunpack.c.h.b16 %v6070
    %v7225 = vunpack.c.l.b16 %v6071
    %v7226 = vunpack.c.h.b16 %v6071
    %v7227 = vunpack.c.l.b16 %v6072
    %v7228 = vunpack.c.h.b16 %v6072
    %v7229 = vunpack.c.l.b16 %v6073
    %v7230 = vunpack.c.h.b16 %v6073
    %v7231 = vunpack.c.l.b16 %v6074
    %v7232 = vunpack.c.h.b16 %v6074
    %v7233 = vunpack.c.l.b16 %v6075
    %v7234 = vunpack.c.h.b16 %v6075
    %v7235 = vunpack.c.l.b16 %v6076
    %v7236 = vunpack.c.h.b16 %v6076
    %v7237 = vunpack.c.l.b16 %v6077
    %v7238 = vunpack.c.h.b16 %v6077
    %v7239 = vunpack.c.l.b16 %v6078
    %v7240 = vunpack.c.h.b16 %v6078
    %v7241 = vunpack.c.l.b16 %v6079
    %v7242 = vunpack.c.h.b16 %v6079
    %v7243 = vunpack.c.l.b16 %v6080
    %v7244 = vunpack.c.h.b16 %v6080
    %v7245 = vunpack.c.l.b16 %v6081
    %v7246 = vunpack.c.h.b16 %v6081
    %v7247 = vunpack.c.l.b16 %v6082
    %v7248 = vunpack.c.h.b16 %v6082
    %v7249 = vunpack.c.l.b16 %v6083
    %v7250 = vunpack.c.h.b16 %v6083
    %v7251 = vunpack.c.l.b16 %v6084
    %v7252 = vunpack.c.h.b16 %v6084
    %v7253 = vunpack.c.l.b16 %v6085
    %v7254 = vunpack.c.h.b16 %v6085
    %v7255 = vunpack.c.l.b16 %v6086
    %v7256 = vunpack.c.h.b16 %v6086
    %v7257 = vunpack.c.l.b16 %v6087
    %v7258 = vunpack.c.h.b16 %v6087
    %v7259 = vunpack.c.l.b16 %v6088
    %v7260 = vunpack.c.h.b16 %v6088
    %v7261 = vunpack.c.l.b16 %v6089
    %v7262 = vunpack.c.h.b16 %v6089
    %v7263 = vunpack.c.l.b16 %v6090
    %v7264 = vunpack.c.h.b16 %v6090
    %v7265 = vunpack.c.l.b16 %v6091
    %v7266 = vunpack.c.h.b16 %v6091
    %v7267 = vunpack.c.l.b16 %v6092
    %v7268 = vunpack.c.h.b16 %v6092
    %v7269 = vunpack.c.l.b16 %v6093
    %v7270 = vunpack.c.h.b16 %v6093
    %v7271 = vunpack.c.l.b16 %v6094
    %v7272 = vunpack.c.h.b16 %v6094
    %v7273 = vunpack.c.l.b16 %v6095
    %v7274 = vunpack.c.h.b16 %v6095
    %v7275 = vunpack.c.l.b16 %v6096
    %v7276 = vunpack.c.h.b16 %v6096
    %v7277 = vunpack.c.l.b16 %v6097
    %v7278 = vunpack.c.h.b16 %v6097
    %v7279 = vunpack.c.l.b16 %v6098
    %v7280 = vunpack.c.h.b16 %v6098
    %v7281 = vunpack.c.l.b16 %v6099
    %v7282 = vunpack.c.h.b16 %v6099
    %v7283 = vunpack.c.l.b16 %v6100
    %v7284 = vunpack.c.h.b16 %v6100
    %v7285 = vunpack.c.l.b16 %v6101
    %v7286 = vunpack.c.h.b16 %v6101
    %v7287 = vunpack.c.l.b16 %v6102
    %v7288 = vunpack.c.h.b16 %v6102
    %v7289 = vunpack.c.l.b16 %v6103
    %v7290 = vunpack.c.h.b16 %v6103
    %v7291 = vunpack.c.l.b16 %v6104
    %v7292 = vunpack.c.h.b16 %v6104
    %v7293 = vunpack.c.l.b16 %v6105
    %v7294 = vunpack.c.h.b16 %v6105
    %v7295 = vunpack.c.l.b16 %v6106
    %v7296 = vunpack.c.h.b16 %v6106
    %v7297 = vunpack.c.l.b16 %v6107
    %v7298 = vunpack.c.h.b16 %v6107
    %v7299 = vunpack.c.l.b16 %v6108
    %v7300 = vunpack.c.h.b16 %v6108
    %v7301 = vunpack.c.l.b16 %v6109
    %v7302 = vunpack.c.h.b16 %v6109
    %v7303 = vunpack.c.l.b16 %v6110
    %v7304 = vunpack.c.h.b16 %v6110
    %v7305 = vunpack.c.l.b16 %v6111
    %v7306 = vunpack.c.h.b16 %v6111
    %v7307 = vunpack.c.l.b16 %v6112
    %v7308 = vunpack.c.h.b16 %v6112
    %v7309 = vunpack.c.l.b16 %v6113
    %v7310 = vunpack.c.h.b16 %v6113
    %v7311 = vunpack.c.l.b16 %v6114
    %v7312 = vunpack.c.h.b16 %v6114
    %v7313 = vunpack.c.l.b16 %v6115
    %v7314 = vunpack.c.h.b16 %v6115
    %v7315 = vunpack.c.l.b16 %v6116
    %v7316 = vunpack.c.h.b16 %v6116
    %v7317 = vunpack.c.l.b16 %v6117
    %v7318 = vunpack.c.h.b16 %v6117
    %v7319 = vunpack.c.l.b16 %v6118
    %v7320 = vunpack.c.h.b16 %v6118
    %v7321 = vunpack.c.l.b16 %v6119
    %v7322 = vunpack.c.h.b16 %v6119
    %v7323 = vunpack.c.l.b16 %v6120
    %v7324 = vunpack.c.h.b16 %v6120
    %v7325 = vunpack.c.l.b16 %v6121
    %v7326 = vunpack.c.h.b16 %v6121
    %v7327 = vunpack.c.l.b16 %v6122
    %v7328 = vunpack.c.h.b16 %v6122
    %v7329 = vunpack.c.l.b16 %v6123
    %v7330 = vunpack.c.h.b16 %v6123
    %v7331 = vunpack.c.l.b16 %v6124
    %v7332 = vunpack.c.h.b16 %v6124
    %v7333 = vunpack.c.l.b16 %v6125
    %v7334 = vunpack.c.h.b16 %v6125
    %v7335 = vunpack.c.l.b16 %v6126
    %v7336 = vunpack.c.h.b16 %v6126
    %v7337 = vunpack.c.l.b16 %v6127
    %v7338 = vunpack.c.h.b16 %v6127
    %v7339 = vunpack.c.l.b16 %v6128
    %v7340 = vunpack.c.h.b16 %v6128
    %v7341 = vunpack.c.l.b16 %v6129
    %v7342 = vunpack.c.h.b16 %v6129
    %v7343 = vunpack.c.l.b16 %v6130
    %v7344 = vunpack.c.h.b16 %v6130
    %v7345 = vunpack.c.l.b16 %v6131
    %v7346 = vunpack.c.h.b16 %v6131
    %v7347 = vunpack.c.l.b16 %v6132
    %v7348 = vunpack.c.h.b16 %v6132
    %v7349 = vunpack.c.l.b16 %v6133
    %v7350 = vunpack.c.h.b16 %v6133
    %v7351 = vunpack.c.l.b16 %v6134
    %v7352 = vunpack.c.h.b16 %v6134
    %v7353 = vunpack.c.l.b16 %v6135
    %v7354 = vunpack.c.h.b16 %v6135
    %v7355 = vunpack.c.l.b16 %v6136
    %v7356 = vunpack.c.h.b16 %v6136
    %v7357 = vunpack.c.l.b16 %v6137
    %v7358 = vunpack.c.h.b16 %v6137
    %v7359 = vunpack.c.l.b16 %v6138
    %v7360 = vunpack.c.h.b16 %v6138
    %v7361 = vunpack.c.l.b16 %v6139
    %v7362 = vunpack.c.h.b16 %v6139
    %v7363 = vunpack.c.l.b16 %v6140
    %v7364 = vunpack.c.h.b16 %v6140
    %v7365 = vunpack.c.l.b16 %v6141
    %v7366 = vunpack.c.h.b16 %v6141
    %v7367 = vunpack.c.l.b16 %v6142
    %v7368 = vunpack.c.h.b16 %v6142
    %v7369 = vunpack.c.l.b16 %v6143
    %v7370 = vunpack.c.h.b16 %v6143
    %v7371 = vunpack.c.l.b16 %v6144
    %v7372 = vunpack.c.h.b16 %v6144
    %v7373 = vunpack.c.l.b16 %v6145
    %v7374 = vunpack.c.h.b16 %v6145
    %v7375 = vunpack.c.l.b16 %v6146
    %v7376 = vunpack.c.h.b16 %v6146
    %v7377 = vunpack.c.l.b16 %v6147
    %v7378 = vunpack.c.h.b16 %v6147
    %v7379 = vunpack.c.l.b16 %v6148
    %v7380 = vunpack.c.h.b16 %v6148
    %v7381 = vunpack.c.l.b16 %v6149
    %v7382 = vunpack.c.h.b16 %v6149
    %v7383 = vunpack.c.l.b16 %v6150
    %v7384 = vunpack.c.h.b16 %v6150
    %v7385 = vunpack.c.l.b16 %v6151
    %v7386 = vunpack.c.h.b16 %v6151
    %v7387 = vunpack.c.l.b16 %v6152
    %v7388 = vunpack.c.h.b16 %v6152
    %v7389 = vunpack.c.l.b16 %v6153
    %v7390 = vunpack.c.h.b16 %v6153
    %v7391 = vunpack.c.l.b16 %v6154
    %v7392 = vunpack.c.h.b16 %v6154
    %v7393 = vunpack.c.l.b16 %v6155
    %v7394 = vunpack.c.h.b16 %v6155
    %v7395 = vunpack.c.l.b16 %v6156
    %v7396 = vunpack.c.h.b16 %v6156
    %v7397 = vunpack.c.l.b16 %v6157
    %v7398 = vunpack.c.h.b16 %v6157
    %v7399 = vunpack.c.l.b16 %v6158
    %v7400 = vunpack.c.h.b16 %v6158
    %v7401 = vunpack.c.l.b16 %v6159
    %v7402 = vunpack.c.h.b16 %v6159
    %v7403 = vunpack.c.l.b16 %v6160
    %v7404 = vunpack.c.h.b16 %v6160
    %v7405 = vunpack.c.l.b16 %v6161
    %v7406 = vunpack.c.h.b16 %v6161
    %v7407 = vunpack.c.l.b16 %v6162
    %v7408 = vunpack.c.h.b16 %v6162
    %v7409 = vunpack.c.l.b16 %v6163
    %v7410 = vunpack.c.h.b16 %v6163
    %v7411 = vunpack.c.l.b16 %v6164
    %v7412 = vunpack.c.h.b16 %v6164
    %v7413 = vunpack.c.l.b16 %v6165
    %v7414 = vunpack.c.h.b16 %v6165
    %v7415 = vunpack.c.l.b16 %v6166
    %v7416 = vunpack.c.h.b16 %v6166
    %v7417 = vunpack.c.l.b16 %v6167
    %v7418 = vunpack.c.h.b16 %v6167
    %v7419 = vunpack.c.l.b16 %v6168
    %v7420 = vunpack.c.h.b16 %v6168
    %v7421 = vunpack.c.l.b16 %v6169
    %v7422 = vunpack.c.h.b16 %v6169
    %v7423 = vunpack.c.l.b16 %v6170
    %v7424 = vunpack.c.h.b16 %v6170
    %v7425 = vunpack.c.l.b16 %v6171
    %v7426 = vunpack.c.h.b16 %v6171
    %v7427 = vunpack.c.l.b16 %v6172
    %v7428 = vunpack.c.h.b16 %v6172
    %v7429 = vunpack.c.l.b16 %v6173
    %v7430 = vunpack.c.h.b16 %v6173
    %v7431 = vunpack.c.l.b16 %v6174
    %v7432 = vunpack.c.h.b16 %v6174
    %v7433 = vunpack.c.l.b16 %v6175
    %v7434 = vunpack.c.h.b16 %v6175
    %v7435 = vunpack.c.l.b16 %v6176
    %v7436 = vunpack.c.h.b16 %v6176
    %v7437 = vunpack.c.l.b16 %v6177
    %v7438 = vunpack.c.h.b16 %v6177
    %v7439 = vunpack.c.l.b16 %v6178
    %v7440 = vunpack.c.h.b16 %v6178
    %v7441 = vunpack.c.l.b16 %v6179
    %v7442 = vunpack.c.h.b16 %v6179
    %v7443 = vunpack.c.l.b16 %v6180
    %v7444 = vunpack.c.h.b16 %v6180
    %v7445 = vunpack.c.l.b16 %v6181
    %v7446 = vunpack.c.h.b16 %v6181
    %v7447 = vunpack.c.l.b16 %v6182
    %v7448 = vunpack.c.h.b16 %v6182
    %v7449 = vunpack.c.l.b16 %v6183
    %v7450 = vunpack.c.h.b16 %v6183
    %v7451 = vunpack.c.l.b16 %v6184
    %v7452 = vunpack.c.h.b16 %v6184
    %v7453 = vunpack.c.l.b16 %v6185
    %v7454 = vunpack.c.h.b16 %v6185
    %v7455 = vunpack.c.l.b16 %v6186
    %v7456 = vunpack.c.h.b16 %v6186
    %v7457 = vunpack.c.l.b16 %v6187
    %v7458 = vunpack.c.h.b16 %v6187
    %v7459 = vunpack.c.l.b16 %v6188
    %v7460 = vunpack.c.h.b16 %v6188
    %v7461 = vunpack.c.l.b16 %v6189
    %v7462 = vunpack.c.h.b16 %v6189
    %v7463 = vunpack.c.l.b16 %v6190
    %v7464 = vunpack.c.h.b16 %v6190
    %v7465 = vunpack.c.l.b16 %v6191
    %v7466 = vunpack.c.h.b16 %v6191
    %v7467 = vunpack.c.l.b16 %v6192
    %v7468 = vunpack.c.h.b16 %v6192
    %v7469 = vunpack.c.l.b16 %v6193
    %v7470 = vunpack.c.h.b16 %v6193
    %v7471 = vunpack.c.l.b16 %v6194
    %v7472 = vunpack.c.h.b16 %v6194
    %v7473 = vunpack.c.l.b16 %v6195
    %v7474 = vunpack.c.h.b16 %v6195
    %v7475 = vunpack.c.l.b16 %v6196
    %v7476 = vunpack.c.h.b16 %v6196
    %v7477 = vunpack.c.l.b16 %v6197
    %v7478 = vunpack.c.h.b16 %v6197
    %v7479 = vunpack.c.l.b16 %v6198
    %v7480 = vunpack.c.h.b16 %v6198
    %v7481 = vunpack.c.l.b16 %v6199
    %v7482 = vunpack.c.h.b16 %v6199
    %v7483 = vunpack.c.l.b16 %v6200
    %v7484 = vunpack.c.h.b16 %v6200
    %v7485 = vunpack.c.l.b16 %v6201
    %v7486 = vunpack.c.h.b16 %v6201
    %v7487 = vunpack.c.l.b16 %v6202
    %v7488 = vunpack.c.h.b16 %v6202
    %v7489 = vunpack.c.l.b16 %v6203
    %v7490 = vunpack.c.h.b16 %v6203
    %v7491 = vunpack.c.l.b16 %v6204
    %v7492 = vunpack.c.h.b16 %v6204
    %v7493 = vunpack.c.l.b16 %v6205
    %v7494 = vunpack.c.h.b16 %v6205
    %v7495 = vunpack.c.l.b16 %v6206
    %v7496 = vunpack.c.h.b16 %v6206
    %v7497 = vunpack.c.l.b16 %v6207
    %v7498 = vunpack.c.h.b16 %v6207
    %v7499 = vunpack.c.l.b16 %v6208
    %v7500 = vunpack.c.h.b16 %v6208
    %v7501 = vunpack.c.l.b16 %v6209
    %v7502 = vunpack.c.h.b16 %v6209
    %v7503 = vunpack.c.l.b16 %v6210
    %v7504 = vunpack.c.h.b16 %v6210
    %v7505 = vunpack.c.l.b16 %v6211
    %v7506 = vunpack.c.h.b16 %v6211
    %v7507 = vunpack.c.l.b16 %v6212
    %v7508 = vunpack.c.h.b16 %v6212
    %v7509 = vunpack.c.l.b16 %v6213
    %v7510 = vunpack.c.h.b16 %v6213
    %v7511 = vunpack.c.l.b16 %v6214
    %v7512 = vunpack.c.h.b16 %v6214
    %v7513 = vunpack.c.l.b16 %v6215
    %v7514 = vunpack.c.h.b16 %v6215
    %v7515 = vunpack.c.l.b16 %v6216
    %v7516 = vunpack.c.h.b16 %v6216
    %v7517 = vunpack.c.l.b16 %v6217
    %v7518 = vunpack.c.h.b16 %v6217
    %v7519 = vunpack.c.l.b16 %v6218
    %v7520 = vunpack.c.h.b16 %v6218
    %v7521 = vunpack.c.l.b16 %v6219
    %v7522 = vunpack.c.h.b16 %v6219
    %v7523 = vunpack.c.l.b16 %v6220
    %v7524 = vunpack.c.h.b16 %v6220
    %v7525 = vunpack.c.l.b16 %v6221
    %v7526 = vunpack.c.h.b16 %v6221
    %v7527 = vunpack.c.l.b16 %v6222
    %v7528 = vunpack.c.h.b16 %v6222
    %v7529 = vunpack.c.l.b16 %v6223
    %v7530 = vunpack.c.h.b16 %v6223
    %v7531 = vunpack.c.l.b16 %v6224
    %v7532 = vunpack.c.h.b16 %v6224
    %v7533 = vunpack.c.l.b16 %v6225
    %v7534 = vunpack.c.h.b16 %v6225
    %v7535 = vunpack.c.l.b16 %v6226
    %v7536 = vunpack.c.h.b16 %v6226
    %v7537 = vunpack.c.l.b16 %v6227
    %v7538 = vunpack.c.h.b16 %v6227
    %v7539 = vunpack.c.l.b16 %v6228
    %v7540 = vunpack.c.h.b16 %v6228
    %v7541 = vunpack.c.l.b16 %v6229
    %v7542 = vunpack.c.h.b16 %v6229
    %v7543 = vunpack.c.l.b16 %v6230
    %v7544 = vunpack.c.h.b16 %v6230
    %v7545 = vunpack.c.l.b16 %v6231
    %v7546 = vunpack.c.h.b16 %v6231
    %v7547 = vunpack.c.l.b16 %v6232
    %v7548 = vunpack.c.h.b16 %v6232
    %v7549 = vunpack.c.l.b16 %v6233
    %v7550 = vunpack.c.h.b16 %v6233
    %v7551 = vunpack.c.l.b16 %v6234
    %v7552 = vunpack.c.h.b16 %v6234
    %v7553 = vunpack.c.l.b16 %v6235
    %v7554 = vunpack.c.h.b16 %v6235
    %v7555 = vunpack.c.l.b16 %v6236
    %v7556 = vunpack.c.h.b16 %v6236
    %v7557 = vunpack.c.l.b16 %v6237
    %v7558 = vunpack.c.h.b16 %v6237
    %v7559 = vunpack.c.l.b16 %v6238
    %v7560 = vunpack.c.h.b16 %v6238
    %v7561 = vunpack.c.l.b16 %v6239
    %v7562 = vunpack.c.h.b16 %v6239
    %v7563 = vunpack.c.l.b16 %v6240
    %v7564 = vunpack.c.h.b16 %v6240
    %v7565 = vunpack.c.l.b16 %v6241
    %v7566 = vunpack.c.h.b16 %v6241
    %v7567 = vunpack.c.l.b16 %v6242
    %v7568 = vunpack.c.h.b16 %v6242
    %v7569 = vunpack.c.l.b16 %v6243
    %v7570 = vunpack.c.h.b16 %v6243
    %v7571 = vunpack.c.l.b16 %v6244
    %v7572 = vunpack.c.h.b16 %v6244
    %v7573 = vunpack.c.l.b16 %v6245
    %v7574 = vunpack.c.h.b16 %v6245
    %v7575 = vunpack.c.l.b16 %v6246
    %v7576 = vunpack.c.h.b16 %v6246
    %v7577 = vunpack.c.l.b16 %v6247
    %v7578 = vunpack.c.h.b16 %v6247
    %v7579 = vunpack.c.l.b16 %v6248
    %v7580 = vunpack.c.h.b16 %v6248
    %v7581 = vunpack.c.l.b16 %v6249
    %v7582 = vunpack.c.h.b16 %v6249
    %v7583 = vunpack.c.l.b16 %v6250
    %v7584 = vunpack.c.h.b16 %v6250
    %v7585 = vunpack.c.l.b16 %v6251
    %v7586 = vunpack.c.h.b16 %v6251
    %v7587 = vunpack.c.l.b16 %v6252
    %v7588 = vunpack.c.h.b16 %v6252
    %v7589 = vunpack.c.l.b16 %v6253
    %v7590 = vunpack.c.h.b16 %v6253
    %v7591 = vunpack.c.l.b16 %v6254
    %v7592 = vunpack.c.h.b16 %v6254
    %v7593 = vunpack.c.l.b16 %v6255
    %v7594 = vunpack.c.h.b16 %v6255
    %v7595 = vunpack.c.l.b16 %v6256
    %v7596 = vunpack.c.h.b16 %v6256
    %v7597 = vunpack.c.l.b16 %v6257
    %v7598 = vunpack.c.h.b16 %v6257
    %v7599 = vunpack.c.l.b16 %v6258
    %v7600 = vunpack.c.h.b16 %v6258
    %v7601 = vunpack.c.l.b16 %v6259
    %v7602 = vunpack.c.h.b16 %v6259
    %v7603 = vunpack.c.l.b16 %v6260
    %v7604 = vunpack.c.h.b16 %v6260
    %v7605 = vunpack.c.l.b16 %v6261
    %v7606 = vunpack.c.h.b16 %v6261
    %v7607 = vunpack.c.l.b16 %v6262
    %v7608 = vunpack.c.h.b16 %v6262
    %v7609 = vunpack.c.l.b16 %v6263
    %v7610 = vunpack.c.h.b16 %v6263
    %v7611 = vunpack.c.l.b16 %v6264
    %v7612 = vunpack.c.h.b16 %v6264
    %v7613 = vunpack.c.l.b16 %v6265
    %v7614 = vunpack.c.h.b16 %v6265
    %v7615 = vunpack.c.l.b16 %v6266
    %v7616 = vunpack.c.h.b16 %v6266
    %v7617 = vunpack.c.l.b16 %v6267
    %v7618 = vunpack.c.h.b16 %v6267
    %v7619 = vunpack.c.l.b16 %v6268
    %v7620 = vunpack.c.h.b16 %v6268
    %v7621 = vunpack.c.l.b16 %v6269
    %v7622 = vunpack.c.h.b16 %v6269
    %v7623 = vunpack.c.l.b16 %v6270
    %v7624 = vunpack.c.h.b16 %v6270
    %v7625 = vunpack.c.l.b16 %v6271
    %v7626 = vunpack.c.h.b16 %v6271
    %v7627 = vunpack.c.l.b16 %v6272
    %v7628 = vunpack.c.h.b16 %v6272
    %v7629 = vunpack.c.l.b16 %v6273
    %v7630 = vunpack.c.h.b16 %v6273
    %v7631 = vunpack.c.l.b16 %v6274
    %v7632 = vunpack.c.h.b16 %v6274
    %v7633 = vunpack.c.l.b16 %v6275
    %v7634 = vunpack.c.h.b16 %v6275
    %v7635 = vunpack.c.l.b16 %v6276
    %v7636 = vunpack.c.h.b16 %v6276
    %v7637 = vunpack.c.l.b16 %v6277
    %v7638 = vunpack.c.h.b16 %v6277
    %v7639 = vunpack.c.l.b16 %v6278
    %v7640 = vunpack.c.h.b16 %v6278
    %v7641 = vunpack.c.l.b16 %v6279
    %v7642 = vunpack.c.h.b16 %v6279
    %v7643 = vunpack.c.l.b16 %v6280
    %v7644 = vunpack.c.h.b16 %v6280
    %v7645 = vunpack.c.l.b16 %v6281
    %v7646 = vunpack.c.h.b16 %v6281
    %v7647 = vunpack.c.l.b16 %v6282
    %v7648 = vunpack.c.h.b16 %v6282
    %v7649 = vunpack.c.l.b16 %v6283
    %v7650 = vunpack.c.h.b16 %v6283
    %v7651 = vunpack.c.l.b16 %v6284
    %v7652 = vunpack.c.h.b16 %v6284
    %v7653 = vunpack.c.l.b16 %v6285
    %v7654 = vunpack.c.h.b16 %v6285
    %v7655 = vunpack.c.l.b16 %v6286
    %v7656 = vunpack.c.h.b16 %v6286
    %v7657 = vunpack.c.l.b16 %v6287
    %v7658 = vunpack.c.h.b16 %v6287
    %v7659 = vunpack.c.l.b16 %v6288
    %v7660 = vunpack.c.h.b16 %v6288
    %v7661 = vunpack.c.l.b16 %v6289
    %v7662 = vunpack.c.h.b16 %v6289
    %v7663 = vunpack.c.l.b16 %v6290
    %v7664 = vunpack.c.h.b16 %v6290
    %v7665 = vunpack.c.l.b16 %v6291
    %v7666 = vunpack.c.h.b16 %v6291
    %v7667 = vunpack.c.l.b16 %v6292
    %v7668 = vunpack.c.h.b16 %v6292
    %v7669 = vunpack.c.l.b16 %v6293
    %v7670 = vunpack.c.h.b16 %v6293
    %v7671 = vunpack.c.l.b16 %v6294
    %v7672 = vunpack.c.h.b16 %v6294
    %v7673 = vunpack.c.l.b16 %v6295
    %v7674 = vunpack.c.h.b16 %v6295
    %v7675 = vunpack.c.l.b16 %v6296
    %v7676 = vunpack.c.h.b16 %v6296
    %v7677 = vunpack.c.l.b16 %v6297
    %v7678 = vunpack.c.h.b16 %v6297
    %v7679 = vunpack.c.l.b16 %v6298
    %v7680 = vunpack.c.h.b16 %v6298
    %v7681 = vunpack.c.l.b16 %v6299
    %v7682 = vunpack.c.h.b16 %v6299
    %v7683 = vunpack.c.l.b16 %v6300
    %v7684 = vunpack.c.h.b16 %v6300
    %v7685 = vunpack.c.l.b16 %v6301
    %v7686 = vunpack.c.h.b16 %v6301
    %v7687 = vunpack.c.l.b16 %v6302
    %v7688 = vunpack.c.h.b16 %v6302
    %v7689 = vunpack.c.l.b16 %v6303
    %v7690 = vunpack.c.h.b16 %v6303
    %v7691 = vunpack.c.l.b16 %v6304
    %v7692 = vunpack.c.h.b16 %v6304
    %v7693 = vunpack.c.l.b16 %v6305
    %v7694 = vunpack.c.h.b16 %v6305
    %v7695 = vunpack.c.l.b16 %v6306
    %v7696 = vunpack.c.h.b16 %v6306
    %v7697 = vunpack.c.l.b16 %v6307
    %v7698 = vunpack.c.h.b16 %v6307
    %v7699 = vunpack.c.l.b16 %v6308
    %v7700 = vunpack.c.h.b16 %v6308
    %v7701 = vunpack.c.l.b16 %v6309
    %v7702 = vunpack.c.h.b16 %v6309
    %v7703 = vunpack.c.l.b16 %v6310
    %v7704 = vunpack.c.h.b16 %v6310
    %v7705 = vunpack.c.l.b16 %v6311
    %v7706 = vunpack.c.h.b16 %v6311
    %v7707 = vunpack.c.l.b16 %v6312
    %v7708 = vunpack.c.h.b16 %v6312
    %v7709 = vunpack.c.l.b16 %v6313
    %v7710 = vunpack.c.h.b16 %v6313
    %v7711 = vunpack.c.l.b16 %v6314
    %v7712 = vunpack.c.h.b16 %v6314
    %v7713 = vunpack.c.l.b16 %v6315
    %v7714 = vunpack.c.h.b16 %v6315
    %v7715 = vunpack.c.l.b16 %v6316
    %v7716 = vunpack.c.h.b16 %v6316
    %v7717 = vunpack.c.l.b16 %v6317
    %v7718 = vunpack.c.h.b16 %v6317
    %v7719 = vunpack.c.l.b16 %v6318
    %v7720 = vunpack.c.h.b16 %v6318
    %v7721 = vunpack.c.l.b16 %v6319
    %v7722 = vunpack.c.h.b16 %v6319
    %v7723 = vunpack.c.l.b16 %v6320
    %v7724 = vunpack.c.h.b16 %v6320
    %v7725 = vunpack.c.l.b16 %v6321
    %v7726 = vunpack.c.h.b16 %v6321
    %v7727 = vunpack.c.l.b16 %v6322
    %v7728 = vunpack.c.h.b16 %v6322
    %v7729 = vunpack.c.l.b16 %v6323
    %v7730 = vunpack.c.h.b16 %v6323
    %v7731 = vunpack.c.l.b16 %v6324
    %v7732 = vunpack.c.h.b16 %v6324
    %v7733 = vunpack.c.l.b16 %v6325
    %v7734 = vunpack.c.h.b16 %v6325
    %v7735 = vunpack.c.l.b16 %v6326
    %v7736 = vunpack.c.h.b16 %v6326
    %v7737 = vunpack.c.l.b16 %v6327
    %v7738 = vunpack.c.h.b16 %v6327
    %v7739 = vunpack.c.l.b16 %v6328
    %v7740 = vunpack.c.h.b16 %v6328
    %v7741 = vunpack.c.l.b16 %v6329
    %v7742 = vunpack.c.h.b16 %v6329
    %v7743 = vunpack.c.l.b16 %v6330
    %v7744 = vunpack.c.h.b16 %v6330
    %v7745 = vunpack.c.l.b16 %v6331
    %v7746 = vunpack.c.h.b16 %v6331
    %v7747 = vunpack.c.l.b16 %v6332
    %v7748 = vunpack.c.h.b16 %v6332
    %v7749 = vunpack.c.l.b16 %v6333
    %v7750 = vunpack.c.h.b16 %v6333
    %v7751 = vunpack.c.l.b16 %v6334
    %v7752 = vunpack.c.h.b16 %v6334
    %v7753 = vunpack.c.l.b16 %v6335
    %v7754 = vunpack.c.h.b16 %v6335
    %v7755 = vunpack.c.l.b16 %v6336
    %v7756 = vunpack.c.h.b16 %v6336
    %v7757 = vunpack.c.l.b16 %v6337
    %v7758 = vunpack.c.h.b16 %v6337
    %v7759 = vunpack.c.l.b16 %v6338
    %v7760 = vunpack.c.h.b16 %v6338
    %v7761 = vunpack.c.l.b16 %v6339
    %v7762 = vunpack.c.h.b16 %v6339
    %v7763 = vunpack.c.l.b16 %v6340
    %v7764 = vunpack.c.h.b16 %v6340
    %v7765 = vunpack.c.l.b16 %v6341
    %v7766 = vunpack.c.h.b16 %v6341
    %v7767 = vunpack.c.l.b16 %v6342
    %v7768 = vunpack.c.h.b16 %v6342
    %v7769 = vunpack.c.l.b16 %v6343
    %v7770 = vunpack.c.h.b16 %v6343
    %v7771 = vunpack.c.l.b16 %v6344
    %v7772 = vunpack.c.h.b16 %v6344
    %v7773 = vunpack.c.l.b16 %v6345
    %v7774 = vunpack.c.h.b16 %v6345
    %v7775 = vunpack.c.l.b16 %v6346
    %v7776 = vunpack.c.h.b16 %v6346
    %v7777 = vunpack.c.l.b16 %v6347
    %v7778 = vunpack.c.h.b16 %v6347
    %v7779 = vunpack.c.l.b16 %v6348
    %v7780 = vunpack.c.h.b16 %v6348
    %v7781 = vunpack.c.l.b16 %v6349
    %v7782 = vunpack.c.h.b16 %v6349
    %v7783 = vunpack.c.l.b16 %v6350
    %v7784 = vunpack.c.h.b16 %v6350
    %v7785 = vunpack.c.l.b16 %v6351
    %v7786 = vunpack.c.h.b16 %v6351
    %v7787 = vunpack.c.l.b16 %v6352
    %v7788 = vunpack.c.h.b16 %v6352
    %v7789 = vunpack.c.l.b16 %v6353
    %v7790 = vunpack.c.h.b16 %v6353
    %v7791 = vunpack.c.l.b16 %v6354
    %v7792 = vunpack.c.h.b16 %v6354
    %v7793 = vunpack.c.l.b16 %v6355
    %v7794 = vunpack.c.h.b16 %v6355
    %v7795 = vunpack.c.l.b16 %v6356
    %v7796 = vunpack.c.h.b16 %v6356
    %v7797 = vunpack.c.l.b16 %v6357
    %v7798 = vunpack.c.h.b16 %v6357
    %v7799 = vunpack.c.l.b16 %v6358
    %v7800 = vunpack.c.h.b16 %v6358
    %v7801 = vunpack.c.l.b16 %v6359
    %v7802 = vunpack.c.h.b16 %v6359
    %v7803 = vunpack.c.l.b16 %v6360
    %v7804 = vunpack.c.h.b16 %v6360
    %v7805 = vunpack.c.l.b16 %v6361
    %v7806 = vunpack.c.h.b16 %v6361
    %v7807 = vunpack.c.l.b16 %v6362
    %v7808 = vunpack.c.h.b16 %v6362
    %v7809 = vunpack.c.l.b16 %v6363
    %v7810 = vunpack.c.h.b16 %v6363
    %v7811 = vunpack.c.l.b16 %v6364
    %v7812 = vunpack.c.h.b16 %v6364
    %v7813 = vunpack.c.l.b16 %v6365
    %v7814 = vunpack.c.h.b16 %v6365
    %v7815 = vunpack.c.l.b16 %v6366
    %v7816 = vunpack.c.h.b16 %v6366
    %v7817 = vunpack.c.l.b16 %v6367
    %v7818 = vunpack.c.h.b16 %v6367
    %v7819 = vunpack.c.l.b16 %v6368
    %v7820 = vunpack.c.h.b16 %v6368
    %v7821 = vunpack.c.l.b16 %v6369
    %v7822 = vunpack.c.h.b16 %v6369
    %v7823 = vunpack.c.l.b16 %v6370
    %v7824 = vunpack.c.h.b16 %v6370
    %v7825 = vunpack.c.l.b16 %v6371
    %v7826 = vunpack.c.h.b16 %v6371
    %v7827 = vunpack.c.l.b16 %v6372
    %v7828 = vunpack.c.h.b16 %v6372
    %v7829 = vunpack.c.l.b16 %v6373
    %v7830 = vunpack.c.h.b16 %v6373
    %v7831 = vunpack.c.l.b16 %v6374
    %v7832 = vunpack.c.h.b16 %v6374
    %v7833 = vunpack.c.l.b16 %v6375
    %v7834 = vunpack.c.h.b16 %v6375
    %v7835 = vunpack.c.l.b16 %v6376
    %v7836 = vunpack.c.h.b16 %v6376
    %v7837 = vunpack.c.l.b16 %v6377
    %v7838 = vunpack.c.h.b16 %v6377
    %v7839 = vunpack.c.l.b16 %v6378
    %v7840 = vunpack.c.h.b16 %v6378
    %v7841 = vunpack.c.l.b16 %v6379
    %v7842 = vunpack.c.h.b16 %v6379
    %v7843 = vunpack.c.l.b16 %v6380
    %v7844 = vunpack.c.h.b16 %v6380
    %v7845 = vunpack.c.l.b16 %v6381
    %v7846 = vunpack.c.h.b16 %v6381
    %v7847 = vunpack.c.l.b16 %v6382
    %v7848 = vunpack.c.h.b16 %v6382
    %v7849 = vunpack.c.l.b16 %v6383
    %v7850 = vunpack.c.h.b16 %v6383
    %v7851 = vunpack.c.l.b16 %v6384
    %v7852 = vunpack.c.h.b16 %v6384
    %v7853 = vunpack.c.l.b16 %v6385
    %v7854 = vunpack.c.h.b16 %v6385
    %v7855 = vunpack.c.l.b16 %v6386
    %v7856 = vunpack.c.h.b16 %v6386
    %v7857 = vunpack.c.l.b16 %v6387
    %v7858 = vunpack.c.h.b16 %v6387
    %v7859 = vunpack.c.l.b16 %v6388
    %v7860 = vunpack.c.h.b16 %v6388
    %v7861 = vunpack.c.l.b16 %v6389
    %v7862 = vunpack.c.h.b16 %v6389
    %v7863 = vunpack.c.l.b16 %v6390
    %v7864 = vunpack.c.h.b16 %v6390
    %v7865 = vunpack.c.l.b16 %v6391
    %v7866 = vunpack.c.h.b16 %v6391
    %v7867 = vunpack.c.l.b16 %v6392
    %v7868 = vunpack.c.h.b16 %v6392
    %v7869 = vunpack.c.l.b16 %v6393
    %v7870 = vunpack.c.h.b16 %v6393
    %v7871 = vunpack.c.l.b16 %v6394
    %v7872 = vunpack.c.h.b16 %v6394
    %v7873 = vunpack.c.l.b16 %v6395
    %v7874 = vunpack.c.h.b16 %v6395
    %v7875 = vunpack.c.l.b16 %v6396
    %v7876 = vunpack.c.h.b16 %v6396
    %v7877 = vunpack.c.l.b16 %v6397
    %v7878 = vunpack.c.h.b16 %v6397
    %v7879 = vunpack.c.l.b16 %v6398
    %v7880 = vunpack.c.h.b16 %v6398
    %v7881 = vunpack.c.l.b16 %v6399
    %v7882 = vunpack.c.h.b16 %v6399
    %v7883 = vunpack.c.l.b16 %v6400
    %v7884 = vunpack.c.h.b16 %v6400
    %v7885 = vunpack.c.l.b16 %v6401
    %v7886 = vunpack.c.h.b16 %v6401
    %v7887 = vunpack.c.l.b16 %v6402
    %v7888 = vunpack.c.h.b16 %v6402
    %v7889 = vunpack.c.l.b16 %v6403
    %v7890 = vunpack.c.h.b16 %v6403
    %v7891 = vunpack.c.l.b16 %v6404
    %v7892 = vunpack.c.h.b16 %v6404
    %v7893 = vunpack.c.l.b16 %v6405
    %v7894 = vunpack.c.h.b16 %v6405
    %v7895 = vunpack.c.l.b16 %v6406
    %v7896 = vunpack.c.h.b16 %v6406
    %v7897 = vunpack.c.l.b16 %v6407
    %v7898 = vunpack.c.h.b16 %v6407
    %v7899 = vunpack.c.l.b16 %v6408
    %v7900 = vunpack.c.h.b16 %v6408
    %v7901 = vunpack.c.l.b16 %v6409
    %v7902 = vunpack.c.h.b16 %v6409
    %v7903 = vunpack.c.l.b16 %v6410
    %v7904 = vunpack.c.h.b16 %v6410
    %v7905 = vunpack.c.l.b16 %v6411
    %v7906 = vunpack.c.h.b16 %v6411
    %v7907 = vunpack.c.l.b16 %v6412
    %v7908 = vunpack.c.h.b16 %v6412
    %v7909 = vunpack.c.l.b16 %v6413
    %v7910 = vunpack.c.h.b16 %v6413
    %v7911 = vunpack.c.l.b16 %v6414
    %v7912 = vunpack.c.h.b16 %v6414
    %v7913 = vunpack.c.l.b16 %v6415
    %v7914 = vunpack.c.h.b16 %v6415
    %v7915 = vunpack.c.l.b16 %v6416
    %v7916 = vunpack.c.h.b16 %v6416
    %v7917 = vunpack.c.l.b16 %v6417
    %v7918 = vunpack.c.h.b16 %v6417
    %v7919 = vunpack.c.l.b16 %v6418
    %v7920 = vunpack.c.h.b16 %v6418
    %v7921 = vunpack.c.l.b16 %v6419
    %v7922 = vunpack.c.h.b16 %v6419
    %v7923 = vunpack.c.l.b16 %v6420
    %v7924 = vunpack.c.h.b16 %v6420
    %v7925 = vunpack.c.l.b16 %v6421
    %v7926 = vunpack.c.h.b16 %v6421
    %v7927 = vunpack.c.l.b16 %v6422
    %v7928 = vunpack.c.h.b16 %v6422
    %v7929 = vunpack.c.l.b16 %v6423
    %v7930 = vunpack.c.h.b16 %v6423
    %v7931 = vunpack.c.l.b16 %v6424
    %v7932 = vunpack.c.h.b16 %v6424
    %v7933 = vunpack.c.l.b16 %v6425
    %v7934 = vunpack.c.h.b16 %v6425
    %v7935 = vunpack.c.l.b16 %v6426
    %v7936 = vunpack.c.h.b16 %v6426
    %v7937 = vunpack.c.l.b16 %v6427
    %v7938 = vunpack.c.h.b16 %v6427
    %v7939 = vunpack.c.l.b16 %v6428
    %v7940 = vunpack.c.h.b16 %v6428
    %v7941 = vunpack.c.l.b16 %v6429
    %v7942 = vunpack.c.h.b16 %v6429
    %v7943 = vunpack.c.l.b16 %v6430
    %v7944 = vunpack.c.h.b16 %v6430
    %v7945 = vunpack.c.l.b16 %v6431
    %v7946 = vunpack.c.h.b16 %v6431
    %v7947 = vunpack.c.l.b16 %v6432
    %v7948 = vunpack.c.h.b16 %v6432
    %v7949 = vunpack.c.l.b16 %v6433
    %v7950 = vunpack.c.h.b16 %v6433
    %v7951 = vunpack.c.l.b16 %v6434
    %v7952 = vunpack.c.h.b16 %v6434
    %v7953 = vunpack.c.l.b16 %v6435
    %v7954 = vunpack.c.h.b16 %v6435
    %v7955 = vunpack.c.l.b16 %v6436
    %v7956 = vunpack.c.h.b16 %v6436
    %v7957 = vunpack.c.l.b16 %v6437
    %v7958 = vunpack.c.h.b16 %v6437
    %v7959 = vunpack.c.l.b16 %v6438
    %v7960 = vunpack.c.h.b16 %v6438
    %v7961 = vunpack.c.l.b16 %v6439
    %v7962 = vunpack.c.h.b16 %v6439
    %v7963 = vunpack.c.l.b16 %v6440
    %v7964 = vunpack.c.h.b16 %v6440
    %v7965 = vunpack.c.l.b16 %v6441
    %v7966 = vunpack.c.h.b16 %v6441
    %v7967 = vunpack.c.l.b16 %v6442
    %v7968 = vunpack.c.h.b16 %v6442
    %v7969 = vunpack.c.l.b16 %v6443
    %v7970 = vunpack.c.h.b16 %v6443
    %v7971 = vunpack.c.l.b16 %v6444
    %v7972 = vunpack.c.h.b16 %v6444
    %v7973 = vunpack.c.l.b16 %v6445
    %v7974 = vunpack.c.h.b16 %v6445
    %v7975 = vunpack.c.l.b16 %v6446
    %v7976 = vunpack.c.h.b16 %v6446
    %v7977 = vunpack.c.l.b16 %v6447
    %v7978 = vunpack.c.h.b16 %v6447
    %v7979 = vunpack.c.l.b16 %v6448
    %v7980 = vunpack.c.h.b16 %v6448
    %v7981 = vunpack.c.l.b16 %v6449
    %v7982 = vunpack.c.h.b16 %v6449
    %v7983 = vunpack.c.l.b16 %v6450
    %v7984 = vunpack.c.h.b16 %v6450
    %v7985 = vunpack.c.l.b16 %v6451
    %v7986 = vunpack.c.h.b16 %v6451
    %v7987 = vunpack.c.l.b16 %v6452
    %v7988 = vunpack.c.h.b16 %v6452
    %v7989 = vunpack.c.l.b16 %v6453
    %v7990 = vunpack.c.h.b16 %v6453
    %v7991 = vunpack.c.l.b16 %v6454
    %v7992 = vunpack.c.h.b16 %v6454
    %v7993 = vunpack.c.l.b16 %v6455
    %v7994 = vunpack.c.h.b16 %v6455
    %v7995 = vunpack.c.l.b16 %v6456
    %v7996 = vunpack.c.h.b16 %v6456
    %v7997 = vunpack.c.l.b16 %v6457
    %v7998 = vunpack.c.h.b16 %v6457
    %v7999 = vunpack.c.l.b16 %v6458
    %v8000 = vunpack.c.h.b16 %v6458
    %v8001 = vunpack.c.l.b16 %v6459
    %v8002 = vunpack.c.h.b16 %v6459
    %v8003 = vunpack.c.l.b16 %v6460
    %v8004 = vunpack.c.h.b16 %v6460
    %v8005 = vunpack.c.l.b16 %v6461
    %v8006 = vunpack.c.h.b16 %v6461
    %v8007 = vunpack.c.l.b16 %v6462
    %v8008 = vunpack.c.h.b16 %v6462
    %v8009 = vunpack.c.l.b16 %v6463
    %v8010 = vunpack.c.h.b16 %v6463
    %v8011 = vunpack.c.l.b16 %v6464
    %v8012 = vunpack.c.h.b16 %v6464
    %v8013 = vunpack.c.l.b16 %v6465
    %v8014 = vunpack.c.h.b16 %v6465
    %v8015 = vunpack.c.l.b16 %v6466
    %v8016 = vunpack.c.h.b16 %v6466
    %v8017 = vunpack.c.l.b16 %v6467
    %v8018 = vunpack.c.h.b16 %v6467
    %v8019 = vunpack.c.l.b16 %v6468
    %v8020 = vunpack.c.h.b16 %v6468
    %v8021 = vunpack.c.l.b16 %v6469
    %v8022 = vunpack.c.h.b16 %v6469
    %v8023 = vunpack.c.l.b16 %v6470
    %v8024 = vunpack.c.h.b16 %v6470
    %v8025 = vunpack.c.l.b16 %v6471
    %v8026 = vunpack.c.h.b16 %v6471
    %v8027 = vunpack.c.l.b16 %v6472
    %v8028 = vunpack.c.h.b16 %v6472
    %v8029 = vunpack.c.l.b16 %v6473
    %v8030 = vunpack.c.h.b16 %v6473
    %v8031 = vunpack.c.l.b16 %v6474
    %v8032 = vunpack.c.h.b16 %v6474
    %v8033 = vunpack.c.l.b16 %v6475
    %v8034 = vunpack.c.h.b16 %v6475
    %v8035 = vunpack.c.l.b16 %v6476
    %v8036 = vunpack.c.h.b16 %v6476
    %v8037 = vunpack.c.l.b16 %v6477
    %v8038 = vunpack.c.h.b16 %v6477
    %v8039 = vunpack.c.l.b16 %v6478
    %v8040 = vunpack.c.h.b16 %v6478
    %v8041 = vunpack.c.l.b16 %v6479
    %v8042 = vunpack.c.h.b16 %v6479
    %v8043 = vunpack.c.l.b16 %v6480
    %v8044 = vunpack.c.h.b16 %v6480
    %v8045 = vunpack.c.l.b16 %v6481
    %v8046 = vunpack.c.h.b16 %v6481
    %v8047 = vunpack.c.l.b16 %v6482
    %v8048 = vunpack.c.h.b16 %v6482
    %v8049 = vunpack.c.l.b16 %v6483
    %v8050 = vunpack.c.h.b16 %v6483
    %v8051 = vunpack.c.l.b16 %v6484
    %v8052 = vunpack.c.h.b16 %v6484
    %v8053 = vunpack.c.l.b16 %v6485
    %v8054 = vunpack.c.h.b16 %v6485
    %v8055 = vunpack.c.l.b16 %v6486
    %v8056 = vunpack.c.h.b16 %v6486
    %v8057 = vunpack.c.l.b16 %v6487
    %v8058 = vunpack.c.h.b16 %v6487
    %v8059 = vunpack.c.l.b16 %v6488
    %v8060 = vunpack.c.h.b16 %v6488
    %v8061 = vunpack.c.l.b16 %v6489
    %v8062 = vunpack.c.h.b16 %v6489
    %v8063 = vunpack.c.l.b16 %v6490
    %v8064 = vunpack.c.h.b16 %v6490
    %v8065 = vunpack.c.l.b16 %v6491
    %v8066 = vunpack.c.h.b16 %v6491
    %v8067 = vunpack.c.l.b16 %v6492
    %v8068 = vunpack.c.h.b16 %v6492
    %v8069 = vunpack.c.l.b16 %v6493
    %v8070 = vunpack.c.h.b16 %v6493
    %v8071 = vunpack.c.l.b16 %v6494
    %v8072 = vunpack.c.h.b16 %v6494
    %v8073 = vpack.c.b16 %v7057, %v7049
    %v8074 = vpack.c.b16 %v7058, %v7050
    %v8075 = vpack.c.b16 %v7059, %v7051
    %v8076 = vpack.c.b16 %v7060, %v7052
    %v8077 = vpack.c.b16 %v7061, %v7053
    %v8078 = vpack.c.b16 %v7062, %v7054
    %v8079 = vpack.c.b16 %v7063, %v7055
    %v8080 = vpack.c.b16 %v7064, %v7056
    %v8081 = vpack.c.b16 %v7073, %v7065
    %v8082 = vpack.c.b16 %v7074, %v7066
    %v8083 = vpack.c.b16 %v7075, %v7067
    %v8084 = vpack.c.b16 %v7076, %v7068
    %v8085 = vpack.c.b16 %v7077, %v7069
    %v8086 = vpack.c.b16 %v7078, %v7070
    %v8087 = vpack.c.b16 %v7079, %v7071
    %v8088 = vpack.c.b16 %v7080, %v7072
    %v8089 = vpack.c.b16 %v7089, %v7081
    %v8090 = vpack.c.b16 %v7090, %v7082
    %v8091 = vpack.c.b16 %v7091, %v7083
    %v8092 = vpack.c.b16 %v7092, %v7084
    %v8093 = vpack.c.b16 %v7093, %v7085
    %v8094 = vpack.c.b16 %v7094, %v7086
    %v8095 = vpack.c.b16 %v7095, %v7087
    %v8096 = vpack.c.b16 %v7096, %v7088
    %v8097 = vpack.c.b16 %v7105, %v7097
    %v8098 = vpack.c.b16 %v7106, %v7098
    %v8099 = vpack.c.b16 %v7107, %v7099
    %v8100 = vpack.c.b16 %v7108, %v7100
    %v8101 = vpack.c.b16 %v7109, %v7101
    %v8102 = vpack.c.b16 %v7110, %v7102
    %v8103 = vpack.c.b16 %v7111, %v7103
    %v8104 = vpack.c.b16 %v7112, %v7104
    %v8105 = vpack.c.b16 %v7121, %v7113
    %v8106 = vpack.c.b16 %v7122, %v7114
    %v8107 = vpack.c.b16 %v7123, %v7115
    %v8108 = vpack.c.b16 %v7124, %v7116
    %v8109 = vpack.c.b16 %v7125, %v7117
    %v8110 = vpack.c.b16 %v7126, %v7118
    %v8111 = vpack.c.b16 %v7127, %v7119
    %v8112 = vpack.c.b16 %v7128, %v7120
    %v8113 = vpack.c.b16 %v7137, %v7129
    %v8114 = vpack.c.b16 %v7138, %v7130
    %v8115 = vpack.c.b16 %v7139, %v7131
    %v8116 = vpack.c.b16 %v7140, %v7132
    %v8117 = vpack.c.b16 %v7141, %v7133
    %v8118 = vpack.c.b16 %v7142, %v7134
    %v8119 = vpack.c.b16 %v7143, %v7135
    %v8120 = vpack.c.b16 %v7144, %v7136
    %v8121 = vpack.c.b16 %v7153, %v7145
    %v8122 = vpack.c.b16 %v7154, %v7146
    %v8123 = vpack.c.b16 %v7155, %v7147
    %v8124 = vpack.c.b16 %v7156, %v7148
    %v8125 = vpack.c.b16 %v7157, %v7149
    %v8126 = vpack.c.b16 %v7158, %v7150
    %v8127 = vpack.c.b16 %v7159, %v7151
    %v8128 = vpack.c.b16 %v7160, %v7152
    %v8129 = vpack.c.b16 %v7169, %v7161
    %v8130 = vpack.c.b16 %v7170, %v7162
    %v8131 = vpack.c.b16 %v7171, %v7163
    %v8132 = vpack.c.b16 %v7172, %v7164
    %v8133 = vpack.c.b16 %v7173, %v7165
    %v8134 = vpack.c.b16 %v7174, %v7166
    %v8135 = vpack.c.b16 %v7175, %v7167
    %v8136 = vpack.c.b16 %v7176, %v7168
    %v8137 = vpack.c.b16 %v7185, %v7177
    %v8138 = vpack.c.b16 %v7186, %v7178
    %v8139 = vpack.c.b16 %v7187, %v7179
    %v8140 = vpack.c.b16 %v7188, %v7180
    %v8141 = vpack.c.b16 %v7189, %v7181
    %v8142 = vpack.c.b16 %v7190, %v7182
    %v8143 = vpack.c.b16 %v7191, %v7183
    %v8144 = vpack.c.b16 %v7192, %v7184
    %v8145 = vpack.c.b16 %v7201, %v7193
    %v8146 = vpack.c.b16 %v7202, %v7194
    %v8147 = vpack.c.b16 %v7203, %v7195
    %v8148 = vpack.c.b16 %v7204, %v7196
    %v8149 = vpack.c.b16 %v7205, %v7197
    %v8150 = vpack.c.b16 %v7206, %v7198
    %v8151 = vpack.c.b16 %v7207, %v7199
    %v8152 = vpack.c.b16 %v7208, %v7200
    %v8153 = vpack.c.b16 %v7217, %v7209
    %v8154 = vpack.c.b16 %v7218, %v7210
    %v8155 = vpack.c.b16 %v7219, %v7211
    %v8156 = vpack.c.b16 %v7220, %v7212
    %v8157 = vpack.c.b16 %v7221, %v7213
    %v8158 = vpack.c.b16 %v7222, %v7214
    %v8159 = vpack.c.b16 %v7223, %v7215
    %v8160 = vpack.c.b16 %v7224, %v7216
    %v8161 = vpack.c.b16 %v7233, %v7225
    %v8162 = vpack.c.b16 %v7234, %v7226
    %v8163 = vpack.c.b16 %v7235, %v7227
    %v8164 = vpack.c.b16 %v7236, %v7228
    %v8165 = vpack.c.b16 %v7237, %v7229
    %v8166 = vpack.c.b16 %v7238, %v7230
    %v8167 = vpack.c.b16 %v7239, %v7231
    %v8168 = vpack.c.b16 %v7240, %v7232
    %v8169 = vpack.c.b16 %v7249, %v7241
    %v8170 = vpack.c.b16 %v7250, %v7242
    %v8171 = vpack.c.b16 %v7251, %v7243
    %v8172 = vpack.c.b16 %v7252, %v7244
    %v8173 = vpack.c.b16 %v7253, %v7245
    %v8174 = vpack.c.b16 %v7254, %v7246
    %v8175 = vpack.c.b16 %v7255, %v7247
    %v8176 = vpack.c.b16 %v7256, %v7248
    %v8177 = vpack.c.b16 %v7265, %v7257
    %v8178 = vpack.c.b16 %v7266, %v7258
    %v8179 = vpack.c.b16 %v7267, %v7259
    %v8180 = vpack.c.b16 %v7268, %v7260
    %v8181 = vpack.c.b16 %v7269, %v7261
    %v8182 = vpack.c.b16 %v7270, %v7262
    %v8183 = vpack.c.b16 %v7271, %v7263
    %v8184 = vpack.c.b16 %v7272, %v7264
    %v8185 = vpack.c.b16 %v7281, %v7273
    %v8186 = vpack.c.b16 %v7282, %v7274
    %v8187 = vpack.c.b16 %v7283, %v7275
    %v8188 = vpack.c.b16 %v7284, %v7276
    %v8189 = vpack.c.b16 %v7285, %v7277
    %v8190 = vpack.c.b16 %v7286, %v7278
    %v8191 = vpack.c.b16 %v7287, %v7279
    %v8192 = vpack.c.b16 %v7288, %v7280
    %v8193 = vpack.c.b16 %v7297, %v7289
    %v8194 = vpack.c.b16 %v7298, %v7290
    %v8195 = vpack.c.b16 %v7299, %v7291
    %v8196 = vpack.c.b16 %v7300, %v7292
    %v8197 = vpack.c.b16 %v7301, %v7293
    %v8198 = vpack.c.b16 %v7302, %v7294
    %v8199 = vpack.c.b16 %v7303, %v7295
    %v8200 = vpack.c.b16 %v7304, %v7296
    %v8201 = vpack.c.b16 %v7313, %v7305
    %v8202 = vpack.c.b16 %v7314, %v7306
    %v8203 = vpack.c.b16 %v7315, %v7307
    %v8204 = vpack.c.b16 %v7316, %v7308
    %v8205 = vpack.c.b16 %v7317, %v7309
    %v8206 = vpack.c.b16 %v7318, %v7310
    %v8207 = vpack.c.b16 %v7319, %v7311
    %v8208 = vpack.c.b16 %v7320, %v7312
    %v8209 = vpack.c.b16 %v7329, %v7321
    %v8210 = vpack.c.b16 %v7330, %v7322
    %v8211 = vpack.c.b16 %v7331, %v7323
    %v8212 = vpack.c.b16 %v7332, %v7324
    %v8213 = vpack.c.b16 %v7333, %v7325
    %v8214 = vpack.c.b16 %v7334, %v7326
    %v8215 = vpack.c.b16 %v7335, %v7327
    %v8216 = vpack.c.b16 %v7336, %v7328
    %v8217 = vpack.c.b16 %v7345, %v7337
    %v8218 = vpack.c.b16 %v7346, %v7338
    %v8219 = vpack.c.b16 %v7347, %v7339
    %v8220 = vpack.c.b16 %v7348, %v7340
    %v8221 = vpack.c.b16 %v7349, %v7341
    %v8222 = vpack.c.b16 %v7350, %v7342
    %v8223 = vpack.c.b16 %v7351, %v7343
    %v8224 = vpack.c.b16 %v7352, %v7344
    %v8225 = vpack.c.b16 %v7361, %v7353
    %v8226 = vpack.c.b16 %v7362, %v7354
    %v8227 = vpack.c.b16 %v7363, %v7355
    %v8228 = vpack.c.b16 %v7364, %v7356
    %v8229 = vpack.c.b16 %v7365, %v7357
    %v8230 = vpack.c.b16 %v7366, %v7358
    %v8231 = vpack.c.b16 %v7367, %v7359
    %v8232 = vpack.c.b16 %v7368, %v7360
    %v8233 = vpack.c.b16 %v7377, %v7369
    %v8234 = vpack.c.b16 %v7378, %v7370
    %v8235 = vpack.c.b16 %v7379, %v7371
    %v8236 = vpack.c.b16 %v7380, %v7372
    %v8237 = vpack.c.b16 %v7381, %v7373
    %v8238 = vpack.c.b16 %v7382, %v7374
    %v8239 = vpack.c.b16 %v7383, %v7375
    %v8240 = vpack.c.b16 %v7384, %v7376
    %v8241 = vpack.c.b16 %v7393, %v7385
    %v8242 = vpack.c.b16 %v7394, %v7386
    %v8243 = vpack.c.b16 %v7395, %v7387
    %v8244 = vpack.c.b16 %v7396, %v7388
    %v8245 = vpack.c.b16 %v7397, %v7389
    %v8246 = vpack.c.b16 %v7398, %v7390
    %v8247 = vpack.c.b16 %v7399, %v7391
    %v8248 = vpack.c.b16 %v7400, %v7392
    %v8249 = vpack.c.b16 %v7409, %v7401
    %v8250 = vpack.c.b16 %v7410, %v7402
    %v8251 = vpack.c.b16 %v7411, %v7403
    %v8252 = vpack.c.b16 %v7412, %v7404
    %v8253 = vpack.c.b16 %v7413, %v7405
    %v8254 = vpack.c.b16 %v7414, %v7406
    %v8255 = vpack.c.b16 %v7415, %v7407
    %v8256 = vpack.c.b16 %v7416, %v7408
    %v8257 = vpack.c.b16 %v7425, %v7417
    %v8258 = vpack.c.b16 %v7426, %v7418
    %v8259 = vpack.c.b16 %v7427, %v7419
    %v8260 = vpack.c.b16 %v7428, %v7420
    %v8261 = vpack.c.b16 %v7429, %v7421
    %v8262 = vpack.c.b16 %v7430, %v7422
    %v8263 = vpack.c.b16 %v7431, %v7423
    %v8264 = vpack.c.b16 %v7432, %v7424
    %v8265 = vpack.c.b16 %v7441, %v7433
    %v8266 = vpack.c.b16 %v7442, %v7434
    %v8267 = vpack.c.b16 %v7443, %v7435
    %v8268 = vpack.c.b16 %v7444, %v7436
    %v8269 = vpack.c.b16 %v7445, %v7437
    %v8270 = vpack.c.b16 %v7446, %v7438
    %v8271 = vpack.c.b16 %v7447, %v7439
    %v8272 = vpack.c.b16 %v7448, %v7440
    %v8273 = vpack.c.b16 %v7457, %v7449
    %v8274 = vpack.c.b16 %v7458, %v7450
    %v8275 = vpack.c.b16 %v7459, %v7451
    %v8276 = vpack.c.b16 %v7460, %v7452
    %v8277 = vpack.c.b16 %v7461, %v7453
    %v8278 = vpack.c.b16 %v7462, %v7454
    %v8279 = vpack.c.b16 %v7463, %v7455
    %v8280 = vpack.c.b16 %v7464, %v7456
    %v8281 = vpack.c.b16 %v7473, %v7465
    %v8282 = vpack.c.b16 %v7474, %v7466
    %v8283 = vpack.c.b16 %v7475, %v7467
    %v8284 = vpack.c.b16 %v7476, %v7468
    %v8285 = vpack.c.b16 %v7477, %v7469
    %v8286 = vpack.c.b16 %v7478, %v7470
    %v8287 = vpack.c.b16 %v7479, %v7471
    %v8288 = vpack.c.b16 %v7480, %v7472
    %v8289 = vpack.c.b16 %v7489, %v7481
    %v8290 = vpack.c.b16 %v7490, %v7482
    %v8291 = vpack.c.b16 %v7491, %v7483
    %v8292 = vpack.c.b16 %v7492, %v7484
    %v8293 = vpack.c.b16 %v7493, %v7485
    %v8294 = vpack.c.b16 %v7494, %v7486
    %v8295 = vpack.c.b16 %v7495, %v7487
    %v8296 = vpack.c.b16 %v7496, %v7488
    %v8297 = vpack.c.b16 %v7505, %v7497
    %v8298 = vpack.c.b16 %v7506, %v7498
    %v8299 = vpack.c.b16 %v7507, %v7499
    %v8300 = vpack.c.b16 %v7508, %v7500
    %v8301 = vpack.c.b16 %v7509, %v7501
    %v8302 = vpack.c.b16 %v7510, %v7502
    %v8303 = vpack.c.b16 %v7511, %v7503
    %v8304 = vpack.c.b16 %v7512, %v7504
    %v8305 = vpack.c.b16 %v7521, %v7513
    %v8306 = vpack.c.b16 %v7522, %v7514
    %v8307 = vpack.c.b16 %v7523, %v7515
    %v8308 = vpack.c.b16 %v7524, %v7516
    %v8309 = vpack.c.b16 %v7525, %v7517
    %v8310 = vpack.c.b16 %v7526, %v7518
    %v8311 = vpack.c.b16 %v7527, %v7519
    %v8312 = vpack.c.b16 %v7528, %v7520
    %v8313 = vpack.c.b16 %v7537, %v7529
    %v8314 = vpack.c.b16 %v7538, %v7530
    %v8315 = vpack.c.b16 %v7539, %v7531
    %v8316 = vpack.c.b16 %v7540, %v7532
    %v8317 = vpack.c.b16 %v7541, %v7533
    %v8318 = vpack.c.b16 %v7542, %v7534
    %v8319 = vpack.c.b16 %v7543, %v7535
    %v8320 = vpack.c.b16 %v7544, %v7536
    %v8321 = vpack.c.b16 %v7553, %v7545
    %v8322 = vpack.c.b16 %v7554, %v7546
    %v8323 = vpack.c.b16 %v7555, %v7547
    %v8324 = vpack.c.b16 %v7556, %v7548
    %v8325 = vpack.c.b16 %v7557, %v7549
    %v8326 = vpack.c.b16 %v7558, %v7550
    %v8327 = vpack.c.b16 %v7559, %v7551
    %v8328 = vpack.c.b16 %v7560, %v7552
    %v8329 = vpack.c.b16 %v7569, %v7561
    %v8330 = vpack.c.b16 %v7570, %v7562
    %v8331 = vpack.c.b16 %v7571, %v7563
    %v8332 = vpack.c.b16 %v7572, %v7564
    %v8333 = vpack.c.b16 %v7573, %v7565
    %v8334 = vpack.c.b16 %v7574, %v7566
    %v8335 = vpack.c.b16 %v7575, %v7567
    %v8336 = vpack.c.b16 %v7576, %v7568
    %v8337 = vpack.c.b16 %v7585, %v7577
    %v8338 = vpack.c.b16 %v7586, %v7578
    %v8339 = vpack.c.b16 %v7587, %v7579
    %v8340 = vpack.c.b16 %v7588, %v7580
    %v8341 = vpack.c.b16 %v7589, %v7581
    %v8342 = vpack.c.b16 %v7590, %v7582
    %v8343 = vpack.c.b16 %v7591, %v7583
    %v8344 = vpack.c.b16 %v7592, %v7584
    %v8345 = vpack.c.b16 %v7601, %v7593
    %v8346 = vpack.c.b16 %v7602, %v7594
    %v8347 = vpack.c.b16 %v7603, %v7595
    %v8348 = vpack.c.b16 %v7604, %v7596
    %v8349 = vpack.c.b16 %v7605, %v7597
    %v8350 = vpack.c.b16 %v7606, %v7598
    %v8351 = vpack.c.b16 %v7607, %v7599
    %v8352 = vpack.c.b16 %v7608, %v7600
    %v8353 = vpack.c.b16 %v7617, %v7609
    %v8354 = vpack.c.b16 %v7618, %v7610
    %v8355 = vpack.c.b16 %v7619, %v7611
    %v8356 = vpack.c.b16 %v7620, %v7612
    %v8357 = vpack.c.b16 %v7621, %v7613
    %v8358 = vpack.c.b16 %v7622, %v7614
    %v8359 = vpack.c.b16 %v7623, %v7615
    %v8360 = vpack.c.b16 %v7624, %v7616
    %v8361 = vpack.c.b16 %v7633, %v7625
    %v8362 = vpack.c.b16 %v7634, %v7626
    %v8363 = vpack.c.b16 %v7635, %v7627
    %v8364 = vpack.c.b16 %v7636, %v7628
    %v8365 = vpack.c.b16 %v7637, %v7629
    %v8366 = vpack.c.b16 %v7638, %v7630
    %v8367 = vpack.c.b16 %v7639, %v7631
    %v8368 = vpack.c.b16 %v7640, %v7632
    %v8369 = vpack.c.b16 %v7649, %v7641
    %v8370 = vpack.c.b16 %v7650, %v7642
    %v8371 = vpack.c.b16 %v7651, %v7643
    %v8372 = vpack.c.b16 %v7652, %v7644
    %v8373 = vpack.c.b16 %v7653, %v7645
    %v8374 = vpack.c.b16 %v7654, %v7646
    %v8375 = vpack.c.b16 %v7655, %v7647
    %v8376 = vpack.c.b16 %v7656, %v7648
    %v8377 = vpack.c.b16 %v7665, %v7657
    %v8378 = vpack.c.b16 %v7666, %v7658
    %v8379 = vpack.c.b16 %v7667, %v7659
    %v8380 = vpack.c.b16 %v7668, %v7660
    %v8381 = vpack.c.b16 %v7669, %v7661
    %v8382 = vpack.c.b16 %v7670, %v7662
    %v8383 = vpack.c.b16 %v7671, %v7663
    %v8384 = vpack.c.b16 %v7672, %v7664
    %v8385 = vpack.c.b16 %v7681, %v7673
    %v8386 = vpack.c.b16 %v7682, %v7674
    %v8387 = vpack.c.b16 %v7683, %v7675
    %v8388 = vpack.c.b16 %v7684, %v7676
    %v8389 = vpack.c.b16 %v7685, %v7677
    %v8390 = vpack.c.b16 %v7686, %v7678
    %v8391 = vpack.c.b16 %v7687, %v7679
    %v8392 = vpack.c.b16 %v7688, %v7680
    %v8393 = vpack.c.b16 %v7697, %v7689
    %v8394 = vpack.c.b16 %v7698, %v7690
    %v8395 = vpack.c.b16 %v7699, %v7691
    %v8396 = vpack.c.b16 %v7700, %v7692
    %v8397 = vpack.c.b16 %v7701, %v7693
    %v8398 = vpack.c.b16 %v7702, %v7694
    %v8399 = vpack.c.b16 %v7703, %v7695
    %v8400 = vpack.c.b16 %v7704, %v7696
    %v8401 = vpack.c.b16 %v7713, %v7705
    %v8402 = vpack.c.b16 %v7714, %v7706
    %v8403 = vpack.c.b16 %v7715, %v7707
    %v8404 = vpack.c.b16 %v7716, %v7708
    %v8405 = vpack.c.b16 %v7717, %v7709
    %v8406 = vpack.c.b16 %v7718, %v7710
    %v8407 = vpack.c.b16 %v7719, %v7711
    %v8408 = vpack.c.b16 %v7720, %v7712
    %v8409 = vpack.c.b16 %v7729, %v7721
    %v8410 = vpack.c.b16 %v7730, %v7722
    %v8411 = vpack.c.b16 %v7731, %v7723
    %v8412 = vpack.c.b16 %v7732, %v7724
    %v8413 = vpack.c.b16 %v7733, %v7725
    %v8414 = vpack.c.b16 %v7734, %v7726
    %v8415 = vpack.c.b16 %v7735, %v7727
    %v8416 = vpack.c.b16 %v7736, %v7728
    %v8417 = vpack.c.b16 %v7745, %v7737
    %v8418 = vpack.c.b16 %v7746, %v7738
    %v8419 = vpack.c.b16 %v7747, %v7739
    %v8420 = vpack.c.b16 %v7748, %v7740
    %v8421 = vpack.c.b16 %v7749, %v7741
    %v8422 = vpack.c.b16 %v7750, %v7742
    %v8423 = vpack.c.b16 %v7751, %v7743
    %v8424 = vpack.c.b16 %v7752, %v7744
    %v8425 = vpack.c.b16 %v7761, %v7753
    %v8426 = vpack.c.b16 %v7762, %v7754
    %v8427 = vpack.c.b16 %v7763, %v7755
    %v8428 = vpack.c.b16 %v7764, %v7756
    %v8429 = vpack.c.b16 %v7765, %v7757
    %v8430 = vpack.c.b16 %v7766, %v7758
    %v8431 = vpack.c.b16 %v7767, %v7759
    %v8432 = vpack.c.b16 %v7768, %v7760
    %v8433 = vpack.c.b16 %v7777, %v7769
    %v8434 = vpack.c.b16 %v7778, %v7770
    %v8435 = vpack.c.b16 %v7779, %v7771
    %v8436 = vpack.c.b16 %v7780, %v7772
    %v8437 = vpack.c.b16 %v7781, %v7773
    %v8438 = vpack.c.b16 %v7782, %v7774
    %v8439 = vpack.c.b16 %v7783, %v7775
    %v8440 = vpack.c.b16 %v7784, %v7776
    %v8441 = vpack.c.b16 %v7793, %v7785
    %v8442 = vpack.c.b16 %v7794, %v7786
    %v8443 = vpack.c.b16 %v7795, %v7787
    %v8444 = vpack.c.b16 %v7796, %v7788
    %v8445 = vpack.c.b16 %v7797, %v7789
    %v8446 = vpack.c.b16 %v7798, %v7790
    %v8447 = vpack.c.b16 %v7799, %v7791
    %v8448 = vpack.c.b16 %v7800, %v7792
    %v8449 = vpack.c.b16 %v7809, %v7801
    %v8450 = vpack.c.b16 %v7810, %v7802
    %v8451 = vpack.c.b16 %v7811, %v7803
    %v8452 = vpack.c.b16 %v7812, %v7804
    %v8453 = vpack.c.b16 %v7813, %v7805
    %v8454 = vpack.c.b16 %v7814, %v7806
    %v8455 = vpack.c.b16 %v7815, %v7807
    %v8456 = vpack.c.b16 %v7816, %v7808
    %v8457 = vpack.c.b16 %v7825, %v7817
    %v8458 = vpack.c.b16 %v7826, %v7818
    %v8459 = vpack.c.b16 %v7827, %v7819
    %v8460 = vpack.c.b16 %v7828, %v7820
    %v8461 = vpack.c.b16 %v7829, %v7821
    %v8462 = vpack.c.b16 %v7830, %v7822
    %v8463 = vpack.c.b16 %v7831, %v7823
    %v8464 = vpack.c.b16 %v7832, %v7824
    %v8465 = vpack.c.b16 %v7841, %v7833
    %v8466 = vpack.c.b16 %v7842, %v7834
    %v8467 = vpack.c.b16 %v7843, %v7835
    %v8468 = vpack.c.b16 %v7844, %v7836
    %v8469 = vpack.c.b16 %v7845, %v7837
    %v8470 = vpack.c.b16 %v7846, %v7838
    %v8471 = vpack.c.b16 %v7847, %v7839
    %v8472 = vpack.c.b16 %v7848, %v7840
    %v8473 = vpack.c.b16 %v7857, %v7849
    %v8474 = vpack.c.b16 %v7858, %v7850
    %v8475 = vpack.c.b16 %v7859, %v7851
    %v8476 = vpack.c.b16 %v7860, %v7852
    %v8477 = vpack.c.b16 %v7861, %v7853
    %v8478 = vpack.c.b16 %v7862, %v7854
    %v8479 = vpack.c.b16 %v7863, %v7855
    %v8480 = vpack.c.b16 %v7864, %v7856
    %v8481 = vpack.c.b16 %v7873, %v7865
    %v8482 = vpack.c.b16 %v7874, %v7866
    %v8483 = vpack.c.b16 %v7875, %v7867
    %v8484 = vpack.c.b16 %v7876, %v7868
    %v8485 = vpack.c.b16 %v7877, %v7869
    %v8486 = vpack.c.b16 %v7878, %v7870
    %v8487 = vpack.c.b16 %v7879, %v7871
    %v8488 = vpack.c.b16 %v7880, %v7872
    %v8489 = vpack.c.b16 %v7889, %v7881
    %v8490 = vpack.c.b16 %v7890, %v7882
    %v8491 = vpack.c.b16 %v7891, %v7883
    %v8492 = vpack.c.b16 %v7892, %v7884
    %v8493 = vpack.c.b16 %v7893, %v7885
    %v8494 = vpack.c.b16 %v7894, %v7886
    %v8495 = vpack.c.b16 %v7895, %v7887
    %v8496 = vpack.c.b16 %v7896, %v7888
    %v8497 = vpack.c.b16 %v7905, %v7897
    %v8498 = vpack.c.b16 %v7906, %v7898
    %v8499 = vpack.c.b16 %v7907, %v7899
    %v8500 = vpack.c.b16 %v7908, %v7900
    %v8501 = vpack.c.b16 %v7909, %v7901
    %v8502 = vpack.c.b16 %v7910, %v7902
    %v8503 = vpack.c.b16 %v7911, %v7903
    %v8504 = vpack.c.b16 %v7912, %v7904
    %v8505 = vpack.c.b16 %v7921, %v7913
    %v8506 = vpack.c.b16 %v7922, %v7914
    %v8507 = vpack.c.b16 %v7923, %v7915
    %v8508 = vpack.c.b16 %v7924, %v7916
    %v8509 = vpack.c.b16 %v7925, %v7917
    %v8510 = vpack.c.b16 %v7926, %v7918
    %v8511 = vpack.c.b16 %v7927, %v7919
    %v8512 = vpack.c.b16 %v7928, %v7920
    %v8513 = vpack.c.b16 %v7937, %v7929
    %v8514 = vpack.c.b16 %v7938, %v7930
    %v8515 = vpack.c.b16 %v7939, %v7931
    %v8516 = vpack.c.b16 %v7940, %v7932
    %v8517 = vpack.c.b16 %v7941, %v7933
    %v8518 = vpack.c.b16 %v7942, %v7934
    %v8519 = vpack.c.b16 %v7943, %v7935
    %v8520 = vpack.c.b16 %v7944, %v7936
    %v8521 = vpack.c.b16 %v7953, %v7945
    %v8522 = vpack.c.b16 %v7954, %v7946
    %v8523 = vpack.c.b16 %v7955, %v7947
    %v8524 = vpack.c.b16 %v7956, %v7948
    %v8525 = vpack.c.b16 %v7957, %v7949
    %v8526 = vpack.c.b16 %v7958, %v7950
    %v8527 = vpack.c.b16 %v7959, %v7951
    %v8528 = vpack.c.b16 %v7960, %v7952
    %v8529 = vpack.c.b16 %v7969, %v7961
    %v8530 = vpack.c.b16 %v7970, %v7962
    %v8531 = vpack.c.b16 %v7971, %v7963
    %v8532 = vpack.c.b16 %v7972, %v7964
    %v8533 = vpack.c.b16 %v7973, %v7965
    %v8534 = vpack.c.b16 %v7974, %v7966
    %v8535 = vpack.c.b16 %v7975, %v7967
    %v8536 = vpack.c.b16 %v7976, %v7968
    %v8537 = vpack.c.b16 %v7985, %v7977
    %v8538 = vpack.c.b16 %v7986, %v7978
    %v8539 = vpack.c.b16 %v7987, %v7979
    %v8540 = vpack.c.b16 %v7988, %v7980
    %v8541 = vpack.c.b16 %v7989, %v7981
    %v8542 = vpack.c.b16 %v7990, %v7982
    %v8543 = vpack.c.b16 %v7991, %v7983
    %v8544 = vpack.c.b16 %v7992, %v7984
    %v8545 = vpack.c.b16 %v8001, %v7993
    %v8546 = vpack.c.b16 %v8002, %v7994
    %v8547 = vpack.c.b16 %v8003, %v7995
    %v8548 = vpack.c.b16 %v8004, %v7996
    %v8549 = vpack.c.b16 %v8005, %v7997
    %v8550 = vpack.c.b16 %v8006, %v7998
    %v8551 = vpack.c.b16 %v8007, %v7999
    %v8552 = vpack.c.b16 %v8008, %v8000
    %v8553 = vpack.c.b16 %v8017, %v8009
    %v8554 = vpack.c.b16 %v8018, %v8010
    %v8555 = vpack.c.b16 %v8019, %v8011
    %v8556 = vpack.c.b16 %v8020, %v8012
    %v8557 = vpack.c.b16 %v8021, %v8013
    %v8558 = vpack.c.b16 %v8022, %v8014
    %v8559 = vpack.c.b16 %v8023, %v8015
    %v8560 = vpack.c.b16 %v8024, %v8016
    %v8561 = vpack.c.b16 %v8033, %v8025
    %v8562 = vpack.c.b16 %v8034, %v8026
    %v8563 = vpack.c.b16 %v8035, %v8027
    %v8564 = vpack.c.b16 %v8036, %v8028
    %v8565 = vpack.c.b16 %v8037, %v8029
    %v8566 = vpack.c.b16 %v8038, %v8030
    %v8567 = vpack.c.b16 %v8039, %v8031
    %v8568 = vpack.c.b16 %v8040, %v8032
    %v8569 = vpack.c.b16 %v8049, %v8041
    %v8570 = vpack.c.b16 %v8050, %v8042
    %v8571 = vpack.c.b16 %v8051, %v8043
    %v8572 = vpack.c.b16 %v8052, %v8044
    %v8573 = vpack.c.b16 %v8053, %v8045
    %v8574 = vpack.c.b16 %v8054, %v8046
    %v8575 = vpack.c.b16 %v8055, %v8047
    %v8576 = vpack.c.b16 %v8056, %v8048
    %v8577 = vpack.c.b16 %v8065, %v8057
    %v8578 = vpack.c.b16 %v8066, %v8058
    %v8579 = vpack.c.b16 %v8067, %v8059
    %v8580 = vpack.c.b16 %v8068, %v8060
    %v8581 = vpack.c.b16 %v8069, %v8061
    %v8582 = vpack.c.b16 %v8070, %v8062
    %v8583 = vpack.c.b16 %v8071, %v8063
    %v8584 = vpack.c.b16 %v8072, %v8064
    %9097 = vmatprep.subr.bf16.mxu0 %v8074
    %9098 = vmatpush1.bf16.msra.mxu0 %v8073
    %9099 = vmatprep.subr.bf16.mxu0 %v8082
    %9100 = vmatpush1.bf16.msra.mxu0 %v8081
    %9101 = vmatprep.subr.bf16.mxu0 %v8090
    %9102 = vmatpush1.bf16.msra.mxu0 %v8089
    %9103 = vmatprep.subr.bf16.mxu0 %v8098
    %9104 = vmatpush1.bf16.msra.mxu0 %v8097
    %9105 = vmatprep.subr.bf16.mxu0 %v8106
    %9106 = vmatpush1.bf16.msra.mxu0 %v8105
    %9107 = vmatprep.subr.bf16.mxu0 %v8114
    %9108 = vmatpush1.bf16.msra.mxu0 %v8113
    %9109 = vmatprep.subr.bf16.mxu0 %v8122
    %9110 = vmatpush1.bf16.msra.mxu0 %v8121
    %9111 = vmatprep.subr.bf16.mxu0 %v8130
    %9112 = vmatpush1.bf16.msra.mxu0 %v8129
    %9113 = vmatprep.subr.bf16.mxu0 %v8138
    %9114 = vmatpush1.bf16.msra.mxu0 %v8137
    %9115 = vmatprep.subr.bf16.mxu0 %v8146
    %9116 = vmatpush1.bf16.msra.mxu0 %v8145
    %9117 = vmatprep.subr.bf16.mxu0 %v8154
    %9118 = vmatpush1.bf16.msra.mxu0 %v8153
    %9119 = vmatprep.subr.bf16.mxu0 %v8162
    %9120 = vmatpush1.bf16.msra.mxu0 %v8161
    %9121 = vmatprep.subr.bf16.mxu0 %v8170
    %9122 = vmatpush1.bf16.msra.mxu0 %v8169
    %9123 = vmatprep.subr.bf16.mxu0 %v8178
    %9124 = vmatpush1.bf16.msra.mxu0 %v8177
    %9125 = vmatprep.subr.bf16.mxu0 %v8186
    %9126 = vmatpush1.bf16.msra.mxu0 %v8185
    %9127 = vmatprep.subr.bf16.mxu0 %v8194
    %9128 = vmatpush1.bf16.msra.mxu0 %v8193
    %9129 = vmatprep.mubr.bf16.mxu0 %v5976
    %9130 = vmatmul.mubr.bf16.gmra.mrb[0].mxu0 %v5975
    %v9131 = vpop.f32.mrb[0].mxu0
    %v9132 = vadd.f32 %v6500, %v9131
    %v9133 = vpop.f32.mrb[0].mxu0
    %v9134 = vadd.f32 %v6504, %v9133
    %v9135 = vpop.f32.mrb[0].mxu0
    %v9136 = vpop.f32.mrb[0].mxu0
    %9137 = vdwg.mxu0
    %9138 = vmatprep.subr.bf16.mxu0 %v8202
    %9139 = vmatpush1.bf16.msra.mxu0 %v8201
    %9140 = vmatprep.subr.bf16.mxu0 %v8210
    %9141 = vmatpush1.bf16.msra.mxu0 %v8209
    %9142 = vmatprep.subr.bf16.mxu0 %v8218
    %9143 = vmatpush1.bf16.msra.mxu0 %v8217
    %9144 = vmatprep.subr.bf16.mxu0 %v8226
    %9145 = vmatpush1.bf16.msra.mxu0 %v8225
    %9146 = vmatprep.subr.bf16.mxu0 %v8234
    %9147 = vmatpush1.bf16.msra.mxu0 %v8233
    %9148 = vmatprep.subr.bf16.mxu0 %v8242
    %9149 = vmatpush1.bf16.msra.mxu0 %v8241
    %9150 = vmatprep.subr.bf16.mxu0 %v8250
    %9151 = vmatpush1.bf16.msra.mxu0 %v8249
    %9152 = vmatprep.subr.bf16.mxu0 %v8258
    %9153 = vmatpush1.bf16.msra.mxu0 %v8257
    %9154 = vmatprep.subr.bf16.mxu0 %v8266
    %9155 = vmatpush1.bf16.msra.mxu0 %v8265
    %9156 = vmatprep.subr.bf16.mxu0 %v8274
    %9157 = vmatpush1.bf16.msra.mxu0 %v8273
    %9158 = vmatprep.subr.bf16.mxu0 %v8282
    %9159 = vmatpush1.bf16.msra.mxu0 %v8281
    %9160 = vmatprep.subr.bf16.mxu0 %v8290
    %9161 = vmatpush1.bf16.msra.mxu0 %v8289
    %9162 = vmatprep.subr.bf16.mxu0 %v8298
    %9163 = vmatpush1.bf16.msra.mxu0 %v8297
    %9164 = vmatprep.subr.bf16.mxu0 %v8306
    %9165 = vmatpush1.bf16.msra.mxu0 %v8305
    %9166 = vmatprep.subr.bf16.mxu0 %v8314
    %9167 = vmatpush1.bf16.msra.mxu0 %v8313
    %9168 = vmatprep.subr.bf16.mxu0 %v8322
    %9169 = vmatpush1.bf16.msra.mxu0 %v8321
    %9170 = vmatprep.mubr.bf16.mxu0 %v5978
    %9171 = vmatmul.mubr.bf16.gmra.mrb[0].mxu0 %v5977
    %v9172 = vpop.f32.mrb[0].mxu0
    %v9173 = vadd.f32 %v9132, %v9172
    %v9174 = vpop.f32.mrb[0].mxu0
    %v9175 = vadd.f32 %v9134, %v9174
    %v9176 = vpop.f32.mrb[0].mxu0
    %v9177 = vpop.f32.mrb[0].mxu0
    %9178 = vdwg.mxu0
    %9179 = vmatprep.subr.bf16.mxu0 %v8330
    %9180 = vmatpush1.bf16.msra.mxu0 %v8329
    %9181 = vmatprep.subr.bf16.mxu0 %v8338
    %9182 = vmatpush1.bf16.msra.mxu0 %v8337
    %9183 = vmatprep.subr.bf16.mxu0 %v8346
    %9184 = vmatpush1.bf16.msra.mxu0 %v8345
    %9185 = vmatprep.subr.bf16.mxu0 %v8354
    %9186 = vmatpush1.bf16.msra.mxu0 %v8353
    %9187 = vmatprep.subr.bf16.mxu0 %v8362
    %9188 = vmatpush1.bf16.msra.mxu0 %v8361
    %9189 = vmatprep.subr.bf16.mxu0 %v8370
    %9190 = vmatpush1.bf16.msra.mxu0 %v8369
    %9191 = vmatprep.subr.bf16.mxu0 %v8378
    %9192 = vmatpush1.bf16.msra.mxu0 %v8377
    %9193 = vmatprep.subr.bf16.mxu0 %v8386
    %9194 = vmatpush1.bf16.msra.mxu0 %v8385
    %9195 = vmatprep.subr.bf16.mxu0 %v8394
    %9196 = vmatpush1.bf16.msra.mxu0 %v8393
    %9197 = vmatprep.subr.bf16.mxu0 %v8402
    %9198 = vmatpush1.bf16.msra.mxu0 %v8401
    %9199 = vmatprep.subr.bf16.mxu0 %v8410
    %9200 = vmatpush1.bf16.msra.mxu0 %v8409
    %9201 = vmatprep.subr.bf16.mxu0 %v8418
    %9202 = vmatpush1.bf16.msra.mxu0 %v8417
    %9203 = vmatprep.subr.bf16.mxu0 %v8426
    %9204 = vmatpush1.bf16.msra.mxu0 %v8425
    %9205 = vmatprep.subr.bf16.mxu0 %v8434
    %9206 = vmatpush1.bf16.msra.mxu0 %v8433
    %9207 = vmatprep.subr.bf16.mxu0 %v8442
    %9208 = vmatpush1.bf16.msra.mxu0 %v8441
    %9209 = vmatprep.subr.bf16.mxu0 %v8450
    %9210 = vmatpush1.bf16.msra.mxu0 %v8449
    %9211 = vmatprep.mubr.bf16.mxu0 %v5980
    %9212 = vmatmul.mubr.bf16.gmra.mrb[0].mxu0 %v5979
    %v9213 = vpop.f32.mrb[0].mxu0
    %v9214 = vadd.f32 %v9173, %v9213
    %v9215 = vpop.f32.mrb[0].mxu0
    %v9216 = vadd.f32 %v9175, %v9215
    %v9217 = vpop.f32.mrb[0].mxu0
    %v9218 = vpop.f32.mrb[0].mxu0
    %9219 = vdwg.mxu0
    %9220 = vmatprep.subr.bf16.mxu0 %v8458
    %9221 = vmatpush1.bf16.msra.mxu0 %v8457
    %9222 = vmatprep.subr.bf16.mxu0 %v8466
    %9223 = vmatpush1.bf16.msra.mxu0 %v8465
    %9224 = vmatprep.subr.bf16.mxu0 %v8474
    %9225 = vmatpush1.bf16.msra.mxu0 %v8473
    %9226 = vmatprep.subr.bf16.mxu0 %v8482
    %9227 = vmatpush1.bf16.msra.mxu0 %v8481
    %9228 = vmatprep.subr.bf16.mxu0 %v8490
    %9229 = vmatpush1.bf16.msra.mxu0 %v8489
    %9230 = vmatprep.subr.bf16.mxu0 %v8498
    %9231 = vmatpush1.bf16.msra.mxu0 %v8497
    %9232 = vmatprep.subr.bf16.mxu0 %v8506
    %9233 = vmatpush1.bf16.msra.mxu0 %v8505
    %9234 = vmatprep.subr.bf16.mxu0 %v8514
    %9235 = vmatpush1.bf16.msra.mxu0 %v8513
    %9236 = vmatprep.subr.bf16.mxu0 %v8522
    %9237 = vmatpush1.bf16.msra.mxu0 %v8521
    %9238 = vmatprep.subr.bf16.mxu0 %v8530
    %9239 = vmatpush1.bf16.msra.mxu0 %v8529
    %9240 = vmatprep.subr.bf16.mxu0 %v8538
    %9241 = vmatpush1.bf16.msra.mxu0 %v8537
    %9242 = vmatprep.subr.bf16.mxu0 %v8546
    %9243 = vmatpush1.bf16.msra.mxu0 %v8545
    %9244 = vmatprep.subr.bf16.mxu0 %v8554
    %9245 = vmatpush1.bf16.msra.mxu0 %v8553
    %9246 = vmatprep.subr.bf16.mxu0 %v8562
    %9247 = vmatpush1.bf16.msra.mxu0 %v8561
    %9248 = vmatprep.subr.bf16.mxu0 %v8570
    %9249 = vmatpush1.bf16.msra.mxu0 %v8569
    %9250 = vmatprep.subr.bf16.mxu0 %v8578
    %9251 = vmatpush1.bf16.msra.mxu0 %v8577
    %9252 = vmatprep.mubr.bf16.mxu0 %v5982
    %9253 = vmatmul.mubr.bf16.gmra.mrb[0].mxu0 %v5981
    %v9254 = vpop.f32.mrb[0].mxu0
    %v9255 = vadd.f32 %v9214, %v9254
    %v9256 = vpop.f32.mrb[0].mxu0
    %v9257 = vadd.f32 %v9216, %v9256
    %v9258 = vpop.f32.mrb[0].mxu0
    %v9259 = vpop.f32.mrb[0].mxu0
    %9260 = vdwg.mxu0
    %9261 = vmatprep.subr.bf16.mxu0 %v8076
    %9262 = vmatpush1.bf16.msra.mxu0 %v8075
    %9263 = vmatprep.subr.bf16.mxu0 %v8084
    %9264 = vmatpush1.bf16.msra.mxu0 %v8083
    %9265 = vmatprep.subr.bf16.mxu0 %v8092
    %9266 = vmatpush1.bf16.msra.mxu0 %v8091
    %9267 = vmatprep.subr.bf16.mxu0 %v8100
    %9268 = vmatpush1.bf16.msra.mxu0 %v8099
    %9269 = vmatprep.subr.bf16.mxu0 %v8108
    %9270 = vmatpush1.bf16.msra.mxu0 %v8107
    %9271 = vmatprep.subr.bf16.mxu0 %v8116
    %9272 = vmatpush1.bf16.msra.mxu0 %v8115
    %9273 = vmatprep.subr.bf16.mxu0 %v8124
    %9274 = vmatpush1.bf16.msra.mxu0 %v8123
    %9275 = vmatprep.subr.bf16.mxu0 %v8132
    %9276 = vmatpush1.bf16.msra.mxu0 %v8131
    %9277 = vmatprep.subr.bf16.mxu0 %v8140
    %9278 = vmatpush1.bf16.msra.mxu0 %v8139
    %9279 = vmatprep.subr.bf16.mxu0 %v8148
    %9280 = vmatpush1.bf16.msra.mxu0 %v8147
    %9281 = vmatprep.subr.bf16.mxu0 %v8156
    %9282 = vmatpush1.bf16.msra.mxu0 %v8155
    %9283 = vmatprep.subr.bf16.mxu0 %v8164
    %9284 = vmatpush1.bf16.msra.mxu0 %v8163
    %9285 = vmatprep.subr.bf16.mxu0 %v8172
    %9286 = vmatpush1.bf16.msra.mxu0 %v8171
    %9287 = vmatprep.subr.bf16.mxu0 %v8180
    %9288 = vmatpush1.bf16.msra.mxu0 %v8179
    %9289 = vmatprep.subr.bf16.mxu0 %v8188
    %9290 = vmatpush1.bf16.msra.mxu0 %v8187
    %9291 = vmatprep.subr.bf16.mxu0 %v8196
    %9292 = vmatpush1.bf16.msra.mxu0 %v8195
    %9293 = vmatprep.mubr.bf16.mxu0 %v5976
    %9294 = vmatmul.mubr.bf16.gmra.mrb[0].mxu0 %v5975
    %v9295 = vpop.f32.mrb[0].mxu0
    %v9296 = vadd.f32 %v6508, %v9295
    %v9297 = vpop.f32.mrb[0].mxu0
    %v9298 = vadd.f32 %v6512, %v9297
    %v9299 = vpop.f32.mrb[0].mxu0
    %v9300 = vpop.f32.mrb[0].mxu0
    %9301 = vdwg.mxu0
    %9302 = vmatprep.subr.bf16.mxu0 %v8204
    %9303 = vmatpush1.bf16.msra.mxu0 %v8203
    %9304 = vmatprep.subr.bf16.mxu0 %v8212
    %9305 = vmatpush1.bf16.msra.mxu0 %v8211
    %9306 = vmatprep.subr.bf16.mxu0 %v8220
    %9307 = vmatpush1.bf16.msra.mxu0 %v8219
    %9308 = vmatprep.subr.bf16.mxu0 %v8228
    %9309 = vmatpush1.bf16.msra.mxu0 %v8227
    %9310 = vmatprep.subr.bf16.mxu0 %v8236
    %9311 = vmatpush1.bf16.msra.mxu0 %v8235
    %9312 = vmatprep.subr.bf16.mxu0 %v8244
    %9313 = vmatpush1.bf16.msra.mxu0 %v8243
    %9314 = vmatprep.subr.bf16.mxu0 %v8252
    %9315 = vmatpush1.bf16.msra.mxu0 %v8251
    %9316 = vmatprep.subr.bf16.mxu0 %v8260
    %9317 = vmatpush1.bf16.msra.mxu0 %v8259
    %9318 = vmatprep.subr.bf16.mxu0 %v8268
    %9319 = vmatpush1.bf16.msra.mxu0 %v8267
    %9320 = vmatprep.subr.bf16.mxu0 %v8276
    %9321 = vmatpush1.bf16.msra.mxu0 %v8275
    %9322 = vmatprep.subr.bf16.mxu0 %v8284
    %9323 = vmatpush1.bf16.msra.mxu0 %v8283
    %9324 = vmatprep.subr.bf16.mxu0 %v8292
    %9325 = vmatpush1.bf16.msra.mxu0 %v8291
    %9326 = vmatprep.subr.bf16.mxu0 %v8300
    %9327 = vmatpush1.bf16.msra.mxu0 %v8299
    %9328 = vmatprep.subr.bf16.mxu0 %v8308
    %9329 = vmatpush1.bf16.msra.mxu0 %v8307
    %9330 = vmatprep.subr.bf16.mxu0 %v8316
    %9331 = vmatpush1.bf16.msra.mxu0 %v8315
    %9332 = vmatprep.subr.bf16.mxu0 %v8324
    %9333 = vmatpush1.bf16.msra.mxu0 %v8323
    %9334 = vmatprep.mubr.bf16.mxu0 %v5978
    %9335 = vmatmul.mubr.bf16.gmra.mrb[0].mxu0 %v5977
    %v9336 = vpop.f32.mrb[0].mxu0
    %v9337 = vadd.f32 %v9296, %v9336
    %v9338 = vpop.f32.mrb[0].mxu0
    %v9339 = vadd.f32 %v9298, %v9338
    %v9340 = vpop.f32.mrb[0].mxu0
    %v9341 = vpop.f32.mrb[0].mxu0
    %9342 = vdwg.mxu0
    %9343 = vmatprep.subr.bf16.mxu0 %v8332
    %9344 = vmatpush1.bf16.msra.mxu0 %v8331
    %9345 = vmatprep.subr.bf16.mxu0 %v8340
    %9346 = vmatpush1.bf16.msra.mxu0 %v8339
    %9347 = vmatprep.subr.bf16.mxu0 %v8348
    %9348 = vmatpush1.bf16.msra.mxu0 %v8347
    %9349 = vmatprep.subr.bf16.mxu0 %v8356
    %9350 = vmatpush1.bf16.msra.mxu0 %v8355
    %9351 = vmatprep.subr.bf16.mxu0 %v8364
    %9352 = vmatpush1.bf16.msra.mxu0 %v8363
    %9353 = vmatprep.subr.bf16.mxu0 %v8372
    %9354 = vmatpush1.bf16.msra.mxu0 %v8371
    %9355 = vmatprep.subr.bf16.mxu0 %v8380
    %9356 = vmatpush1.bf16.msra.mxu0 %v8379
    %9357 = vmatprep.subr.bf16.mxu0 %v8388
    %9358 = vmatpush1.bf16.msra.mxu0 %v8387
    %9359 = vmatprep.subr.bf16.mxu0 %v8396
    %9360 = vmatpush1.bf16.msra.mxu0 %v8395
    %9361 = vmatprep.subr.bf16.mxu0 %v8404
    %9362 = vmatpush1.bf16.msra.mxu0 %v8403
    %9363 = vmatprep.subr.bf16.mxu0 %v8412
    %9364 = vmatpush1.bf16.msra.mxu0 %v8411
    %9365 = vmatprep.subr.bf16.mxu0 %v8420
    %9366 = vmatpush1.bf16.msra.mxu0 %v8419
    %9367 = vmatprep.subr.bf16.mxu0 %v8428
    %9368 = vmatpush1.bf16.msra.mxu0 %v8427
    %9369 = vmatprep.subr.bf16.mxu0 %v8436
    %9370 = vmatpush1.bf16.msra.mxu0 %v8435
    %9371 = vmatprep.subr.bf16.mxu0 %v8444
    %9372 = vmatpush1.bf16.msra.mxu0 %v8443
    %9373 = vmatprep.subr.bf16.mxu0 %v8452
    %9374 = vmatpush1.bf16.msra.mxu0 %v8451
    %9375 = vmatprep.mubr.bf16.mxu0 %v5980
    %9376 = vmatmul.mubr.bf16.gmra.mrb[0].mxu0 %v5979
    %v9377 = vpop.f32.mrb[0].mxu0
    %v9378 = vadd.f32 %v9337, %v9377
    %v9379 = vpop.f32.mrb[0].mxu0
    %v9380 = vadd.f32 %v9339, %v9379
    %v9381 = vpop.f32.mrb[0].mxu0
    %v9382 = vpop.f32.mrb[0].mxu0
    %9383 = vdwg.mxu0
    %9384 = vmatprep.subr.bf16.mxu0 %v8460
    %9385 = vmatpush1.bf16.msra.mxu0 %v8459
    %9386 = vmatprep.subr.bf16.mxu0 %v8468
    %9387 = vmatpush1.bf16.msra.mxu0 %v8467
    %9388 = vmatprep.subr.bf16.mxu0 %v8476
    %9389 = vmatpush1.bf16.msra.mxu0 %v8475
    %9390 = vmatprep.subr.bf16.mxu0 %v8484
    %9391 = vmatpush1.bf16.msra.mxu0 %v8483
    %9392 = vmatprep.subr.bf16.mxu0 %v8492
    %9393 = vmatpush1.bf16.msra.mxu0 %v8491
    %9394 = vmatprep.subr.bf16.mxu0 %v8500
    %9395 = vmatpush1.bf16.msra.mxu0 %v8499
    %9396 = vmatprep.subr.bf16.mxu0 %v8508
    %9397 = vmatpush1.bf16.msra.mxu0 %v8507
    %9398 = vmatprep.subr.bf16.mxu0 %v8516
    %9399 = vmatpush1.bf16.msra.mxu0 %v8515
    %9400 = vmatprep.subr.bf16.mxu0 %v8524
    %9401 = vmatpush1.bf16.msra.mxu0 %v8523
    %9402 = vmatprep.subr.bf16.mxu0 %v8532
    %9403 = vmatpush1.bf16.msra.mxu0 %v8531
    %9404 = vmatprep.subr.bf16.mxu0 %v8540
    %9405 = vmatpush1.bf16.msra.mxu0 %v8539
    %9406 = vmatprep.subr.bf16.mxu0 %v8548
    %9407 = vmatpush1.bf16.msra.mxu0 %v8547
    %9408 = vmatprep.subr.bf16.mxu0 %v8556
    %9409 = vmatpush1.bf16.msra.mxu0 %v8555
    %9410 = vmatprep.subr.bf16.mxu0 %v8564
    %9411 = vmatpush1.bf16.msra.mxu0 %v8563
    %9412 = vmatprep.subr.bf16.mxu0 %v8572
    %9413 = vmatpush1.bf16.msra.mxu0 %v8571
    %9414 = vmatprep.subr.bf16.mxu0 %v8580
    %9415 = vmatpush1.bf16.msra.mxu0 %v8579
    %9416 = vmatprep.mubr.bf16.mxu0 %v5982
    %9417 = vmatmul.mubr.bf16.gmra.mrb[0].mxu0 %v5981
    %v9418 = vpop.f32.mrb[0].mxu0
    %v9419 = vadd.f32 %v9378, %v9418
    %v9420 = vpop.f32.mrb[0].mxu0
    %v9421 = vadd.f32 %v9380, %v9420
    %v9422 = vpop.f32.mrb[0].mxu0
    %v9423 = vpop.f32.mrb[0].mxu0
    %9424 = vdwg.mxu0
    %9425 = vmatprep.subr.bf16.mxu0 %v8078
    %9426 = vmatpush1.bf16.msra.mxu0 %v8077
    %9427 = vmatprep.subr.bf16.mxu0 %v8086
    %9428 = vmatpush1.bf16.msra.mxu0 %v8085
    %9429 = vmatprep.subr.bf16.mxu0 %v8094
    %9430 = vmatpush1.bf16.msra.mxu0 %v8093
    %9431 = vmatprep.subr.bf16.mxu0 %v8102
    %9432 = vmatpush1.bf16.msra.mxu0 %v8101
    %9433 = vmatprep.subr.bf16.mxu0 %v8110
    %9434 = vmatpush1.bf16.msra.mxu0 %v8109
    %9435 = vmatprep.subr.bf16.mxu0 %v8118
    %9436 = vmatpush1.bf16.msra.mxu0 %v8117
    %9437 = vmatprep.subr.bf16.mxu0 %v8126
    %9438 = vmatpush1.bf16.msra.mxu0 %v8125
    %9439 = vmatprep.subr.bf16.mxu0 %v8134
    %9440 = vmatpush1.bf16.msra.mxu0 %v8133
    %9441 = vmatprep.subr.bf16.mxu0 %v8142
    %9442 = vmatpush1.bf16.msra.mxu0 %v8141
    %9443 = vmatprep.subr.bf16.mxu0 %v8150
    %9444 = vmatpush1.bf16.msra.mxu0 %v8149
    %9445 = vmatprep.subr.bf16.mxu0 %v8158
    %9446 = vmatpush1.bf16.msra.mxu0 %v8157
    %9447 = vmatprep.subr.bf16.mxu0 %v8166
    %9448 = vmatpush1.bf16.msra.mxu0 %v8165
    %9449 = vmatprep.subr.bf16.mxu0 %v8174
    %9450 = vmatpush1.bf16.msra.mxu0 %v8173
    %9451 = vmatprep.subr.bf16.mxu0 %v8182
    %9452 = vmatpush1.bf16.msra.mxu0 %v8181
    %9453 = vmatprep.subr.bf16.mxu0 %v8190
    %9454 = vmatpush1.bf16.msra.mxu0 %v8189
    %9455 = vmatprep.subr.bf16.mxu0 %v8198
    %9456 = vmatpush1.bf16.msra.mxu0 %v8197
    %9457 = vmatprep.mubr.bf16.mxu0 %v5976
    %9458 = vmatmul.mubr.bf16.gmra.mrb[0].mxu0 %v5975
    %v9459 = vpop.f32.mrb[0].mxu0
    %v9460 = vadd.f32 %v6516, %v9459
    %v9461 = vpop.f32.mrb[0].mxu0
    %v9462 = vadd.f32 %v6520, %v9461
    %v9463 = vpop.f32.mrb[0].mxu0
    %v9464 = vpop.f32.mrb[0].mxu0
    %9465 = vdwg.mxu0
    %9466 = vmatprep.subr.bf16.mxu0 %v8206
    %9467 = vmatpush1.bf16.msra.mxu0 %v8205
    %9468 = vmatprep.subr.bf16.mxu0 %v8214
    %9469 = vmatpush1.bf16.msra.mxu0 %v8213
    %9470 = vmatprep.subr.bf16.mxu0 %v8222
    %9471 = vmatpush1.bf16.msra.mxu0 %v8221
    %9472 = vmatprep.subr.bf16.mxu0 %v8230
    %9473 = vmatpush1.bf16.msra.mxu0 %v8229
    %9474 = vmatprep.subr.bf16.mxu0 %v8238
    %9475 = vmatpush1.bf16.msra.mxu0 %v8237
    %9476 = vmatprep.subr.bf16.mxu0 %v8246
    %9477 = vmatpush1.bf16.msra.mxu0 %v8245
    %9478 = vmatprep.subr.bf16.mxu0 %v8254
    %9479 = vmatpush1.bf16.msra.mxu0 %v8253
    %9480 = vmatprep.subr.bf16.mxu0 %v8262
    %9481 = vmatpush1.bf16.msra.mxu0 %v8261
    %9482 = vmatprep.subr.bf16.mxu0 %v8270
    %9483 = vmatpush1.bf16.msra.mxu0 %v8269
    %9484 = vmatprep.subr.bf16.mxu0 %v8278
    %9485 = vmatpush1.bf16.msra.mxu0 %v8277
    %9486 = vmatprep.subr.bf16.mxu0 %v8286
    %9487 = vmatpush1.bf16.msra.mxu0 %v8285
    %9488 = vmatprep.subr.bf16.mxu0 %v8294
    %9489 = vmatpush1.bf16.msra.mxu0 %v8293
    %9490 = vmatprep.subr.bf16.mxu0 %v8302
    %9491 = vmatpush1.bf16.msra.mxu0 %v8301
    %9492 = vmatprep.subr.bf16.mxu0 %v8310
    %9493 = vmatpush1.bf16.msra.mxu0 %v8309
    %9494 = vmatprep.subr.bf16.mxu0 %v8318
    %9495 = vmatpush1.bf16.msra.mxu0 %v8317
    %9496 = vmatprep.subr.bf16.mxu0 %v8326
    %9497 = vmatpush1.bf16.msra.mxu0 %v8325
    %9498 = vmatprep.mubr.bf16.mxu0 %v5978
    %9499 = vmatmul.mubr.bf16.gmra.mrb[0].mxu0 %v5977
    %v9500 = vpop.f32.mrb[0].mxu0
    %v9501 = vadd.f32 %v9460, %v9500
    %v9502 = vpop.f32.mrb[0].mxu0
    %v9503 = vadd.f32 %v9462, %v9502
    %v9504 = vpop.f32.mrb[0].mxu0
    %v9505 = vpop.f32.mrb[0].mxu0
    %9506 = vdwg.mxu0
    %9507 = vmatprep.subr.bf16.mxu0 %v8334
    %9508 = vmatpush1.bf16.msra.mxu0 %v8333
    %9509 = vmatprep.subr.bf16.mxu0 %v8342
    %9510 = vmatpush1.bf16.msra.mxu0 %v8341
    %9511 = vmatprep.subr.bf16.mxu0 %v8350
    %9512 = vmatpush1.bf16.msra.mxu0 %v8349
    %9513 = vmatprep.subr.bf16.mxu0 %v8358
    %9514 = vmatpush1.bf16.msra.mxu0 %v8357
    %9515 = vmatprep.subr.bf16.mxu0 %v8366
    %9516 = vmatpush1.bf16.msra.mxu0 %v8365
    %9517 = vmatprep.subr.bf16.mxu0 %v8374
    %9518 = vmatpush1.bf16.msra.mxu0 %v8373
    %9519 = vmatprep.subr.bf16.mxu0 %v8382
    %9520 = vmatpush1.bf16.msra.mxu0 %v8381
    %9521 = vmatprep.subr.bf16.mxu0 %v8390
    %9522 = vmatpush1.bf16.msra.mxu0 %v8389
    %9523 = vmatprep.subr.bf16.mxu0 %v8398
    %9524 = vmatpush1.bf16.msra.mxu0 %v8397
    %9525 = vmatprep.subr.bf16.mxu0 %v8406
    %9526 = vmatpush1.bf16.msra.mxu0 %v8405
    %9527 = vmatprep.subr.bf16.mxu0 %v8414
    %9528 = vmatpush1.bf16.msra.mxu0 %v8413
    %9529 = vmatprep.subr.bf16.mxu0 %v8422
    %9530 = vmatpush1.bf16.msra.mxu0 %v8421
    %9531 = vmatprep.subr.bf16.mxu0 %v8430
    %9532 = vmatpush1.bf16.msra.mxu0 %v8429
    %9533 = vmatprep.subr.bf16.mxu0 %v8438
    %9534 = vmatpush1.bf16.msra.mxu0 %v8437
    %9535 = vmatprep.subr.bf16.mxu0 %v8446
    %9536 = vmatpush1.bf16.msra.mxu0 %v8445
    %9537 = vmatprep.subr.bf16.mxu0 %v8454
    %9538 = vmatpush1.bf16.msra.mxu0 %v8453
    %9539 = vmatprep.mubr.bf16.mxu0 %v5980
    %9540 = vmatmul.mubr.bf16.gmra.mrb[0].mxu0 %v5979
    %v9541 = vpop.f32.mrb[0].mxu0
    %v9542 = vadd.f32 %v9501, %v9541
    %v9543 = vpop.f32.mrb[0].mxu0
    %v9544 = vadd.f32 %v9503, %v9543
    %v9545 = vpop.f32.mrb[0].mxu0
    %v9546 = vpop.f32.mrb[0].mxu0
    %9547 = vdwg.mxu0
    %9548 = vmatprep.subr.bf16.mxu0 %v8462
    %9549 = vmatpush1.bf16.msra.mxu0 %v8461
    %9550 = vmatprep.subr.bf16.mxu0 %v8470
    %9551 = vmatpush1.bf16.msra.mxu0 %v8469
    %9552 = vmatprep.subr.bf16.mxu0 %v8478
    %9553 = vmatpush1.bf16.msra.mxu0 %v8477
    %9554 = vmatprep.subr.bf16.mxu0 %v8486
    %9555 = vmatpush1.bf16.msra.mxu0 %v8485
    %9556 = vmatprep.subr.bf16.mxu0 %v8494
    %9557 = vmatpush1.bf16.msra.mxu0 %v8493
    %9558 = vmatprep.subr.bf16.mxu0 %v8502
    %9559 = vmatpush1.bf16.msra.mxu0 %v8501
    %9560 = vmatprep.subr.bf16.mxu0 %v8510
    %9561 = vmatpush1.bf16.msra.mxu0 %v8509
    %9562 = vmatprep.subr.bf16.mxu0 %v8518
    %9563 = vmatpush1.bf16.msra.mxu0 %v8517
    %9564 = vmatprep.subr.bf16.mxu0 %v8526
    %9565 = vmatpush1.bf16.msra.mxu0 %v8525
    %9566 = vmatprep.subr.bf16.mxu0 %v8534
    %9567 = vmatpush1.bf16.msra.mxu0 %v8533
    %9568 = vmatprep.subr.bf16.mxu0 %v8542
    %9569 = vmatpush1.bf16.msra.mxu0 %v8541
    %9570 = vmatprep.subr.bf16.mxu0 %v8550
    %9571 = vmatpush1.bf16.msra.mxu0 %v8549
    %9572 = vmatprep.subr.bf16.mxu0 %v8558
    %9573 = vmatpush1.bf16.msra.mxu0 %v8557
    %9574 = vmatprep.subr.bf16.mxu0 %v8566
    %9575 = vmatpush1.bf16.msra.mxu0 %v8565
    %9576 = vmatprep.subr.bf16.mxu0 %v8574
    %9577 = vmatpush1.bf16.msra.mxu0 %v8573
    %9578 = vmatprep.subr.bf16.mxu0 %v8582
    %9579 = vmatpush1.bf16.msra.mxu0 %v8581
    %9580 = vmatprep.mubr.bf16.mxu0 %v5982
    %9581 = vmatmul.mubr.bf16.gmra.mrb[0].mxu0 %v5981
    %v9582 = vpop.f32.mrb[0].mxu0
    %v9583 = vadd.f32 %v9542, %v9582
    %v9584 = vpop.f32.mrb[0].mxu0
    %v9585 = vadd.f32 %v9544, %v9584
    %v9586 = vpop.f32.mrb[0].mxu0
    %v9587 = vpop.f32.mrb[0].mxu0
    %9588 = vdwg.mxu0
    %9589 = vmatprep.subr.bf16.mxu0 %v8080
    %9590 = vmatpush1.bf16.msra.mxu0 %v8079
    %9591 = vmatprep.subr.bf16.mxu0 %v8088
    %9592 = vmatpush1.bf16.msra.mxu0 %v8087
    %9593 = vmatprep.subr.bf16.mxu0 %v8096
    %9594 = vmatpush1.bf16.msra.mxu0 %v8095
    %9595 = vmatprep.subr.bf16.mxu0 %v8104
    %9596 = vmatpush1.bf16.msra.mxu0 %v8103
    %9597 = vmatprep.subr.bf16.mxu0 %v8112
    %9598 = vmatpush1.bf16.msra.mxu0 %v8111
    %9599 = vmatprep.subr.bf16.mxu0 %v8120
    %9600 = vmatpush1.bf16.msra.mxu0 %v8119
    %9601 = vmatprep.subr.bf16.mxu0 %v8128
    %9602 = vmatpush1.bf16.msra.mxu0 %v8127
    %9603 = vmatprep.subr.bf16.mxu0 %v8136
    %9604 = vmatpush1.bf16.msra.mxu0 %v8135
    %9605 = vmatprep.subr.bf16.mxu0 %v8144
    %9606 = vmatpush1.bf16.msra.mxu0 %v8143
    %9607 = vmatprep.subr.bf16.mxu0 %v8152
    %9608 = vmatpush1.bf16.msra.mxu0 %v8151
    %9609 = vmatprep.subr.bf16.mxu0 %v8160
    %9610 = vmatpush1.bf16.msra.mxu0 %v8159
    %9611 = vmatprep.subr.bf16.mxu0 %v8168
    %9612 = vmatpush1.bf16.msra.mxu0 %v8167
    %9613 = vmatprep.subr.bf16.mxu0 %v8176
    %9614 = vmatpush1.bf16.msra.mxu0 %v8175
    %9615 = vmatprep.subr.bf16.mxu0 %v8184
    %9616 = vmatpush1.bf16.msra.mxu0 %v8183
    %9617 = vmatprep.subr.bf16.mxu0 %v8192
    %9618 = vmatpush1.bf16.msra.mxu0 %v8191
    %9619 = vmatprep.subr.bf16.mxu0 %v8200
    %9620 = vmatpush1.bf16.msra.mxu0 %v8199
    %9621 = vmatprep.mubr.bf16.mxu0 %v5976
    %9622 = vmatmul.mubr.bf16.gmra.mrb[0].mxu0 %v5975
    %v9623 = vpop.f32.mrb[0].mxu0
    %v9624 = vadd.f32 %v6524, %v9623
    %v9625 = vpop.f32.mrb[0].mxu0
    %v9626 = vadd.f32 %v6528, %v9625
    %v9627 = vpop.f32.mrb[0].mxu0
    %v9628 = vpop.f32.mrb[0].mxu0
    %9629 = vdwg.mxu0
    %9630 = vmatprep.subr.bf16.mxu0 %v8208
    %9631 = vmatpush1.bf16.msra.mxu0 %v8207
    %9632 = vmatprep.subr.bf16.mxu0 %v8216
    %9633 = vmatpush1.bf16.msra.mxu0 %v8215
    %9634 = vmatprep.subr.bf16.mxu0 %v8224
    %9635 = vmatpush1.bf16.msra.mxu0 %v8223
    %9636 = vmatprep.subr.bf16.mxu0 %v8232
    %9637 = vmatpush1.bf16.msra.mxu0 %v8231
    %9638 = vmatprep.subr.bf16.mxu0 %v8240
    %9639 = vmatpush1.bf16.msra.mxu0 %v8239
    %9640 = vmatprep.subr.bf16.mxu0 %v8248
    %9641 = vmatpush1.bf16.msra.mxu0 %v8247
    %9642 = vmatprep.subr.bf16.mxu0 %v8256
    %9643 = vmatpush1.bf16.msra.mxu0 %v8255
    %9644 = vmatprep.subr.bf16.mxu0 %v8264
    %9645 = vmatpush1.bf16.msra.mxu0 %v8263
    %9646 = vmatprep.subr.bf16.mxu0 %v8272
    %9647 = vmatpush1.bf16.msra.mxu0 %v8271
    %9648 = vmatprep.subr.bf16.mxu0 %v8280
    %9649 = vmatpush1.bf16.msra.mxu0 %v8279
    %9650 = vmatprep.subr.bf16.mxu0 %v8288
    %9651 = vmatpush1.bf16.msra.mxu0 %v8287
    %9652 = vmatprep.subr.bf16.mxu0 %v8296
    %9653 = vmatpush1.bf16.msra.mxu0 %v8295
    %9654 = vmatprep.subr.bf16.mxu0 %v8304
    %9655 = vmatpush1.bf16.msra.mxu0 %v8303
    %9656 = vmatprep.subr.bf16.mxu0 %v8312
    %9657 = vmatpush1.bf16.msra.mxu0 %v8311
    %9658 = vmatprep.subr.bf16.mxu0 %v8320
    %9659 = vmatpush1.bf16.msra.mxu0 %v8319
    %9660 = vmatprep.subr.bf16.mxu0 %v8328
    %9661 = vmatpush1.bf16.msra.mxu0 %v8327
    %9662 = vmatprep.mubr.bf16.mxu0 %v5978
    %9663 = vmatmul.mubr.bf16.gmra.mrb[0].mxu0 %v5977
    %v9664 = vpop.f32.mrb[0].mxu0
    %v9665 = vadd.f32 %v9624, %v9664
    %v9666 = vpop.f32.mrb[0].mxu0
    %v9667 = vadd.f32 %v9626, %v9666
    %v9668 = vpop.f32.mrb[0].mxu0
    %v9669 = vpop.f32.mrb[0].mxu0
    %9670 = vdwg.mxu0
    %9671 = vmatprep.subr.bf16.mxu0 %v8336
    %9672 = vmatpush1.bf16.msra.mxu0 %v8335
    %9673 = vmatprep.subr.bf16.mxu0 %v8344
    %9674 = vmatpush1.bf16.msra.mxu0 %v8343
    %9675 = vmatprep.subr.bf16.mxu0 %v8352
    %9676 = vmatpush1.bf16.msra.mxu0 %v8351
    %9677 = vmatprep.subr.bf16.mxu0 %v8360
    %9678 = vmatpush1.bf16.msra.mxu0 %v8359
    %9679 = vmatprep.subr.bf16.mxu0 %v8368
    %9680 = vmatpush1.bf16.msra.mxu0 %v8367
    %9681 = vmatprep.subr.bf16.mxu0 %v8376
    %9682 = vmatpush1.bf16.msra.mxu0 %v8375
    %9683 = vmatprep.subr.bf16.mxu0 %v8384
    %9684 = vmatpush1.bf16.msra.mxu0 %v8383
    %9685 = vmatprep.subr.bf16.mxu0 %v8392
    %9686 = vmatpush1.bf16.msra.mxu0 %v8391
    %9687 = vmatprep.subr.bf16.mxu0 %v8400
    %9688 = vmatpush1.bf16.msra.mxu0 %v8399
    %9689 = vmatprep.subr.bf16.mxu0 %v8408
    %9690 = vmatpush1.bf16.msra.mxu0 %v8407
    %9691 = vmatprep.subr.bf16.mxu0 %v8416
    %9692 = vmatpush1.bf16.msra.mxu0 %v8415
    %9693 = vmatprep.subr.bf16.mxu0 %v8424
    %9694 = vmatpush1.bf16.msra.mxu0 %v8423
    %9695 = vmatprep.subr.bf16.mxu0 %v8432
    %9696 = vmatpush1.bf16.msra.mxu0 %v8431
    %9697 = vmatprep.subr.bf16.mxu0 %v8440
    %9698 = vmatpush1.bf16.msra.mxu0 %v8439
    %9699 = vmatprep.subr.bf16.mxu0 %v8448
    %9700 = vmatpush1.bf16.msra.mxu0 %v8447
    %9701 = vmatprep.subr.bf16.mxu0 %v8456
    %9702 = vmatpush1.bf16.msra.mxu0 %v8455
    %9703 = vmatprep.mubr.bf16.mxu0 %v5980
    %9704 = vmatmul.mubr.bf16.gmra.mrb[0].mxu0 %v5979
    %v9705 = vpop.f32.mrb[0].mxu0
    %v9706 = vadd.f32 %v9665, %v9705
    %v9707 = vpop.f32.mrb[0].mxu0
    %v9708 = vadd.f32 %v9667, %v9707
    %v9709 = vpop.f32.mrb[0].mxu0
    %v9710 = vpop.f32.mrb[0].mxu0
    %9711 = vdwg.mxu0
    %9712 = vmatprep.subr.bf16.mxu0 %v8464
    %9713 = vmatpush1.bf16.msra.mxu0 %v8463
    %9714 = vmatprep.subr.bf16.mxu0 %v8472
    %9715 = vmatpush1.bf16.msra.mxu0 %v8471
    %9716 = vmatprep.subr.bf16.mxu0 %v8480
    %9717 = vmatpush1.bf16.msra.mxu0 %v8479
    %9718 = vmatprep.subr.bf16.mxu0 %v8488
    %9719 = vmatpush1.bf16.msra.mxu0 %v8487
    %9720 = vmatprep.subr.bf16.mxu0 %v8496
    %9721 = vmatpush1.bf16.msra.mxu0 %v8495
    %9722 = vmatprep.subr.bf16.mxu0 %v8504
    %9723 = vmatpush1.bf16.msra.mxu0 %v8503
    %9724 = vmatprep.subr.bf16.mxu0 %v8512
    %9725 = vmatpush1.bf16.msra.mxu0 %v8511
    %9726 = vmatprep.subr.bf16.mxu0 %v8520
    %9727 = vmatpush1.bf16.msra.mxu0 %v8519
    %9728 = vmatprep.subr.bf16.mxu0 %v8528
    %9729 = vmatpush1.bf16.msra.mxu0 %v8527
    %9730 = vmatprep.subr.bf16.mxu0 %v8536
    %9731 = vmatpush1.bf16.msra.mxu0 %v8535
    %9732 = vmatprep.subr.bf16.mxu0 %v8544
    %9733 = vmatpush1.bf16.msra.mxu0 %v8543
    %9734 = vmatprep.subr.bf16.mxu0 %v8552
    %9735 = vmatpush1.bf16.msra.mxu0 %v8551
    %9736 = vmatprep.subr.bf16.mxu0 %v8560
    %9737 = vmatpush1.bf16.msra.mxu0 %v8559
    %9738 = vmatprep.subr.bf16.mxu0 %v8568
    %9739 = vmatpush1.bf16.msra.mxu0 %v8567
    %9740 = vmatprep.subr.bf16.mxu0 %v8576
    %9741 = vmatpush1.bf16.msra.mxu0 %v8575
    %9742 = vmatprep.subr.bf16.mxu0 %v8584
    %9743 = vmatpush1.bf16.msra.mxu0 %v8583
    %9744 = vmatprep.mubr.bf16.mxu0 %v5982
    %9745 = vmatmul.mubr.bf16.gmra.mrb[0].mxu0 %v5981
    %v9746 = vpop.f32.mrb[0].mxu0
    %v9747 = vadd.f32 %v9706, %v9746
    %v9748 = vpop.f32.mrb[0].mxu0
    %v9749 = vadd.f32 %v9708, %v9748
    %v9750 = vpop.f32.mrb[0].mxu0
    %v9751 = vpop.f32.mrb[0].mxu0
    %9752 = vdwg.mxu0
    %v9753 = vmax.f32 %v9255, 0.0
    %v9754 = vmax.f32 %v9257, 0.0
    %v9755 = vmax.f32 %v9419, 0.0
    %v9756 = vmax.f32 %v9421, 0.0
    %v9757 = vmax.f32 %v9583, 0.0
    %v9758 = vmax.f32 %v9585, 0.0
    %v9759 = vmax.f32 %v9747, 0.0
    %v9760 = vmax.f32 %v9749, 0.0
    %v9761 = vpack.c.bf16 %v9753, %v9753
    %v9762 = vpack.c.bf16 %v9754, %v9754
    %v9763 = vpack.c.bf16 %v9755, %v9755
    %v9764 = vpack.c.bf16 %v9756, %v9756
    %v9765 = vpack.c.bf16 %v9757, %v9757
    %v9766 = vpack.c.bf16 %v9758, %v9758
    %v9767 = vpack.c.bf16 %v9759, %v9759
    %v9768 = vpack.c.bf16 %v9760, %v9760
    %v9769 = vld [vmem:[#allocation13] sm:$0xff]
    %v9770 = vld [vmem:[#allocation13 + $0x8] sm:$0xff]
    %v9771 = vld [vmem:[#allocation13 + $0x10] sm:$0xff]
    %v9772 = vld [vmem:[#allocation13 + $0x18] sm:$0xff]
    %v9773 = vld [vmem:[#allocation13 + $0x20] sm:$0xff]
    %v9774 = vld [vmem:[#allocation13 + $0x28] sm:$0xff]
    %v9775 = vld [vmem:[#allocation13 + $0x30] sm:$0xff]
    %v9776 = vld [vmem:[#allocation13 + $0x38] sm:$0xff]
    %v9777 = vld [vmem:[#allocation13 + $0x40] sm:$0xff]
    %v9778 = vld [vmem:[#allocation13 + $0x48] sm:$0xff]
    %v9779 = vld [vmem:[#allocation13 + $0x50] sm:$0xff]
    %v9780 = vld [vmem:[#allocation13 + $0x58] sm:$0xff]
    %v9781 = vld [vmem:[#allocation13 + $0x60] sm:$0xff]
    %v9782 = vld [vmem:[#allocation13 + $0x68] sm:$0xff]
    %v9783 = vld [vmem:[#allocation13 + $0x70] sm:$0xff]
    %v9784 = vld [vmem:[#allocation13 + $0x78] sm:$0xff]
    %v9785 = vld [vmem:[#allocation13 + $0x80] sm:$0xff]
    %v9786 = vld [vmem:[#allocation13 + $0x88] sm:$0xff]
    %v9787 = vld [vmem:[#allocation13 + $0x90] sm:$0xff]
    %v9788 = vld [vmem:[#allocation13 + $0x98] sm:$0xff]
    %v9789 = vld [vmem:[#allocation13 + $0xa0] sm:$0xff]
    %v9790 = vld [vmem:[#allocation13 + $0xa8] sm:$0xff]
    %v9791 = vld [vmem:[#allocation13 + $0xb0] sm:$0xff]
    %v9792 = vld [vmem:[#allocation13 + $0xb8] sm:$0xff]
    %v9793 = vld [vmem:[#allocation13 + $0xc0] sm:$0xff]
    %v9794 = vld [vmem:[#allocation13 + $0xc8] sm:$0xff]
    %v9795 = vld [vmem:[#allocation13 + $0xd0] sm:$0xff]
    %v9796 = vld [vmem:[#allocation13 + $0xd8] sm:$0xff]
    %v9797 = vld [vmem:[#allocation13 + $0xe0] sm:$0xff]
    %v9798 = vld [vmem:[#allocation13 + $0xe8] sm:$0xff]
    %v9799 = vld [vmem:[#allocation13 + $0xf0] sm:$0xff]
    %v9800 = vld [vmem:[#allocation13 + $0xf8] sm:$0xff]
    %v9801 = vld [vmem:[#allocation13 + $0x100] sm:$0xff]
    %v9802 = vld [vmem:[#allocation13 + $0x108] sm:$0xff]
    %v9803 = vld [vmem:[#allocation13 + $0x110] sm:$0xff]
    %v9804 = vld [vmem:[#allocation13 + $0x118] sm:$0xff]
    %v9805 = vld [vmem:[#allocation13 + $0x120] sm:$0xff]
    %v9806 = vld [vmem:[#allocation13 + $0x128] sm:$0xff]
    %v9807 = vld [vmem:[#allocation13 + $0x130] sm:$0xff]
    %v9808 = vld [vmem:[#allocation13 + $0x138] sm:$0xff]
    %v9809 = vld [vmem:[#allocation13 + $0x140] sm:$0xff]
    %v9810 = vld [vmem:[#allocation13 + $0x148] sm:$0xff]
    %v9811 = vld [vmem:[#allocation13 + $0x150] sm:$0xff]
    %v9812 = vld [vmem:[#allocation13 + $0x158] sm:$0xff]
    %v9813 = vld [vmem:[#allocation13 + $0x160] sm:$0xff]
    %v9814 = vld [vmem:[#allocation13 + $0x168] sm:$0xff]
    %v9815 = vld [vmem:[#allocation13 + $0x170] sm:$0xff]
    %v9816 = vld [vmem:[#allocation13 + $0x178] sm:$0xff]
    %v9817 = vld [vmem:[#allocation13 + $0x180] sm:$0xff]
    %v9818 = vld [vmem:[#allocation13 + $0x188] sm:$0xff]
    %v9819 = vld [vmem:[#allocation13 + $0x190] sm:$0xff]
    %v9820 = vld [vmem:[#allocation13 + $0x198] sm:$0xff]
    %v9821 = vld [vmem:[#allocation13 + $0x1a0] sm:$0xff]
    %v9822 = vld [vmem:[#allocation13 + $0x1a8] sm:$0xff]
    %v9823 = vld [vmem:[#allocation13 + $0x1b0] sm:$0xff]
    %v9824 = vld [vmem:[#allocation13 + $0x1b8] sm:$0xff]
    %v9825 = vld [vmem:[#allocation13 + $0x1c0] sm:$0xff]
    %v9826 = vld [vmem:[#allocation13 + $0x1c8] sm:$0xff]
    %v9827 = vld [vmem:[#allocation13 + $0x1d0] sm:$0xff]
    %v9828 = vld [vmem:[#allocation13 + $0x1d8] sm:$0xff]
    %v9829 = vld [vmem:[#allocation13 + $0x1e0] sm:$0xff]
    %v9830 = vld [vmem:[#allocation13 + $0x1e8] sm:$0xff]
    %v9831 = vld [vmem:[#allocation13 + $0x1f0] sm:$0xff]
    %v9832 = vld [vmem:[#allocation13 + $0x1f8] sm:$0xff]
    %v9833 = vld [vmem:[#allocation13 + $0x200] sm:$0xff]
    %v9834 = vld [vmem:[#allocation13 + $0x208] sm:$0xff]
    %v9835 = vld [vmem:[#allocation13 + $0x210] sm:$0xff]
    %v9836 = vld [vmem:[#allocation13 + $0x218] sm:$0xff]
    %v9837 = vld [vmem:[#allocation13 + $0x220] sm:$0xff]
    %v9838 = vld [vmem:[#allocation13 + $0x228] sm:$0xff]
    %v9839 = vld [vmem:[#allocation13 + $0x230] sm:$0xff]
    %v9840 = vld [vmem:[#allocation13 + $0x238] sm:$0xff]
    %v9841 = vld [vmem:[#allocation13 + $0x240] sm:$0xff]
    %v9842 = vld [vmem:[#allocation13 + $0x248] sm:$0xff]
    %v9843 = vld [vmem:[#allocation13 + $0x250] sm:$0xff]
    %v9844 = vld [vmem:[#allocation13 + $0x258] sm:$0xff]
    %v9845 = vld [vmem:[#allocation13 + $0x260] sm:$0xff]
    %v9846 = vld [vmem:[#allocation13 + $0x268] sm:$0xff]
    %v9847 = vld [vmem:[#allocation13 + $0x270] sm:$0xff]
    %v9848 = vld [vmem:[#allocation13 + $0x278] sm:$0xff]
    %v9849 = vld [vmem:[#allocation13 + $0x280] sm:$0xff]
    %v9850 = vld [vmem:[#allocation13 + $0x288] sm:$0xff]
    %v9851 = vld [vmem:[#allocation13 + $0x290] sm:$0xff]
    %v9852 = vld [vmem:[#allocation13 + $0x298] sm:$0xff]
    %v9853 = vld [vmem:[#allocation13 + $0x2a0] sm:$0xff]
    %v9854 = vld [vmem:[#allocation13 + $0x2a8] sm:$0xff]
    %v9855 = vld [vmem:[#allocation13 + $0x2b0] sm:$0xff]
    %v9856 = vld [vmem:[#allocation13 + $0x2b8] sm:$0xff]
    %v9857 = vld [vmem:[#allocation13 + $0x2c0] sm:$0xff]
    %v9858 = vld [vmem:[#allocation13 + $0x2c8] sm:$0xff]
    %v9859 = vld [vmem:[#allocation13 + $0x2d0] sm:$0xff]
    %v9860 = vld [vmem:[#allocation13 + $0x2d8] sm:$0xff]
    %v9861 = vld [vmem:[#allocation13 + $0x2e0] sm:$0xff]
    %v9862 = vld [vmem:[#allocation13 + $0x2e8] sm:$0xff]
    %v9863 = vld [vmem:[#allocation13 + $0x2f0] sm:$0xff]
    %v9864 = vld [vmem:[#allocation13 + $0x2f8] sm:$0xff]
    %v9865 = vld [vmem:[#allocation13 + $0x300] sm:$0xff]
    %v9866 = vld [vmem:[#allocation13 + $0x308] sm:$0xff]
    %v9867 = vld [vmem:[#allocation13 + $0x310] sm:$0xff]
    %v9868 = vld [vmem:[#allocation13 + $0x318] sm:$0xff]
    %v9869 = vld [vmem:[#allocation13 + $0x320] sm:$0xff]
    %v9870 = vld [vmem:[#allocation13 + $0x328] sm:$0xff]
    %v9871 = vld [vmem:[#allocation13 + $0x330] sm:$0xff]
    %v9872 = vld [vmem:[#allocation13 + $0x338] sm:$0xff]
    %v9873 = vld [vmem:[#allocation13 + $0x340] sm:$0xff]
    %v9874 = vld [vmem:[#allocation13 + $0x348] sm:$0xff]
    %v9875 = vld [vmem:[#allocation13 + $0x350] sm:$0xff]
    %v9876 = vld [vmem:[#allocation13 + $0x358] sm:$0xff]
    %v9877 = vld [vmem:[#allocation13 + $0x360] sm:$0xff]
    %v9878 = vld [vmem:[#allocation13 + $0x368] sm:$0xff]
    %v9879 = vld [vmem:[#allocation13 + $0x370] sm:$0xff]
    %v9880 = vld [vmem:[#allocation13 + $0x378] sm:$0xff]
    %v9881 = vld [vmem:[#allocation13 + $0x380] sm:$0xff]
    %v9882 = vld [vmem:[#allocation13 + $0x388] sm:$0xff]
    %v9883 = vld [vmem:[#allocation13 + $0x390] sm:$0xff]
    %v9884 = vld [vmem:[#allocation13 + $0x398] sm:$0xff]
    %v9885 = vld [vmem:[#allocation13 + $0x3a0] sm:$0xff]
    %v9886 = vld [vmem:[#allocation13 + $0x3a8] sm:$0xff]
    %v9887 = vld [vmem:[#allocation13 + $0x3b0] sm:$0xff]
    %v9888 = vld [vmem:[#allocation13 + $0x3b8] sm:$0xff]
    %v9889 = vld [vmem:[#allocation13 + $0x3c0] sm:$0xff]
    %v9890 = vld [vmem:[#allocation13 + $0x3c8] sm:$0xff]
    %v9891 = vld [vmem:[#allocation13 + $0x3d0] sm:$0xff]
    %v9892 = vld [vmem:[#allocation13 + $0x3d8] sm:$0xff]
    %v9893 = vld [vmem:[#allocation13 + $0x3e0] sm:$0xff]
    %v9894 = vld [vmem:[#allocation13 + $0x3e8] sm:$0xff]
    %v9895 = vld [vmem:[#allocation13 + $0x3f0] sm:$0xff]
    %v9896 = vld [vmem:[#allocation13 + $0x3f8] sm:$0xff]
    %v9897 = vld [vmem:[#allocation13 + $0x400] sm:$0xff]
    %v9898 = vld [vmem:[#allocation13 + $0x408] sm:$0xff]
    %v9899 = vld [vmem:[#allocation13 + $0x410] sm:$0xff]
    %v9900 = vld [vmem:[#allocation13 + $0x418] sm:$0xff]
    %v9901 = vld [vmem:[#allocation13 + $0x420] sm:$0xff]
    %v9902 = vld [vmem:[#allocation13 + $0x428] sm:$0xff]
    %v9903 = vld [vmem:[#allocation13 + $0x430] sm:$0xff]
    %v9904 = vld [vmem:[#allocation13 + $0x438] sm:$0xff]
    %v9905 = vld [vmem:[#allocation13 + $0x440] sm:$0xff]
    %v9906 = vld [vmem:[#allocation13 + $0x448] sm:$0xff]
    %v9907 = vld [vmem:[#allocation13 + $0x450] sm:$0xff]
    %v9908 = vld [vmem:[#allocation13 + $0x458] sm:$0xff]
    %v9909 = vld [vmem:[#allocation13 + $0x460] sm:$0xff]
    %v9910 = vld [vmem:[#allocation13 + $0x468] sm:$0xff]
    %v9911 = vld [vmem:[#allocation13 + $0x470] sm:$0xff]
    %v9912 = vld [vmem:[#allocation13 + $0x478] sm:$0xff]
    %v9913 = vld [vmem:[#allocation13 + $0x480] sm:$0xff]
    %v9914 = vld [vmem:[#allocation13 + $0x488] sm:$0xff]
    %v9915 = vld [vmem:[#allocation13 + $0x490] sm:$0xff]
    %v9916 = vld [vmem:[#allocation13 + $0x498] sm:$0xff]
    %v9917 = vld [vmem:[#allocation13 + $0x4a0] sm:$0xff]
    %v9918 = vld [vmem:[#allocation13 + $0x4a8] sm:$0xff]
    %v9919 = vld [vmem:[#allocation13 + $0x4b0] sm:$0xff]
    %v9920 = vld [vmem:[#allocation13 + $0x4b8] sm:$0xff]
    %v9921 = vld [vmem:[#allocation13 + $0x4c0] sm:$0xff]
    %v9922 = vld [vmem:[#allocation13 + $0x4c8] sm:$0xff]
    %v9923 = vld [vmem:[#allocation13 + $0x4d0] sm:$0xff]
    %v9924 = vld [vmem:[#allocation13 + $0x4d8] sm:$0xff]
    %v9925 = vld [vmem:[#allocation13 + $0x4e0] sm:$0xff]
    %v9926 = vld [vmem:[#allocation13 + $0x4e8] sm:$0xff]
    %v9927 = vld [vmem:[#allocation13 + $0x4f0] sm:$0xff]
    %v9928 = vld [vmem:[#allocation13 + $0x4f8] sm:$0xff]
    %v9929 = vld [vmem:[#allocation13 + $0x500] sm:$0xff]
    %v9930 = vld [vmem:[#allocation13 + $0x508] sm:$0xff]
    %v9931 = vld [vmem:[#allocation13 + $0x510] sm:$0xff]
    %v9932 = vld [vmem:[#allocation13 + $0x518] sm:$0xff]
    %v9933 = vld [vmem:[#allocation13 + $0x520] sm:$0xff]
    %v9934 = vld [vmem:[#allocation13 + $0x528] sm:$0xff]
    %v9935 = vld [vmem:[#allocation13 + $0x530] sm:$0xff]
    %v9936 = vld [vmem:[#allocation13 + $0x538] sm:$0xff]
    %v9937 = vld [vmem:[#allocation13 + $0x540] sm:$0xff]
    %v9938 = vld [vmem:[#allocation13 + $0x548] sm:$0xff]
    %v9939 = vld [vmem:[#allocation13 + $0x550] sm:$0xff]
    %v9940 = vld [vmem:[#allocation13 + $0x558] sm:$0xff]
    %v9941 = vld [vmem:[#allocation13 + $0x560] sm:$0xff]
    %v9942 = vld [vmem:[#allocation13 + $0x568] sm:$0xff]
    %v9943 = vld [vmem:[#allocation13 + $0x570] sm:$0xff]
    %v9944 = vld [vmem:[#allocation13 + $0x578] sm:$0xff]
    %v9945 = vld [vmem:[#allocation13 + $0x580] sm:$0xff]
    %v9946 = vld [vmem:[#allocation13 + $0x588] sm:$0xff]
    %v9947 = vld [vmem:[#allocation13 + $0x590] sm:$0xff]
    %v9948 = vld [vmem:[#allocation13 + $0x598] sm:$0xff]
    %v9949 = vld [vmem:[#allocation13 + $0x5a0] sm:$0xff]
    %v9950 = vld [vmem:[#allocation13 + $0x5a8] sm:$0xff]
    %v9951 = vld [vmem:[#allocation13 + $0x5b0] sm:$0xff]
    %v9952 = vld [vmem:[#allocation13 + $0x5b8] sm:$0xff]
    %v9953 = vld [vmem:[#allocation13 + $0x5c0] sm:$0xff]
    %v9954 = vld [vmem:[#allocation13 + $0x5c8] sm:$0xff]
    %v9955 = vld [vmem:[#allocation13 + $0x5d0] sm:$0xff]
    %v9956 = vld [vmem:[#allocation13 + $0x5d8] sm:$0xff]
    %v9957 = vld [vmem:[#allocation13 + $0x5e0] sm:$0xff]
    %v9958 = vld [vmem:[#allocation13 + $0x5e8] sm:$0xff]
    %v9959 = vld [vmem:[#allocation13 + $0x5f0] sm:$0xff]
    %v9960 = vld [vmem:[#allocation13 + $0x5f8] sm:$0xff]
    %v9961 = vld [vmem:[#allocation13 + $0x600] sm:$0xff]
    %v9962 = vld [vmem:[#allocation13 + $0x608] sm:$0xff]
    %v9963 = vld [vmem:[#allocation13 + $0x610] sm:$0xff]
    %v9964 = vld [vmem:[#allocation13 + $0x618] sm:$0xff]
    %v9965 = vld [vmem:[#allocation13 + $0x620] sm:$0xff]
    %v9966 = vld [vmem:[#allocation13 + $0x628] sm:$0xff]
    %v9967 = vld [vmem:[#allocation13 + $0x630] sm:$0xff]
    %v9968 = vld [vmem:[#allocation13 + $0x638] sm:$0xff]
    %v9969 = vld [vmem:[#allocation13 + $0x640] sm:$0xff]
    %v9970 = vld [vmem:[#allocation13 + $0x648] sm:$0xff]
    %v9971 = vld [vmem:[#allocation13 + $0x650] sm:$0xff]
    %v9972 = vld [vmem:[#allocation13 + $0x658] sm:$0xff]
    %v9973 = vld [vmem:[#allocation13 + $0x660] sm:$0xff]
    %v9974 = vld [vmem:[#allocation13 + $0x668] sm:$0xff]
    %v9975 = vld [vmem:[#allocation13 + $0x670] sm:$0xff]
    %v9976 = vld [vmem:[#allocation13 + $0x678] sm:$0xff]
    %v9977 = vld [vmem:[#allocation13 + $0x680] sm:$0xff]
    %v9978 = vld [vmem:[#allocation13 + $0x688] sm:$0xff]
    %v9979 = vld [vmem:[#allocation13 + $0x690] sm:$0xff]
    %v9980 = vld [vmem:[#allocation13 + $0x698] sm:$0xff]
    %v9981 = vld [vmem:[#allocation13 + $0x6a0] sm:$0xff]
    %v9982 = vld [vmem:[#allocation13 + $0x6a8] sm:$0xff]
    %v9983 = vld [vmem:[#allocation13 + $0x6b0] sm:$0xff]
    %v9984 = vld [vmem:[#allocation13 + $0x6b8] sm:$0xff]
    %v9985 = vld [vmem:[#allocation13 + $0x6c0] sm:$0xff]
    %v9986 = vld [vmem:[#allocation13 + $0x6c8] sm:$0xff]
    %v9987 = vld [vmem:[#allocation13 + $0x6d0] sm:$0xff]
    %v9988 = vld [vmem:[#allocation13 + $0x6d8] sm:$0xff]
    %v9989 = vld [vmem:[#allocation13 + $0x6e0] sm:$0xff]
    %v9990 = vld [vmem:[#allocation13 + $0x6e8] sm:$0xff]
    %v9991 = vld [vmem:[#allocation13 + $0x6f0] sm:$0xff]
    %v9992 = vld [vmem:[#allocation13 + $0x6f8] sm:$0xff]
    %v9993 = vld [vmem:[#allocation13 + $0x700] sm:$0xff]
    %v9994 = vld [vmem:[#allocation13 + $0x708] sm:$0xff]
    %v9995 = vld [vmem:[#allocation13 + $0x710] sm:$0xff]
    %v9996 = vld [vmem:[#allocation13 + $0x718] sm:$0xff]
    %v9997 = vld [vmem:[#allocation13 + $0x720] sm:$0xff]
    %v9998 = vld [vmem:[#allocation13 + $0x728] sm:$0xff]
    %v9999 = vld [vmem:[#allocation13 + $0x730] sm:$0xff]
    %v10000 = vld [vmem:[#allocation13 + $0x738] sm:$0xff]
    %v10001 = vld [vmem:[#allocation13 + $0x740] sm:$0xff]
    %v10002 = vld [vmem:[#allocation13 + $0x748] sm:$0xff]
    %v10003 = vld [vmem:[#allocation13 + $0x750] sm:$0xff]
    %v10004 = vld [vmem:[#allocation13 + $0x758] sm:$0xff]
    %v10005 = vld [vmem:[#allocation13 + $0x760] sm:$0xff]
    %v10006 = vld [vmem:[#allocation13 + $0x768] sm:$0xff]
    %v10007 = vld [vmem:[#allocation13 + $0x770] sm:$0xff]
    %v10008 = vld [vmem:[#allocation13 + $0x778] sm:$0xff]
    %v10009 = vld [vmem:[#allocation13 + $0x780] sm:$0xff]
    %v10010 = vld [vmem:[#allocation13 + $0x788] sm:$0xff]
    %v10011 = vld [vmem:[#allocation13 + $0x790] sm:$0xff]
    %v10012 = vld [vmem:[#allocation13 + $0x798] sm:$0xff]
    %v10013 = vld [vmem:[#allocation13 + $0x7a0] sm:$0xff]
    %v10014 = vld [vmem:[#allocation13 + $0x7a8] sm:$0xff]
    %v10015 = vld [vmem:[#allocation13 + $0x7b0] sm:$0xff]
    %v10016 = vld [vmem:[#allocation13 + $0x7b8] sm:$0xff]
    %v10017 = vld [vmem:[#allocation13 + $0x7c0] sm:$0xff]
    %v10018 = vld [vmem:[#allocation13 + $0x7c8] sm:$0xff]
    %v10019 = vld [vmem:[#allocation13 + $0x7d0] sm:$0xff]
    %v10020 = vld [vmem:[#allocation13 + $0x7d8] sm:$0xff]
    %v10021 = vld [vmem:[#allocation13 + $0x7e0] sm:$0xff]
    %v10022 = vld [vmem:[#allocation13 + $0x7e8] sm:$0xff]
    %v10023 = vld [vmem:[#allocation13 + $0x7f0] sm:$0xff]
    %v10024 = vld [vmem:[#allocation13 + $0x7f8] sm:$0xff]
    %v10025 = vld [vmem:[#allocation14] sm:$0xf]
    %v10027 = vlaneseq
    %v10028 = vshrl.u32 %v10027, 7
    %v10029 = vsub.s32 0, %v10028
    %v10030 = vrot.slane %v10025, %v10029
    %v10031 = vlaneseq
    %v10032 = vshrl.u32 %v10031, 7
    %v10033 = vsub.s32 1, %v10032
    %v10034 = vrot.slane %v10025, %v10033
    %v10035 = vlaneseq
    %v10036 = vshrl.u32 %v10035, 7
    %v10037 = vsub.s32 2, %v10036
    %v10038 = vrot.slane %v10025, %v10037
    %v10039 = vlaneseq
    %v10040 = vshrl.u32 %v10039, 7
    %v10041 = vsub.s32 3, %v10040
    %v10042 = vrot.slane %v10025, %v10041
    %v10303 = vunpack.c.l.b16 %v9769
    %v10304 = vunpack.c.h.b16 %v9769
    %v10305 = vunpack.c.l.b16 %v9770
    %v10306 = vunpack.c.h.b16 %v9770
    %v10307 = vunpack.c.l.b16 %v9771
    %v10308 = vunpack.c.h.b16 %v9771
    %v10309 = vunpack.c.l.b16 %v9772
    %v10310 = vunpack.c.h.b16 %v9772
    %v10311 = vunpack.c.l.b16 %v9773
    %v10312 = vunpack.c.h.b16 %v9773
    %v10313 = vunpack.c.l.b16 %v9774
    %v10314 = vunpack.c.h.b16 %v9774
    %v10315 = vunpack.c.l.b16 %v9775
    %v10316 = vunpack.c.h.b16 %v9775
    %v10317 = vunpack.c.l.b16 %v9776
    %v10318 = vunpack.c.h.b16 %v9776
    %v10319 = vunpack.c.l.b16 %v9777
    %v10320 = vunpack.c.h.b16 %v9777
    %v10321 = vunpack.c.l.b16 %v9778
    %v10322 = vunpack.c.h.b16 %v9778
    %v10323 = vunpack.c.l.b16 %v9779
    %v10324 = vunpack.c.h.b16 %v9779
    %v10325 = vunpack.c.l.b16 %v9780
    %v10326 = vunpack.c.h.b16 %v9780
    %v10327 = vunpack.c.l.b16 %v9781
    %v10328 = vunpack.c.h.b16 %v9781
    %v10329 = vunpack.c.l.b16 %v9782
    %v10330 = vunpack.c.h.b16 %v9782
    %v10331 = vunpack.c.l.b16 %v9783
    %v10332 = vunpack.c.h.b16 %v9783
    %v10333 = vunpack.c.l.b16 %v9784
    %v10334 = vunpack.c.h.b16 %v9784
    %v10335 = vunpack.c.l.b16 %v9785
    %v10336 = vunpack.c.h.b16 %v9785
    %v10337 = vunpack.c.l.b16 %v9786
    %v10338 = vunpack.c.h.b16 %v9786
    %v10339 = vunpack.c.l.b16 %v9787
    %v10340 = vunpack.c.h.b16 %v9787
    %v10341 = vunpack.c.l.b16 %v9788
    %v10342 = vunpack.c.h.b16 %v9788
    %v10343 = vunpack.c.l.b16 %v9789
    %v10344 = vunpack.c.h.b16 %v9789
    %v10345 = vunpack.c.l.b16 %v9790
    %v10346 = vunpack.c.h.b16 %v9790
    %v10347 = vunpack.c.l.b16 %v9791
    %v10348 = vunpack.c.h.b16 %v9791
    %v10349 = vunpack.c.l.b16 %v9792
    %v10350 = vunpack.c.h.b16 %v9792
    %v10351 = vunpack.c.l.b16 %v9793
    %v10352 = vunpack.c.h.b16 %v9793
    %v10353 = vunpack.c.l.b16 %v9794
    %v10354 = vunpack.c.h.b16 %v9794
    %v10355 = vunpack.c.l.b16 %v9795
    %v10356 = vunpack.c.h.b16 %v9795
    %v10357 = vunpack.c.l.b16 %v9796
    %v10358 = vunpack.c.h.b16 %v9796
    %v10359 = vunpack.c.l.b16 %v9797
    %v10360 = vunpack.c.h.b16 %v9797
    %v10361 = vunpack.c.l.b16 %v9798
    %v10362 = vunpack.c.h.b16 %v9798
    %v10363 = vunpack.c.l.b16 %v9799
    %v10364 = vunpack.c.h.b16 %v9799
    %v10365 = vunpack.c.l.b16 %v9800
    %v10366 = vunpack.c.h.b16 %v9800
    %v10367 = vunpack.c.l.b16 %v9801
    %v10368 = vunpack.c.h.b16 %v9801
    %v10369 = vunpack.c.l.b16 %v9802
    %v10370 = vunpack.c.h.b16 %v9802
    %v10371 = vunpack.c.l.b16 %v9803
    %v10372 = vunpack.c.h.b16 %v9803
    %v10373 = vunpack.c.l.b16 %v9804
    %v10374 = vunpack.c.h.b16 %v9804
    %v10375 = vunpack.c.l.b16 %v9805
    %v10376 = vunpack.c.h.b16 %v9805
    %v10377 = vunpack.c.l.b16 %v9806
    %v10378 = vunpack.c.h.b16 %v9806
    %v10379 = vunpack.c.l.b16 %v9807
    %v10380 = vunpack.c.h.b16 %v9807
    %v10381 = vunpack.c.l.b16 %v9808
    %v10382 = vunpack.c.h.b16 %v9808
    %v10383 = vunpack.c.l.b16 %v9809
    %v10384 = vunpack.c.h.b16 %v9809
    %v10385 = vunpack.c.l.b16 %v9810
    %v10386 = vunpack.c.h.b16 %v9810
    %v10387 = vunpack.c.l.b16 %v9811
    %v10388 = vunpack.c.h.b16 %v9811
    %v10389 = vunpack.c.l.b16 %v9812
    %v10390 = vunpack.c.h.b16 %v9812
    %v10391 = vunpack.c.l.b16 %v9813
    %v10392 = vunpack.c.h.b16 %v9813
    %v10393 = vunpack.c.l.b16 %v9814
    %v10394 = vunpack.c.h.b16 %v9814
    %v10395 = vunpack.c.l.b16 %v9815
    %v10396 = vunpack.c.h.b16 %v9815
    %v10397 = vunpack.c.l.b16 %v9816
    %v10398 = vunpack.c.h.b16 %v9816
    %v10399 = vunpack.c.l.b16 %v9817
    %v10400 = vunpack.c.h.b16 %v9817
    %v10401 = vunpack.c.l.b16 %v9818
    %v10402 = vunpack.c.h.b16 %v9818
    %v10403 = vunpack.c.l.b16 %v9819
    %v10404 = vunpack.c.h.b16 %v9819
    %v10405 = vunpack.c.l.b16 %v9820
    %v10406 = vunpack.c.h.b16 %v9820
    %v10407 = vunpack.c.l.b16 %v9821
    %v10408 = vunpack.c.h.b16 %v9821
    %v10409 = vunpack.c.l.b16 %v9822
    %v10410 = vunpack.c.h.b16 %v9822
    %v10411 = vunpack.c.l.b16 %v9823
    %v10412 = vunpack.c.h.b16 %v9823
    %v10413 = vunpack.c.l.b16 %v9824
    %v10414 = vunpack.c.h.b16 %v9824
    %v10415 = vunpack.c.l.b16 %v9825
    %v10416 = vunpack.c.h.b16 %v9825
    %v10417 = vunpack.c.l.b16 %v9826
    %v10418 = vunpack.c.h.b16 %v9826
    %v10419 = vunpack.c.l.b16 %v9827
    %v10420 = vunpack.c.h.b16 %v9827
    %v10421 = vunpack.c.l.b16 %v9828
    %v10422 = vunpack.c.h.b16 %v9828
    %v10423 = vunpack.c.l.b16 %v9829
    %v10424 = vunpack.c.h.b16 %v9829
    %v10425 = vunpack.c.l.b16 %v9830
    %v10426 = vunpack.c.h.b16 %v9830
    %v10427 = vunpack.c.l.b16 %v9831
    %v10428 = vunpack.c.h.b16 %v9831
    %v10429 = vunpack.c.l.b16 %v9832
    %v10430 = vunpack.c.h.b16 %v9832
    %v10431 = vunpack.c.l.b16 %v9833
    %v10432 = vunpack.c.h.b16 %v9833
    %v10433 = vunpack.c.l.b16 %v9834
    %v10434 = vunpack.c.h.b16 %v9834
    %v10435 = vunpack.c.l.b16 %v9835
    %v10436 = vunpack.c.h.b16 %v9835
    %v10437 = vunpack.c.l.b16 %v9836
    %v10438 = vunpack.c.h.b16 %v9836
    %v10439 = vunpack.c.l.b16 %v9837
    %v10440 = vunpack.c.h.b16 %v9837
    %v10441 = vunpack.c.l.b16 %v9838
    %v10442 = vunpack.c.h.b16 %v9838
    %v10443 = vunpack.c.l.b16 %v9839
    %v10444 = vunpack.c.h.b16 %v9839
    %v10445 = vunpack.c.l.b16 %v9840
    %v10446 = vunpack.c.h.b16 %v9840
    %v10447 = vunpack.c.l.b16 %v9841
    %v10448 = vunpack.c.h.b16 %v9841
    %v10449 = vunpack.c.l.b16 %v9842
    %v10450 = vunpack.c.h.b16 %v9842
    %v10451 = vunpack.c.l.b16 %v9843
    %v10452 = vunpack.c.h.b16 %v9843
    %v10453 = vunpack.c.l.b16 %v9844
    %v10454 = vunpack.c.h.b16 %v9844
    %v10455 = vunpack.c.l.b16 %v9845
    %v10456 = vunpack.c.h.b16 %v9845
    %v10457 = vunpack.c.l.b16 %v9846
    %v10458 = vunpack.c.h.b16 %v9846
    %v10459 = vunpack.c.l.b16 %v9847
    %v10460 = vunpack.c.h.b16 %v9847
    %v10461 = vunpack.c.l.b16 %v9848
    %v10462 = vunpack.c.h.b16 %v9848
    %v10463 = vunpack.c.l.b16 %v9849
    %v10464 = vunpack.c.h.b16 %v9849
    %v10465 = vunpack.c.l.b16 %v9850
    %v10466 = vunpack.c.h.b16 %v9850
    %v10467 = vunpack.c.l.b16 %v9851
    %v10468 = vunpack.c.h.b16 %v9851
    %v10469 = vunpack.c.l.b16 %v9852
    %v10470 = vunpack.c.h.b16 %v9852
    %v10471 = vunpack.c.l.b16 %v9853
    %v10472 = vunpack.c.h.b16 %v9853
    %v10473 = vunpack.c.l.b16 %v9854
    %v10474 = vunpack.c.h.b16 %v9854
    %v10475 = vunpack.c.l.b16 %v9855
    %v10476 = vunpack.c.h.b16 %v9855
    %v10477 = vunpack.c.l.b16 %v9856
    %v10478 = vunpack.c.h.b16 %v9856
    %v10479 = vunpack.c.l.b16 %v9857
    %v10480 = vunpack.c.h.b16 %v9857
    %v10481 = vunpack.c.l.b16 %v9858
    %v10482 = vunpack.c.h.b16 %v9858
    %v10483 = vunpack.c.l.b16 %v9859
    %v10484 = vunpack.c.h.b16 %v9859
    %v10485 = vunpack.c.l.b16 %v9860
    %v10486 = vunpack.c.h.b16 %v9860
    %v10487 = vunpack.c.l.b16 %v9861
    %v10488 = vunpack.c.h.b16 %v9861
    %v10489 = vunpack.c.l.b16 %v9862
    %v10490 = vunpack.c.h.b16 %v9862
    %v10491 = vunpack.c.l.b16 %v9863
    %v10492 = vunpack.c.h.b16 %v9863
    %v10493 = vunpack.c.l.b16 %v9864
    %v10494 = vunpack.c.h.b16 %v9864
    %v10495 = vunpack.c.l.b16 %v9865
    %v10496 = vunpack.c.h.b16 %v9865
    %v10497 = vunpack.c.l.b16 %v9866
    %v10498 = vunpack.c.h.b16 %v9866
    %v10499 = vunpack.c.l.b16 %v9867
    %v10500 = vunpack.c.h.b16 %v9867
    %v10501 = vunpack.c.l.b16 %v9868
    %v10502 = vunpack.c.h.b16 %v9868
    %v10503 = vunpack.c.l.b16 %v9869
    %v10504 = vunpack.c.h.b16 %v9869
    %v10505 = vunpack.c.l.b16 %v9870
    %v10506 = vunpack.c.h.b16 %v9870
    %v10507 = vunpack.c.l.b16 %v9871
    %v10508 = vunpack.c.h.b16 %v9871
    %v10509 = vunpack.c.l.b16 %v9872
    %v10510 = vunpack.c.h.b16 %v9872
    %v10511 = vunpack.c.l.b16 %v9873
    %v10512 = vunpack.c.h.b16 %v9873
    %v10513 = vunpack.c.l.b16 %v9874
    %v10514 = vunpack.c.h.b16 %v9874
    %v10515 = vunpack.c.l.b16 %v9875
    %v10516 = vunpack.c.h.b16 %v9875
    %v10517 = vunpack.c.l.b16 %v9876
    %v10518 = vunpack.c.h.b16 %v9876
    %v10519 = vunpack.c.l.b16 %v9877
    %v10520 = vunpack.c.h.b16 %v9877
    %v10521 = vunpack.c.l.b16 %v9878
    %v10522 = vunpack.c.h.b16 %v9878
    %v10523 = vunpack.c.l.b16 %v9879
    %v10524 = vunpack.c.h.b16 %v9879
    %v10525 = vunpack.c.l.b16 %v9880
    %v10526 = vunpack.c.h.b16 %v9880
    %v10527 = vunpack.c.l.b16 %v9881
    %v10528 = vunpack.c.h.b16 %v9881
    %v10529 = vunpack.c.l.b16 %v9882
    %v10530 = vunpack.c.h.b16 %v9882
    %v10531 = vunpack.c.l.b16 %v9883
    %v10532 = vunpack.c.h.b16 %v9883
    %v10533 = vunpack.c.l.b16 %v9884
    %v10534 = vunpack.c.h.b16 %v9884
    %v10535 = vunpack.c.l.b16 %v9885
    %v10536 = vunpack.c.h.b16 %v9885
    %v10537 = vunpack.c.l.b16 %v9886
    %v10538 = vunpack.c.h.b16 %v9886
    %v10539 = vunpack.c.l.b16 %v9887
    %v10540 = vunpack.c.h.b16 %v9887
    %v10541 = vunpack.c.l.b16 %v9888
    %v10542 = vunpack.c.h.b16 %v9888
    %v10543 = vunpack.c.l.b16 %v9889
    %v10544 = vunpack.c.h.b16 %v9889
    %v10545 = vunpack.c.l.b16 %v9890
    %v10546 = vunpack.c.h.b16 %v9890
    %v10547 = vunpack.c.l.b16 %v9891
    %v10548 = vunpack.c.h.b16 %v9891
    %v10549 = vunpack.c.l.b16 %v9892
    %v10550 = vunpack.c.h.b16 %v9892
    %v10551 = vunpack.c.l.b16 %v9893
    %v10552 = vunpack.c.h.b16 %v9893
    %v10553 = vunpack.c.l.b16 %v9894
    %v10554 = vunpack.c.h.b16 %v9894
    %v10555 = vunpack.c.l.b16 %v9895
    %v10556 = vunpack.c.h.b16 %v9895
    %v10557 = vunpack.c.l.b16 %v9896
    %v10558 = vunpack.c.h.b16 %v9896
    %v10559 = vunpack.c.l.b16 %v9897
    %v10560 = vunpack.c.h.b16 %v9897
    %v10561 = vunpack.c.l.b16 %v9898
    %v10562 = vunpack.c.h.b16 %v9898
    %v10563 = vunpack.c.l.b16 %v9899
    %v10564 = vunpack.c.h.b16 %v9899
    %v10565 = vunpack.c.l.b16 %v9900
    %v10566 = vunpack.c.h.b16 %v9900
    %v10567 = vunpack.c.l.b16 %v9901
    %v10568 = vunpack.c.h.b16 %v9901
    %v10569 = vunpack.c.l.b16 %v9902
    %v10570 = vunpack.c.h.b16 %v9902
    %v10571 = vunpack.c.l.b16 %v9903
    %v10572 = vunpack.c.h.b16 %v9903
    %v10573 = vunpack.c.l.b16 %v9904
    %v10574 = vunpack.c.h.b16 %v9904
    %v10575 = vunpack.c.l.b16 %v9905
    %v10576 = vunpack.c.h.b16 %v9905
    %v10577 = vunpack.c.l.b16 %v9906
    %v10578 = vunpack.c.h.b16 %v9906
    %v10579 = vunpack.c.l.b16 %v9907
    %v10580 = vunpack.c.h.b16 %v9907
    %v10581 = vunpack.c.l.b16 %v9908
    %v10582 = vunpack.c.h.b16 %v9908
    %v10583 = vunpack.c.l.b16 %v9909
    %v10584 = vunpack.c.h.b16 %v9909
    %v10585 = vunpack.c.l.b16 %v9910
    %v10586 = vunpack.c.h.b16 %v9910
    %v10587 = vunpack.c.l.b16 %v9911
    %v10588 = vunpack.c.h.b16 %v9911
    %v10589 = vunpack.c.l.b16 %v9912
    %v10590 = vunpack.c.h.b16 %v9912
    %v10591 = vunpack.c.l.b16 %v9913
    %v10592 = vunpack.c.h.b16 %v9913
    %v10593 = vunpack.c.l.b16 %v9914
    %v10594 = vunpack.c.h.b16 %v9914
    %v10595 = vunpack.c.l.b16 %v9915
    %v10596 = vunpack.c.h.b16 %v9915
    %v10597 = vunpack.c.l.b16 %v9916
    %v10598 = vunpack.c.h.b16 %v9916
    %v10599 = vunpack.c.l.b16 %v9917
    %v10600 = vunpack.c.h.b16 %v9917
    %v10601 = vunpack.c.l.b16 %v9918
    %v10602 = vunpack.c.h.b16 %v9918
    %v10603 = vunpack.c.l.b16 %v9919
    %v10604 = vunpack.c.h.b16 %v9919
    %v10605 = vunpack.c.l.b16 %v9920
    %v10606 = vunpack.c.h.b16 %v9920
    %v10607 = vunpack.c.l.b16 %v9921
    %v10608 = vunpack.c.h.b16 %v9921
    %v10609 = vunpack.c.l.b16 %v9922
    %v10610 = vunpack.c.h.b16 %v9922
    %v10611 = vunpack.c.l.b16 %v9923
    %v10612 = vunpack.c.h.b16 %v9923
    %v10613 = vunpack.c.l.b16 %v9924
    %v10614 = vunpack.c.h.b16 %v9924
    %v10615 = vunpack.c.l.b16 %v9925
    %v10616 = vunpack.c.h.b16 %v9925
    %v10617 = vunpack.c.l.b16 %v9926
    %v10618 = vunpack.c.h.b16 %v9926
    %v10619 = vunpack.c.l.b16 %v9927
    %v10620 = vunpack.c.h.b16 %v9927
    %v10621 = vunpack.c.l.b16 %v9928
    %v10622 = vunpack.c.h.b16 %v9928
    %v10623 = vunpack.c.l.b16 %v9929
    %v10624 = vunpack.c.h.b16 %v9929
    %v10625 = vunpack.c.l.b16 %v9930
    %v10626 = vunpack.c.h.b16 %v9930
    %v10627 = vunpack.c.l.b16 %v9931
    %v10628 = vunpack.c.h.b16 %v9931
    %v10629 = vunpack.c.l.b16 %v9932
    %v10630 = vunpack.c.h.b16 %v9932
    %v10631 = vunpack.c.l.b16 %v9933
    %v10632 = vunpack.c.h.b16 %v9933
    %v10633 = vunpack.c.l.b16 %v9934
    %v10634 = vunpack.c.h.b16 %v9934
    %v10635 = vunpack.c.l.b16 %v9935
    %v10636 = vunpack.c.h.b16 %v9935
    %v10637 = vunpack.c.l.b16 %v9936
    %v10638 = vunpack.c.h.b16 %v9936
    %v10639 = vunpack.c.l.b16 %v9937
    %v10640 = vunpack.c.h.b16 %v9937
    %v10641 = vunpack.c.l.b16 %v9938
    %v10642 = vunpack.c.h.b16 %v9938
    %v10643 = vunpack.c.l.b16 %v9939
    %v10644 = vunpack.c.h.b16 %v9939
    %v10645 = vunpack.c.l.b16 %v9940
    %v10646 = vunpack.c.h.b16 %v9940
    %v10647 = vunpack.c.l.b16 %v9941
    %v10648 = vunpack.c.h.b16 %v9941
    %v10649 = vunpack.c.l.b16 %v9942
    %v10650 = vunpack.c.h.b16 %v9942
    %v10651 = vunpack.c.l.b16 %v9943
    %v10652 = vunpack.c.h.b16 %v9943
    %v10653 = vunpack.c.l.b16 %v9944
    %v10654 = vunpack.c.h.b16 %v9944
    %v10655 = vunpack.c.l.b16 %v9945
    %v10656 = vunpack.c.h.b16 %v9945
    %v10657 = vunpack.c.l.b16 %v9946
    %v10658 = vunpack.c.h.b16 %v9946
    %v10659 = vunpack.c.l.b16 %v9947
    %v10660 = vunpack.c.h.b16 %v9947
    %v10661 = vunpack.c.l.b16 %v9948
    %v10662 = vunpack.c.h.b16 %v9948
    %v10663 = vunpack.c.l.b16 %v9949
    %v10664 = vunpack.c.h.b16 %v9949
    %v10665 = vunpack.c.l.b16 %v9950
    %v10666 = vunpack.c.h.b16 %v9950
    %v10667 = vunpack.c.l.b16 %v9951
    %v10668 = vunpack.c.h.b16 %v9951
    %v10669 = vunpack.c.l.b16 %v9952
    %v10670 = vunpack.c.h.b16 %v9952
    %v10671 = vunpack.c.l.b16 %v9953
    %v10672 = vunpack.c.h.b16 %v9953
    %v10673 = vunpack.c.l.b16 %v9954
    %v10674 = vunpack.c.h.b16 %v9954
    %v10675 = vunpack.c.l.b16 %v9955
    %v10676 = vunpack.c.h.b16 %v9955
    %v10677 = vunpack.c.l.b16 %v9956
    %v10678 = vunpack.c.h.b16 %v9956
    %v10679 = vunpack.c.l.b16 %v9957
    %v10680 = vunpack.c.h.b16 %v9957
    %v10681 = vunpack.c.l.b16 %v9958
    %v10682 = vunpack.c.h.b16 %v9958
    %v10683 = vunpack.c.l.b16 %v9959
    %v10684 = vunpack.c.h.b16 %v9959
    %v10685 = vunpack.c.l.b16 %v9960
    %v10686 = vunpack.c.h.b16 %v9960
    %v10687 = vunpack.c.l.b16 %v9961
    %v10688 = vunpack.c.h.b16 %v9961
    %v10689 = vunpack.c.l.b16 %v9962
    %v10690 = vunpack.c.h.b16 %v9962
    %v10691 = vunpack.c.l.b16 %v9963
    %v10692 = vunpack.c.h.b16 %v9963
    %v10693 = vunpack.c.l.b16 %v9964
    %v10694 = vunpack.c.h.b16 %v9964
    %v10695 = vunpack.c.l.b16 %v9965
    %v10696 = vunpack.c.h.b16 %v9965
    %v10697 = vunpack.c.l.b16 %v9966
    %v10698 = vunpack.c.h.b16 %v9966
    %v10699 = vunpack.c.l.b16 %v9967
    %v10700 = vunpack.c.h.b16 %v9967
    %v10701 = vunpack.c.l.b16 %v9968
    %v10702 = vunpack.c.h.b16 %v9968
    %v10703 = vunpack.c.l.b16 %v9969
    %v10704 = vunpack.c.h.b16 %v9969
    %v10705 = vunpack.c.l.b16 %v9970
    %v10706 = vunpack.c.h.b16 %v9970
    %v10707 = vunpack.c.l.b16 %v9971
    %v10708 = vunpack.c.h.b16 %v9971
    %v10709 = vunpack.c.l.b16 %v9972
    %v10710 = vunpack.c.h.b16 %v9972
    %v10711 = vunpack.c.l.b16 %v9973
    %v10712 = vunpack.c.h.b16 %v9973
    %v10713 = vunpack.c.l.b16 %v9974
    %v10714 = vunpack.c.h.b16 %v9974
    %v10715 = vunpack.c.l.b16 %v9975
    %v10716 = vunpack.c.h.b16 %v9975
    %v10717 = vunpack.c.l.b16 %v9976
    %v10718 = vunpack.c.h.b16 %v9976
    %v10719 = vunpack.c.l.b16 %v9977
    %v10720 = vunpack.c.h.b16 %v9977
    %v10721 = vunpack.c.l.b16 %v9978
    %v10722 = vunpack.c.h.b16 %v9978
    %v10723 = vunpack.c.l.b16 %v9979
    %v10724 = vunpack.c.h.b16 %v9979
    %v10725 = vunpack.c.l.b16 %v9980
    %v10726 = vunpack.c.h.b16 %v9980
    %v10727 = vunpack.c.l.b16 %v9981
    %v10728 = vunpack.c.h.b16 %v9981
    %v10729 = vunpack.c.l.b16 %v9982
    %v10730 = vunpack.c.h.b16 %v9982
    %v10731 = vunpack.c.l.b16 %v9983
    %v10732 = vunpack.c.h.b16 %v9983
    %v10733 = vunpack.c.l.b16 %v9984
    %v10734 = vunpack.c.h.b16 %v9984
    %v10735 = vunpack.c.l.b16 %v9985
    %v10736 = vunpack.c.h.b16 %v9985
    %v10737 = vunpack.c.l.b16 %v9986
    %v10738 = vunpack.c.h.b16 %v9986
    %v10739 = vunpack.c.l.b16 %v9987
    %v10740 = vunpack.c.h.b16 %v9987
    %v10741 = vunpack.c.l.b16 %v9988
    %v10742 = vunpack.c.h.b16 %v9988
    %v10743 = vunpack.c.l.b16 %v9989
    %v10744 = vunpack.c.h.b16 %v9989
    %v10745 = vunpack.c.l.b16 %v9990
    %v10746 = vunpack.c.h.b16 %v9990
    %v10747 = vunpack.c.l.b16 %v9991
    %v10748 = vunpack.c.h.b16 %v9991
    %v10749 = vunpack.c.l.b16 %v9992
    %v10750 = vunpack.c.h.b16 %v9992
    %v10751 = vunpack.c.l.b16 %v9993
    %v10752 = vunpack.c.h.b16 %v9993
    %v10753 = vunpack.c.l.b16 %v9994
    %v10754 = vunpack.c.h.b16 %v9994
    %v10755 = vunpack.c.l.b16 %v9995
    %v10756 = vunpack.c.h.b16 %v9995
    %v10757 = vunpack.c.l.b16 %v9996
    %v10758 = vunpack.c.h.b16 %v9996
    %v10759 = vunpack.c.l.b16 %v9997
    %v10760 = vunpack.c.h.b16 %v9997
    %v10761 = vunpack.c.l.b16 %v9998
    %v10762 = vunpack.c.h.b16 %v9998
    %v10763 = vunpack.c.l.b16 %v9999
    %v10764 = vunpack.c.h.b16 %v9999
    %v10765 = vunpack.c.l.b16 %v10000
    %v10766 = vunpack.c.h.b16 %v10000
    %v10767 = vunpack.c.l.b16 %v10001
    %v10768 = vunpack.c.h.b16 %v10001
    %v10769 = vunpack.c.l.b16 %v10002
    %v10770 = vunpack.c.h.b16 %v10002
    %v10771 = vunpack.c.l.b16 %v10003
    %v10772 = vunpack.c.h.b16 %v10003
    %v10773 = vunpack.c.l.b16 %v10004
    %v10774 = vunpack.c.h.b16 %v10004
    %v10775 = vunpack.c.l.b16 %v10005
    %v10776 = vunpack.c.h.b16 %v10005
    %v10777 = vunpack.c.l.b16 %v10006
    %v10778 = vunpack.c.h.b16 %v10006
    %v10779 = vunpack.c.l.b16 %v10007
    %v10780 = vunpack.c.h.b16 %v10007
    %v10781 = vunpack.c.l.b16 %v10008
    %v10782 = vunpack.c.h.b16 %v10008
    %v10783 = vunpack.c.l.b16 %v10009
    %v10784 = vunpack.c.h.b16 %v10009
    %v10785 = vunpack.c.l.b16 %v10010
    %v10786 = vunpack.c.h.b16 %v10010
    %v10787 = vunpack.c.l.b16 %v10011
    %v10788 = vunpack.c.h.b16 %v10011
    %v10789 = vunpack.c.l.b16 %v10012
    %v10790 = vunpack.c.h.b16 %v10012
    %v10791 = vunpack.c.l.b16 %v10013
    %v10792 = vunpack.c.h.b16 %v10013
    %v10793 = vunpack.c.l.b16 %v10014
    %v10794 = vunpack.c.h.b16 %v10014
    %v10795 = vunpack.c.l.b16 %v10015
    %v10796 = vunpack.c.h.b16 %v10015
    %v10797 = vunpack.c.l.b16 %v10016
    %v10798 = vunpack.c.h.b16 %v10016
    %v10799 = vunpack.c.l.b16 %v10017
    %v10800 = vunpack.c.h.b16 %v10017
    %v10801 = vunpack.c.l.b16 %v10018
    %v10802 = vunpack.c.h.b16 %v10018
    %v10803 = vunpack.c.l.b16 %v10019
    %v10804 = vunpack.c.h.b16 %v10019
    %v10805 = vunpack.c.l.b16 %v10020
    %v10806 = vunpack.c.h.b16 %v10020
    %v10807 = vunpack.c.l.b16 %v10021
    %v10808 = vunpack.c.h.b16 %v10021
    %v10809 = vunpack.c.l.b16 %v10022
    %v10810 = vunpack.c.h.b16 %v10022
    %v10811 = vunpack.c.l.b16 %v10023
    %v10812 = vunpack.c.h.b16 %v10023
    %v10813 = vunpack.c.l.b16 %v10024
    %v10814 = vunpack.c.h.b16 %v10024
    %v10815 = vpack.c.b16 %v10307, %v10303
    %v10816 = vpack.c.b16 %v10308, %v10304
    %v10817 = vpack.c.b16 %v10309, %v10305
    %v10818 = vpack.c.b16 %v10310, %v10306
    %v10819 = vpack.c.b16 %v10315, %v10311
    %v10820 = vpack.c.b16 %v10316, %v10312
    %v10821 = vpack.c.b16 %v10317, %v10313
    %v10822 = vpack.c.b16 %v10318, %v10314
    %v10823 = vpack.c.b16 %v10323, %v10319
    %v10824 = vpack.c.b16 %v10324, %v10320
    %v10825 = vpack.c.b16 %v10325, %v10321
    %v10826 = vpack.c.b16 %v10326, %v10322
    %v10827 = vpack.c.b16 %v10331, %v10327
    %v10828 = vpack.c.b16 %v10332, %v10328
    %v10829 = vpack.c.b16 %v10333, %v10329
    %v10830 = vpack.c.b16 %v10334, %v10330
    %v10831 = vpack.c.b16 %v10339, %v10335
    %v10832 = vpack.c.b16 %v10340, %v10336
    %v10833 = vpack.c.b16 %v10341, %v10337
    %v10834 = vpack.c.b16 %v10342, %v10338
    %v10835 = vpack.c.b16 %v10347, %v10343
    %v10836 = vpack.c.b16 %v10348, %v10344
    %v10837 = vpack.c.b16 %v10349, %v10345
    %v10838 = vpack.c.b16 %v10350, %v10346
    %v10839 = vpack.c.b16 %v10355, %v10351
    %v10840 = vpack.c.b16 %v10356, %v10352
    %v10841 = vpack.c.b16 %v10357, %v10353
    %v10842 = vpack.c.b16 %v10358, %v10354
    %v10843 = vpack.c.b16 %v10363, %v10359
    %v10844 = vpack.c.b16 %v10364, %v10360
    %v10845 = vpack.c.b16 %v10365, %v10361
    %v10846 = vpack.c.b16 %v10366, %v10362
    %v10847 = vpack.c.b16 %v10371, %v10367
    %v10848 = vpack.c.b16 %v10372, %v10368
    %v10849 = vpack.c.b16 %v10373, %v10369
    %v10850 = vpack.c.b16 %v10374, %v10370
    %v10851 = vpack.c.b16 %v10379, %v10375
    %v10852 = vpack.c.b16 %v10380, %v10376
    %v10853 = vpack.c.b16 %v10381, %v10377
    %v10854 = vpack.c.b16 %v10382, %v10378
    %v10855 = vpack.c.b16 %v10387, %v10383
    %v10856 = vpack.c.b16 %v10388, %v10384
    %v10857 = vpack.c.b16 %v10389, %v10385
    %v10858 = vpack.c.b16 %v10390, %v10386
    %v10859 = vpack.c.b16 %v10395, %v10391
    %v10860 = vpack.c.b16 %v10396, %v10392
    %v10861 = vpack.c.b16 %v10397, %v10393
    %v10862 = vpack.c.b16 %v10398, %v10394
    %v10863 = vpack.c.b16 %v10403, %v10399
    %v10864 = vpack.c.b16 %v10404, %v10400
    %v10865 = vpack.c.b16 %v10405, %v10401
    %v10866 = vpack.c.b16 %v10406, %v10402
    %v10867 = vpack.c.b16 %v10411, %v10407
    %v10868 = vpack.c.b16 %v10412, %v10408
    %v10869 = vpack.c.b16 %v10413, %v10409
    %v10870 = vpack.c.b16 %v10414, %v10410
    %v10871 = vpack.c.b16 %v10419, %v10415
    %v10872 = vpack.c.b16 %v10420, %v10416
    %v10873 = vpack.c.b16 %v10421, %v10417
    %v10874 = vpack.c.b16 %v10422, %v10418
    %v10875 = vpack.c.b16 %v10427, %v10423
    %v10876 = vpack.c.b16 %v10428, %v10424
    %v10877 = vpack.c.b16 %v10429, %v10425
    %v10878 = vpack.c.b16 %v10430, %v10426
    %v10879 = vpack.c.b16 %v10435, %v10431
    %v10880 = vpack.c.b16 %v10436, %v10432
    %v10881 = vpack.c.b16 %v10437, %v10433
    %v10882 = vpack.c.b16 %v10438, %v10434
    %v10883 = vpack.c.b16 %v10443, %v10439
    %v10884 = vpack.c.b16 %v10444, %v10440
    %v10885 = vpack.c.b16 %v10445, %v10441
    %v10886 = vpack.c.b16 %v10446, %v10442
    %v10887 = vpack.c.b16 %v10451, %v10447
    %v10888 = vpack.c.b16 %v10452, %v10448
    %v10889 = vpack.c.b16 %v10453, %v10449
    %v10890 = vpack.c.b16 %v10454, %v10450
    %v10891 = vpack.c.b16 %v10459, %v10455
    %v10892 = vpack.c.b16 %v10460, %v10456
    %v10893 = vpack.c.b16 %v10461, %v10457
    %v10894 = vpack.c.b16 %v10462, %v10458
    %v10895 = vpack.c.b16 %v10467, %v10463
    %v10896 = vpack.c.b16 %v10468, %v10464
    %v10897 = vpack.c.b16 %v10469, %v10465
    %v10898 = vpack.c.b16 %v10470, %v10466
    %v10899 = vpack.c.b16 %v10475, %v10471
    %v10900 = vpack.c.b16 %v10476, %v10472
    %v10901 = vpack.c.b16 %v10477, %v10473
    %v10902 = vpack.c.b16 %v10478, %v10474
    %v10903 = vpack.c.b16 %v10483, %v10479
    %v10904 = vpack.c.b16 %v10484, %v10480
    %v10905 = vpack.c.b16 %v10485, %v10481
    %v10906 = vpack.c.b16 %v10486, %v10482
    %v10907 = vpack.c.b16 %v10491, %v10487
    %v10908 = vpack.c.b16 %v10492, %v10488
    %v10909 = vpack.c.b16 %v10493, %v10489
    %v10910 = vpack.c.b16 %v10494, %v10490
    %v10911 = vpack.c.b16 %v10499, %v10495
    %v10912 = vpack.c.b16 %v10500, %v10496
    %v10913 = vpack.c.b16 %v10501, %v10497
    %v10914 = vpack.c.b16 %v10502, %v10498
    %v10915 = vpack.c.b16 %v10507, %v10503
    %v10916 = vpack.c.b16 %v10508, %v10504
    %v10917 = vpack.c.b16 %v10509, %v10505
    %v10918 = vpack.c.b16 %v10510, %v10506
    %v10919 = vpack.c.b16 %v10515, %v10511
    %v10920 = vpack.c.b16 %v10516, %v10512
    %v10921 = vpack.c.b16 %v10517, %v10513
    %v10922 = vpack.c.b16 %v10518, %v10514
    %v10923 = vpack.c.b16 %v10523, %v10519
    %v10924 = vpack.c.b16 %v10524, %v10520
    %v10925 = vpack.c.b16 %v10525, %v10521
    %v10926 = vpack.c.b16 %v10526, %v10522
    %v10927 = vpack.c.b16 %v10531, %v10527
    %v10928 = vpack.c.b16 %v10532, %v10528
    %v10929 = vpack.c.b16 %v10533, %v10529
    %v10930 = vpack.c.b16 %v10534, %v10530
    %v10931 = vpack.c.b16 %v10539, %v10535
    %v10932 = vpack.c.b16 %v10540, %v10536
    %v10933 = vpack.c.b16 %v10541, %v10537
    %v10934 = vpack.c.b16 %v10542, %v10538
    %v10935 = vpack.c.b16 %v10547, %v10543
    %v10936 = vpack.c.b16 %v10548, %v10544
    %v10937 = vpack.c.b16 %v10549, %v10545
    %v10938 = vpack.c.b16 %v10550, %v10546
    %v10939 = vpack.c.b16 %v10555, %v10551
    %v10940 = vpack.c.b16 %v10556, %v10552
    %v10941 = vpack.c.b16 %v10557, %v10553
    %v10942 = vpack.c.b16 %v10558, %v10554
    %v10943 = vpack.c.b16 %v10563, %v10559
    %v10944 = vpack.c.b16 %v10564, %v10560
    %v10945 = vpack.c.b16 %v10565, %v10561
    %v10946 = vpack.c.b16 %v10566, %v10562
    %v10947 = vpack.c.b16 %v10571, %v10567
    %v10948 = vpack.c.b16 %v10572, %v10568
    %v10949 = vpack.c.b16 %v10573, %v10569
    %v10950 = vpack.c.b16 %v10574, %v10570
    %v10951 = vpack.c.b16 %v10579, %v10575
    %v10952 = vpack.c.b16 %v10580, %v10576
    %v10953 = vpack.c.b16 %v10581, %v10577
    %v10954 = vpack.c.b16 %v10582, %v10578
    %v10955 = vpack.c.b16 %v10587, %v10583
    %v10956 = vpack.c.b16 %v10588, %v10584
    %v10957 = vpack.c.b16 %v10589, %v10585
    %v10958 = vpack.c.b16 %v10590, %v10586
    %v10959 = vpack.c.b16 %v10595, %v10591
    %v10960 = vpack.c.b16 %v10596, %v10592
    %v10961 = vpack.c.b16 %v10597, %v10593
    %v10962 = vpack.c.b16 %v10598, %v10594
    %v10963 = vpack.c.b16 %v10603, %v10599
    %v10964 = vpack.c.b16 %v10604, %v10600
    %v10965 = vpack.c.b16 %v10605, %v10601
    %v10966 = vpack.c.b16 %v10606, %v10602
    %v10967 = vpack.c.b16 %v10611, %v10607
    %v10968 = vpack.c.b16 %v10612, %v10608
    %v10969 = vpack.c.b16 %v10613, %v10609
    %v10970 = vpack.c.b16 %v10614, %v10610
    %v10971 = vpack.c.b16 %v10619, %v10615
    %v10972 = vpack.c.b16 %v10620, %v10616
    %v10973 = vpack.c.b16 %v10621, %v10617
    %v10974 = vpack.c.b16 %v10622, %v10618
    %v10975 = vpack.c.b16 %v10627, %v10623
    %v10976 = vpack.c.b16 %v10628, %v10624
    %v10977 = vpack.c.b16 %v10629, %v10625
    %v10978 = vpack.c.b16 %v10630, %v10626
    %v10979 = vpack.c.b16 %v10635, %v10631
    %v10980 = vpack.c.b16 %v10636, %v10632
    %v10981 = vpack.c.b16 %v10637, %v10633
    %v10982 = vpack.c.b16 %v10638, %v10634
    %v10983 = vpack.c.b16 %v10643, %v10639
    %v10984 = vpack.c.b16 %v10644, %v10640
    %v10985 = vpack.c.b16 %v10645, %v10641
    %v10986 = vpack.c.b16 %v10646, %v10642
    %v10987 = vpack.c.b16 %v10651, %v10647
    %v10988 = vpack.c.b16 %v10652, %v10648
    %v10989 = vpack.c.b16 %v10653, %v10649
    %v10990 = vpack.c.b16 %v10654, %v10650
    %v10991 = vpack.c.b16 %v10659, %v10655
    %v10992 = vpack.c.b16 %v10660, %v10656
    %v10993 = vpack.c.b16 %v10661, %v10657
    %v10994 = vpack.c.b16 %v10662, %v10658
    %v10995 = vpack.c.b16 %v10667, %v10663
    %v10996 = vpack.c.b16 %v10668, %v10664
    %v10997 = vpack.c.b16 %v10669, %v10665
    %v10998 = vpack.c.b16 %v10670, %v10666
    %v10999 = vpack.c.b16 %v10675, %v10671
    %v11000 = vpack.c.b16 %v10676, %v10672
    %v11001 = vpack.c.b16 %v10677, %v10673
    %v11002 = vpack.c.b16 %v10678, %v10674
    %v11003 = vpack.c.b16 %v10683, %v10679
    %v11004 = vpack.c.b16 %v10684, %v10680
    %v11005 = vpack.c.b16 %v10685, %v10681
    %v11006 = vpack.c.b16 %v10686, %v10682
    %v11007 = vpack.c.b16 %v10691, %v10687
    %v11008 = vpack.c.b16 %v10692, %v10688
    %v11009 = vpack.c.b16 %v10693, %v10689
    %v11010 = vpack.c.b16 %v10694, %v10690
    %v11011 = vpack.c.b16 %v10699, %v10695
    %v11012 = vpack.c.b16 %v10700, %v10696
    %v11013 = vpack.c.b16 %v10701, %v10697
    %v11014 = vpack.c.b16 %v10702, %v10698
    %v11015 = vpack.c.b16 %v10707, %v10703
    %v11016 = vpack.c.b16 %v10708, %v10704
    %v11017 = vpack.c.b16 %v10709, %v10705
    %v11018 = vpack.c.b16 %v10710, %v10706
    %v11019 = vpack.c.b16 %v10715, %v10711
    %v11020 = vpack.c.b16 %v10716, %v10712
    %v11021 = vpack.c.b16 %v10717, %v10713
    %v11022 = vpack.c.b16 %v10718, %v10714
    %v11023 = vpack.c.b16 %v10723, %v10719
    %v11024 = vpack.c.b16 %v10724, %v10720
    %v11025 = vpack.c.b16 %v10725, %v10721
    %v11026 = vpack.c.b16 %v10726, %v10722
    %v11027 = vpack.c.b16 %v10731, %v10727
    %v11028 = vpack.c.b16 %v10732, %v10728
    %v11029 = vpack.c.b16 %v10733, %v10729
    %v11030 = vpack.c.b16 %v10734, %v10730
    %v11031 = vpack.c.b16 %v10739, %v10735
    %v11032 = vpack.c.b16 %v10740, %v10736
    %v11033 = vpack.c.b16 %v10741, %v10737
    %v11034 = vpack.c.b16 %v10742, %v10738
    %v11035 = vpack.c.b16 %v10747, %v10743
    %v11036 = vpack.c.b16 %v10748, %v10744
    %v11037 = vpack.c.b16 %v10749, %v10745
    %v11038 = vpack.c.b16 %v10750, %v10746
    %v11039 = vpack.c.b16 %v10755, %v10751
    %v11040 = vpack.c.b16 %v10756, %v10752
    %v11041 = vpack.c.b16 %v10757, %v10753
    %v11042 = vpack.c.b16 %v10758, %v10754
    %v11043 = vpack.c.b16 %v10763, %v10759
    %v11044 = vpack.c.b16 %v10764, %v10760
    %v11045 = vpack.c.b16 %v10765, %v10761
    %v11046 = vpack.c.b16 %v10766, %v10762
    %v11047 = vpack.c.b16 %v10771, %v10767
    %v11048 = vpack.c.b16 %v10772, %v10768
    %v11049 = vpack.c.b16 %v10773, %v10769
    %v11050 = vpack.c.b16 %v10774, %v10770
    %v11051 = vpack.c.b16 %v10779, %v10775
    %v11052 = vpack.c.b16 %v10780, %v10776
    %v11053 = vpack.c.b16 %v10781, %v10777
    %v11054 = vpack.c.b16 %v10782, %v10778
    %v11055 = vpack.c.b16 %v10787, %v10783
    %v11056 = vpack.c.b16 %v10788, %v10784
    %v11057 = vpack.c.b16 %v10789, %v10785
    %v11058 = vpack.c.b16 %v10790, %v10786
    %v11059 = vpack.c.b16 %v10795, %v10791
    %v11060 = vpack.c.b16 %v10796, %v10792
    %v11061 = vpack.c.b16 %v10797, %v10793
    %v11062 = vpack.c.b16 %v10798, %v10794
    %v11063 = vpack.c.b16 %v10803, %v10799
    %v11064 = vpack.c.b16 %v10804, %v10800
    %v11065 = vpack.c.b16 %v10805, %v10801
    %v11066 = vpack.c.b16 %v10806, %v10802
    %v11067 = vpack.c.b16 %v10811, %v10807
    %v11068 = vpack.c.b16 %v10812, %v10808
    %v11069 = vpack.c.b16 %v10813, %v10809
    %v11070 = vpack.c.b16 %v10814, %v10810
    %11327 = vmatprep.subr.bf16.mxu0 %v10816
    %11328 = vmatpush1.bf16.msra.mxu0 %v10815
    %11329 = vmatprep.subr.bf16.mxu0 %v10820
    %11330 = vmatpush1.bf16.msra.mxu0 %v10819
    %11331 = vmatprep.subr.bf16.mxu0 %v10824
    %11332 = vmatpush1.bf16.msra.mxu0 %v10823
    %11333 = vmatprep.subr.bf16.mxu0 %v10828
    %11334 = vmatpush1.bf16.msra.mxu0 %v10827
    %11335 = vmatprep.subr.bf16.mxu0 %v10832
    %11336 = vmatpush1.bf16.msra.mxu0 %v10831
    %11337 = vmatprep.subr.bf16.mxu0 %v10836
    %11338 = vmatpush1.bf16.msra.mxu0 %v10835
    %11339 = vmatprep.subr.bf16.mxu0 %v10840
    %11340 = vmatpush1.bf16.msra.mxu0 %v10839
    %11341 = vmatprep.subr.bf16.mxu0 %v10844
    %11342 = vmatpush1.bf16.msra.mxu0 %v10843
    %11343 = vmatprep.subr.bf16.mxu0 %v10848
    %11344 = vmatpush1.bf16.msra.mxu0 %v10847
    %11345 = vmatprep.subr.bf16.mxu0 %v10852
    %11346 = vmatpush1.bf16.msra.mxu0 %v10851
    %11347 = vmatprep.subr.bf16.mxu0 %v10856
    %11348 = vmatpush1.bf16.msra.mxu0 %v10855
    %11349 = vmatprep.subr.bf16.mxu0 %v10860
    %11350 = vmatpush1.bf16.msra.mxu0 %v10859
    %11351 = vmatprep.subr.bf16.mxu0 %v10864
    %11352 = vmatpush1.bf16.msra.mxu0 %v10863
    %11353 = vmatprep.subr.bf16.mxu0 %v10868
    %11354 = vmatpush1.bf16.msra.mxu0 %v10867
    %11355 = vmatprep.subr.bf16.mxu0 %v10872
    %11356 = vmatpush1.bf16.msra.mxu0 %v10871
    %11357 = vmatprep.subr.bf16.mxu0 %v10876
    %11358 = vmatpush1.bf16.msra.mxu0 %v10875
    %11359 = vmatprep.mubr.bf16.mxu0 %v9762
    %11360 = vmatmul.mubr.bf16.gmra.mrb[0].mxu0 %v9761
    %v11361 = vpop.f32.mrb[0].mxu0
    %v11362 = vadd.f32 %v10030, %v11361
    %v11363 = vpop.f32.mrb[0].mxu0
    %v11364 = vadd.f32 %v10034, %v11363
    %v11365 = vpop.f32.mrb[0].mxu0
    %v11366 = vpop.f32.mrb[0].mxu0
    %11367 = vdwg.mxu0
    %11368 = vmatprep.subr.bf16.mxu0 %v10880
    %11369 = vmatpush1.bf16.msra.mxu0 %v10879
    %11370 = vmatprep.subr.bf16.mxu0 %v10884
    %11371 = vmatpush1.bf16.msra.mxu0 %v10883
    %11372 = vmatprep.subr.bf16.mxu0 %v10888
    %11373 = vmatpush1.bf16.msra.mxu0 %v10887
    %11374 = vmatprep.subr.bf16.mxu0 %v10892
    %11375 = vmatpush1.bf16.msra.mxu0 %v10891
    %11376 = vmatprep.subr.bf16.mxu0 %v10896
    %11377 = vmatpush1.bf16.msra.mxu0 %v10895
    %11378 = vmatprep.subr.bf16.mxu0 %v10900
    %11379 = vmatpush1.bf16.msra.mxu0 %v10899
    %11380 = vmatprep.subr.bf16.mxu0 %v10904
    %11381 = vmatpush1.bf16.msra.mxu0 %v10903
    %11382 = vmatprep.subr.bf16.mxu0 %v10908
    %11383 = vmatpush1.bf16.msra.mxu0 %v10907
    %11384 = vmatprep.subr.bf16.mxu0 %v10912
    %11385 = vmatpush1.bf16.msra.mxu0 %v10911
    %11386 = vmatprep.subr.bf16.mxu0 %v10916
    %11387 = vmatpush1.bf16.msra.mxu0 %v10915
    %11388 = vmatprep.subr.bf16.mxu0 %v10920
    %11389 = vmatpush1.bf16.msra.mxu0 %v10919
    %11390 = vmatprep.subr.bf16.mxu0 %v10924
    %11391 = vmatpush1.bf16.msra.mxu0 %v10923
    %11392 = vmatprep.subr.bf16.mxu0 %v10928
    %11393 = vmatpush1.bf16.msra.mxu0 %v10927
    %11394 = vmatprep.subr.bf16.mxu0 %v10932
    %11395 = vmatpush1.bf16.msra.mxu0 %v10931
    %11396 = vmatprep.subr.bf16.mxu0 %v10936
    %11397 = vmatpush1.bf16.msra.mxu0 %v10935
    %11398 = vmatprep.subr.bf16.mxu0 %v10940
    %11399 = vmatpush1.bf16.msra.mxu0 %v10939
    %11400 = vmatprep.mubr.bf16.mxu0 %v9764
    %11401 = vmatmul.mubr.bf16.gmra.mrb[0].mxu0 %v9763
    %v11402 = vpop.f32.mrb[0].mxu0
    %v11403 = vadd.f32 %v11362, %v11402
    %v11404 = vpop.f32.mrb[0].mxu0
    %v11405 = vadd.f32 %v11364, %v11404
    %v11406 = vpop.f32.mrb[0].mxu0
    %v11407 = vpop.f32.mrb[0].mxu0
    %11408 = vdwg.mxu0
    %11409 = vmatprep.subr.bf16.mxu0 %v10944
    %11410 = vmatpush1.bf16.msra.mxu0 %v10943
    %11411 = vmatprep.subr.bf16.mxu0 %v10948
    %11412 = vmatpush1.bf16.msra.mxu0 %v10947
    %11413 = vmatprep.subr.bf16.mxu0 %v10952
    %11414 = vmatpush1.bf16.msra.mxu0 %v10951
    %11415 = vmatprep.subr.bf16.mxu0 %v10956
    %11416 = vmatpush1.bf16.msra.mxu0 %v10955
    %11417 = vmatprep.subr.bf16.mxu0 %v10960
    %11418 = vmatpush1.bf16.msra.mxu0 %v10959
    %11419 = vmatprep.subr.bf16.mxu0 %v10964
    %11420 = vmatpush1.bf16.msra.mxu0 %v10963
    %11421 = vmatprep.subr.bf16.mxu0 %v10968
    %11422 = vmatpush1.bf16.msra.mxu0 %v10967
    %11423 = vmatprep.subr.bf16.mxu0 %v10972
    %11424 = vmatpush1.bf16.msra.mxu0 %v10971
    %11425 = vmatprep.subr.bf16.mxu0 %v10976
    %11426 = vmatpush1.bf16.msra.mxu0 %v10975
    %11427 = vmatprep.subr.bf16.mxu0 %v10980
    %11428 = vmatpush1.bf16.msra.mxu0 %v10979
    %11429 = vmatprep.subr.bf16.mxu0 %v10984
    %11430 = vmatpush1.bf16.msra.mxu0 %v10983
    %11431 = vmatprep.subr.bf16.mxu0 %v10988
    %11432 = vmatpush1.bf16.msra.mxu0 %v10987
    %11433 = vmatprep.subr.bf16.mxu0 %v10992
    %11434 = vmatpush1.bf16.msra.mxu0 %v10991
    %11435 = vmatprep.subr.bf16.mxu0 %v10996
    %11436 = vmatpush1.bf16.msra.mxu0 %v10995
    %11437 = vmatprep.subr.bf16.mxu0 %v11000
    %11438 = vmatpush1.bf16.msra.mxu0 %v10999
    %11439 = vmatprep.subr.bf16.mxu0 %v11004
    %11440 = vmatpush1.bf16.msra.mxu0 %v11003
    %11441 = vmatprep.mubr.bf16.mxu0 %v9766
    %11442 = vmatmul.mubr.bf16.gmra.mrb[0].mxu0 %v9765
    %v11443 = vpop.f32.mrb[0].mxu0
    %v11444 = vadd.f32 %v11403, %v11443
    %v11445 = vpop.f32.mrb[0].mxu0
    %v11446 = vadd.f32 %v11405, %v11445
    %v11447 = vpop.f32.mrb[0].mxu0
    %v11448 = vpop.f32.mrb[0].mxu0
    %11449 = vdwg.mxu0
    %11450 = vmatprep.subr.bf16.mxu0 %v11008
    %11451 = vmatpush1.bf16.msra.mxu0 %v11007
    %11452 = vmatprep.subr.bf16.mxu0 %v11012
    %11453 = vmatpush1.bf16.msra.mxu0 %v11011
    %11454 = vmatprep.subr.bf16.mxu0 %v11016
    %11455 = vmatpush1.bf16.msra.mxu0 %v11015
    %11456 = vmatprep.subr.bf16.mxu0 %v11020
    %11457 = vmatpush1.bf16.msra.mxu0 %v11019
    %11458 = vmatprep.subr.bf16.mxu0 %v11024
    %11459 = vmatpush1.bf16.msra.mxu0 %v11023
    %11460 = vmatprep.subr.bf16.mxu0 %v11028
    %11461 = vmatpush1.bf16.msra.mxu0 %v11027
    %11462 = vmatprep.subr.bf16.mxu0 %v11032
    %11463 = vmatpush1.bf16.msra.mxu0 %v11031
    %11464 = vmatprep.subr.bf16.mxu0 %v11036
    %11465 = vmatpush1.bf16.msra.mxu0 %v11035
    %11466 = vmatprep.subr.bf16.mxu0 %v11040
    %11467 = vmatpush1.bf16.msra.mxu0 %v11039
    %11468 = vmatprep.subr.bf16.mxu0 %v11044
    %11469 = vmatpush1.bf16.msra.mxu0 %v11043
    %11470 = vmatprep.subr.bf16.mxu0 %v11048
    %11471 = vmatpush1.bf16.msra.mxu0 %v11047
    %11472 = vmatprep.subr.bf16.mxu0 %v11052
    %11473 = vmatpush1.bf16.msra.mxu0 %v11051
    %11474 = vmatprep.subr.bf16.mxu0 %v11056
    %11475 = vmatpush1.bf16.msra.mxu0 %v11055
    %11476 = vmatprep.subr.bf16.mxu0 %v11060
    %11477 = vmatpush1.bf16.msra.mxu0 %v11059
    %11478 = vmatprep.subr.bf16.mxu0 %v11064
    %11479 = vmatpush1.bf16.msra.mxu0 %v11063
    %11480 = vmatprep.subr.bf16.mxu0 %v11068
    %11481 = vmatpush1.bf16.msra.mxu0 %v11067
    %11482 = vmatprep.mubr.bf16.mxu0 %v9768
    %11483 = vmatmul.mubr.bf16.gmra.mrb[0].mxu0 %v9767
    %v11484 = vpop.f32.mrb[0].mxu0
    %v11485 = vadd.f32 %v11444, %v11484
    %v11486 = vpop.f32.mrb[0].mxu0
    %v11487 = vadd.f32 %v11446, %v11486
    %v11488 = vpop.f32.mrb[0].mxu0
    %v11489 = vpop.f32.mrb[0].mxu0
    %11490 = vdwg.mxu0
    %11491 = vmatprep.subr.bf16.mxu0 %v10818
    %11492 = vmatpush1.bf16.msra.mxu0 %v10817
    %11493 = vmatprep.subr.bf16.mxu0 %v10822
    %11494 = vmatpush1.bf16.msra.mxu0 %v10821
    %11495 = vmatprep.subr.bf16.mxu0 %v10826
    %11496 = vmatpush1.bf16.msra.mxu0 %v10825
    %11497 = vmatprep.subr.bf16.mxu0 %v10830
    %11498 = vmatpush1.bf16.msra.mxu0 %v10829
    %11499 = vmatprep.subr.bf16.mxu0 %v10834
    %11500 = vmatpush1.bf16.msra.mxu0 %v10833
    %11501 = vmatprep.subr.bf16.mxu0 %v10838
    %11502 = vmatpush1.bf16.msra.mxu0 %v10837
    %11503 = vmatprep.subr.bf16.mxu0 %v10842
    %11504 = vmatpush1.bf16.msra.mxu0 %v10841
    %11505 = vmatprep.subr.bf16.mxu0 %v10846
    %11506 = vmatpush1.bf16.msra.mxu0 %v10845
    %11507 = vmatprep.subr.bf16.mxu0 %v10850
    %11508 = vmatpush1.bf16.msra.mxu0 %v10849
    %11509 = vmatprep.subr.bf16.mxu0 %v10854
    %11510 = vmatpush1.bf16.msra.mxu0 %v10853
    %11511 = vmatprep.subr.bf16.mxu0 %v10858
    %11512 = vmatpush1.bf16.msra.mxu0 %v10857
    %11513 = vmatprep.subr.bf16.mxu0 %v10862
    %11514 = vmatpush1.bf16.msra.mxu0 %v10861
    %11515 = vmatprep.subr.bf16.mxu0 %v10866
    %11516 = vmatpush1.bf16.msra.mxu0 %v10865
    %11517 = vmatprep.subr.bf16.mxu0 %v10870
    %11518 = vmatpush1.bf16.msra.mxu0 %v10869
    %11519 = vmatprep.subr.bf16.mxu0 %v10874
    %11520 = vmatpush1.bf16.msra.mxu0 %v10873
    %11521 = vmatprep.subr.bf16.mxu0 %v10878
    %11522 = vmatpush1.bf16.msra.mxu0 %v10877
    %11523 = vmatprep.mubr.bf16.mxu0 %v9762
    %11524 = vmatmul.mubr.bf16.gmra.mrb[0].mxu0 %v9761
    %v11525 = vpop.f32.mrb[0].mxu0
    %v11526 = vadd.f32 %v10038, %v11525
    %v11527 = vpop.f32.mrb[0].mxu0
    %v11528 = vadd.f32 %v10042, %v11527
    %v11529 = vpop.f32.mrb[0].mxu0
    %v11530 = vpop.f32.mrb[0].mxu0
    %11531 = vdwg.mxu0
    %11532 = vmatprep.subr.bf16.mxu0 %v10882
    %11533 = vmatpush1.bf16.msra.mxu0 %v10881
    %11534 = vmatprep.subr.bf16.mxu0 %v10886
    %11535 = vmatpush1.bf16.msra.mxu0 %v10885
    %11536 = vmatprep.subr.bf16.mxu0 %v10890
    %11537 = vmatpush1.bf16.msra.mxu0 %v10889
    %11538 = vmatprep.subr.bf16.mxu0 %v10894
    %11539 = vmatpush1.bf16.msra.mxu0 %v10893
    %11540 = vmatprep.subr.bf16.mxu0 %v10898
    %11541 = vmatpush1.bf16.msra.mxu0 %v10897
    %11542 = vmatprep.subr.bf16.mxu0 %v10902
    %11543 = vmatpush1.bf16.msra.mxu0 %v10901
    %11544 = vmatprep.subr.bf16.mxu0 %v10906
    %11545 = vmatpush1.bf16.msra.mxu0 %v10905
    %11546 = vmatprep.subr.bf16.mxu0 %v10910
    %11547 = vmatpush1.bf16.msra.mxu0 %v10909
    %11548 = vmatprep.subr.bf16.mxu0 %v10914
    %11549 = vmatpush1.bf16.msra.mxu0 %v10913
    %11550 = vmatprep.subr.bf16.mxu0 %v10918
    %11551 = vmatpush1.bf16.msra.mxu0 %v10917
    %11552 = vmatprep.subr.bf16.mxu0 %v10922
    %11553 = vmatpush1.bf16.msra.mxu0 %v10921
    %11554 = vmatprep.subr.bf16.mxu0 %v10926
    %11555 = vmatpush1.bf16.msra.mxu0 %v10925
    %11556 = vmatprep.subr.bf16.mxu0 %v10930
    %11557 = vmatpush1.bf16.msra.mxu0 %v10929
    %11558 = vmatprep.subr.bf16.mxu0 %v10934
    %11559 = vmatpush1.bf16.msra.mxu0 %v10933
    %11560 = vmatprep.subr.bf16.mxu0 %v10938
    %11561 = vmatpush1.bf16.msra.mxu0 %v10937
    %11562 = vmatprep.subr.bf16.mxu0 %v10942
    %11563 = vmatpush1.bf16.msra.mxu0 %v10941
    %11564 = vmatprep.mubr.bf16.mxu0 %v9764
    %11565 = vmatmul.mubr.bf16.gmra.mrb[0].mxu0 %v9763
    %v11566 = vpop.f32.mrb[0].mxu0
    %v11567 = vadd.f32 %v11526, %v11566
    %v11568 = vpop.f32.mrb[0].mxu0
    %v11569 = vadd.f32 %v11528, %v11568
    %v11570 = vpop.f32.mrb[0].mxu0
    %v11571 = vpop.f32.mrb[0].mxu0
    %11572 = vdwg.mxu0
    %11573 = vmatprep.subr.bf16.mxu0 %v10946
    %11574 = vmatpush1.bf16.msra.mxu0 %v10945
    %11575 = vmatprep.subr.bf16.mxu0 %v10950
    %11576 = vmatpush1.bf16.msra.mxu0 %v10949
    %11577 = vmatprep.subr.bf16.mxu0 %v10954
    %11578 = vmatpush1.bf16.msra.mxu0 %v10953
    %11579 = vmatprep.subr.bf16.mxu0 %v10958
    %11580 = vmatpush1.bf16.msra.mxu0 %v10957
    %11581 = vmatprep.subr.bf16.mxu0 %v10962
    %11582 = vmatpush1.bf16.msra.mxu0 %v10961
    %11583 = vmatprep.subr.bf16.mxu0 %v10966
    %11584 = vmatpush1.bf16.msra.mxu0 %v10965
    %11585 = vmatprep.subr.bf16.mxu0 %v10970
    %11586 = vmatpush1.bf16.msra.mxu0 %v10969
    %11587 = vmatprep.subr.bf16.mxu0 %v10974
    %11588 = vmatpush1.bf16.msra.mxu0 %v10973
    %11589 = vmatprep.subr.bf16.mxu0 %v10978
    %11590 = vmatpush1.bf16.msra.mxu0 %v10977
    %11591 = vmatprep.subr.bf16.mxu0 %v10982
    %11592 = vmatpush1.bf16.msra.mxu0 %v10981
    %11593 = vmatprep.subr.bf16.mxu0 %v10986
    %11594 = vmatpush1.bf16.msra.mxu0 %v10985
    %11595 = vmatprep.subr.bf16.mxu0 %v10990
    %11596 = vmatpush1.bf16.msra.mxu0 %v10989
    %11597 = vmatprep.subr.bf16.mxu0 %v10994
    %11598 = vmatpush1.bf16.msra.mxu0 %v10993
    %11599 = vmatprep.subr.bf16.mxu0 %v10998
    %11600 = vmatpush1.bf16.msra.mxu0 %v10997
    %11601 = vmatprep.subr.bf16.mxu0 %v11002
    %11602 = vmatpush1.bf16.msra.mxu0 %v11001
    %11603 = vmatprep.subr.bf16.mxu0 %v11006
    %11604 = vmatpush1.bf16.msra.mxu0 %v11005
    %11605 = vmatprep.mubr.bf16.mxu0 %v9766
    %11606 = vmatmul.mubr.bf16.gmra.mrb[0].mxu0 %v9765
    %v11607 = vpop.f32.mrb[0].mxu0
    %v11608 = vadd.f32 %v11567, %v11607
    %v11609 = vpop.f32.mrb[0].mxu0
    %v11610 = vadd.f32 %v11569, %v11609
    %v11611 = vpop.f32.mrb[0].mxu0
    %v11612 = vpop.f32.mrb[0].mxu0
    %11613 = vdwg.mxu0
    %11614 = vmatprep.subr.bf16.mxu0 %v11010
    %11615 = vmatpush1.bf16.msra.mxu0 %v11009
    %11616 = vmatprep.subr.bf16.mxu0 %v11014
    %11617 = vmatpush1.bf16.msra.mxu0 %v11013
    %11618 = vmatprep.subr.bf16.mxu0 %v11018
    %11619 = vmatpush1.bf16.msra.mxu0 %v11017
    %11620 = vmatprep.subr.bf16.mxu0 %v11022
    %11621 = vmatpush1.bf16.msra.mxu0 %v11021
    %11622 = vmatprep.subr.bf16.mxu0 %v11026
    %11623 = vmatpush1.bf16.msra.mxu0 %v11025
    %11624 = vmatprep.subr.bf16.mxu0 %v11030
    %11625 = vmatpush1.bf16.msra.mxu0 %v11029
    %11626 = vmatprep.subr.bf16.mxu0 %v11034
    %11627 = vmatpush1.bf16.msra.mxu0 %v11033
    %11628 = vmatprep.subr.bf16.mxu0 %v11038
    %11629 = vmatpush1.bf16.msra.mxu0 %v11037
    %11630 = vmatprep.subr.bf16.mxu0 %v11042
    %11631 = vmatpush1.bf16.msra.mxu0 %v11041
    %11632 = vmatprep.subr.bf16.mxu0 %v11046
    %11633 = vmatpush1.bf16.msra.mxu0 %v11045
    %11634 = vmatprep.subr.bf16.mxu0 %v11050
    %11635 = vmatpush1.bf16.msra.mxu0 %v11049
    %11636 = vmatprep.subr.bf16.mxu0 %v11054
    %11637 = vmatpush1.bf16.msra.mxu0 %v11053
    %11638 = vmatprep.subr.bf16.mxu0 %v11058
    %11639 = vmatpush1.bf16.msra.mxu0 %v11057
    %11640 = vmatprep.subr.bf16.mxu0 %v11062
    %11641 = vmatpush1.bf16.msra.mxu0 %v11061
    %11642 = vmatprep.subr.bf16.mxu0 %v11066
    %11643 = vmatpush1.bf16.msra.mxu0 %v11065
    %11644 = vmatprep.subr.bf16.mxu0 %v11070
    %11645 = vmatpush1.bf16.msra.mxu0 %v11069
    %11646 = vmatprep.mubr.bf16.mxu0 %v9768
    %11647 = vmatmul.mubr.bf16.gmra.mrb[0].mxu0 %v9767
    %v11648 = vpop.f32.mrb[0].mxu0
    %v11649 = vadd.f32 %v11608, %v11648
    %v11650 = vpop.f32.mrb[0].mxu0
    %v11651 = vadd.f32 %v11610, %v11650
    %v11652 = vpop.f32.mrb[0].mxu0
    %v11653 = vpop.f32.mrb[0].mxu0
    %11654 = vdwg.mxu0
    %v11655 = vmax.f32 %v11485, 0.0
    %v11656 = vmax.f32 %v11487, 0.0
    %v11657 = vmax.f32 %v11649, 0.0
    %v11658 = vmax.f32 %v11651, 0.0
    %v11659 = vpack.c.bf16 %v11655, %v11655
    %v11660 = vpack.c.bf16 %v11656, %v11656
    %v11661 = vpack.c.bf16 %v11657, %v11657
    %v11662 = vpack.c.bf16 %v11658, %v11658
    %v11663 = vld [vmem:[#allocation16] sm:$0xff]
    %v11664 = vld [vmem:[#allocation16 + $0x8] sm:$0xff]
    %v11665 = vld [vmem:[#allocation16 + $0x10] sm:$0xff]
    %v11666 = vld [vmem:[#allocation16 + $0x18] sm:$0xff]
    %v11667 = vld [vmem:[#allocation16 + $0x20] sm:$0xff]
    %v11668 = vld [vmem:[#allocation16 + $0x28] sm:$0xff]
    %v11669 = vld [vmem:[#allocation16 + $0x30] sm:$0xff]
    %v11670 = vld [vmem:[#allocation16 + $0x38] sm:$0xff]
    %v11671 = vld [vmem:[#allocation16 + $0x40] sm:$0xff]
    %v11672 = vld [vmem:[#allocation16 + $0x48] sm:$0xff]
    %v11673 = vld [vmem:[#allocation16 + $0x50] sm:$0xff]
    %v11674 = vld [vmem:[#allocation16 + $0x58] sm:$0xff]
    %v11675 = vld [vmem:[#allocation16 + $0x60] sm:$0xff]
    %v11676 = vld [vmem:[#allocation16 + $0x68] sm:$0xff]
    %v11677 = vld [vmem:[#allocation16 + $0x70] sm:$0xff]
    %v11678 = vld [vmem:[#allocation16 + $0x78] sm:$0xff]
    %v11679 = vld [vmem:[#allocation16 + $0x80] sm:$0xff]
    %v11680 = vld [vmem:[#allocation16 + $0x88] sm:$0xff]
    %v11681 = vld [vmem:[#allocation16 + $0x90] sm:$0xff]
    %v11682 = vld [vmem:[#allocation16 + $0x98] sm:$0xff]
    %v11683 = vld [vmem:[#allocation16 + $0xa0] sm:$0xff]
    %v11684 = vld [vmem:[#allocation16 + $0xa8] sm:$0xff]
    %v11685 = vld [vmem:[#allocation16 + $0xb0] sm:$0xff]
    %v11686 = vld [vmem:[#allocation16 + $0xb8] sm:$0xff]
    %v11687 = vld [vmem:[#allocation16 + $0xc0] sm:$0xff]
    %v11688 = vld [vmem:[#allocation16 + $0xc8] sm:$0xff]
    %v11689 = vld [vmem:[#allocation16 + $0xd0] sm:$0xff]
    %v11690 = vld [vmem:[#allocation16 + $0xd8] sm:$0xff]
    %v11691 = vld [vmem:[#allocation16 + $0xe0] sm:$0xff]
    %v11692 = vld [vmem:[#allocation16 + $0xe8] sm:$0xff]
    %v11693 = vld [vmem:[#allocation16 + $0xf0] sm:$0xff]
    %v11694 = vld [vmem:[#allocation16 + $0xf8] sm:$0xff]
    %v11695 = vld [vmem:[#allocation16 + $0x100] sm:$0xff]
    %v11696 = vld [vmem:[#allocation16 + $0x108] sm:$0xff]
    %v11697 = vld [vmem:[#allocation16 + $0x110] sm:$0xff]
    %v11698 = vld [vmem:[#allocation16 + $0x118] sm:$0xff]
    %v11699 = vld [vmem:[#allocation16 + $0x120] sm:$0xff]
    %v11700 = vld [vmem:[#allocation16 + $0x128] sm:$0xff]
    %v11701 = vld [vmem:[#allocation16 + $0x130] sm:$0xff]
    %v11702 = vld [vmem:[#allocation16 + $0x138] sm:$0xff]
    %v11703 = vld [vmem:[#allocation16 + $0x140] sm:$0xff]
    %v11704 = vld [vmem:[#allocation16 + $0x148] sm:$0xff]
    %v11705 = vld [vmem:[#allocation16 + $0x150] sm:$0xff]
    %v11706 = vld [vmem:[#allocation16 + $0x158] sm:$0xff]
    %v11707 = vld [vmem:[#allocation16 + $0x160] sm:$0xff]
    %v11708 = vld [vmem:[#allocation16 + $0x168] sm:$0xff]
    %v11709 = vld [vmem:[#allocation16 + $0x170] sm:$0xff]
    %v11710 = vld [vmem:[#allocation16 + $0x178] sm:$0xff]
    %v11711 = vld [vmem:[#allocation16 + $0x180] sm:$0xff]
    %v11712 = vld [vmem:[#allocation16 + $0x188] sm:$0xff]
    %v11713 = vld [vmem:[#allocation16 + $0x190] sm:$0xff]
    %v11714 = vld [vmem:[#allocation16 + $0x198] sm:$0xff]
    %v11715 = vld [vmem:[#allocation16 + $0x1a0] sm:$0xff]
    %v11716 = vld [vmem:[#allocation16 + $0x1a8] sm:$0xff]
    %v11717 = vld [vmem:[#allocation16 + $0x1b0] sm:$0xff]
    %v11718 = vld [vmem:[#allocation16 + $0x1b8] sm:$0xff]
    %v11719 = vld [vmem:[#allocation16 + $0x1c0] sm:$0xff]
    %v11720 = vld [vmem:[#allocation16 + $0x1c8] sm:$0xff]
    %v11721 = vld [vmem:[#allocation16 + $0x1d0] sm:$0xff]
    %v11722 = vld [vmem:[#allocation16 + $0x1d8] sm:$0xff]
    %v11723 = vld [vmem:[#allocation16 + $0x1e0] sm:$0xff]
    %v11724 = vld [vmem:[#allocation16 + $0x1e8] sm:$0xff]
    %v11725 = vld [vmem:[#allocation16 + $0x1f0] sm:$0xff]
    %v11726 = vld [vmem:[#allocation16 + $0x1f8] sm:$0xff]
    %v11727 = vld [vmem:[#allocation17] sm:$0x3]
    %v11729 = vlaneseq
    %v11730 = vshrl.u32 %v11729, 7
    %v11731 = vsub.s32 0, %v11730
    %v11732 = vrot.slane %v11727, %v11731
    %v11733 = vlaneseq
    %v11734 = vshrl.u32 %v11733, 7
    %v11735 = vsub.s32 1, %v11734
    %v11736 = vrot.slane %v11727, %v11735
    %v11803 = vunpack.c.l.b16 %v11663
    %v11804 = vunpack.c.h.b16 %v11663
    %v11805 = vunpack.c.l.b16 %v11664
    %v11806 = vunpack.c.h.b16 %v11664
    %v11807 = vunpack.c.l.b16 %v11665
    %v11808 = vunpack.c.h.b16 %v11665
    %v11809 = vunpack.c.l.b16 %v11666
    %v11810 = vunpack.c.h.b16 %v11666
    %v11811 = vunpack.c.l.b16 %v11667
    %v11812 = vunpack.c.h.b16 %v11667
    %v11813 = vunpack.c.l.b16 %v11668
    %v11814 = vunpack.c.h.b16 %v11668
    %v11815 = vunpack.c.l.b16 %v11669
    %v11816 = vunpack.c.h.b16 %v11669
    %v11817 = vunpack.c.l.b16 %v11670
    %v11818 = vunpack.c.h.b16 %v11670
    %v11819 = vunpack.c.l.b16 %v11671
    %v11820 = vunpack.c.h.b16 %v11671
    %v11821 = vunpack.c.l.b16 %v11672
    %v11822 = vunpack.c.h.b16 %v11672
    %v11823 = vunpack.c.l.b16 %v11673
    %v11824 = vunpack.c.h.b16 %v11673
    %v11825 = vunpack.c.l.b16 %v11674
    %v11826 = vunpack.c.h.b16 %v11674
    %v11827 = vunpack.c.l.b16 %v11675
    %v11828 = vunpack.c.h.b16 %v11675
    %v11829 = vunpack.c.l.b16 %v11676
    %v11830 = vunpack.c.h.b16 %v11676
    %v11831 = vunpack.c.l.b16 %v11677
    %v11832 = vunpack.c.h.b16 %v11677
    %v11833 = vunpack.c.l.b16 %v11678
    %v11834 = vunpack.c.h.b16 %v11678
    %v11835 = vunpack.c.l.b16 %v11679
    %v11836 = vunpack.c.h.b16 %v11679
    %v11837 = vunpack.c.l.b16 %v11680
    %v11838 = vunpack.c.h.b16 %v11680
    %v11839 = vunpack.c.l.b16 %v11681
    %v11840 = vunpack.c.h.b16 %v11681
    %v11841 = vunpack.c.l.b16 %v11682
    %v11842 = vunpack.c.h.b16 %v11682
    %v11843 = vunpack.c.l.b16 %v11683
    %v11844 = vunpack.c.h.b16 %v11683
    %v11845 = vunpack.c.l.b16 %v11684
    %v11846 = vunpack.c.h.b16 %v11684
    %v11847 = vunpack.c.l.b16 %v11685
    %v11848 = vunpack.c.h.b16 %v11685
    %v11849 = vunpack.c.l.b16 %v11686
    %v11850 = vunpack.c.h.b16 %v11686
    %v11851 = vunpack.c.l.b16 %v11687
    %v11852 = vunpack.c.h.b16 %v11687
    %v11853 = vunpack.c.l.b16 %v11688
    %v11854 = vunpack.c.h.b16 %v11688
    %v11855 = vunpack.c.l.b16 %v11689
    %v11856 = vunpack.c.h.b16 %v11689
    %v11857 = vunpack.c.l.b16 %v11690
    %v11858 = vunpack.c.h.b16 %v11690
    %v11859 = vunpack.c.l.b16 %v11691
    %v11860 = vunpack.c.h.b16 %v11691
    %v11861 = vunpack.c.l.b16 %v11692
    %v11862 = vunpack.c.h.b16 %v11692
    %v11863 = vunpack.c.l.b16 %v11693
    %v11864 = vunpack.c.h.b16 %v11693
    %v11865 = vunpack.c.l.b16 %v11694
    %v11866 = vunpack.c.h.b16 %v11694
    %v11867 = vunpack.c.l.b16 %v11695
    %v11868 = vunpack.c.h.b16 %v11695
    %v11869 = vunpack.c.l.b16 %v11696
    %v11870 = vunpack.c.h.b16 %v11696
    %v11871 = vunpack.c.l.b16 %v11697
    %v11872 = vunpack.c.h.b16 %v11697
    %v11873 = vunpack.c.l.b16 %v11698
    %v11874 = vunpack.c.h.b16 %v11698
    %v11875 = vunpack.c.l.b16 %v11699
    %v11876 = vunpack.c.h.b16 %v11699
    %v11877 = vunpack.c.l.b16 %v11700
    %v11878 = vunpack.c.h.b16 %v11700
    %v11879 = vunpack.c.l.b16 %v11701
    %v11880 = vunpack.c.h.b16 %v11701
    %v11881 = vunpack.c.l.b16 %v11702
    %v11882 = vunpack.c.h.b16 %v11702
    %v11883 = vunpack.c.l.b16 %v11703
    %v11884 = vunpack.c.h.b16 %v11703
    %v11885 = vunpack.c.l.b16 %v11704
    %v11886 = vunpack.c.h.b16 %v11704
    %v11887 = vunpack.c.l.b16 %v11705
    %v11888 = vunpack.c.h.b16 %v11705
    %v11889 = vunpack.c.l.b16 %v11706
    %v11890 = vunpack.c.h.b16 %v11706
    %v11891 = vunpack.c.l.b16 %v11707
    %v11892 = vunpack.c.h.b16 %v11707
    %v11893 = vunpack.c.l.b16 %v11708
    %v11894 = vunpack.c.h.b16 %v11708
    %v11895 = vunpack.c.l.b16 %v11709
    %v11896 = vunpack.c.h.b16 %v11709
    %v11897 = vunpack.c.l.b16 %v11710
    %v11898 = vunpack.c.h.b16 %v11710
    %v11899 = vunpack.c.l.b16 %v11711
    %v11900 = vunpack.c.h.b16 %v11711
    %v11901 = vunpack.c.l.b16 %v11712
    %v11902 = vunpack.c.h.b16 %v11712
    %v11903 = vunpack.c.l.b16 %v11713
    %v11904 = vunpack.c.h.b16 %v11713
    %v11905 = vunpack.c.l.b16 %v11714
    %v11906 = vunpack.c.h.b16 %v11714
    %v11907 = vunpack.c.l.b16 %v11715
    %v11908 = vunpack.c.h.b16 %v11715
    %v11909 = vunpack.c.l.b16 %v11716
    %v11910 = vunpack.c.h.b16 %v11716
    %v11911 = vunpack.c.l.b16 %v11717
    %v11912 = vunpack.c.h.b16 %v11717
    %v11913 = vunpack.c.l.b16 %v11718
    %v11914 = vunpack.c.h.b16 %v11718
    %v11915 = vunpack.c.l.b16 %v11719
    %v11916 = vunpack.c.h.b16 %v11719
    %v11917 = vunpack.c.l.b16 %v11720
    %v11918 = vunpack.c.h.b16 %v11720
    %v11919 = vunpack.c.l.b16 %v11721
    %v11920 = vunpack.c.h.b16 %v11721
    %v11921 = vunpack.c.l.b16 %v11722
    %v11922 = vunpack.c.h.b16 %v11722
    %v11923 = vunpack.c.l.b16 %v11723
    %v11924 = vunpack.c.h.b16 %v11723
    %v11925 = vunpack.c.l.b16 %v11724
    %v11926 = vunpack.c.h.b16 %v11724
    %v11927 = vunpack.c.l.b16 %v11725
    %v11928 = vunpack.c.h.b16 %v11725
    %v11929 = vunpack.c.l.b16 %v11726
    %v11930 = vunpack.c.h.b16 %v11726
    %v11931 = vpack.c.b16 %v11805, %v11803
    %v11932 = vpack.c.b16 %v11806, %v11804
    %v11933 = vpack.c.b16 %v11809, %v11807
    %v11934 = vpack.c.b16 %v11810, %v11808
    %v11935 = vpack.c.b16 %v11813, %v11811
    %v11936 = vpack.c.b16 %v11814, %v11812
    %v11937 = vpack.c.b16 %v11817, %v11815
    %v11938 = vpack.c.b16 %v11818, %v11816
    %v11939 = vpack.c.b16 %v11821, %v11819
    %v11940 = vpack.c.b16 %v11822, %v11820
    %v11941 = vpack.c.b16 %v11825, %v11823
    %v11942 = vpack.c.b16 %v11826, %v11824
    %v11943 = vpack.c.b16 %v11829, %v11827
    %v11944 = vpack.c.b16 %v11830, %v11828
    %v11945 = vpack.c.b16 %v11833, %v11831
    %v11946 = vpack.c.b16 %v11834, %v11832
    %v11947 = vpack.c.b16 %v11837, %v11835
    %v11948 = vpack.c.b16 %v11838, %v11836
    %v11949 = vpack.c.b16 %v11841, %v11839
    %v11950 = vpack.c.b16 %v11842, %v11840
    %v11951 = vpack.c.b16 %v11845, %v11843
    %v11952 = vpack.c.b16 %v11846, %v11844
    %v11953 = vpack.c.b16 %v11849, %v11847
    %v11954 = vpack.c.b16 %v11850, %v11848
    %v11955 = vpack.c.b16 %v11853, %v11851
    %v11956 = vpack.c.b16 %v11854, %v11852
    %v11957 = vpack.c.b16 %v11857, %v11855
    %v11958 = vpack.c.b16 %v11858, %v11856
    %v11959 = vpack.c.b16 %v11861, %v11859
    %v11960 = vpack.c.b16 %v11862, %v11860
    %v11961 = vpack.c.b16 %v11865, %v11863
    %v11962 = vpack.c.b16 %v11866, %v11864
    %v11963 = vpack.c.b16 %v11869, %v11867
    %v11964 = vpack.c.b16 %v11870, %v11868
    %v11965 = vpack.c.b16 %v11873, %v11871
    %v11966 = vpack.c.b16 %v11874, %v11872
    %v11967 = vpack.c.b16 %v11877, %v11875
    %v11968 = vpack.c.b16 %v11878, %v11876
    %v11969 = vpack.c.b16 %v11881, %v11879
    %v11970 = vpack.c.b16 %v11882, %v11880
    %v11971 = vpack.c.b16 %v11885, %v11883
    %v11972 = vpack.c.b16 %v11886, %v11884
    %v11973 = vpack.c.b16 %v11889, %v11887
    %v11974 = vpack.c.b16 %v11890, %v11888
    %v11975 = vpack.c.b16 %v11893, %v11891
    %v11976 = vpack.c.b16 %v11894, %v11892
    %v11977 = vpack.c.b16 %v11897, %v11895
    %v11978 = vpack.c.b16 %v11898, %v11896
    %v11979 = vpack.c.b16 %v11901, %v11899
    %v11980 = vpack.c.b16 %v11902, %v11900
    %v11981 = vpack.c.b16 %v11905, %v11903
    %v11982 = vpack.c.b16 %v11906, %v11904
    %v11983 = vpack.c.b16 %v11909, %v11907
    %v11984 = vpack.c.b16 %v11910, %v11908
    %v11985 = vpack.c.b16 %v11913, %v11911
    %v11986 = vpack.c.b16 %v11914, %v11912
    %v11987 = vpack.c.b16 %v11917, %v11915
    %v11988 = vpack.c.b16 %v11918, %v11916
    %v11989 = vpack.c.b16 %v11921, %v11919
    %v11990 = vpack.c.b16 %v11922, %v11920
    %v11991 = vpack.c.b16 %v11925, %v11923
    %v11992 = vpack.c.b16 %v11926, %v11924
    %v11993 = vpack.c.b16 %v11929, %v11927
    %v11994 = vpack.c.b16 %v11930, %v11928
    %12059 = vmatprep.subr.bf16.mxu0 %v11932
    %12060 = vmatpush1.bf16.msra.mxu0 %v11931
    %12061 = vmatprep.subr.bf16.mxu0 %v11934
    %12062 = vmatpush1.bf16.msra.mxu0 %v11933
    %12063 = vmatprep.subr.bf16.mxu0 %v11936
    %12064 = vmatpush1.bf16.msra.mxu0 %v11935
    %12065 = vmatprep.subr.bf16.mxu0 %v11938
    %12066 = vmatpush1.bf16.msra.mxu0 %v11937
    %12067 = vmatprep.subr.bf16.mxu0 %v11940
    %12068 = vmatpush1.bf16.msra.mxu0 %v11939
    %12069 = vmatprep.subr.bf16.mxu0 %v11942
    %12070 = vmatpush1.bf16.msra.mxu0 %v11941
    %12071 = vmatprep.subr.bf16.mxu0 %v11944
    %12072 = vmatpush1.bf16.msra.mxu0 %v11943
    %12073 = vmatprep.subr.bf16.mxu0 %v11946
    %12074 = vmatpush1.bf16.msra.mxu0 %v11945
    %12075 = vmatprep.subr.bf16.mxu0 %v11948
    %12076 = vmatpush1.bf16.msra.mxu0 %v11947
    %12077 = vmatprep.subr.bf16.mxu0 %v11950
    %12078 = vmatpush1.bf16.msra.mxu0 %v11949
    %12079 = vmatprep.subr.bf16.mxu0 %v11952
    %12080 = vmatpush1.bf16.msra.mxu0 %v11951
    %12081 = vmatprep.subr.bf16.mxu0 %v11954
    %12082 = vmatpush1.bf16.msra.mxu0 %v11953
    %12083 = vmatprep.subr.bf16.mxu0 %v11956
    %12084 = vmatpush1.bf16.msra.mxu0 %v11955
    %12085 = vmatprep.subr.bf16.mxu0 %v11958
    %12086 = vmatpush1.bf16.msra.mxu0 %v11957
    %12087 = vmatprep.subr.bf16.mxu0 %v11960
    %12088 = vmatpush1.bf16.msra.mxu0 %v11959
    %12089 = vmatprep.subr.bf16.mxu0 %v11962
    %12090 = vmatpush1.bf16.msra.mxu0 %v11961
    %12091 = vmatprep.mubr.bf16.mxu0 %v11660
    %12092 = vmatmul.mubr.bf16.gmra.mrb[0].mxu0 %v11659
    %v12093 = vpop.f32.mrb[0].mxu0
    %v12094 = vadd.f32 %v11732, %v12093
    %v12095 = vpop.f32.mrb[0].mxu0
    %v12096 = vadd.f32 %v11736, %v12095
    %v12097 = vpop.f32.mrb[0].mxu0
    %v12098 = vpop.f32.mrb[0].mxu0
    %12099 = vdwg.mxu0
    %12100 = vmatprep.subr.bf16.mxu0 %v11964
    %12101 = vmatpush1.bf16.msra.mxu0 %v11963
    %12102 = vmatprep.subr.bf16.mxu0 %v11966
    %12103 = vmatpush1.bf16.msra.mxu0 %v11965
    %12104 = vmatprep.subr.bf16.mxu0 %v11968
    %12105 = vmatpush1.bf16.msra.mxu0 %v11967
    %12106 = vmatprep.subr.bf16.mxu0 %v11970
    %12107 = vmatpush1.bf16.msra.mxu0 %v11969
    %12108 = vmatprep.subr.bf16.mxu0 %v11972
    %12109 = vmatpush1.bf16.msra.mxu0 %v11971
    %12110 = vmatprep.subr.bf16.mxu0 %v11974
    %12111 = vmatpush1.bf16.msra.mxu0 %v11973
    %12112 = vmatprep.subr.bf16.mxu0 %v11976
    %12113 = vmatpush1.bf16.msra.mxu0 %v11975
    %12114 = vmatprep.subr.bf16.mxu0 %v11978
    %12115 = vmatpush1.bf16.msra.mxu0 %v11977
    %12116 = vmatprep.subr.bf16.mxu0 %v11980
    %12117 = vmatpush1.bf16.msra.mxu0 %v11979
    %12118 = vmatprep.subr.bf16.mxu0 %v11982
    %12119 = vmatpush1.bf16.msra.mxu0 %v11981
    %12120 = vmatprep.subr.bf16.mxu0 %v11984
    %12121 = vmatpush1.bf16.msra.mxu0 %v11983
    %12122 = vmatprep.subr.bf16.mxu0 %v11986
    %12123 = vmatpush1.bf16.msra.mxu0 %v11985
    %12124 = vmatprep.subr.bf16.mxu0 %v11988
    %12125 = vmatpush1.bf16.msra.mxu0 %v11987
    %12126 = vmatprep.subr.bf16.mxu0 %v11990
    %12127 = vmatpush1.bf16.msra.mxu0 %v11989
    %12128 = vmatprep.subr.bf16.mxu0 %v11992
    %12129 = vmatpush1.bf16.msra.mxu0 %v11991
    %12130 = vmatprep.subr.bf16.mxu0 %v11994
    %12131 = vmatpush1.bf16.msra.mxu0 %v11993
    %12132 = vmatprep.mubr.bf16.mxu0 %v11662
    %12133 = vmatmul.mubr.bf16.gmra.mrb[0].mxu0 %v11661
    %v12134 = vpop.f32.mrb[0].mxu0
    %v12135 = vadd.f32 %v12094, %v12134
    %v12136 = vpop.f32.mrb[0].mxu0
    %v12137 = vadd.f32 %v12096, %v12136
    %v12138 = vpop.f32.mrb[0].mxu0
    %v12139 = vpop.f32.mrb[0].mxu0
    %12140 = vdwg.mxu0
    %v12141 = vmax.f32 %v12135, 0.0
    %v12142 = vmax.f32 %v12137, 0.0
    %v12143 = vpack.c.bf16 %v12141, %v12141
    %v12144 = vpack.c.bf16 %v12142, %v12142
    %v12145 = vld [vmem:[#allocation19] sm:$0xf]
    %v12146 = vld [vmem:[#allocation19 + $0x4] sm:$0xf]
    %v12147 = vld [vmem:[#allocation19 + $0x8] sm:$0xf]
    %v12148 = vld [vmem:[#allocation19 + $0xc] sm:$0xf]
    %v12149 = vld [vmem:[#allocation19 + $0x10] sm:$0xf]
    %v12150 = vld [vmem:[#allocation19 + $0x14] sm:$0xf]
    %v12151 = vld [vmem:[#allocation19 + $0x18] sm:$0xf]
    %v12152 = vld [vmem:[#allocation19 + $0x1c] sm:$0xf]
    %v12153 = vld [vmem:[#allocation19 + $0x20] sm:$0xf]
    %v12154 = vld [vmem:[#allocation19 + $0x24] sm:$0xf]
    %v12155 = vld [vmem:[#allocation19 + $0x28] sm:$0xf]
    %v12156 = vld [vmem:[#allocation19 + $0x2c] sm:$0xf]
    %v12157 = vld [vmem:[#allocation19 + $0x30] sm:$0xf]
    %v12158 = vld [vmem:[#allocation19 + $0x34] sm:$0xf]
    %v12159 = vld [vmem:[#allocation19 + $0x38] sm:$0xf]
    %v12160 = vld [vmem:[#allocation19 + $0x3c] sm:$0xf]
    %v12161 = vld [vmem:[#allocation19 + $0x40] sm:$0xf]
    %v12162 = vld [vmem:[#allocation19 + $0x44] sm:$0xf]
    %v12163 = vld [vmem:[#allocation19 + $0x48] sm:$0xf]
    %v12164 = vld [vmem:[#allocation19 + $0x4c] sm:$0xf]
    %v12165 = vld [vmem:[#allocation19 + $0x50] sm:$0xf]
    %v12166 = vld [vmem:[#allocation19 + $0x54] sm:$0xf]
    %v12167 = vld [vmem:[#allocation19 + $0x58] sm:$0xf]
    %v12168 = vld [vmem:[#allocation19 + $0x5c] sm:$0xf]
    %v12169 = vld [vmem:[#allocation19 + $0x60] sm:$0xf]
    %v12170 = vld [vmem:[#allocation19 + $0x64] sm:$0xf]
    %v12171 = vld [vmem:[#allocation19 + $0x68] sm:$0xf]
    %v12172 = vld [vmem:[#allocation19 + $0x6c] sm:$0xf]
    %v12173 = vld [vmem:[#allocation19 + $0x70] sm:$0xf]
    %v12174 = vld [vmem:[#allocation19 + $0x74] sm:$0xf]
    %v12175 = vld [vmem:[#allocation19 + $0x78] sm:$0xf]
    %v12176 = vld [vmem:[#allocation19 + $0x7c] sm:$0xf]
    %v12177 = vld [vmem:[#allocation20] sm:$0x1]
    %v12179 = vlaneseq
    %v12180 = vshrl.u32 %v12179, 7
    %v12181 = vsub.s32 0, %v12180
    %v12182 = vrot.slane %v12177, %v12181
    %v12216 = vunpack.c.l.b16 %v12145
    %v12217 = vunpack.c.l.b16 %v12146
    %v12218 = vunpack.c.l.b16 %v12147
    %v12219 = vunpack.c.l.b16 %v12148
    %v12220 = vunpack.c.l.b16 %v12149
    %v12221 = vunpack.c.l.b16 %v12150
    %v12222 = vunpack.c.l.b16 %v12151
    %v12223 = vunpack.c.l.b16 %v12152
    %v12224 = vunpack.c.l.b16 %v12153
    %v12225 = vunpack.c.l.b16 %v12154
    %v12226 = vunpack.c.l.b16 %v12155
    %v12227 = vunpack.c.l.b16 %v12156
    %v12228 = vunpack.c.l.b16 %v12157
    %v12229 = vunpack.c.l.b16 %v12158
    %v12230 = vunpack.c.l.b16 %v12159
    %v12231 = vunpack.c.l.b16 %v12160
    %v12232 = vunpack.c.l.b16 %v12161
    %v12233 = vunpack.c.l.b16 %v12162
    %v12234 = vunpack.c.l.b16 %v12163
    %v12235 = vunpack.c.l.b16 %v12164
    %v12236 = vunpack.c.l.b16 %v12165
    %v12237 = vunpack.c.l.b16 %v12166
    %v12238 = vunpack.c.l.b16 %v12167
    %v12239 = vunpack.c.l.b16 %v12168
    %v12240 = vunpack.c.l.b16 %v12169
    %v12241 = vunpack.c.l.b16 %v12170
    %v12242 = vunpack.c.l.b16 %v12171
    %v12243 = vunpack.c.l.b16 %v12172
    %v12244 = vunpack.c.l.b16 %v12173
    %v12245 = vunpack.c.l.b16 %v12174
    %v12246 = vunpack.c.l.b16 %v12175
    %v12247 = vunpack.c.l.b16 %v12176
    %v12248 = vpack.c.b16 %v12217, %v12216
    %v12249 = vpack.c.b16 %v12219, %v12218
    %v12250 = vpack.c.b16 %v12221, %v12220
    %v12251 = vpack.c.b16 %v12223, %v12222
    %v12252 = vpack.c.b16 %v12225, %v12224
    %v12253 = vpack.c.b16 %v12227, %v12226
    %v12254 = vpack.c.b16 %v12229, %v12228
    %v12255 = vpack.c.b16 %v12231, %v12230
    %v12256 = vpack.c.b16 %v12233, %v12232
    %v12257 = vpack.c.b16 %v12235, %v12234
    %v12258 = vpack.c.b16 %v12237, %v12236
    %v12259 = vpack.c.b16 %v12239, %v12238
    %v12260 = vpack.c.b16 %v12241, %v12240
    %v12261 = vpack.c.b16 %v12243, %v12242
    %v12262 = vpack.c.b16 %v12245, %v12244
    %v12263 = vpack.c.b16 %v12247, %v12246
    %12280 = vmatprep.subr.bf16.mxu0 0
    %12281 = vmatpush1.bf16.msra.mxu0 %v12248
    %12282 = vmatprep.subr.bf16.mxu0 0
    %12283 = vmatpush1.bf16.msra.mxu0 %v12249
    %12284 = vmatprep.subr.bf16.mxu0 0
    %12285 = vmatpush1.bf16.msra.mxu0 %v12250
    %12286 = vmatprep.subr.bf16.mxu0 0
    %12287 = vmatpush1.bf16.msra.mxu0 %v12251
    %12288 = vmatprep.subr.bf16.mxu0 0
    %12289 = vmatpush1.bf16.msra.mxu0 %v12252
    %12290 = vmatprep.subr.bf16.mxu0 0
    %12291 = vmatpush1.bf16.msra.mxu0 %v12253
    %12292 = vmatprep.subr.bf16.mxu0 0
    %12293 = vmatpush1.bf16.msra.mxu0 %v12254
    %12294 = vmatprep.subr.bf16.mxu0 0
    %12295 = vmatpush1.bf16.msra.mxu0 %v12255
    %12296 = vmatprep.subr.bf16.mxu0 0
    %12297 = vmatpush1.bf16.msra.mxu0 %v12256
    %12298 = vmatprep.subr.bf16.mxu0 0
    %12299 = vmatpush1.bf16.msra.mxu0 %v12257
    %12300 = vmatprep.subr.bf16.mxu0 0
    %12301 = vmatpush1.bf16.msra.mxu0 %v12258
    %12302 = vmatprep.subr.bf16.mxu0 0
    %12303 = vmatpush1.bf16.msra.mxu0 %v12259
    %12304 = vmatprep.subr.bf16.mxu0 0
    %12305 = vmatpush1.bf16.msra.mxu0 %v12260
    %12306 = vmatprep.subr.bf16.mxu0 0
    %12307 = vmatpush1.bf16.msra.mxu0 %v12261
    %12308 = vmatprep.subr.bf16.mxu0 0
    %12309 = vmatpush1.bf16.msra.mxu0 %v12262
    %12310 = vmatprep.subr.bf16.mxu0 0
    %12311 = vmatpush1.bf16.msra.mxu0 %v12263
    %12312 = vmatprep.mubr.bf16.mxu0 %v12144
    %12313 = vmatmul.mubr.bf16.gmra.mrb[0].mxu0 %v12143
    %v12314 = vpop.f32.mrb[0].mxu0
    %v12315 = vadd.f32 %v12182, %v12314
    %v12316 = vpop.f32.mrb[0].mxu0
    %v12317 = vpop.f32.mrb[0].mxu0
    %v12318 = vpop.f32.mrb[0].mxu0
    %12319 = vdwg.mxu0
    %v12320 = vmax.f32 %v12315, 0.0
    %v12321 = vpack.c.bf16 %v12320, %v12320
    %v12322 = vld [vmem:[#allocation22] sm:$0xf]
    %v12323 = vld [vmem:[#allocation22 + $0x4] sm:$0xf]
    %v12324 = vld [vmem:[#allocation22 + $0x8] sm:$0xf]
    %v12325 = vld [vmem:[#allocation22 + $0xc] sm:$0xf]
    %v12326 = vld [vmem:[#allocation22 + $0x10] sm:$0xf]
    %v12327 = vld [vmem:[#allocation22 + $0x14] sm:$0xf]
    %v12328 = vld [vmem:[#allocation22 + $0x18] sm:$0xf]
    %v12329 = vld [vmem:[#allocation22 + $0x1c] sm:$0xf]
    %v12330 = vld [vmem:[#allocation22 + $0x20] sm:$0xf]
    %v12331 = vld [vmem:[#allocation22 + $0x24] sm:$0xf]
    %v12332 = vld [vmem:[#allocation22 + $0x28] sm:$0xf]
    %v12333 = vld [vmem:[#allocation22 + $0x2c] sm:$0xf]
    %v12334 = vld [vmem:[#allocation22 + $0x30] sm:$0xf]
    %v12335 = vld [vmem:[#allocation22 + $0x34] sm:$0xf]
    %v12336 = vld [vmem:[#allocation22 + $0x38] sm:$0xf]
    %v12337 = vld [vmem:[#allocation22 + $0x3c] sm:$0xf]
    %v12338 = vld [vmem:[#allocation23] sm:$0x1]
    %v12340 = vlaneseq
    %v12341 = vshrl.u32 %v12340, 7
    %v12342 = vsub.s32 0, %v12341
    %v12343 = vrot.slane %v12338, %v12342
    %v12361 = vunpack.c.l.b16 %v12322
    %v12362 = vunpack.c.l.b16 %v12323
    %v12363 = vunpack.c.l.b16 %v12324
    %v12364 = vunpack.c.l.b16 %v12325
    %v12365 = vunpack.c.l.b16 %v12326
    %v12366 = vunpack.c.l.b16 %v12327
    %v12367 = vunpack.c.l.b16 %v12328
    %v12368 = vunpack.c.l.b16 %v12329
    %v12369 = vunpack.c.l.b16 %v12330
    %v12370 = vunpack.c.l.b16 %v12331
    %v12371 = vunpack.c.l.b16 %v12332
    %v12372 = vunpack.c.l.b16 %v12333
    %v12373 = vunpack.c.l.b16 %v12334
    %v12374 = vunpack.c.l.b16 %v12335
    %v12375 = vunpack.c.l.b16 %v12336
    %v12376 = vunpack.c.l.b16 %v12337
    %v12377 = vpack.c.b16 %v12362, %v12361
    %v12378 = vpack.c.b16 %v12364, %v12363
    %v12379 = vpack.c.b16 %v12366, %v12365
    %v12380 = vpack.c.b16 %v12368, %v12367
    %v12381 = vpack.c.b16 %v12370, %v12369
    %v12382 = vpack.c.b16 %v12372, %v12371
    %v12383 = vpack.c.b16 %v12374, %v12373
    %v12384 = vpack.c.b16 %v12376, %v12375
    %12393 = vmatprep.subr.bf16.mxu0 0
    %12394 = vmatpush1.bf16.msra.mxu0 %v12377
    %12395 = vmatprep.subr.bf16.mxu0 0
    %12396 = vmatpush1.bf16.msra.mxu0 %v12378
    %12397 = vmatprep.subr.bf16.mxu0 0
    %12398 = vmatpush1.bf16.msra.mxu0 %v12379
    %12399 = vmatprep.subr.bf16.mxu0 0
    %12400 = vmatpush1.bf16.msra.mxu0 %v12380
    %12401 = vmatprep.subr.bf16.mxu0 0
    %12402 = vmatpush1.bf16.msra.mxu0 %v12381
    %12403 = vmatprep.subr.bf16.mxu0 0
    %12404 = vmatpush1.bf16.msra.mxu0 %v12382
    %12405 = vmatprep.subr.bf16.mxu0 0
    %12406 = vmatpush1.bf16.msra.mxu0 %v12383
    %12407 = vmatprep.subr.bf16.mxu0 0
    %12408 = vmatpush1.bf16.msra.mxu0 %v12384
    %12409 = vmatprep.subr.bf16.mxu0 0
    %12410 = vmatpush1.bf16.msra.mxu0 0
    %12411 = vmatprep.subr.bf16.mxu0 0
    %12412 = vmatpush1.bf16.msra.mxu0 0
    %12413 = vmatprep.subr.bf16.mxu0 0
    %12414 = vmatpush1.bf16.msra.mxu0 0
    %12415 = vmatprep.subr.bf16.mxu0 0
    %12416 = vmatpush1.bf16.msra.mxu0 0
    %12417 = vmatprep.subr.bf16.mxu0 0
    %12418 = vmatpush1.bf16.msra.mxu0 0
    %12419 = vmatprep.subr.bf16.mxu0 0
    %12420 = vmatpush1.bf16.msra.mxu0 0
    %12421 = vmatprep.subr.bf16.mxu0 0
    %12422 = vmatpush1.bf16.msra.mxu0 0
    %12423 = vmatprep.subr.bf16.mxu0 0
    %12424 = vmatpush1.bf16.msra.mxu0 0
    %12425 = vmatprep.mubr.bf16.mxu0 0
    %12426 = vmatmul.mubr.bf16.gmra.mrb[0].mxu0 %v12321
    %v12427 = vpop.f32.mrb[0].mxu0
    %v12428 = vadd.f32 %v12343, %v12427
    %v12429 = vpop.f32.mrb[0].mxu0
    %v12430 = vpop.f32.mrb[0].mxu0
    %v12431 = vpop.f32.mrb[0].mxu0
    %12432 = vdwg.mxu0
    %v12433 = vmax.f32 %v12428, 0.0
    %v12434 = vpack.c.bf16 %v12433, %v12433
    %v12435 = vld [vmem:[#allocation25] sm:$0xf]
    %v12436 = vld [vmem:[#allocation25 + $0x4] sm:$0xf]
    %v12437 = vld [vmem:[#allocation25 + $0x8] sm:$0xf]
    %v12438 = vld [vmem:[#allocation25 + $0xc] sm:$0xf]
    %v12439 = vld [vmem:[#allocation25 + $0x10] sm:$0xf]
    %v12440 = vld [vmem:[#allocation25 + $0x14] sm:$0xf]
    %v12441 = vld [vmem:[#allocation25 + $0x18] sm:$0xf]
    %v12442 = vld [vmem:[#allocation25 + $0x1c] sm:$0xf]
    %v12443 = vld [vmem:[#allocation25 + $0x20] sm:$0xf]
    %v12444 = vld [vmem:[#allocation25 + $0x24] sm:$0xf]
    %v12445 = vld [vmem:[#allocation25 + $0x28] sm:$0xf]
    %v12446 = vld [vmem:[#allocation25 + $0x2c] sm:$0xf]
    %v12447 = vld [vmem:[#allocation25 + $0x30] sm:$0xf]
    %v12448 = vld [vmem:[#allocation25 + $0x34] sm:$0xf]
    %v12449 = vld [vmem:[#allocation25 + $0x38] sm:$0xf]
    %v12450 = vld [vmem:[#allocation25 + $0x3c] sm:$0xf]
    %v12451 = vld [vmem:[#allocation26] sm:$0x1]
    %v12453 = vlaneseq
    %v12454 = vshrl.u32 %v12453, 7
    %v12455 = vsub.s32 0, %v12454
    %v12456 = vrot.slane %v12451, %v12455
    %v12474 = vunpack.c.l.b16 %v12435
    %v12475 = vunpack.c.l.b16 %v12436
    %v12476 = vunpack.c.l.b16 %v12437
    %v12477 = vunpack.c.l.b16 %v12438
    %v12478 = vunpack.c.l.b16 %v12439
    %v12479 = vunpack.c.l.b16 %v12440
    %v12480 = vunpack.c.l.b16 %v12441
    %v12481 = vunpack.c.l.b16 %v12442
    %v12482 = vunpack.c.l.b16 %v12443
    %v12483 = vunpack.c.l.b16 %v12444
    %v12484 = vunpack.c.l.b16 %v12445
    %v12485 = vunpack.c.l.b16 %v12446
    %v12486 = vunpack.c.l.b16 %v12447
    %v12487 = vunpack.c.l.b16 %v12448
    %v12488 = vunpack.c.l.b16 %v12449
    %v12489 = vunpack.c.l.b16 %v12450
    %v12490 = vpack.c.b16 %v12475, %v12474
    %v12491 = vpack.c.b16 %v12477, %v12476
    %v12492 = vpack.c.b16 %v12479, %v12478
    %v12493 = vpack.c.b16 %v12481, %v12480
    %v12494 = vpack.c.b16 %v12483, %v12482
    %v12495 = vpack.c.b16 %v12485, %v12484
    %v12496 = vpack.c.b16 %v12487, %v12486
    %v12497 = vpack.c.b16 %v12489, %v12488
    %12506 = vmatprep.subr.bf16.mxu0 0
    %12507 = vmatpush1.bf16.msra.mxu0 %v12490
    %12508 = vmatprep.subr.bf16.mxu0 0
    %12509 = vmatpush1.bf16.msra.mxu0 %v12491
    %12510 = vmatprep.subr.bf16.mxu0 0
    %12511 = vmatpush1.bf16.msra.mxu0 %v12492
    %12512 = vmatprep.subr.bf16.mxu0 0
    %12513 = vmatpush1.bf16.msra.mxu0 %v12493
    %12514 = vmatprep.subr.bf16.mxu0 0
    %12515 = vmatpush1.bf16.msra.mxu0 %v12494
    %12516 = vmatprep.subr.bf16.mxu0 0
    %12517 = vmatpush1.bf16.msra.mxu0 %v12495
    %12518 = vmatprep.subr.bf16.mxu0 0
    %12519 = vmatpush1.bf16.msra.mxu0 %v12496
    %12520 = vmatprep.subr.bf16.mxu0 0
    %12521 = vmatpush1.bf16.msra.mxu0 %v12497
    %12522 = vmatprep.subr.bf16.mxu0 0
    %12523 = vmatpush1.bf16.msra.mxu0 0
    %12524 = vmatprep.subr.bf16.mxu0 0
    %12525 = vmatpush1.bf16.msra.mxu0 0
    %12526 = vmatprep.subr.bf16.mxu0 0
    %12527 = vmatpush1.bf16.msra.mxu0 0
    %12528 = vmatprep.subr.bf16.mxu0 0
    %12529 = vmatpush1.bf16.msra.mxu0 0
    %12530 = vmatprep.subr.bf16.mxu0 0
    %12531 = vmatpush1.bf16.msra.mxu0 0
    %12532 = vmatprep.subr.bf16.mxu0 0
    %12533 = vmatpush1.bf16.msra.mxu0 0
    %12534 = vmatprep.subr.bf16.mxu0 0
    %12535 = vmatpush1.bf16.msra.mxu0 0
    %12536 = vmatprep.subr.bf16.mxu0 0
    %12537 = vmatpush1.bf16.msra.mxu0 0
    %12538 = vmatprep.mubr.bf16.mxu0 0
    %12539 = vmatmul.mubr.bf16.gmra.mrb[0].mxu0 %v12434
    %v12540 = vpop.f32.mrb[0].mxu0
    %v12541 = vadd.f32 %v12456, %v12540
    %v12542 = vpop.f32.mrb[0].mxu0
    %v12543 = vpop.f32.mrb[0].mxu0
    %v12544 = vpop.f32.mrb[0].mxu0
    %12545 = vdwg.mxu0
    %12546 = vst [vmem:[#allocation28] sm:$0xff] %v12541
    // Predicated region
    $region134: #{my_model_forward.1} parent=1 // pred_check
      _
    $region135: #{my_model_forward.1} parent=1 // pred_check_branch
      %12548 = sbr.rel (0) target = $region137
    $region136: #{my_model_forward.1} parent=1 // pred_region
      %s12550 = ssub.s32 128, 128
      %12551 = vsyncadd [#allocation4], %s12550
      %s12553 = sshll.u32 [#allocation28], 4
      %s12554 = int_to_ptr.vmem [resolvable:$true] %s12553
      %12556 = dma.vmem_to_hbm [thread:$0]  %s12554, 128, %s17, [#allocation4]
    $region137: #{my_model_forward.1} parent=1 // pred_fallthru
      _
    // Predicated region
    $region138: #{my_model_forward.1} parent=1 // pred_check
      _
    $region139: #{my_model_forward.1} parent=1 // pred_check_branch
      %12558 = sbr.rel (0) target = $region141
    $region140: #{my_model_forward.1} parent=1 // pred_region
      %12559 = dma.done [#allocation4], 128
    $region141: #{my_model_forward.1} parent=1 // pred_fallthru
      _
    %12560 = vsyncpa [#allocation3], 1
    %12561 = vsyncpa [#allocation6], 1
    %12562 = vsyncpa [#allocation9], 1
    %12563 = vsyncpa [#allocation12], 1
    %12564 = vsyncpa [#allocation15], 1
    %12565 = vsyncpa [#allocation18], 1
    %12566 = vsyncpa [#allocation21], 1
    %12567 = vsyncpa [#allocation24], 1
    %12568 = vsyncpa [#allocation27], 1
    %12569 = vsyncpa [#allocation4], 1

</llo_original>
